<compile_context>
chip_gen: v5e
topology: v5e:2x2
jax: 0.10.0
libtpu: 0.0.40
codegen_flags: <defaults>
</compile_context>

<pallas_src>
import math
import numpy as np
import jax
import jax.numpy as jnp
from jax.experimental import pallas as pl
from jax.experimental.pallas import tpu as pltpu

PATCH = 7            # patch_size
PCA = 12             # pca_components
CLASS_NUM = 9
EXP = 3              # 'e' in Lite_HCNet
B = 2                # example batch size
P_REAL = PATCH * PATCH          # 49
P_PAD = 128                     # lane-padded spatial axis
R_S = B * PCA                   # 24 small-slab rows: (b, d)
C_BIG = EXP * PCA               # 36
R_B = B * C_BIG                 # 72 big-slab rows: (co, b, d)
BN_EPS = 1e-5

DELTAS = list(range(-3, 4))
# Depth-tap block order: |delta|<=1 taps first so the c=3 unit's trimmed
# operator pairs with a prefix of the shared x_cat layout.
BLOCK_DELTAS = (-1, 0, 1, -3, -2, 2, 3)
TAPS2D = [("h", d) for d in DELTAS] + [("w", d) for d in DELTAS if d != 0]
N_TAP2 = len(TAPS2D)            # 13 (delta=0 of the H and W convs merged)

# big-slab row bookkeeping (rows ordered (co, b, d))
CO_ROW = np.array([r // (B * PCA) for r in range(R_B)])
B_ROW = np.array([(r // PCA) % B for r in range(R_B)])
D_ROW = np.array([r % PCA for r in range(R_B)])
CH_ROW = CO_ROW * PCA + D_ROW                   # PyTorch channel index co*12+d
PERM_ROW = B_ROW * C_BIG + CH_ROW               # slab row -> (b, ch) index


# ---------------------------------------------------------------------------
# bsm mask (verbatim port of the reference implementation)
# ---------------------------------------------------------------------------
def bsm(n, d):
    a = [[0] * n for _ in range(n)]
    p = 0
    q = n - 1
    w = int((n + 1) / 2)
    t = 0
    while p < d:
        for i in range(p, q):
            a[p][i] = t
        for i in range(p, q):
            a[i][q] = t
        for i in range(q, p, -1):
            a[q][i] = t
        for i in range(q, p, -1):
            a[i][p] = t
        p += 1
        q -= 1
    while p == d or (p > d and p < q):
        for i in range(p, q):
            a[p][i] = 1
        for i in range(p, q):
            a[i][q] = 1
        for i in range(q, p, -1):
            a[q][i] = 1
        for i in range(q, p, -1):
            a[i][p] = 1
        a[w - 1][w - 1] = 1
        p += 1
        q -= 1
    return np.array(a)


# ---------------------------------------------------------------------------
# Host-side operator builders (plain numpy, parameter setup glue)
# ---------------------------------------------------------------------------
def _shift1d(n, delta):
    m = np.zeros((n, n), np.float32)
    for p in range(n):
        q = p + delta
        if 0 <= q < n:
            m[q, p] = 1.0
    return m


def _sshift(dh, dw):
    # (P_PAD, P_PAD): (X @ S)[:, h*7+w] = X[:, (h+dh)*7 + (w+dw)]  (zero padded)
    s = np.zeros((P_PAD, P_PAD), np.float32)
    s[:P_REAL, :P_REAL] = np.kron(_shift1d(PATCH, dh), _shift1d(PATCH, dw))
    return s


def _ncam_kernel_size(c):
    k = int(abs((math.log(c, 2) + 3) / 2))
    return k if k % 2 else k + 1


def _ncam_dense(w, c):
    # (M v)[j] = sum_t w0[t] v[j+t-pk] + w1[t] v[c-1-(j+t-pk)]
    w = np.asarray(w, np.float32)
    k = w.shape[-1]
    pk = (k - 1) // 2
    m = np.zeros((c, c), np.float32)
    for j in range(c):
        for t in range(k):
            src = j + t - pk
            if 0 <= src < c:
                m[j, src] += w[0, 0, 0, t]
                m[j, c - 1 - src] += w[0, 0, 1, t]
    return m


def _band_small(w):
    return np.kron(np.eye(B, dtype=np.float32), _ncam_dense(w, PCA))


def _band_big(w):
    bd = np.kron(np.eye(B, dtype=np.float32), _ncam_dense(w, C_BIG))
    return bd[np.ix_(PERM_ROW, PERM_ROW)]       # re-order to (co, b, d) rows


# ---------------------------------------------------------------------------
# The fused Pallas kernel (both LE_HCL units inside one program, no grid)
# ---------------------------------------------------------------------------
def lehcl_fused_kernel(x0_ref, dmask_ref, kcat0_ref, kcat1_ref, dscb_ref,
                       band_s_ref, ncb_s_ref, band_b_ref, ncb_b_ref,
                       pools_ref, pw3a_ref, bn3a_ref,
                       dw2w_ref, dw2b_ref, mask2d_ref,
                       pw2m_ref, pw2b_ref, bn2a_ref, out_ref):
    x0 = x0_ref[...]                     # (24, 128) f32, lanes 49.. are zero
    pool_u = pools_ref[0]                # (1, 128) unmasked mean weights (1/49)
    pool_m = pools_ref[1]                # (1, 128) bsm-masked mean weights

    def mmb(a, b):
        # bf16 MXU matmul with f32 accumulation
        return jnp.dot(a.astype(jnp.bfloat16), b.astype(jnp.bfloat16),
                       preferred_element_type=jnp.float32)

    def tree_sum(ts):
        while len(ts) > 1:
            nxt = [ts[i] + ts[i + 1] for i in range(0, len(ts) - 1, 2)]
            if len(ts) % 2:
                nxt.append(ts[-1])
            ts = nxt
        return ts[0]

    def hswish(v):
        return v * jnp.clip(v + 3.0, 0.0, 6.0) * (1.0 / 6.0)

    def ncam(f, band, bias_col, r):
        # Apply the band conv first as ONE well-shaped MXU matmul (N=128),
        # then pool with lane reductions:  (band @ f) @ p == band @ (f @ p).
        bf = mmb(band, f)                                        # (2r, 128)
        q_u = jnp.sum(bf[:r] * pool_u, axis=-1, keepdims=True)   # unmasked pool
        q_m = jnp.sum(bf[r:] * pool_m, axis=-1, keepdims=True)   # masked pool
        s_u = jax.nn.sigmoid(q_u + bias_col[:r])
        s_m = jax.nn.sigmoid(q_m + bias_col[r:])
        at = jax.nn.sigmoid((s_u * s_m - 0.2) * 2.0)
        return f * at

    def row_shift(x, delta):
        # out[r] = x[r + delta], zero filled (depth/batch validity via dmask)
        n, w = x.shape
        if delta == 0:
            return x
        z = jnp.zeros((abs(delta), w), x.dtype)
        if delta > 0:
            return jnp.concatenate([x[delta:, :], z], axis=0)
        return jnp.concatenate([z, x[:n + delta, :]], axis=0)

    # depth-shifted blocks of the shared input (built once, used by both units)
    blocks = [x0]
    for j, dlt in enumerate(BLOCK_DELTAS):
        blocks.append(row_shift(x0, dlt) * dmask_ref[j])
    x_cat = jnp.concatenate(blocks, axis=1)                      # (24, 8*128)

    outs = []
    for u, (pc, kcat_ref) in enumerate(((1, kcat0_ref), (3, kcat1_ref))):
        # ---------------- LE_DSC3D: one wide-K bf16 MXU matmul --------------
        kk = kcat_ref.shape[0]                  # 512 (c=3) or 1024 (c=7)
        y = mmb(x_cat[:, :kk], kcat_ref[...]) + dscb_ref[u]       # (24, 128)

        y = ncam(y, band_s_ref[u, 0], ncb_s_ref[u, 0], R_S)       # NCAM3D(12)
        # pointwise Conv3d 1 -> EXP: replicate rows + per-row affine (VPU)
        y = jnp.concatenate([y, y, y], axis=0)                    # (72, 128)
        pw3a = pw3a_ref[u]
        y = y * pw3a[:, 0:1] + pw3a[:, 1:2]
        y = ncam(y, band_b_ref[u, 0], ncb_b_ref[u, 0], R_B)       # NCAM3D(36)
        bn3a = bn3a_ref[u]
        y = hswish(y * bn3a[:, 0:1] + bn3a[:, 1:2])               # BN3d + hswish

        # ---------------- LE_DSC2D: lane rolls + masks on the XLU/VPU -------
        terms = []
        for j, (kind, dlt) in enumerate(TAPS2D):
            if abs(dlt) > pc:
                continue                        # tap outside this unit's kernel
            if dlt == 0:
                t = y                           # identity tap (H and W merged)
            else:
                shift = (-(PATCH * dlt) if kind == "h" else -dlt) % P_PAD
                t = pltpu.roll(y, shift, axis=1) * mask2d_ref[j]
            terms.append(dw2w_ref[u, j] * t)
        y = tree_sum(terms) + dw2b_ref[u]                         # (72, 128)

        y = ncam(y, band_b_ref[u, 1], ncb_b_ref[u, 1], R_B)       # NCAM2D(36)
        y = mmb(pw2m_ref[u], y) + pw2b_ref[u]                     # pointwise 36->12
        y = ncam(y, band_s_ref[u, 1], ncb_s_ref[u, 1], R_S)       # NCAM2D(12)
        bn2a = bn2a_ref[u]
        y = hswish(y * bn2a[:, 0:1] + bn2a[:, 1:2]) + x0          # BN2d+hswish+res
        outs.append(y)

    out_ref[...] = jnp.concatenate(outs, axis=0)                  # (48, 128)


# ---------------------------------------------------------------------------
# pallas_call wrapper: single launch; head (pool + FC) done in plain XLA
# ---------------------------------------------------------------------------
def lite_hcnet_forward(x, params):
    # x: (B, 1, PCA, H, W) float32 (PyTorch NCDHW) -> lane-padded slab
    x0 = jnp.reshape(x, (R_S, P_REAL)).astype(jnp.float32)
    x0 = jnp.pad(x0, ((0, 0), (0, P_PAD - P_REAL)))

    u = pl.pallas_call(
        lehcl_fused_kernel,
        out_shape=jax.ShapeDtypeStruct((2 * R_S, P_PAD), jnp.float32),
    )(x0, params["dmask"], params["kcat0"], params["kcat1"], params["dscb"],
      params["band_s"], params["ncb_s"], params["band_b"], params["ncb_b"],
      params["pools"], params["pw3a"], params["bn3a"],
      params["dw2w"], params["dw2b"], params["mask2d"],
      params["pw2m"], params["pw2b"], params["bn2a"])

    # Tiny head: global average pool over the 49 real lanes + shared FC.
    pooled = jnp.sum(u[:, :P_REAL], axis=-1) / P_REAL            # (48,)
    pooled = pooled.reshape(2, B, PCA)
    feat = pooled[0] + pooled[1]                                  # (B, 12)
    return feat @ params["fc_w"].T + params["fc_b"]               # (B, 9)


# ---------------------------------------------------------------------------
# Deterministic parameter construction (mirrors the PyTorch module structure)
# ---------------------------------------------------------------------------
def make_unit_params(key, c):
    pc = (c - 1) // 2
    kit = iter(jax.random.split(key, 32))

    def nrm(shape, s=0.2):
        return (np.asarray(jax.random.normal(next(kit), shape,
                                             dtype=jnp.float32)) * s).astype(np.float32)

    # ---- LE_DSC3D(1, EXP, c, c, c) ----
    dw_w, dw_b = nrm((1, 1, c, 1, c)), nrm((1,), 0.05)
    dw1_w, dw1_b = nrm((1, 1, c, c, 1)), nrm((1,), 0.05)
    dw2_w, dw2_b = nrm((1, 1, 1, c, c)), nrm((1,), 0.05)
    pw3_w, pw3_b = nrm((EXP, 1, 1, 1, 1)), nrm((EXP,), 0.05)
    k_s = _ncam_kernel_size(PCA)        # 3
    k_b = _ncam_kernel_size(C_BIG)      # 5
    a1u_w, a1u_b = nrm((1, 1, 2, k_s)), nrm((1,), 0.05)   # NCAM3D(12) conv1d  (unmasked)
    a1m_w, a1m_b = nrm((1, 1, 2, k_s)), nrm((1,), 0.05)   # NCAM3D(12) conv1d1 (masked)
    a2u_w, a2u_b = nrm((1, 1, 2, k_b)), nrm((1,), 0.05)
    a2m_w, a2m_b = nrm((1, 1, 2, k_b)), nrm((1,), 0.05)
    bn3_g, bn3_be = np.ones((EXP,), np.float32), np.zeros((EXP,), np.float32)
    bn3_rm, bn3_rv = np.zeros((EXP,), np.float32), np.ones((EXP,), np.float32)

    # ---- LE_DSC2D(36, 12, c, c) ----
    dwh_w, dwh_b = nrm((C_BIG, 1, c, 1)), nrm((C_BIG,), 0.05)
    dww_w, dww_b = nrm((C_BIG, 1, 1, c)), nrm((C_BIG,), 0.05)
    pw2_w, pw2_b = nrm((PCA, C_BIG, 1, 1)), nrm((PCA,), 0.05)
    c1u_w, c1u_b = nrm((1, 1, 2, k_b)), nrm((1,), 0.05)   # NCAM2D(36)
    c1m_w, c1m_b = nrm((1, 1, 2, k_b)), nrm((1,), 0.05)
    c2u_w, c2u_b = nrm((1, 1, 2, k_s)), nrm((1,), 0.05)   # NCAM2D(12)
    c2m_w, c2m_b = nrm((1, 1, 2, k_s)), nrm((1,), 0.05)
    bn2_g, bn2_be = np.ones((PCA,), np.float32), np.zeros((PCA,), np.float32)
    bn2_rm, bn2_rv = np.zeros((PCA,), np.float32), np.ones((PCA,), np.float32)

    # ---- DSC3D fused RHS operator: [K2 ; K3(delta) for valid deltas] --------
    # Only the taps with |delta| <= pc are emitted (4 blocks for c=3, 8 for c=7).
    k2 = sum(dw2_w[0, 0, 0, th, tw] * _sshift(th - pc, tw - pc)
             for th in range(c) for tw in range(c))
    kblocks = [k2]
    for dlt in BLOCK_DELTAS:
        if abs(dlt) > pc:
            continue
        tc = dlt + pc
        k3 = (sum(dw_w[0, 0, tc, 0, tw] * _sshift(0, tw - pc) for tw in range(c)) +
              sum(dw1_w[0, 0, tc, th, 0] * _sshift(th - pc, 0) for th in range(c)))
        kblocks.append(k3)
    kcat = np.concatenate(kblocks, axis=0).astype(np.float32)
    dscb = np.full((R_S, 1), float(dw_b[0] + dw1_b[0] + dw2_b[0]), np.float32)

    # ---- NCAM fused band operators (vstack un/masked) + bias columns ----
    band_s = np.stack([
        np.concatenate([_band_small(a1u_w), _band_small(a1m_w)], axis=0),
        np.concatenate([_band_small(c2u_w), _band_small(c2m_w)], axis=0)]).astype(np.float32)
    ncb_s = np.stack([
        np.concatenate([np.full((R_S, 1), a1u_b[0], np.float32),
                        np.full((R_S, 1), a1m_b[0], np.float32)], axis=0),
        np.concatenate([np.full((R_S, 1), c2u_b[0], np.float32),
                        np.full((R_S, 1), c2m_b[0], np.float32)], axis=0)]).astype(np.float32)
    band_b = np.stack([
        np.concatenate([_band_big(a2u_w), _band_big(a2m_w)], axis=0),
        np.concatenate([_band_big(c1u_w), _band_big(c1m_w)], axis=0)]).astype(np.float32)
    ncb_b = np.stack([
        np.concatenate([np.full((R_B, 1), a2u_b[0], np.float32),
                        np.full((R_B, 1), a2m_b[0], np.float32)], axis=0),
        np.concatenate([np.full((R_B, 1), c1u_b[0], np.float32),
                        np.full((R_B, 1), c1m_b[0], np.float32)], axis=0)]).astype(np.float32)

    # ---- pointwise Conv3d 1->EXP as per-row affine (rows ordered (co,b,d)) ----
    pw3a = np.stack([pw3_w[CO_ROW, 0, 0, 0, 0], pw3_b[CO_ROW]], axis=1).astype(np.float32)

    bn3_sc = bn3_g / np.sqrt(bn3_rv + BN_EPS)
    bn3_sh = bn3_be - bn3_rm * bn3_sc
    bn3a = np.stack([bn3_sc[CO_ROW], bn3_sh[CO_ROW]], axis=1).astype(np.float32)

    # ---- DSC2D per-tap per-row weights (13 tap slots; invalid taps zero) ----
    dw2w = np.zeros((N_TAP2, R_B, 1), np.float32)
    for j, (kind, dlt) in enumerate(TAPS2D):
        if abs(dlt) > pc:
            continue
        t = dlt + pc
        if kind == "h":
            wvec = dwh_w[CH_ROW, 0, t, 0]
            if dlt == 0:                       # merged identity tap of the W conv
                wvec = wvec + dww_w[CH_ROW, 0, 0, t]
        else:
            wvec = dww_w[CH_ROW, 0, 0, t]
        dw2w[j, :, 0] = wvec
    dw2b = (dwh_b[CH_ROW] + dww_b[CH_ROW])[:, None].astype(np.float32)

    # ---- pointwise Conv2d 36->12 as a left-multiply on the (co,b,d) slab ----
    pw2m = np.zeros((R_S, R_B), np.float32)
    for rout in range(R_S):
        b, dout = rout // PCA, rout % PCA
        for rin in range(R_B):
            if B_ROW[rin] == b:
                pw2m[rout, rin] = pw2_w[dout, CH_ROW[rin], 0, 0]
    pw2b = pw2_b[np.arange(R_S) % PCA][:, None].astype(np.float32)

    bn2_sc = bn2_g / np.sqrt(bn2_rv + BN_EPS)
    bn2_sh = bn2_be - bn2_rm * bn2_sc
    idx = np.arange(R_S) % PCA
    bn2a = np.stack([bn2_sc[idx], bn2_sh[idx]], axis=1).astype(np.float32)

    return dict(kcat=kcat, dscb=dscb, band_s=band_s, ncb_s=ncb_s,
                band_b=band_b, ncb_b=ncb_b, pw3a=pw3a, bn3a=bn3a,
                dw2w=dw2w, dw2b=dw2b, pw2m=pw2m, pw2b=pw2b, bn2a=bn2a)


def make_shared_params():
    # depth-shift validity masks (per delta in BLOCK_DELTAS order, per (b,d) row)
    dmask = np.zeros((len(BLOCK_DELTAS), R_S, 1), np.float32)
    for j, dlt in enumerate(BLOCK_DELTAS):
        for r in range(R_S):
            if 0 <= (r % PCA) + dlt < PCA:
                dmask[j, r, 0] = 1.0
    # pooling rows: row0 = unmasked mean, row1 = bsm-masked mean.
    # (AdaptiveAvgPool2d divides by 49 even on the masked branch.)
    msk = bsm(PATCH, (PATCH - 1) // 2 - 1).astype(np.float32).reshape(-1)
    pools = np.zeros((2, 1, P_PAD), np.float32)
    pools[0, 0, :P_REAL] = 1.0 / P_REAL
    pools[1, 0, :P_REAL] = msk / P_REAL
    # DSC2D per-tap lane validity masks for the rolled slabs
    mask2d = np.zeros((N_TAP2, 1, P_PAD), np.float32)
    for j, (kind, dlt) in enumerate(TAPS2D):
        for h in range(PATCH):
            for w in range(PATCH):
                src = h + dlt if kind == "h" else w + dlt
                if 0 <= src < PATCH:
                    mask2d[j, 0, h * PATCH + w] = 1.0
    return dmask, pools, mask2d


def make_head_params(key):
    k1, k2 = jax.random.split(key)
    fc_w = (np.asarray(jax.random.normal(k1, (CLASS_NUM, PCA),
                                         dtype=jnp.float32)) * 0.2).astype(np.float32)
    fc_b = (np.asarray(jax.random.normal(k2, (CLASS_NUM,),
                                         dtype=jnp.float32)) * 0.05).astype(np.float32)
    return fc_w, fc_b


def build_params(key):
    ku1, ku2, kfc = jax.random.split(key, 3)
    p1 = make_unit_params(ku1, 3)   # LE_HCL(e, e*pca, 3)
    p2 = make_unit_params(ku2, 7)   # LE_HCL(e, e*pca, 7)
    kcat0 = p1.pop("kcat")          # (4*128, 128): zero depth-tap blocks removed
    kcat1 = p2.pop("kcat")          # (8*128, 128)

    bf16_keys = {"band_s", "band_b", "pw2m"}
    params = {}
    for k in p1:
        stacked = np.stack([p1[k], p2[k]], axis=0)
        dt = jnp.bfloat16 if k in bf16_keys else jnp.float32
        params[k] = jnp.asarray(stacked, dt)
    params["kcat0"] = jnp.asarray(kcat0, jnp.bfloat16)
    params["kcat1"] = jnp.asarray(kcat1, jnp.bfloat16)

    dmask, pools, mask2d = make_shared_params()
    fc_w, fc_b = make_head_params(kfc)
    params.update(dmask=jnp.asarray(dmask), pools=jnp.asarray(pools),
                  mask2d=jnp.asarray(mask2d),
                  fc_w=jnp.asarray(fc_w), fc_b=jnp.asarray(fc_b))
    return params


# ---------------------------------------------------------------------------
if __name__ == "__main__":
    key = jax.random.PRNGKey(0)
    kx, kp = jax.random.split(key)

    params = build_params(kp)
    x = jax.random.normal(kx, (B, 1, PCA, PATCH, PATCH), dtype=jnp.float32)

    logits = jax.jit(lite_hcnet_forward)(x, params)
    logits = jax.block_until_ready(logits)

    assert logits.shape == (B, CLASS_NUM)
    assert bool(jnp.all(jnp.isfinite(logits)))
    print("KERNEL_OK")
</pallas_src>

<mosaic_0001>
module attributes {stable_mosaic.version = 11 : i64} {
  func.func @lehcl_fused_kernel(%arg0: memref<24x128xf32, #tpu.memory_space<vmem>>, %arg1: memref<7x24x1xf32, #tpu.memory_space<vmem>>, %arg2: memref<512x128xbf16, #tpu.memory_space<vmem>>, %arg3: memref<1024x128xbf16, #tpu.memory_space<vmem>>, %arg4: memref<2x24x1xf32, #tpu.memory_space<vmem>>, %arg5: memref<2x2x48x24xbf16, #tpu.memory_space<vmem>>, %arg6: memref<2x2x48x1xf32, #tpu.memory_space<vmem>>, %arg7: memref<2x2x144x72xbf16, #tpu.memory_space<vmem>>, %arg8: memref<2x2x144x1xf32, #tpu.memory_space<vmem>>, %arg9: memref<2x1x128xf32, #tpu.memory_space<vmem>>, %arg10: memref<2x72x2xf32, #tpu.memory_space<vmem>>, %arg11: memref<2x72x2xf32, #tpu.memory_space<vmem>>, %arg12: memref<2x13x72x1xf32, #tpu.memory_space<vmem>>, %arg13: memref<2x72x1xf32, #tpu.memory_space<vmem>>, %arg14: memref<13x1x128xf32, #tpu.memory_space<vmem>>, %arg15: memref<2x24x72xbf16, #tpu.memory_space<vmem>>, %arg16: memref<2x24x1xf32, #tpu.memory_space<vmem>>, %arg17: memref<2x24x2xf32, #tpu.memory_space<vmem>>, %arg18: memref<48x128xf32, #tpu.memory_space<vmem>>) attributes {dimension_semantics = [], scalar_prefetch = 0 : i64, scratch_operands = 0 : i64, tpu.core_type = #tpu.core_type<tc>} {
    %c0 = arith.constant 0 : index
    %c0_0 = arith.constant 0 : index
    %0 = vector.load %arg0[%c0, %c0_0] : memref<24x128xf32, #tpu.memory_space<vmem>>, vector<24x128xf32>
    %c0_1 = arith.constant 0 : index
    %c0_2 = arith.constant 0 : index
    %c0_3 = arith.constant 0 : index
    %1 = vector.load %arg9[%c0_1, %c0_2, %c0_3] : memref<2x1x128xf32, #tpu.memory_space<vmem>>, vector<1x1x128xf32>
    %2 = vector.shape_cast %1 : vector<1x1x128xf32> to vector<1x128xf32>
    %c1 = arith.constant 1 : index
    %c0_4 = arith.constant 0 : index
    %c0_5 = arith.constant 0 : index
    %3 = vector.load %arg9[%c1, %c0_4, %c0_5] : memref<2x1x128xf32, #tpu.memory_space<vmem>>, vector<1x1x128xf32>
    %4 = vector.shape_cast %3 : vector<1x1x128xf32> to vector<1x128xf32>
    %cst = arith.constant 0.000000e+00 : f32
    %5 = vector.broadcast %cst : f32 to vector<1x128xf32>
    %6 = vector.extract_strided_slice %0 {offsets = [0, 0], sizes = [23, 128], strides = [1, 1]} : vector<24x128xf32> to vector<23x128xf32>
    %7 = tpu.concatenate %5, %6 in 0 : vector<1x128xf32>, vector<23x128xf32> -> vector<24x128xf32>
    %c0_6 = arith.constant 0 : index
    %c0_7 = arith.constant 0 : index
    %c0_8 = arith.constant 0 : index
    %8 = vector.load %arg1[%c0_6, %c0_7, %c0_8] : memref<7x24x1xf32, #tpu.memory_space<vmem>>, vector<1x24x1xf32>
    %9 = vector.shape_cast %8 : vector<1x24x1xf32> to vector<24x1xf32>
    %10 = vector.broadcast %9 : vector<24x1xf32> to vector<24x128xf32>
    %11 = arith.mulf %7, %10 : vector<24x128xf32>
    %c1_9 = arith.constant 1 : index
    %c0_10 = arith.constant 0 : index
    %c0_11 = arith.constant 0 : index
    %12 = vector.load %arg1[%c1_9, %c0_10, %c0_11] : memref<7x24x1xf32, #tpu.memory_space<vmem>>, vector<1x24x1xf32>
    %13 = vector.shape_cast %12 : vector<1x24x1xf32> to vector<24x1xf32>
    %14 = vector.broadcast %13 : vector<24x1xf32> to vector<24x128xf32>
    %15 = arith.mulf %0, %14 : vector<24x128xf32>
    %cst_12 = arith.constant 0.000000e+00 : f32
    %16 = vector.broadcast %cst_12 : f32 to vector<1x128xf32>
    %17 = vector.extract_strided_slice %0 {offsets = [1, 0], sizes = [23, 128], strides = [1, 1]} : vector<24x128xf32> to vector<23x128xf32>
    %18 = tpu.concatenate %17, %16 in 0 : vector<23x128xf32>, vector<1x128xf32> -> vector<24x128xf32>
    %c2 = arith.constant 2 : index
    %c0_13 = arith.constant 0 : index
    %c0_14 = arith.constant 0 : index
    %19 = vector.load %arg1[%c2, %c0_13, %c0_14] : memref<7x24x1xf32, #tpu.memory_space<vmem>>, vector<1x24x1xf32>
    %20 = vector.shape_cast %19 : vector<1x24x1xf32> to vector<24x1xf32>
    %21 = vector.broadcast %20 : vector<24x1xf32> to vector<24x128xf32>
    %22 = arith.mulf %18, %21 : vector<24x128xf32>
    %cst_15 = arith.constant 0.000000e+00 : f32
    %23 = vector.broadcast %cst_15 : f32 to vector<3x128xf32>
    %24 = vector.extract_strided_slice %0 {offsets = [0, 0], sizes = [21, 128], strides = [1, 1]} : vector<24x128xf32> to vector<21x128xf32>
    %25 = tpu.concatenate %23, %24 in 0 : vector<3x128xf32>, vector<21x128xf32> -> vector<24x128xf32>
    %c3 = arith.constant 3 : index
    %c0_16 = arith.constant 0 : index
    %c0_17 = arith.constant 0 : index
    %26 = vector.load %arg1[%c3, %c0_16, %c0_17] : memref<7x24x1xf32, #tpu.memory_space<vmem>>, vector<1x24x1xf32>
    %27 = vector.shape_cast %26 : vector<1x24x1xf32> to vector<24x1xf32>
    %28 = vector.broadcast %27 : vector<24x1xf32> to vector<24x128xf32>
    %29 = arith.mulf %25, %28 : vector<24x128xf32>
    %cst_18 = arith.constant 0.000000e+00 : f32
    %30 = vector.broadcast %cst_18 : f32 to vector<2x128xf32>
    %31 = vector.extract_strided_slice %0 {offsets = [0, 0], sizes = [22, 128], strides = [1, 1]} : vector<24x128xf32> to vector<22x128xf32>
    %32 = tpu.concatenate %30, %31 in 0 : vector<2x128xf32>, vector<22x128xf32> -> vector<24x128xf32>
    %c4 = arith.constant 4 : index
    %c0_19 = arith.constant 0 : index
    %c0_20 = arith.constant 0 : index
    %33 = vector.load %arg1[%c4, %c0_19, %c0_20] : memref<7x24x1xf32, #tpu.memory_space<vmem>>, vector<1x24x1xf32>
    %34 = vector.shape_cast %33 : vector<1x24x1xf32> to vector<24x1xf32>
    %35 = vector.broadcast %34 : vector<24x1xf32> to vector<24x128xf32>
    %36 = arith.mulf %32, %35 : vector<24x128xf32>
    %cst_21 = arith.constant 0.000000e+00 : f32
    %37 = vector.broadcast %cst_21 : f32 to vector<2x128xf32>
    %38 = vector.extract_strided_slice %0 {offsets = [2, 0], sizes = [22, 128], strides = [1, 1]} : vector<24x128xf32> to vector<22x128xf32>
    %39 = tpu.concatenate %38, %37 in 0 : vector<22x128xf32>, vector<2x128xf32> -> vector<24x128xf32>
    %c5 = arith.constant 5 : index
    %c0_22 = arith.constant 0 : index
    %c0_23 = arith.constant 0 : index
    %40 = vector.load %arg1[%c5, %c0_22, %c0_23] : memref<7x24x1xf32, #tpu.memory_space<vmem>>, vector<1x24x1xf32>
    %41 = vector.shape_cast %40 : vector<1x24x1xf32> to vector<24x1xf32>
    %42 = vector.broadcast %41 : vector<24x1xf32> to vector<24x128xf32>
    %43 = arith.mulf %39, %42 : vector<24x128xf32>
    %cst_24 = arith.constant 0.000000e+00 : f32
    %44 = vector.broadcast %cst_24 : f32 to vector<3x128xf32>
    %45 = vector.extract_strided_slice %0 {offsets = [3, 0], sizes = [21, 128], strides = [1, 1]} : vector<24x128xf32> to vector<21x128xf32>
    %46 = tpu.concatenate %45, %44 in 0 : vector<21x128xf32>, vector<3x128xf32> -> vector<24x128xf32>
    %c6 = arith.constant 6 : index
    %c0_25 = arith.constant 0 : index
    %c0_26 = arith.constant 0 : index
    %47 = vector.load %arg1[%c6, %c0_25, %c0_26] : memref<7x24x1xf32, #tpu.memory_space<vmem>>, vector<1x24x1xf32>
    %48 = vector.shape_cast %47 : vector<1x24x1xf32> to vector<24x1xf32>
    %49 = vector.broadcast %48 : vector<24x1xf32> to vector<24x128xf32>
    %50 = arith.mulf %46, %49 : vector<24x128xf32>
    %51 = tpu.concatenate %0, %11, %15, %22, %29, %36, %43, %50 in 1 : vector<24x128xf32>, vector<24x128xf32>, vector<24x128xf32>, vector<24x128xf32>, vector<24x128xf32>, vector<24x128xf32>, vector<24x128xf32>, vector<24x128xf32> -> vector<24x1024xf32>
    %52 = vector.extract_strided_slice %51 {offsets = [0, 0], sizes = [24, 512], strides = [1, 1]} : vector<24x1024xf32> to vector<24x512xf32>
    %c0_27 = arith.constant 0 : index
    %c0_28 = arith.constant 0 : index
    %53 = vector.load %arg2[%c0_27, %c0_28] : memref<512x128xbf16, #tpu.memory_space<vmem>>, vector<512x128xbf16>
    %54 = arith.truncf %52 : vector<24x512xf32> to vector<24x512xbf16>
    %cst_29 = arith.constant dense<0.000000e+00> : vector<24x128xf32>
    %55 = tpu.matmul %54, %53, %cst_29 {dimension_numbers = #tpu.dot_dimension_numbers<[1], [0], [0], [1], [0, 0, 1, 1], [], []>} : vector<24x512xbf16>, vector<512x128xbf16>, vector<24x128xf32> -> vector<24x128xf32>
    %c0_30 = arith.constant 0 : index
    %c0_31 = arith.constant 0 : index
    %c0_32 = arith.constant 0 : index
    %56 = vector.load %arg4[%c0_30, %c0_31, %c0_32] : memref<2x24x1xf32, #tpu.memory_space<vmem>>, vector<1x24x1xf32>
    %57 = vector.shape_cast %56 : vector<1x24x1xf32> to vector<24x1xf32>
    %58 = vector.broadcast %57 : vector<24x1xf32> to vector<24x128xf32>
    %59 = arith.addf %55, %58 : vector<24x128xf32>
    %c0_33 = arith.constant 0 : index
    %c0_34 = arith.constant 0 : index
    %c0_35 = arith.constant 0 : index
    %c0_36 = arith.constant 0 : index
    %60 = vector.load %arg5[%c0_33, %c0_34, %c0_35, %c0_36] : memref<2x2x48x24xbf16, #tpu.memory_space<vmem>>, vector<1x1x48x24xbf16>
    %61 = vector.shape_cast %60 : vector<1x1x48x24xbf16> to vector<48x24xbf16>
    %c0_37 = arith.constant 0 : index
    %c0_38 = arith.constant 0 : index
    %c0_39 = arith.constant 0 : index
    %c0_40 = arith.constant 0 : index
    %62 = vector.load %arg6[%c0_37, %c0_38, %c0_39, %c0_40] : memref<2x2x48x1xf32, #tpu.memory_space<vmem>>, vector<1x1x48x1xf32>
    %63 = vector.shape_cast %62 : vector<1x1x48x1xf32> to vector<48x1xf32>
    %64 = arith.truncf %59 : vector<24x128xf32> to vector<24x128xbf16>
    %cst_41 = arith.constant dense<0.000000e+00> : vector<48x128xf32>
    %65 = tpu.matmul %61, %64, %cst_41 {dimension_numbers = #tpu.dot_dimension_numbers<[1], [0], [0], [1], [0, 0, 1, 1], [], []>} : vector<48x24xbf16>, vector<24x128xbf16>, vector<48x128xf32> -> vector<48x128xf32>
    %66 = vector.extract_strided_slice %65 {offsets = [0, 0], sizes = [24, 128], strides = [1, 1]} : vector<48x128xf32> to vector<24x128xf32>
    %67 = vector.broadcast %2 : vector<1x128xf32> to vector<24x128xf32>
    %68 = arith.mulf %66, %67 : vector<24x128xf32>
    %cst_42 = arith.constant dense<0.000000e+00> : vector<24xf32>
    %69 = vector.multi_reduction <add>, %68, %cst_42 [1] : vector<24x128xf32> to vector<24xf32>
    %70 = vector.shape_cast %69 : vector<24xf32> to vector<24x1xf32>
    %71 = vector.extract_strided_slice %65 {offsets = [24, 0], sizes = [24, 128], strides = [1, 1]} : vector<48x128xf32> to vector<24x128xf32>
    %72 = vector.broadcast %4 : vector<1x128xf32> to vector<24x128xf32>
    %73 = arith.mulf %71, %72 : vector<24x128xf32>
    %cst_43 = arith.constant dense<0.000000e+00> : vector<24xf32>
    %74 = vector.multi_reduction <add>, %73, %cst_43 [1] : vector<24x128xf32> to vector<24xf32>
    %75 = vector.shape_cast %74 : vector<24xf32> to vector<24x1xf32>
    %76 = vector.extract_strided_slice %63 {offsets = [0, 0], sizes = [24, 1], strides = [1, 1]} : vector<48x1xf32> to vector<24x1xf32>
    %77 = arith.addf %70, %76 : vector<24x1xf32>
    %78 = arith.negf %77 : vector<24x1xf32>
    %79 = math.exp %78 : vector<24x1xf32>
    %cst_44 = arith.constant 1.000000e+00 : f32
    %80 = vector.broadcast %cst_44 : f32 to vector<24x1xf32>
    %81 = arith.addf %80, %79 : vector<24x1xf32>
    %82 = arith.divf %80, %81 : vector<24x1xf32>
    %83 = vector.extract_strided_slice %63 {offsets = [24, 0], sizes = [24, 1], strides = [1, 1]} : vector<48x1xf32> to vector<24x1xf32>
    %84 = arith.addf %75, %83 : vector<24x1xf32>
    %85 = arith.negf %84 : vector<24x1xf32>
    %86 = math.exp %85 : vector<24x1xf32>
    %cst_45 = arith.constant 1.000000e+00 : f32
    %87 = vector.broadcast %cst_45 : f32 to vector<24x1xf32>
    %88 = arith.addf %87, %86 : vector<24x1xf32>
    %89 = arith.divf %87, %88 : vector<24x1xf32>
    %90 = arith.mulf %82, %89 : vector<24x1xf32>
    %cst_46 = arith.constant 2.000000e-01 : f32
    %91 = vector.broadcast %cst_46 : f32 to vector<24x1xf32>
    %92 = arith.subf %90, %91 : vector<24x1xf32>
    %cst_47 = arith.constant 2.000000e+00 : f32
    %93 = vector.broadcast %cst_47 : f32 to vector<24x1xf32>
    %94 = arith.mulf %92, %93 : vector<24x1xf32>
    %95 = arith.negf %94 : vector<24x1xf32>
    %96 = math.exp %95 : vector<24x1xf32>
    %cst_48 = arith.constant 1.000000e+00 : f32
    %97 = vector.broadcast %cst_48 : f32 to vector<24x1xf32>
    %98 = arith.addf %97, %96 : vector<24x1xf32>
    %99 = arith.divf %97, %98 : vector<24x1xf32>
    %100 = vector.broadcast %99 : vector<24x1xf32> to vector<24x128xf32>
    %101 = arith.mulf %59, %100 : vector<24x128xf32>
    %102 = tpu.concatenate %101, %101, %101 in 0 : vector<24x128xf32>, vector<24x128xf32>, vector<24x128xf32> -> vector<72x128xf32>
    %c0_49 = arith.constant 0 : index
    %c0_50 = arith.constant 0 : index
    %c0_51 = arith.constant 0 : index
    %103 = vector.load %arg10[%c0_49, %c0_50, %c0_51] : memref<2x72x2xf32, #tpu.memory_space<vmem>>, vector<1x72x2xf32>
    %104 = vector.shape_cast %103 : vector<1x72x2xf32> to vector<72x2xf32>
    %105 = vector.extract_strided_slice %104 {offsets = [0, 0], sizes = [72, 1], strides = [1, 1]} : vector<72x2xf32> to vector<72x1xf32>
    %106 = vector.broadcast %105 : vector<72x1xf32> to vector<72x128xf32>
    %107 = arith.mulf %102, %106 : vector<72x128xf32>
    %108 = vector.extract_strided_slice %104 {offsets = [0, 1], sizes = [72, 1], strides = [1, 1]} : vector<72x2xf32> to vector<72x1xf32>
    %109 = vector.broadcast %108 : vector<72x1xf32> to vector<72x128xf32>
    %110 = arith.addf %107, %109 : vector<72x128xf32>
    %c0_52 = arith.constant 0 : index
    %c0_53 = arith.constant 0 : index
    %c0_54 = arith.constant 0 : index
    %c0_55 = arith.constant 0 : index
    %111 = vector.load %arg7[%c0_52, %c0_53, %c0_54, %c0_55] : memref<2x2x144x72xbf16, #tpu.memory_space<vmem>>, vector<1x1x144x72xbf16>
    %112 = vector.shape_cast %111 : vector<1x1x144x72xbf16> to vector<144x72xbf16>
    %c0_56 = arith.constant 0 : index
    %c0_57 = arith.constant 0 : index
    %c0_58 = arith.constant 0 : index
    %c0_59 = arith.constant 0 : index
    %113 = vector.load %arg8[%c0_56, %c0_57, %c0_58, %c0_59] : memref<2x2x144x1xf32, #tpu.memory_space<vmem>>, vector<1x1x144x1xf32>
    %114 = vector.shape_cast %113 : vector<1x1x144x1xf32> to vector<144x1xf32>
    %115 = arith.truncf %110 : vector<72x128xf32> to vector<72x128xbf16>
    %cst_60 = arith.constant dense<0.000000e+00> : vector<144x128xf32>
    %116 = tpu.matmul %112, %115, %cst_60 {dimension_numbers = #tpu.dot_dimension_numbers<[1], [0], [0], [1], [0, 0, 1, 1], [], []>} : vector<144x72xbf16>, vector<72x128xbf16>, vector<144x128xf32> -> vector<144x128xf32>
    %117 = vector.extract_strided_slice %116 {offsets = [0, 0], sizes = [72, 128], strides = [1, 1]} : vector<144x128xf32> to vector<72x128xf32>
    %118 = vector.broadcast %2 : vector<1x128xf32> to vector<72x128xf32>
    %119 = arith.mulf %117, %118 : vector<72x128xf32>
    %cst_61 = arith.constant dense<0.000000e+00> : vector<72xf32>
    %120 = vector.multi_reduction <add>, %119, %cst_61 [1] : vector<72x128xf32> to vector<72xf32>
    %121 = vector.shape_cast %120 : vector<72xf32> to vector<72x1xf32>
    %122 = vector.extract_strided_slice %116 {offsets = [72, 0], sizes = [72, 128], strides = [1, 1]} : vector<144x128xf32> to vector<72x128xf32>
    %123 = vector.broadcast %4 : vector<1x128xf32> to vector<72x128xf32>
    %124 = arith.mulf %122, %123 : vector<72x128xf32>
    %cst_62 = arith.constant dense<0.000000e+00> : vector<72xf32>
    %125 = vector.multi_reduction <add>, %124, %cst_62 [1] : vector<72x128xf32> to vector<72xf32>
    %126 = vector.shape_cast %125 : vector<72xf32> to vector<72x1xf32>
    %127 = vector.extract_strided_slice %114 {offsets = [0, 0], sizes = [72, 1], strides = [1, 1]} : vector<144x1xf32> to vector<72x1xf32>
    %128 = arith.addf %121, %127 : vector<72x1xf32>
    %129 = arith.negf %128 : vector<72x1xf32>
    %130 = math.exp %129 : vector<72x1xf32>
    %cst_63 = arith.constant 1.000000e+00 : f32
    %131 = vector.broadcast %cst_63 : f32 to vector<72x1xf32>
    %132 = arith.addf %131, %130 : vector<72x1xf32>
    %133 = arith.divf %131, %132 : vector<72x1xf32>
    %134 = vector.extract_strided_slice %114 {offsets = [72, 0], sizes = [72, 1], strides = [1, 1]} : vector<144x1xf32> to vector<72x1xf32>
    %135 = arith.addf %126, %134 : vector<72x1xf32>
    %136 = arith.negf %135 : vector<72x1xf32>
    %137 = math.exp %136 : vector<72x1xf32>
    %cst_64 = arith.constant 1.000000e+00 : f32
    %138 = vector.broadcast %cst_64 : f32 to vector<72x1xf32>
    %139 = arith.addf %138, %137 : vector<72x1xf32>
    %140 = arith.divf %138, %139 : vector<72x1xf32>
    %141 = arith.mulf %133, %140 : vector<72x1xf32>
    %cst_65 = arith.constant 2.000000e-01 : f32
    %142 = vector.broadcast %cst_65 : f32 to vector<72x1xf32>
    %143 = arith.subf %141, %142 : vector<72x1xf32>
    %cst_66 = arith.constant 2.000000e+00 : f32
    %144 = vector.broadcast %cst_66 : f32 to vector<72x1xf32>
    %145 = arith.mulf %143, %144 : vector<72x1xf32>
    %146 = arith.negf %145 : vector<72x1xf32>
    %147 = math.exp %146 : vector<72x1xf32>
    %cst_67 = arith.constant 1.000000e+00 : f32
    %148 = vector.broadcast %cst_67 : f32 to vector<72x1xf32>
    %149 = arith.addf %148, %147 : vector<72x1xf32>
    %150 = arith.divf %148, %149 : vector<72x1xf32>
    %151 = vector.broadcast %150 : vector<72x1xf32> to vector<72x128xf32>
    %152 = arith.mulf %110, %151 : vector<72x128xf32>
    %c0_68 = arith.constant 0 : index
    %c0_69 = arith.constant 0 : index
    %c0_70 = arith.constant 0 : index
    %153 = vector.load %arg11[%c0_68, %c0_69, %c0_70] : memref<2x72x2xf32, #tpu.memory_space<vmem>>, vector<1x72x2xf32>
    %154 = vector.shape_cast %153 : vector<1x72x2xf32> to vector<72x2xf32>
    %155 = vector.extract_strided_slice %154 {offsets = [0, 0], sizes = [72, 1], strides = [1, 1]} : vector<72x2xf32> to vector<72x1xf32>
    %156 = vector.broadcast %155 : vector<72x1xf32> to vector<72x128xf32>
    %157 = arith.mulf %152, %156 : vector<72x128xf32>
    %158 = vector.extract_strided_slice %154 {offsets = [0, 1], sizes = [72, 1], strides = [1, 1]} : vector<72x2xf32> to vector<72x1xf32>
    %159 = vector.broadcast %158 : vector<72x1xf32> to vector<72x128xf32>
    %160 = arith.addf %157, %159 : vector<72x128xf32>
    %cst_71 = arith.constant 3.000000e+00 : f32
    %161 = vector.broadcast %cst_71 : f32 to vector<72x128xf32>
    %162 = arith.addf %160, %161 : vector<72x128xf32>
    %cst_72 = arith.constant 0.000000e+00 : f32
    %cst_73 = arith.constant 6.000000e+00 : f32
    %163 = vector.broadcast %cst_72 : f32 to vector<72x128xf32>
    %164 = arith.maximumf %163, %162 : vector<72x128xf32>
    %165 = vector.broadcast %cst_73 : f32 to vector<72x128xf32>
    %166 = arith.minimumf %165, %164 : vector<72x128xf32>
    %167 = arith.mulf %160, %166 : vector<72x128xf32>
    %cst_74 = arith.constant 0.166666672 : f32
    %168 = vector.broadcast %cst_74 : f32 to vector<72x128xf32>
    %169 = arith.mulf %167, %168 : vector<72x128xf32>
    %c7_i32 = arith.constant 7 : i32
    %170 = tpu.dynamic_rotate %169 by %c7_i32 dim 1 : vector<72x128xf32>, i32 -> vector<72x128xf32>
    %c2_75 = arith.constant 2 : index
    %c0_76 = arith.constant 0 : index
    %c0_77 = arith.constant 0 : index
    %171 = vector.load %arg14[%c2_75, %c0_76, %c0_77] : memref<13x1x128xf32, #tpu.memory_space<vmem>>, vector<1x1x128xf32>
    %172 = vector.shape_cast %171 : vector<1x1x128xf32> to vector<1x128xf32>
    %173 = vector.broadcast %172 : vector<1x128xf32> to vector<72x128xf32>
    %174 = arith.mulf %170, %173 : vector<72x128xf32>
    %c0_78 = arith.constant 0 : index
    %c2_79 = arith.constant 2 : index
    %c0_80 = arith.constant 0 : index
    %c0_81 = arith.constant 0 : index
    %175 = vector.load %arg12[%c0_78, %c2_79, %c0_80, %c0_81] : memref<2x13x72x1xf32, #tpu.memory_space<vmem>>, vector<1x1x72x1xf32>
    %176 = vector.shape_cast %175 : vector<1x1x72x1xf32> to vector<72x1xf32>
    %177 = vector.broadcast %176 : vector<72x1xf32> to vector<72x128xf32>
    %178 = arith.mulf %177, %174 : vector<72x128xf32>
    %c0_82 = arith.constant 0 : index
    %c3_83 = arith.constant 3 : index
    %c0_84 = arith.constant 0 : index
    %c0_85 = arith.constant 0 : index
    %179 = vector.load %arg12[%c0_82, %c3_83, %c0_84, %c0_85] : memref<2x13x72x1xf32, #tpu.memory_space<vmem>>, vector<1x1x72x1xf32>
    %180 = vector.shape_cast %179 : vector<1x1x72x1xf32> to vector<72x1xf32>
    %181 = vector.broadcast %180 : vector<72x1xf32> to vector<72x128xf32>
    %182 = arith.mulf %181, %169 : vector<72x128xf32>
    %c121_i32 = arith.constant 121 : i32
    %183 = tpu.dynamic_rotate %169 by %c121_i32 dim 1 : vector<72x128xf32>, i32 -> vector<72x128xf32>
    %c4_86 = arith.constant 4 : index
    %c0_87 = arith.constant 0 : index
    %c0_88 = arith.constant 0 : index
    %184 = vector.load %arg14[%c4_86, %c0_87, %c0_88] : memref<13x1x128xf32, #tpu.memory_space<vmem>>, vector<1x1x128xf32>
    %185 = vector.shape_cast %184 : vector<1x1x128xf32> to vector<1x128xf32>
    %186 = vector.broadcast %185 : vector<1x128xf32> to vector<72x128xf32>
    %187 = arith.mulf %183, %186 : vector<72x128xf32>
    %c0_89 = arith.constant 0 : index
    %c4_90 = arith.constant 4 : index
    %c0_91 = arith.constant 0 : index
    %c0_92 = arith.constant 0 : index
    %188 = vector.load %arg12[%c0_89, %c4_90, %c0_91, %c0_92] : memref<2x13x72x1xf32, #tpu.memory_space<vmem>>, vector<1x1x72x1xf32>
    %189 = vector.shape_cast %188 : vector<1x1x72x1xf32> to vector<72x1xf32>
    %190 = vector.broadcast %189 : vector<72x1xf32> to vector<72x128xf32>
    %191 = arith.mulf %190, %187 : vector<72x128xf32>
    %c1_i32 = arith.constant 1 : i32
    %192 = tpu.dynamic_rotate %169 by %c1_i32 dim 1 : vector<72x128xf32>, i32 -> vector<72x128xf32>
    %c9 = arith.constant 9 : index
    %c0_93 = arith.constant 0 : index
    %c0_94 = arith.constant 0 : index
    %193 = vector.load %arg14[%c9, %c0_93, %c0_94] : memref<13x1x128xf32, #tpu.memory_space<vmem>>, vector<1x1x128xf32>
    %194 = vector.shape_cast %193 : vector<1x1x128xf32> to vector<1x128xf32>
    %195 = vector.broadcast %194 : vector<1x128xf32> to vector<72x128xf32>
    %196 = arith.mulf %192, %195 : vector<72x128xf32>
    %c0_95 = arith.constant 0 : index
    %c9_96 = arith.constant 9 : index
    %c0_97 = arith.constant 0 : index
    %c0_98 = arith.constant 0 : index
    %197 = vector.load %arg12[%c0_95, %c9_96, %c0_97, %c0_98] : memref<2x13x72x1xf32, #tpu.memory_space<vmem>>, vector<1x1x72x1xf32>
    %198 = vector.shape_cast %197 : vector<1x1x72x1xf32> to vector<72x1xf32>
    %199 = vector.broadcast %198 : vector<72x1xf32> to vector<72x128xf32>
    %200 = arith.mulf %199, %196 : vector<72x128xf32>
    %c127_i32 = arith.constant 127 : i32
    %201 = tpu.dynamic_rotate %169 by %c127_i32 dim 1 : vector<72x128xf32>, i32 -> vector<72x128xf32>
    %c10 = arith.constant 10 : index
    %c0_99 = arith.constant 0 : index
    %c0_100 = arith.constant 0 : index
    %202 = vector.load %arg14[%c10, %c0_99, %c0_100] : memref<13x1x128xf32, #tpu.memory_space<vmem>>, vector<1x1x128xf32>
    %203 = vector.shape_cast %202 : vector<1x1x128xf32> to vector<1x128xf32>
    %204 = vector.broadcast %203 : vector<1x128xf32> to vector<72x128xf32>
    %205 = arith.mulf %201, %204 : vector<72x128xf32>
    %c0_101 = arith.constant 0 : index
    %c10_102 = arith.constant 10 : index
    %c0_103 = arith.constant 0 : index
    %c0_104 = arith.constant 0 : index
    %206 = vector.load %arg12[%c0_101, %c10_102, %c0_103, %c0_104] : memref<2x13x72x1xf32, #tpu.memory_space<vmem>>, vector<1x1x72x1xf32>
    %207 = vector.shape_cast %206 : vector<1x1x72x1xf32> to vector<72x1xf32>
    %208 = vector.broadcast %207 : vector<72x1xf32> to vector<72x128xf32>
    %209 = arith.mulf %208, %205 : vector<72x128xf32>
    %210 = arith.addf %178, %182 : vector<72x128xf32>
    %211 = arith.addf %191, %200 : vector<72x128xf32>
    %212 = arith.addf %210, %211 : vector<72x128xf32>
    %213 = arith.addf %212, %209 : vector<72x128xf32>
    %c0_105 = arith.constant 0 : index
    %c0_106 = arith.constant 0 : index
    %c0_107 = arith.constant 0 : index
    %214 = vector.load %arg13[%c0_105, %c0_106, %c0_107] : memref<2x72x1xf32, #tpu.memory_space<vmem>>, vector<1x72x1xf32>
    %215 = vector.shape_cast %214 : vector<1x72x1xf32> to vector<72x1xf32>
    %216 = vector.broadcast %215 : vector<72x1xf32> to vector<72x128xf32>
    %217 = arith.addf %213, %216 : vector<72x128xf32>
    %c0_108 = arith.constant 0 : index
    %c1_109 = arith.constant 1 : index
    %c0_110 = arith.constant 0 : index
    %c0_111 = arith.constant 0 : index
    %218 = vector.load %arg7[%c0_108, %c1_109, %c0_110, %c0_111] : memref<2x2x144x72xbf16, #tpu.memory_space<vmem>>, vector<1x1x144x72xbf16>
    %219 = vector.shape_cast %218 : vector<1x1x144x72xbf16> to vector<144x72xbf16>
    %c0_112 = arith.constant 0 : index
    %c1_113 = arith.constant 1 : index
    %c0_114 = arith.constant 0 : index
    %c0_115 = arith.constant 0 : index
    %220 = vector.load %arg8[%c0_112, %c1_113, %c0_114, %c0_115] : memref<2x2x144x1xf32, #tpu.memory_space<vmem>>, vector<1x1x144x1xf32>
    %221 = vector.shape_cast %220 : vector<1x1x144x1xf32> to vector<144x1xf32>
    %222 = arith.truncf %217 : vector<72x128xf32> to vector<72x128xbf16>
    %cst_116 = arith.constant dense<0.000000e+00> : vector<144x128xf32>
    %223 = tpu.matmul %219, %222, %cst_116 {dimension_numbers = #tpu.dot_dimension_numbers<[1], [0], [0], [1], [0, 0, 1, 1], [], []>} : vector<144x72xbf16>, vector<72x128xbf16>, vector<144x128xf32> -> vector<144x128xf32>
    %224 = vector.extract_strided_slice %223 {offsets = [0, 0], sizes = [72, 128], strides = [1, 1]} : vector<144x128xf32> to vector<72x128xf32>
    %225 = vector.broadcast %2 : vector<1x128xf32> to vector<72x128xf32>
    %226 = arith.mulf %224, %225 : vector<72x128xf32>
    %cst_117 = arith.constant dense<0.000000e+00> : vector<72xf32>
    %227 = vector.multi_reduction <add>, %226, %cst_117 [1] : vector<72x128xf32> to vector<72xf32>
    %228 = vector.shape_cast %227 : vector<72xf32> to vector<72x1xf32>
    %229 = vector.extract_strided_slice %223 {offsets = [72, 0], sizes = [72, 128], strides = [1, 1]} : vector<144x128xf32> to vector<72x128xf32>
    %230 = vector.broadcast %4 : vector<1x128xf32> to vector<72x128xf32>
    %231 = arith.mulf %229, %230 : vector<72x128xf32>
    %cst_118 = arith.constant dense<0.000000e+00> : vector<72xf32>
    %232 = vector.multi_reduction <add>, %231, %cst_118 [1] : vector<72x128xf32> to vector<72xf32>
    %233 = vector.shape_cast %232 : vector<72xf32> to vector<72x1xf32>
    %234 = vector.extract_strided_slice %221 {offsets = [0, 0], sizes = [72, 1], strides = [1, 1]} : vector<144x1xf32> to vector<72x1xf32>
    %235 = arith.addf %228, %234 : vector<72x1xf32>
    %236 = arith.negf %235 : vector<72x1xf32>
    %237 = math.exp %236 : vector<72x1xf32>
    %cst_119 = arith.constant 1.000000e+00 : f32
    %238 = vector.broadcast %cst_119 : f32 to vector<72x1xf32>
    %239 = arith.addf %238, %237 : vector<72x1xf32>
    %240 = arith.divf %238, %239 : vector<72x1xf32>
    %241 = vector.extract_strided_slice %221 {offsets = [72, 0], sizes = [72, 1], strides = [1, 1]} : vector<144x1xf32> to vector<72x1xf32>
    %242 = arith.addf %233, %241 : vector<72x1xf32>
    %243 = arith.negf %242 : vector<72x1xf32>
    %244 = math.exp %243 : vector<72x1xf32>
    %cst_120 = arith.constant 1.000000e+00 : f32
    %245 = vector.broadcast %cst_120 : f32 to vector<72x1xf32>
    %246 = arith.addf %245, %244 : vector<72x1xf32>
    %247 = arith.divf %245, %246 : vector<72x1xf32>
    %248 = arith.mulf %240, %247 : vector<72x1xf32>
    %cst_121 = arith.constant 2.000000e-01 : f32
    %249 = vector.broadcast %cst_121 : f32 to vector<72x1xf32>
    %250 = arith.subf %248, %249 : vector<72x1xf32>
    %cst_122 = arith.constant 2.000000e+00 : f32
    %251 = vector.broadcast %cst_122 : f32 to vector<72x1xf32>
    %252 = arith.mulf %250, %251 : vector<72x1xf32>
    %253 = arith.negf %252 : vector<72x1xf32>
    %254 = math.exp %253 : vector<72x1xf32>
    %cst_123 = arith.constant 1.000000e+00 : f32
    %255 = vector.broadcast %cst_123 : f32 to vector<72x1xf32>
    %256 = arith.addf %255, %254 : vector<72x1xf32>
    %257 = arith.divf %255, %256 : vector<72x1xf32>
    %258 = vector.broadcast %257 : vector<72x1xf32> to vector<72x128xf32>
    %259 = arith.mulf %217, %258 : vector<72x128xf32>
    %c0_124 = arith.constant 0 : index
    %c0_125 = arith.constant 0 : index
    %c0_126 = arith.constant 0 : index
    %260 = vector.load %arg15[%c0_124, %c0_125, %c0_126] : memref<2x24x72xbf16, #tpu.memory_space<vmem>>, vector<1x24x72xbf16>
    %261 = vector.shape_cast %260 : vector<1x24x72xbf16> to vector<24x72xbf16>
    %262 = arith.truncf %259 : vector<72x128xf32> to vector<72x128xbf16>
    %cst_127 = arith.constant dense<0.000000e+00> : vector<24x128xf32>
    %263 = tpu.matmul %261, %262, %cst_127 {dimension_numbers = #tpu.dot_dimension_numbers<[1], [0], [0], [1], [0, 0, 1, 1], [], []>} : vector<24x72xbf16>, vector<72x128xbf16>, vector<24x128xf32> -> vector<24x128xf32>
    %c0_128 = arith.constant 0 : index
    %c0_129 = arith.constant 0 : index
    %c0_130 = arith.constant 0 : index
    %264 = vector.load %arg16[%c0_128, %c0_129, %c0_130] : memref<2x24x1xf32, #tpu.memory_space<vmem>>, vector<1x24x1xf32>
    %265 = vector.shape_cast %264 : vector<1x24x1xf32> to vector<24x1xf32>
    %266 = vector.broadcast %265 : vector<24x1xf32> to vector<24x128xf32>
    %267 = arith.addf %263, %266 : vector<24x128xf32>
    %c0_131 = arith.constant 0 : index
    %c1_132 = arith.constant 1 : index
    %c0_133 = arith.constant 0 : index
    %c0_134 = arith.constant 0 : index
    %268 = vector.load %arg5[%c0_131, %c1_132, %c0_133, %c0_134] : memref<2x2x48x24xbf16, #tpu.memory_space<vmem>>, vector<1x1x48x24xbf16>
    %269 = vector.shape_cast %268 : vector<1x1x48x24xbf16> to vector<48x24xbf16>
    %c0_135 = arith.constant 0 : index
    %c1_136 = arith.constant 1 : index
    %c0_137 = arith.constant 0 : index
    %c0_138 = arith.constant 0 : index
    %270 = vector.load %arg6[%c0_135, %c1_136, %c0_137, %c0_138] : memref<2x2x48x1xf32, #tpu.memory_space<vmem>>, vector<1x1x48x1xf32>
    %271 = vector.shape_cast %270 : vector<1x1x48x1xf32> to vector<48x1xf32>
    %272 = arith.truncf %267 : vector<24x128xf32> to vector<24x128xbf16>
    %cst_139 = arith.constant dense<0.000000e+00> : vector<48x128xf32>
    %273 = tpu.matmul %269, %272, %cst_139 {dimension_numbers = #tpu.dot_dimension_numbers<[1], [0], [0], [1], [0, 0, 1, 1], [], []>} : vector<48x24xbf16>, vector<24x128xbf16>, vector<48x128xf32> -> vector<48x128xf32>
    %274 = vector.extract_strided_slice %273 {offsets = [0, 0], sizes = [24, 128], strides = [1, 1]} : vector<48x128xf32> to vector<24x128xf32>
    %275 = vector.broadcast %2 : vector<1x128xf32> to vector<24x128xf32>
    %276 = arith.mulf %274, %275 : vector<24x128xf32>
    %cst_140 = arith.constant dense<0.000000e+00> : vector<24xf32>
    %277 = vector.multi_reduction <add>, %276, %cst_140 [1] : vector<24x128xf32> to vector<24xf32>
    %278 = vector.shape_cast %277 : vector<24xf32> to vector<24x1xf32>
    %279 = vector.extract_strided_slice %273 {offsets = [24, 0], sizes = [24, 128], strides = [1, 1]} : vector<48x128xf32> to vector<24x128xf32>
    %280 = vector.broadcast %4 : vector<1x128xf32> to vector<24x128xf32>
    %281 = arith.mulf %279, %280 : vector<24x128xf32>
    %cst_141 = arith.constant dense<0.000000e+00> : vector<24xf32>
    %282 = vector.multi_reduction <add>, %281, %cst_141 [1] : vector<24x128xf32> to vector<24xf32>
    %283 = vector.shape_cast %282 : vector<24xf32> to vector<24x1xf32>
    %284 = vector.extract_strided_slice %271 {offsets = [0, 0], sizes = [24, 1], strides = [1, 1]} : vector<48x1xf32> to vector<24x1xf32>
    %285 = arith.addf %278, %284 : vector<24x1xf32>
    %286 = arith.negf %285 : vector<24x1xf32>
    %287 = math.exp %286 : vector<24x1xf32>
    %cst_142 = arith.constant 1.000000e+00 : f32
    %288 = vector.broadcast %cst_142 : f32 to vector<24x1xf32>
    %289 = arith.addf %288, %287 : vector<24x1xf32>
    %290 = arith.divf %288, %289 : vector<24x1xf32>
    %291 = vector.extract_strided_slice %271 {offsets = [24, 0], sizes = [24, 1], strides = [1, 1]} : vector<48x1xf32> to vector<24x1xf32>
    %292 = arith.addf %283, %291 : vector<24x1xf32>
    %293 = arith.negf %292 : vector<24x1xf32>
    %294 = math.exp %293 : vector<24x1xf32>
    %cst_143 = arith.constant 1.000000e+00 : f32
    %295 = vector.broadcast %cst_143 : f32 to vector<24x1xf32>
    %296 = arith.addf %295, %294 : vector<24x1xf32>
    %297 = arith.divf %295, %296 : vector<24x1xf32>
    %298 = arith.mulf %290, %297 : vector<24x1xf32>
    %cst_144 = arith.constant 2.000000e-01 : f32
    %299 = vector.broadcast %cst_144 : f32 to vector<24x1xf32>
    %300 = arith.subf %298, %299 : vector<24x1xf32>
    %cst_145 = arith.constant 2.000000e+00 : f32
    %301 = vector.broadcast %cst_145 : f32 to vector<24x1xf32>
    %302 = arith.mulf %300, %301 : vector<24x1xf32>
    %303 = arith.negf %302 : vector<24x1xf32>
    %304 = math.exp %303 : vector<24x1xf32>
    %cst_146 = arith.constant 1.000000e+00 : f32
    %305 = vector.broadcast %cst_146 : f32 to vector<24x1xf32>
    %306 = arith.addf %305, %304 : vector<24x1xf32>
    %307 = arith.divf %305, %306 : vector<24x1xf32>
    %308 = vector.broadcast %307 : vector<24x1xf32> to vector<24x128xf32>
    %309 = arith.mulf %267, %308 : vector<24x128xf32>
    %c0_147 = arith.constant 0 : index
    %c0_148 = arith.constant 0 : index
    %c0_149 = arith.constant 0 : index
    %310 = vector.load %arg17[%c0_147, %c0_148, %c0_149] : memref<2x24x2xf32, #tpu.memory_space<vmem>>, vector<1x24x2xf32>
    %311 = vector.shape_cast %310 : vector<1x24x2xf32> to vector<24x2xf32>
    %312 = vector.extract_strided_slice %311 {offsets = [0, 0], sizes = [24, 1], strides = [1, 1]} : vector<24x2xf32> to vector<24x1xf32>
    %313 = vector.broadcast %312 : vector<24x1xf32> to vector<24x128xf32>
    %314 = arith.mulf %309, %313 : vector<24x128xf32>
    %315 = vector.extract_strided_slice %311 {offsets = [0, 1], sizes = [24, 1], strides = [1, 1]} : vector<24x2xf32> to vector<24x1xf32>
    %316 = vector.broadcast %315 : vector<24x1xf32> to vector<24x128xf32>
    %317 = arith.addf %314, %316 : vector<24x128xf32>
    %cst_150 = arith.constant 3.000000e+00 : f32
    %318 = vector.broadcast %cst_150 : f32 to vector<24x128xf32>
    %319 = arith.addf %317, %318 : vector<24x128xf32>
    %cst_151 = arith.constant 0.000000e+00 : f32
    %cst_152 = arith.constant 6.000000e+00 : f32
    %320 = vector.broadcast %cst_151 : f32 to vector<24x128xf32>
    %321 = arith.maximumf %320, %319 : vector<24x128xf32>
    %322 = vector.broadcast %cst_152 : f32 to vector<24x128xf32>
    %323 = arith.minimumf %322, %321 : vector<24x128xf32>
    %324 = arith.mulf %317, %323 : vector<24x128xf32>
    %cst_153 = arith.constant 0.166666672 : f32
    %325 = vector.broadcast %cst_153 : f32 to vector<24x128xf32>
    %326 = arith.mulf %324, %325 : vector<24x128xf32>
    %327 = arith.addf %326, %0 : vector<24x128xf32>
    %c0_154 = arith.constant 0 : index
    %c0_155 = arith.constant 0 : index
    %328 = vector.load %arg3[%c0_154, %c0_155] : memref<1024x128xbf16, #tpu.memory_space<vmem>>, vector<1024x128xbf16>
    %329 = arith.truncf %51 : vector<24x1024xf32> to vector<24x1024xbf16>
    %cst_156 = arith.constant dense<0.000000e+00> : vector<24x128xf32>
    %330 = tpu.matmul %329, %328, %cst_156 {dimension_numbers = #tpu.dot_dimension_numbers<[1], [0], [0], [1], [0, 0, 1, 1], [], []>} : vector<24x1024xbf16>, vector<1024x128xbf16>, vector<24x128xf32> -> vector<24x128xf32>
    %c1_157 = arith.constant 1 : index
    %c0_158 = arith.constant 0 : index
    %c0_159 = arith.constant 0 : index
    %331 = vector.load %arg4[%c1_157, %c0_158, %c0_159] : memref<2x24x1xf32, #tpu.memory_space<vmem>>, vector<1x24x1xf32>
    %332 = vector.shape_cast %331 : vector<1x24x1xf32> to vector<24x1xf32>
    %333 = vector.broadcast %332 : vector<24x1xf32> to vector<24x128xf32>
    %334 = arith.addf %330, %333 : vector<24x128xf32>
    %c1_160 = arith.constant 1 : index
    %c0_161 = arith.constant 0 : index
    %c0_162 = arith.constant 0 : index
    %c0_163 = arith.constant 0 : index
    %335 = vector.load %arg5[%c1_160, %c0_161, %c0_162, %c0_163] : memref<2x2x48x24xbf16, #tpu.memory_space<vmem>>, vector<1x1x48x24xbf16>
    %336 = vector.shape_cast %335 : vector<1x1x48x24xbf16> to vector<48x24xbf16>
    %c1_164 = arith.constant 1 : index
    %c0_165 = arith.constant 0 : index
    %c0_166 = arith.constant 0 : index
    %c0_167 = arith.constant 0 : index
    %337 = vector.load %arg6[%c1_164, %c0_165, %c0_166, %c0_167] : memref<2x2x48x1xf32, #tpu.memory_space<vmem>>, vector<1x1x48x1xf32>
    %338 = vector.shape_cast %337 : vector<1x1x48x1xf32> to vector<48x1xf32>
    %339 = arith.truncf %334 : vector<24x128xf32> to vector<24x128xbf16>
    %cst_168 = arith.constant dense<0.000000e+00> : vector<48x128xf32>
    %340 = tpu.matmul %336, %339, %cst_168 {dimension_numbers = #tpu.dot_dimension_numbers<[1], [0], [0], [1], [0, 0, 1, 1], [], []>} : vector<48x24xbf16>, vector<24x128xbf16>, vector<48x128xf32> -> vector<48x128xf32>
    %341 = vector.extract_strided_slice %340 {offsets = [0, 0], sizes = [24, 128], strides = [1, 1]} : vector<48x128xf32> to vector<24x128xf32>
    %342 = vector.broadcast %2 : vector<1x128xf32> to vector<24x128xf32>
    %343 = arith.mulf %341, %342 : vector<24x128xf32>
    %cst_169 = arith.constant dense<0.000000e+00> : vector<24xf32>
    %344 = vector.multi_reduction <add>, %343, %cst_169 [1] : vector<24x128xf32> to vector<24xf32>
    %345 = vector.shape_cast %344 : vector<24xf32> to vector<24x1xf32>
    %346 = vector.extract_strided_slice %340 {offsets = [24, 0], sizes = [24, 128], strides = [1, 1]} : vector<48x128xf32> to vector<24x128xf32>
    %347 = vector.broadcast %4 : vector<1x128xf32> to vector<24x128xf32>
    %348 = arith.mulf %346, %347 : vector<24x128xf32>
    %cst_170 = arith.constant dense<0.000000e+00> : vector<24xf32>
    %349 = vector.multi_reduction <add>, %348, %cst_170 [1] : vector<24x128xf32> to vector<24xf32>
    %350 = vector.shape_cast %349 : vector<24xf32> to vector<24x1xf32>
    %351 = vector.extract_strided_slice %338 {offsets = [0, 0], sizes = [24, 1], strides = [1, 1]} : vector<48x1xf32> to vector<24x1xf32>
    %352 = arith.addf %345, %351 : vector<24x1xf32>
    %353 = arith.negf %352 : vector<24x1xf32>
    %354 = math.exp %353 : vector<24x1xf32>
    %cst_171 = arith.constant 1.000000e+00 : f32
    %355 = vector.broadcast %cst_171 : f32 to vector<24x1xf32>
    %356 = arith.addf %355, %354 : vector<24x1xf32>
    %357 = arith.divf %355, %356 : vector<24x1xf32>
    %358 = vector.extract_strided_slice %338 {offsets = [24, 0], sizes = [24, 1], strides = [1, 1]} : vector<48x1xf32> to vector<24x1xf32>
    %359 = arith.addf %350, %358 : vector<24x1xf32>
    %360 = arith.negf %359 : vector<24x1xf32>
    %361 = math.exp %360 : vector<24x1xf32>
    %cst_172 = arith.constant 1.000000e+00 : f32
    %362 = vector.broadcast %cst_172 : f32 to vector<24x1xf32>
    %363 = arith.addf %362, %361 : vector<24x1xf32>
    %364 = arith.divf %362, %363 : vector<24x1xf32>
    %365 = arith.mulf %357, %364 : vector<24x1xf32>
    %cst_173 = arith.constant 2.000000e-01 : f32
    %366 = vector.broadcast %cst_173 : f32 to vector<24x1xf32>
    %367 = arith.subf %365, %366 : vector<24x1xf32>
    %cst_174 = arith.constant 2.000000e+00 : f32
    %368 = vector.broadcast %cst_174 : f32 to vector<24x1xf32>
    %369 = arith.mulf %367, %368 : vector<24x1xf32>
    %370 = arith.negf %369 : vector<24x1xf32>
    %371 = math.exp %370 : vector<24x1xf32>
    %cst_175 = arith.constant 1.000000e+00 : f32
    %372 = vector.broadcast %cst_175 : f32 to vector<24x1xf32>
    %373 = arith.addf %372, %371 : vector<24x1xf32>
    %374 = arith.divf %372, %373 : vector<24x1xf32>
    %375 = vector.broadcast %374 : vector<24x1xf32> to vector<24x128xf32>
    %376 = arith.mulf %334, %375 : vector<24x128xf32>
    %377 = tpu.concatenate %376, %376, %376 in 0 : vector<24x128xf32>, vector<24x128xf32>, vector<24x128xf32> -> vector<72x128xf32>
    %c1_176 = arith.constant 1 : index
    %c0_177 = arith.constant 0 : index
    %c0_178 = arith.constant 0 : index
    %378 = vector.load %arg10[%c1_176, %c0_177, %c0_178] : memref<2x72x2xf32, #tpu.memory_space<vmem>>, vector<1x72x2xf32>
    %379 = vector.shape_cast %378 : vector<1x72x2xf32> to vector<72x2xf32>
    %380 = vector.extract_strided_slice %379 {offsets = [0, 0], sizes = [72, 1], strides = [1, 1]} : vector<72x2xf32> to vector<72x1xf32>
    %381 = vector.broadcast %380 : vector<72x1xf32> to vector<72x128xf32>
    %382 = arith.mulf %377, %381 : vector<72x128xf32>
    %383 = vector.extract_strided_slice %379 {offsets = [0, 1], sizes = [72, 1], strides = [1, 1]} : vector<72x2xf32> to vector<72x1xf32>
    %384 = vector.broadcast %383 : vector<72x1xf32> to vector<72x128xf32>
    %385 = arith.addf %382, %384 : vector<72x128xf32>
    %c1_179 = arith.constant 1 : index
    %c0_180 = arith.constant 0 : index
    %c0_181 = arith.constant 0 : index
    %c0_182 = arith.constant 0 : index
    %386 = vector.load %arg7[%c1_179, %c0_180, %c0_181, %c0_182] : memref<2x2x144x72xbf16, #tpu.memory_space<vmem>>, vector<1x1x144x72xbf16>
    %387 = vector.shape_cast %386 : vector<1x1x144x72xbf16> to vector<144x72xbf16>
    %c1_183 = arith.constant 1 : index
    %c0_184 = arith.constant 0 : index
    %c0_185 = arith.constant 0 : index
    %c0_186 = arith.constant 0 : index
    %388 = vector.load %arg8[%c1_183, %c0_184, %c0_185, %c0_186] : memref<2x2x144x1xf32, #tpu.memory_space<vmem>>, vector<1x1x144x1xf32>
    %389 = vector.shape_cast %388 : vector<1x1x144x1xf32> to vector<144x1xf32>
    %390 = arith.truncf %385 : vector<72x128xf32> to vector<72x128xbf16>
    %cst_187 = arith.constant dense<0.000000e+00> : vector<144x128xf32>
    %391 = tpu.matmul %387, %390, %cst_187 {dimension_numbers = #tpu.dot_dimension_numbers<[1], [0], [0], [1], [0, 0, 1, 1], [], []>} : vector<144x72xbf16>, vector<72x128xbf16>, vector<144x128xf32> -> vector<144x128xf32>
    %392 = vector.extract_strided_slice %391 {offsets = [0, 0], sizes = [72, 128], strides = [1, 1]} : vector<144x128xf32> to vector<72x128xf32>
    %393 = vector.broadcast %2 : vector<1x128xf32> to vector<72x128xf32>
    %394 = arith.mulf %392, %393 : vector<72x128xf32>
    %cst_188 = arith.constant dense<0.000000e+00> : vector<72xf32>
    %395 = vector.multi_reduction <add>, %394, %cst_188 [1] : vector<72x128xf32> to vector<72xf32>
    %396 = vector.shape_cast %395 : vector<72xf32> to vector<72x1xf32>
    %397 = vector.extract_strided_slice %391 {offsets = [72, 0], sizes = [72, 128], strides = [1, 1]} : vector<144x128xf32> to vector<72x128xf32>
    %398 = vector.broadcast %4 : vector<1x128xf32> to vector<72x128xf32>
    %399 = arith.mulf %397, %398 : vector<72x128xf32>
    %cst_189 = arith.constant dense<0.000000e+00> : vector<72xf32>
    %400 = vector.multi_reduction <add>, %399, %cst_189 [1] : vector<72x128xf32> to vector<72xf32>
    %401 = vector.shape_cast %400 : vector<72xf32> to vector<72x1xf32>
    %402 = vector.extract_strided_slice %389 {offsets = [0, 0], sizes = [72, 1], strides = [1, 1]} : vector<144x1xf32> to vector<72x1xf32>
    %403 = arith.addf %396, %402 : vector<72x1xf32>
    %404 = arith.negf %403 : vector<72x1xf32>
    %405 = math.exp %404 : vector<72x1xf32>
    %cst_190 = arith.constant 1.000000e+00 : f32
    %406 = vector.broadcast %cst_190 : f32 to vector<72x1xf32>
    %407 = arith.addf %406, %405 : vector<72x1xf32>
    %408 = arith.divf %406, %407 : vector<72x1xf32>
    %409 = vector.extract_strided_slice %389 {offsets = [72, 0], sizes = [72, 1], strides = [1, 1]} : vector<144x1xf32> to vector<72x1xf32>
    %410 = arith.addf %401, %409 : vector<72x1xf32>
    %411 = arith.negf %410 : vector<72x1xf32>
    %412 = math.exp %411 : vector<72x1xf32>
    %cst_191 = arith.constant 1.000000e+00 : f32
    %413 = vector.broadcast %cst_191 : f32 to vector<72x1xf32>
    %414 = arith.addf %413, %412 : vector<72x1xf32>
    %415 = arith.divf %413, %414 : vector<72x1xf32>
    %416 = arith.mulf %408, %415 : vector<72x1xf32>
    %cst_192 = arith.constant 2.000000e-01 : f32
    %417 = vector.broadcast %cst_192 : f32 to vector<72x1xf32>
    %418 = arith.subf %416, %417 : vector<72x1xf32>
    %cst_193 = arith.constant 2.000000e+00 : f32
    %419 = vector.broadcast %cst_193 : f32 to vector<72x1xf32>
    %420 = arith.mulf %418, %419 : vector<72x1xf32>
    %421 = arith.negf %420 : vector<72x1xf32>
    %422 = math.exp %421 : vector<72x1xf32>
    %cst_194 = arith.constant 1.000000e+00 : f32
    %423 = vector.broadcast %cst_194 : f32 to vector<72x1xf32>
    %424 = arith.addf %423, %422 : vector<72x1xf32>
    %425 = arith.divf %423, %424 : vector<72x1xf32>
    %426 = vector.broadcast %425 : vector<72x1xf32> to vector<72x128xf32>
    %427 = arith.mulf %385, %426 : vector<72x128xf32>
    %c1_195 = arith.constant 1 : index
    %c0_196 = arith.constant 0 : index
    %c0_197 = arith.constant 0 : index
    %428 = vector.load %arg11[%c1_195, %c0_196, %c0_197] : memref<2x72x2xf32, #tpu.memory_space<vmem>>, vector<1x72x2xf32>
    %429 = vector.shape_cast %428 : vector<1x72x2xf32> to vector<72x2xf32>
    %430 = vector.extract_strided_slice %429 {offsets = [0, 0], sizes = [72, 1], strides = [1, 1]} : vector<72x2xf32> to vector<72x1xf32>
    %431 = vector.broadcast %430 : vector<72x1xf32> to vector<72x128xf32>
    %432 = arith.mulf %427, %431 : vector<72x128xf32>
    %433 = vector.extract_strided_slice %429 {offsets = [0, 1], sizes = [72, 1], strides = [1, 1]} : vector<72x2xf32> to vector<72x1xf32>
    %434 = vector.broadcast %433 : vector<72x1xf32> to vector<72x128xf32>
    %435 = arith.addf %432, %434 : vector<72x128xf32>
    %cst_198 = arith.constant 3.000000e+00 : f32
    %436 = vector.broadcast %cst_198 : f32 to vector<72x128xf32>
    %437 = arith.addf %435, %436 : vector<72x128xf32>
    %cst_199 = arith.constant 0.000000e+00 : f32
    %cst_200 = arith.constant 6.000000e+00 : f32
    %438 = vector.broadcast %cst_199 : f32 to vector<72x128xf32>
    %439 = arith.maximumf %438, %437 : vector<72x128xf32>
    %440 = vector.broadcast %cst_200 : f32 to vector<72x128xf32>
    %441 = arith.minimumf %440, %439 : vector<72x128xf32>
    %442 = arith.mulf %435, %441 : vector<72x128xf32>
    %cst_201 = arith.constant 0.166666672 : f32
    %443 = vector.broadcast %cst_201 : f32 to vector<72x128xf32>
    %444 = arith.mulf %442, %443 : vector<72x128xf32>
    %c21_i32 = arith.constant 21 : i32
    %445 = tpu.dynamic_rotate %444 by %c21_i32 dim 1 : vector<72x128xf32>, i32 -> vector<72x128xf32>
    %c0_202 = arith.constant 0 : index
    %c0_203 = arith.constant 0 : index
    %c0_204 = arith.constant 0 : index
    %446 = vector.load %arg14[%c0_202, %c0_203, %c0_204] : memref<13x1x128xf32, #tpu.memory_space<vmem>>, vector<1x1x128xf32>
    %447 = vector.shape_cast %446 : vector<1x1x128xf32> to vector<1x128xf32>
    %448 = vector.broadcast %447 : vector<1x128xf32> to vector<72x128xf32>
    %449 = arith.mulf %445, %448 : vector<72x128xf32>
    %c1_205 = arith.constant 1 : index
    %c0_206 = arith.constant 0 : index
    %c0_207 = arith.constant 0 : index
    %c0_208 = arith.constant 0 : index
    %450 = vector.load %arg12[%c1_205, %c0_206, %c0_207, %c0_208] : memref<2x13x72x1xf32, #tpu.memory_space<vmem>>, vector<1x1x72x1xf32>
    %451 = vector.shape_cast %450 : vector<1x1x72x1xf32> to vector<72x1xf32>
    %452 = vector.broadcast %451 : vector<72x1xf32> to vector<72x128xf32>
    %453 = arith.mulf %452, %449 : vector<72x128xf32>
    %c14_i32 = arith.constant 14 : i32
    %454 = tpu.dynamic_rotate %444 by %c14_i32 dim 1 : vector<72x128xf32>, i32 -> vector<72x128xf32>
    %c1_209 = arith.constant 1 : index
    %c0_210 = arith.constant 0 : index
    %c0_211 = arith.constant 0 : index
    %455 = vector.load %arg14[%c1_209, %c0_210, %c0_211] : memref<13x1x128xf32, #tpu.memory_space<vmem>>, vector<1x1x128xf32>
    %456 = vector.shape_cast %455 : vector<1x1x128xf32> to vector<1x128xf32>
    %457 = vector.broadcast %456 : vector<1x128xf32> to vector<72x128xf32>
    %458 = arith.mulf %454, %457 : vector<72x128xf32>
    %c1_212 = arith.constant 1 : index
    %c1_213 = arith.constant 1 : index
    %c0_214 = arith.constant 0 : index
    %c0_215 = arith.constant 0 : index
    %459 = vector.load %arg12[%c1_212, %c1_213, %c0_214, %c0_215] : memref<2x13x72x1xf32, #tpu.memory_space<vmem>>, vector<1x1x72x1xf32>
    %460 = vector.shape_cast %459 : vector<1x1x72x1xf32> to vector<72x1xf32>
    %461 = vector.broadcast %460 : vector<72x1xf32> to vector<72x128xf32>
    %462 = arith.mulf %461, %458 : vector<72x128xf32>
    %c7_i32_216 = arith.constant 7 : i32
    %463 = tpu.dynamic_rotate %444 by %c7_i32_216 dim 1 : vector<72x128xf32>, i32 -> vector<72x128xf32>
    %c2_217 = arith.constant 2 : index
    %c0_218 = arith.constant 0 : index
    %c0_219 = arith.constant 0 : index
    %464 = vector.load %arg14[%c2_217, %c0_218, %c0_219] : memref<13x1x128xf32, #tpu.memory_space<vmem>>, vector<1x1x128xf32>
    %465 = vector.shape_cast %464 : vector<1x1x128xf32> to vector<1x128xf32>
    %466 = vector.broadcast %465 : vector<1x128xf32> to vector<72x128xf32>
    %467 = arith.mulf %463, %466 : vector<72x128xf32>
    %c1_220 = arith.constant 1 : index
    %c2_221 = arith.constant 2 : index
    %c0_222 = arith.constant 0 : index
    %c0_223 = arith.constant 0 : index
    %468 = vector.load %arg12[%c1_220, %c2_221, %c0_222, %c0_223] : memref<2x13x72x1xf32, #tpu.memory_space<vmem>>, vector<1x1x72x1xf32>
    %469 = vector.shape_cast %468 : vector<1x1x72x1xf32> to vector<72x1xf32>
    %470 = vector.broadcast %469 : vector<72x1xf32> to vector<72x128xf32>
    %471 = arith.mulf %470, %467 : vector<72x128xf32>
    %c1_224 = arith.constant 1 : index
    %c3_225 = arith.constant 3 : index
    %c0_226 = arith.constant 0 : index
    %c0_227 = arith.constant 0 : index
    %472 = vector.load %arg12[%c1_224, %c3_225, %c0_226, %c0_227] : memref<2x13x72x1xf32, #tpu.memory_space<vmem>>, vector<1x1x72x1xf32>
    %473 = vector.shape_cast %472 : vector<1x1x72x1xf32> to vector<72x1xf32>
    %474 = vector.broadcast %473 : vector<72x1xf32> to vector<72x128xf32>
    %475 = arith.mulf %474, %444 : vector<72x128xf32>
    %c121_i32_228 = arith.constant 121 : i32
    %476 = tpu.dynamic_rotate %444 by %c121_i32_228 dim 1 : vector<72x128xf32>, i32 -> vector<72x128xf32>
    %c4_229 = arith.constant 4 : index
    %c0_230 = arith.constant 0 : index
    %c0_231 = arith.constant 0 : index
    %477 = vector.load %arg14[%c4_229, %c0_230, %c0_231] : memref<13x1x128xf32, #tpu.memory_space<vmem>>, vector<1x1x128xf32>
    %478 = vector.shape_cast %477 : vector<1x1x128xf32> to vector<1x128xf32>
    %479 = vector.broadcast %478 : vector<1x128xf32> to vector<72x128xf32>
    %480 = arith.mulf %476, %479 : vector<72x128xf32>
    %c1_232 = arith.constant 1 : index
    %c4_233 = arith.constant 4 : index
    %c0_234 = arith.constant 0 : index
    %c0_235 = arith.constant 0 : index
    %481 = vector.load %arg12[%c1_232, %c4_233, %c0_234, %c0_235] : memref<2x13x72x1xf32, #tpu.memory_space<vmem>>, vector<1x1x72x1xf32>
    %482 = vector.shape_cast %481 : vector<1x1x72x1xf32> to vector<72x1xf32>
    %483 = vector.broadcast %482 : vector<72x1xf32> to vector<72x128xf32>
    %484 = arith.mulf %483, %480 : vector<72x128xf32>
    %c114_i32 = arith.constant 114 : i32
    %485 = tpu.dynamic_rotate %444 by %c114_i32 dim 1 : vector<72x128xf32>, i32 -> vector<72x128xf32>
    %c5_236 = arith.constant 5 : index
    %c0_237 = arith.constant 0 : index
    %c0_238 = arith.constant 0 : index
    %486 = vector.load %arg14[%c5_236, %c0_237, %c0_238] : memref<13x1x128xf32, #tpu.memory_space<vmem>>, vector<1x1x128xf32>
    %487 = vector.shape_cast %486 : vector<1x1x128xf32> to vector<1x128xf32>
    %488 = vector.broadcast %487 : vector<1x128xf32> to vector<72x128xf32>
    %489 = arith.mulf %485, %488 : vector<72x128xf32>
    %c1_239 = arith.constant 1 : index
    %c5_240 = arith.constant 5 : index
    %c0_241 = arith.constant 0 : index
    %c0_242 = arith.constant 0 : index
    %490 = vector.load %arg12[%c1_239, %c5_240, %c0_241, %c0_242] : memref<2x13x72x1xf32, #tpu.memory_space<vmem>>, vector<1x1x72x1xf32>
    %491 = vector.shape_cast %490 : vector<1x1x72x1xf32> to vector<72x1xf32>
    %492 = vector.broadcast %491 : vector<72x1xf32> to vector<72x128xf32>
    %493 = arith.mulf %492, %489 : vector<72x128xf32>
    %c107_i32 = arith.constant 107 : i32
    %494 = tpu.dynamic_rotate %444 by %c107_i32 dim 1 : vector<72x128xf32>, i32 -> vector<72x128xf32>
    %c6_243 = arith.constant 6 : index
    %c0_244 = arith.constant 0 : index
    %c0_245 = arith.constant 0 : index
    %495 = vector.load %arg14[%c6_243, %c0_244, %c0_245] : memref<13x1x128xf32, #tpu.memory_space<vmem>>, vector<1x1x128xf32>
    %496 = vector.shape_cast %495 : vector<1x1x128xf32> to vector<1x128xf32>
    %497 = vector.broadcast %496 : vector<1x128xf32> to vector<72x128xf32>
    %498 = arith.mulf %494, %497 : vector<72x128xf32>
    %c1_246 = arith.constant 1 : index
    %c6_247 = arith.constant 6 : index
    %c0_248 = arith.constant 0 : index
    %c0_249 = arith.constant 0 : index
    %499 = vector.load %arg12[%c1_246, %c6_247, %c0_248, %c0_249] : memref<2x13x72x1xf32, #tpu.memory_space<vmem>>, vector<1x1x72x1xf32>
    %500 = vector.shape_cast %499 : vector<1x1x72x1xf32> to vector<72x1xf32>
    %501 = vector.broadcast %500 : vector<72x1xf32> to vector<72x128xf32>
    %502 = arith.mulf %501, %498 : vector<72x128xf32>
    %c3_i32 = arith.constant 3 : i32
    %503 = tpu.dynamic_rotate %444 by %c3_i32 dim 1 : vector<72x128xf32>, i32 -> vector<72x128xf32>
    %c7 = arith.constant 7 : index
    %c0_250 = arith.constant 0 : index
    %c0_251 = arith.constant 0 : index
    %504 = vector.load %arg14[%c7, %c0_250, %c0_251] : memref<13x1x128xf32, #tpu.memory_space<vmem>>, vector<1x1x128xf32>
    %505 = vector.shape_cast %504 : vector<1x1x128xf32> to vector<1x128xf32>
    %506 = vector.broadcast %505 : vector<1x128xf32> to vector<72x128xf32>
    %507 = arith.mulf %503, %506 : vector<72x128xf32>
    %c1_252 = arith.constant 1 : index
    %c7_253 = arith.constant 7 : index
    %c0_254 = arith.constant 0 : index
    %c0_255 = arith.constant 0 : index
    %508 = vector.load %arg12[%c1_252, %c7_253, %c0_254, %c0_255] : memref<2x13x72x1xf32, #tpu.memory_space<vmem>>, vector<1x1x72x1xf32>
    %509 = vector.shape_cast %508 : vector<1x1x72x1xf32> to vector<72x1xf32>
    %510 = vector.broadcast %509 : vector<72x1xf32> to vector<72x128xf32>
    %511 = arith.mulf %510, %507 : vector<72x128xf32>
    %c2_i32 = arith.constant 2 : i32
    %512 = tpu.dynamic_rotate %444 by %c2_i32 dim 1 : vector<72x128xf32>, i32 -> vector<72x128xf32>
    %c8 = arith.constant 8 : index
    %c0_256 = arith.constant 0 : index
    %c0_257 = arith.constant 0 : index
    %513 = vector.load %arg14[%c8, %c0_256, %c0_257] : memref<13x1x128xf32, #tpu.memory_space<vmem>>, vector<1x1x128xf32>
    %514 = vector.shape_cast %513 : vector<1x1x128xf32> to vector<1x128xf32>
    %515 = vector.broadcast %514 : vector<1x128xf32> to vector<72x128xf32>
    %516 = arith.mulf %512, %515 : vector<72x128xf32>
    %c1_258 = arith.constant 1 : index
    %c8_259 = arith.constant 8 : index
    %c0_260 = arith.constant 0 : index
    %c0_261 = arith.constant 0 : index
    %517 = vector.load %arg12[%c1_258, %c8_259, %c0_260, %c0_261] : memref<2x13x72x1xf32, #tpu.memory_space<vmem>>, vector<1x1x72x1xf32>
    %518 = vector.shape_cast %517 : vector<1x1x72x1xf32> to vector<72x1xf32>
    %519 = vector.broadcast %518 : vector<72x1xf32> to vector<72x128xf32>
    %520 = arith.mulf %519, %516 : vector<72x128xf32>
    %c1_i32_262 = arith.constant 1 : i32
    %521 = tpu.dynamic_rotate %444 by %c1_i32_262 dim 1 : vector<72x128xf32>, i32 -> vector<72x128xf32>
    %c9_263 = arith.constant 9 : index
    %c0_264 = arith.constant 0 : index
    %c0_265 = arith.constant 0 : index
    %522 = vector.load %arg14[%c9_263, %c0_264, %c0_265] : memref<13x1x128xf32, #tpu.memory_space<vmem>>, vector<1x1x128xf32>
    %523 = vector.shape_cast %522 : vector<1x1x128xf32> to vector<1x128xf32>
    %524 = vector.broadcast %523 : vector<1x128xf32> to vector<72x128xf32>
    %525 = arith.mulf %521, %524 : vector<72x128xf32>
    %c1_266 = arith.constant 1 : index
    %c9_267 = arith.constant 9 : index
    %c0_268 = arith.constant 0 : index
    %c0_269 = arith.constant 0 : index
    %526 = vector.load %arg12[%c1_266, %c9_267, %c0_268, %c0_269] : memref<2x13x72x1xf32, #tpu.memory_space<vmem>>, vector<1x1x72x1xf32>
    %527 = vector.shape_cast %526 : vector<1x1x72x1xf32> to vector<72x1xf32>
    %528 = vector.broadcast %527 : vector<72x1xf32> to vector<72x128xf32>
    %529 = arith.mulf %528, %525 : vector<72x128xf32>
    %c127_i32_270 = arith.constant 127 : i32
    %530 = tpu.dynamic_rotate %444 by %c127_i32_270 dim 1 : vector<72x128xf32>, i32 -> vector<72x128xf32>
    %c10_271 = arith.constant 10 : index
    %c0_272 = arith.constant 0 : index
    %c0_273 = arith.constant 0 : index
    %531 = vector.load %arg14[%c10_271, %c0_272, %c0_273] : memref<13x1x128xf32, #tpu.memory_space<vmem>>, vector<1x1x128xf32>
    %532 = vector.shape_cast %531 : vector<1x1x128xf32> to vector<1x128xf32>
    %533 = vector.broadcast %532 : vector<1x128xf32> to vector<72x128xf32>
    %534 = arith.mulf %530, %533 : vector<72x128xf32>
    %c1_274 = arith.constant 1 : index
    %c10_275 = arith.constant 10 : index
    %c0_276 = arith.constant 0 : index
    %c0_277 = arith.constant 0 : index
    %535 = vector.load %arg12[%c1_274, %c10_275, %c0_276, %c0_277] : memref<2x13x72x1xf32, #tpu.memory_space<vmem>>, vector<1x1x72x1xf32>
    %536 = vector.shape_cast %535 : vector<1x1x72x1xf32> to vector<72x1xf32>
    %537 = vector.broadcast %536 : vector<72x1xf32> to vector<72x128xf32>
    %538 = arith.mulf %537, %534 : vector<72x128xf32>
    %c126_i32 = arith.constant 126 : i32
    %539 = tpu.dynamic_rotate %444 by %c126_i32 dim 1 : vector<72x128xf32>, i32 -> vector<72x128xf32>
    %c11 = arith.constant 11 : index
    %c0_278 = arith.constant 0 : index
    %c0_279 = arith.constant 0 : index
    %540 = vector.load %arg14[%c11, %c0_278, %c0_279] : memref<13x1x128xf32, #tpu.memory_space<vmem>>, vector<1x1x128xf32>
    %541 = vector.shape_cast %540 : vector<1x1x128xf32> to vector<1x128xf32>
    %542 = vector.broadcast %541 : vector<1x128xf32> to vector<72x128xf32>
    %543 = arith.mulf %539, %542 : vector<72x128xf32>
    %c1_280 = arith.constant 1 : index
    %c11_281 = arith.constant 11 : index
    %c0_282 = arith.constant 0 : index
    %c0_283 = arith.constant 0 : index
    %544 = vector.load %arg12[%c1_280, %c11_281, %c0_282, %c0_283] : memref<2x13x72x1xf32, #tpu.memory_space<vmem>>, vector<1x1x72x1xf32>
    %545 = vector.shape_cast %544 : vector<1x1x72x1xf32> to vector<72x1xf32>
    %546 = vector.broadcast %545 : vector<72x1xf32> to vector<72x128xf32>
    %547 = arith.mulf %546, %543 : vector<72x128xf32>
    %c125_i32 = arith.constant 125 : i32
    %548 = tpu.dynamic_rotate %444 by %c125_i32 dim 1 : vector<72x128xf32>, i32 -> vector<72x128xf32>
    %c12 = arith.constant 12 : index
    %c0_284 = arith.constant 0 : index
    %c0_285 = arith.constant 0 : index
    %549 = vector.load %arg14[%c12, %c0_284, %c0_285] : memref<13x1x128xf32, #tpu.memory_space<vmem>>, vector<1x1x128xf32>
    %550 = vector.shape_cast %549 : vector<1x1x128xf32> to vector<1x128xf32>
    %551 = vector.broadcast %550 : vector<1x128xf32> to vector<72x128xf32>
    %552 = arith.mulf %548, %551 : vector<72x128xf32>
    %c1_286 = arith.constant 1 : index
    %c12_287 = arith.constant 12 : index
    %c0_288 = arith.constant 0 : index
    %c0_289 = arith.constant 0 : index
    %553 = vector.load %arg12[%c1_286, %c12_287, %c0_288, %c0_289] : memref<2x13x72x1xf32, #tpu.memory_space<vmem>>, vector<1x1x72x1xf32>
    %554 = vector.shape_cast %553 : vector<1x1x72x1xf32> to vector<72x1xf32>
    %555 = vector.broadcast %554 : vector<72x1xf32> to vector<72x128xf32>
    %556 = arith.mulf %555, %552 : vector<72x128xf32>
    %557 = arith.addf %453, %462 : vector<72x128xf32>
    %558 = arith.addf %471, %475 : vector<72x128xf32>
    %559 = arith.addf %484, %493 : vector<72x128xf32>
    %560 = arith.addf %502, %511 : vector<72x128xf32>
    %561 = arith.addf %520, %529 : vector<72x128xf32>
    %562 = arith.addf %538, %547 : vector<72x128xf32>
    %563 = arith.addf %557, %558 : vector<72x128xf32>
    %564 = arith.addf %559, %560 : vector<72x128xf32>
    %565 = arith.addf %561, %562 : vector<72x128xf32>
    %566 = arith.addf %563, %564 : vector<72x128xf32>
    %567 = arith.addf %565, %556 : vector<72x128xf32>
    %568 = arith.addf %566, %567 : vector<72x128xf32>
    %c1_290 = arith.constant 1 : index
    %c0_291 = arith.constant 0 : index
    %c0_292 = arith.constant 0 : index
    %569 = vector.load %arg13[%c1_290, %c0_291, %c0_292] : memref<2x72x1xf32, #tpu.memory_space<vmem>>, vector<1x72x1xf32>
    %570 = vector.shape_cast %569 : vector<1x72x1xf32> to vector<72x1xf32>
    %571 = vector.broadcast %570 : vector<72x1xf32> to vector<72x128xf32>
    %572 = arith.addf %568, %571 : vector<72x128xf32>
    %c1_293 = arith.constant 1 : index
    %c1_294 = arith.constant 1 : index
    %c0_295 = arith.constant 0 : index
    %c0_296 = arith.constant 0 : index
    %573 = vector.load %arg7[%c1_293, %c1_294, %c0_295, %c0_296] : memref<2x2x144x72xbf16, #tpu.memory_space<vmem>>, vector<1x1x144x72xbf16>
    %574 = vector.shape_cast %573 : vector<1x1x144x72xbf16> to vector<144x72xbf16>
    %c1_297 = arith.constant 1 : index
    %c1_298 = arith.constant 1 : index
    %c0_299 = arith.constant 0 : index
    %c0_300 = arith.constant 0 : index
    %575 = vector.load %arg8[%c1_297, %c1_298, %c0_299, %c0_300] : memref<2x2x144x1xf32, #tpu.memory_space<vmem>>, vector<1x1x144x1xf32>
    %576 = vector.shape_cast %575 : vector<1x1x144x1xf32> to vector<144x1xf32>
    %577 = arith.truncf %572 : vector<72x128xf32> to vector<72x128xbf16>
    %cst_301 = arith.constant dense<0.000000e+00> : vector<144x128xf32>
    %578 = tpu.matmul %574, %577, %cst_301 {dimension_numbers = #tpu.dot_dimension_numbers<[1], [0], [0], [1], [0, 0, 1, 1], [], []>} : vector<144x72xbf16>, vector<72x128xbf16>, vector<144x128xf32> -> vector<144x128xf32>
    %579 = vector.extract_strided_slice %578 {offsets = [0, 0], sizes = [72, 128], strides = [1, 1]} : vector<144x128xf32> to vector<72x128xf32>
    %580 = vector.broadcast %2 : vector<1x128xf32> to vector<72x128xf32>
    %581 = arith.mulf %579, %580 : vector<72x128xf32>
    %cst_302 = arith.constant dense<0.000000e+00> : vector<72xf32>
    %582 = vector.multi_reduction <add>, %581, %cst_302 [1] : vector<72x128xf32> to vector<72xf32>
    %583 = vector.shape_cast %582 : vector<72xf32> to vector<72x1xf32>
    %584 = vector.extract_strided_slice %578 {offsets = [72, 0], sizes = [72, 128], strides = [1, 1]} : vector<144x128xf32> to vector<72x128xf32>
    %585 = vector.broadcast %4 : vector<1x128xf32> to vector<72x128xf32>
    %586 = arith.mulf %584, %585 : vector<72x128xf32>
    %cst_303 = arith.constant dense<0.000000e+00> : vector<72xf32>
    %587 = vector.multi_reduction <add>, %586, %cst_303 [1] : vector<72x128xf32> to vector<72xf32>
    %588 = vector.shape_cast %587 : vector<72xf32> to vector<72x1xf32>
    %589 = vector.extract_strided_slice %576 {offsets = [0, 0], sizes = [72, 1], strides = [1, 1]} : vector<144x1xf32> to vector<72x1xf32>
    %590 = arith.addf %583, %589 : vector<72x1xf32>
    %591 = arith.negf %590 : vector<72x1xf32>
    %592 = math.exp %591 : vector<72x1xf32>
    %cst_304 = arith.constant 1.000000e+00 : f32
    %593 = vector.broadcast %cst_304 : f32 to vector<72x1xf32>
    %594 = arith.addf %593, %592 : vector<72x1xf32>
    %595 = arith.divf %593, %594 : vector<72x1xf32>
    %596 = vector.extract_strided_slice %576 {offsets = [72, 0], sizes = [72, 1], strides = [1, 1]} : vector<144x1xf32> to vector<72x1xf32>
    %597 = arith.addf %588, %596 : vector<72x1xf32>
    %598 = arith.negf %597 : vector<72x1xf32>
    %599 = math.exp %598 : vector<72x1xf32>
    %cst_305 = arith.constant 1.000000e+00 : f32
    %600 = vector.broadcast %cst_305 : f32 to vector<72x1xf32>
    %601 = arith.addf %600, %599 : vector<72x1xf32>
    %602 = arith.divf %600, %601 : vector<72x1xf32>
    %603 = arith.mulf %595, %602 : vector<72x1xf32>
    %cst_306 = arith.constant 2.000000e-01 : f32
    %604 = vector.broadcast %cst_306 : f32 to vector<72x1xf32>
    %605 = arith.subf %603, %604 : vector<72x1xf32>
    %cst_307 = arith.constant 2.000000e+00 : f32
    %606 = vector.broadcast %cst_307 : f32 to vector<72x1xf32>
    %607 = arith.mulf %605, %606 : vector<72x1xf32>
    %608 = arith.negf %607 : vector<72x1xf32>
    %609 = math.exp %608 : vector<72x1xf32>
    %cst_308 = arith.constant 1.000000e+00 : f32
    %610 = vector.broadcast %cst_308 : f32 to vector<72x1xf32>
    %611 = arith.addf %610, %609 : vector<72x1xf32>
    %612 = arith.divf %610, %611 : vector<72x1xf32>
    %613 = vector.broadcast %612 : vector<72x1xf32> to vector<72x128xf32>
    %614 = arith.mulf %572, %613 : vector<72x128xf32>
    %c1_309 = arith.constant 1 : index
    %c0_310 = arith.constant 0 : index
    %c0_311 = arith.constant 0 : index
    %615 = vector.load %arg15[%c1_309, %c0_310, %c0_311] : memref<2x24x72xbf16, #tpu.memory_space<vmem>>, vector<1x24x72xbf16>
    %616 = vector.shape_cast %615 : vector<1x24x72xbf16> to vector<24x72xbf16>
    %617 = arith.truncf %614 : vector<72x128xf32> to vector<72x128xbf16>
    %cst_312 = arith.constant dense<0.000000e+00> : vector<24x128xf32>
    %618 = tpu.matmul %616, %617, %cst_312 {dimension_numbers = #tpu.dot_dimension_numbers<[1], [0], [0], [1], [0, 0, 1, 1], [], []>} : vector<24x72xbf16>, vector<72x128xbf16>, vector<24x128xf32> -> vector<24x128xf32>
    %c1_313 = arith.constant 1 : index
    %c0_314 = arith.constant 0 : index
    %c0_315 = arith.constant 0 : index
    %619 = vector.load %arg16[%c1_313, %c0_314, %c0_315] : memref<2x24x1xf32, #tpu.memory_space<vmem>>, vector<1x24x1xf32>
    %620 = vector.shape_cast %619 : vector<1x24x1xf32> to vector<24x1xf32>
    %621 = vector.broadcast %620 : vector<24x1xf32> to vector<24x128xf32>
    %622 = arith.addf %618, %621 : vector<24x128xf32>
    %c1_316 = arith.constant 1 : index
    %c1_317 = arith.constant 1 : index
    %c0_318 = arith.constant 0 : index
    %c0_319 = arith.constant 0 : index
    %623 = vector.load %arg5[%c1_316, %c1_317, %c0_318, %c0_319] : memref<2x2x48x24xbf16, #tpu.memory_space<vmem>>, vector<1x1x48x24xbf16>
    %624 = vector.shape_cast %623 : vector<1x1x48x24xbf16> to vector<48x24xbf16>
    %c1_320 = arith.constant 1 : index
    %c1_321 = arith.constant 1 : index
    %c0_322 = arith.constant 0 : index
    %c0_323 = arith.constant 0 : index
    %625 = vector.load %arg6[%c1_320, %c1_321, %c0_322, %c0_323] : memref<2x2x48x1xf32, #tpu.memory_space<vmem>>, vector<1x1x48x1xf32>
    %626 = vector.shape_cast %625 : vector<1x1x48x1xf32> to vector<48x1xf32>
    %627 = arith.truncf %622 : vector<24x128xf32> to vector<24x128xbf16>
    %cst_324 = arith.constant dense<0.000000e+00> : vector<48x128xf32>
    %628 = tpu.matmul %624, %627, %cst_324 {dimension_numbers = #tpu.dot_dimension_numbers<[1], [0], [0], [1], [0, 0, 1, 1], [], []>} : vector<48x24xbf16>, vector<24x128xbf16>, vector<48x128xf32> -> vector<48x128xf32>
    %629 = vector.extract_strided_slice %628 {offsets = [0, 0], sizes = [24, 128], strides = [1, 1]} : vector<48x128xf32> to vector<24x128xf32>
    %630 = vector.broadcast %2 : vector<1x128xf32> to vector<24x128xf32>
    %631 = arith.mulf %629, %630 : vector<24x128xf32>
    %cst_325 = arith.constant dense<0.000000e+00> : vector<24xf32>
    %632 = vector.multi_reduction <add>, %631, %cst_325 [1] : vector<24x128xf32> to vector<24xf32>
    %633 = vector.shape_cast %632 : vector<24xf32> to vector<24x1xf32>
    %634 = vector.extract_strided_slice %628 {offsets = [24, 0], sizes = [24, 128], strides = [1, 1]} : vector<48x128xf32> to vector<24x128xf32>
    %635 = vector.broadcast %4 : vector<1x128xf32> to vector<24x128xf32>
    %636 = arith.mulf %634, %635 : vector<24x128xf32>
    %cst_326 = arith.constant dense<0.000000e+00> : vector<24xf32>
    %637 = vector.multi_reduction <add>, %636, %cst_326 [1] : vector<24x128xf32> to vector<24xf32>
    %638 = vector.shape_cast %637 : vector<24xf32> to vector<24x1xf32>
    %639 = vector.extract_strided_slice %626 {offsets = [0, 0], sizes = [24, 1], strides = [1, 1]} : vector<48x1xf32> to vector<24x1xf32>
    %640 = arith.addf %633, %639 : vector<24x1xf32>
    %641 = arith.negf %640 : vector<24x1xf32>
    %642 = math.exp %641 : vector<24x1xf32>
    %cst_327 = arith.constant 1.000000e+00 : f32
    %643 = vector.broadcast %cst_327 : f32 to vector<24x1xf32>
    %644 = arith.addf %643, %642 : vector<24x1xf32>
    %645 = arith.divf %643, %644 : vector<24x1xf32>
    %646 = vector.extract_strided_slice %626 {offsets = [24, 0], sizes = [24, 1], strides = [1, 1]} : vector<48x1xf32> to vector<24x1xf32>
    %647 = arith.addf %638, %646 : vector<24x1xf32>
    %648 = arith.negf %647 : vector<24x1xf32>
    %649 = math.exp %648 : vector<24x1xf32>
    %cst_328 = arith.constant 1.000000e+00 : f32
    %650 = vector.broadcast %cst_328 : f32 to vector<24x1xf32>
    %651 = arith.addf %650, %649 : vector<24x1xf32>
    %652 = arith.divf %650, %651 : vector<24x1xf32>
    %653 = arith.mulf %645, %652 : vector<24x1xf32>
    %cst_329 = arith.constant 2.000000e-01 : f32
    %654 = vector.broadcast %cst_329 : f32 to vector<24x1xf32>
    %655 = arith.subf %653, %654 : vector<24x1xf32>
    %cst_330 = arith.constant 2.000000e+00 : f32
    %656 = vector.broadcast %cst_330 : f32 to vector<24x1xf32>
    %657 = arith.mulf %655, %656 : vector<24x1xf32>
    %658 = arith.negf %657 : vector<24x1xf32>
    %659 = math.exp %658 : vector<24x1xf32>
    %cst_331 = arith.constant 1.000000e+00 : f32
    %660 = vector.broadcast %cst_331 : f32 to vector<24x1xf32>
    %661 = arith.addf %660, %659 : vector<24x1xf32>
    %662 = arith.divf %660, %661 : vector<24x1xf32>
    %663 = vector.broadcast %662 : vector<24x1xf32> to vector<24x128xf32>
    %664 = arith.mulf %622, %663 : vector<24x128xf32>
    %c1_332 = arith.constant 1 : index
    %c0_333 = arith.constant 0 : index
    %c0_334 = arith.constant 0 : index
    %665 = vector.load %arg17[%c1_332, %c0_333, %c0_334] : memref<2x24x2xf32, #tpu.memory_space<vmem>>, vector<1x24x2xf32>
    %666 = vector.shape_cast %665 : vector<1x24x2xf32> to vector<24x2xf32>
    %667 = vector.extract_strided_slice %666 {offsets = [0, 0], sizes = [24, 1], strides = [1, 1]} : vector<24x2xf32> to vector<24x1xf32>
    %668 = vector.broadcast %667 : vector<24x1xf32> to vector<24x128xf32>
    %669 = arith.mulf %664, %668 : vector<24x128xf32>
    %670 = vector.extract_strided_slice %666 {offsets = [0, 1], sizes = [24, 1], strides = [1, 1]} : vector<24x2xf32> to vector<24x1xf32>
    %671 = vector.broadcast %670 : vector<24x1xf32> to vector<24x128xf32>
    %672 = arith.addf %669, %671 : vector<24x128xf32>
    %cst_335 = arith.constant 3.000000e+00 : f32
    %673 = vector.broadcast %cst_335 : f32 to vector<24x128xf32>
    %674 = arith.addf %672, %673 : vector<24x128xf32>
    %cst_336 = arith.constant 0.000000e+00 : f32
    %cst_337 = arith.constant 6.000000e+00 : f32
    %675 = vector.broadcast %cst_336 : f32 to vector<24x128xf32>
    %676 = arith.maximumf %675, %674 : vector<24x128xf32>
    %677 = vector.broadcast %cst_337 : f32 to vector<24x128xf32>
    %678 = arith.minimumf %677, %676 : vector<24x128xf32>
    %679 = arith.mulf %672, %678 : vector<24x128xf32>
    %cst_338 = arith.constant 0.166666672 : f32
    %680 = vector.broadcast %cst_338 : f32 to vector<24x128xf32>
    %681 = arith.mulf %679, %680 : vector<24x128xf32>
    %682 = arith.addf %681, %0 : vector<24x128xf32>
    %683 = tpu.concatenate %327, %682 in 0 : vector<24x128xf32>, vector<24x128xf32> -> vector<48x128xf32>
    %c0_339 = arith.constant 0 : index
    %c0_340 = arith.constant 0 : index
    %684 = vector.load %arg18[%c0_339, %c0_340] : memref<48x128xf32, #tpu.memory_space<vmem>>, vector<48x128xf32>
    tpu.vector_store %arg18[%c0_339, %c0_340], %683 {strides = array<i32>} : memref<48x128xf32, #tpu.memory_space<vmem>>, vector<48x128xf32>,
    return
  }
}

</mosaic_0001>

<llo_original>
// kernel: lite_hcnet_forward.1
$region0: #{lite_hcnet_forward.1}
  #allocation0 [shape = 'u32[]', space=smem, size = 0x4, offset = 0x4, fixed_abs, tag = 'smem constant byte address 0x4 - core index']
  #allocation1 [shape = 'u32[72,128]{1,0:T(1,128)}', space=vmem, size = 0x9000, scoped, tag = 'internal scratch']
  %s0 = inlined_call_operand.vmem [shape: f32[24,128], index: 0, kind: input, shape index: {}]
  %s1 = inlined_call_operand.vmem [shape: f32[7,24,1], index: 1, kind: input, shape index: {}]
  %s2 = inlined_call_operand.vmem [shape: bf16[512,128], index: 2, kind: input, shape index: {}]
  %s3 = inlined_call_operand.vmem [shape: bf16[1024,128], index: 3, kind: input, shape index: {}]
  %s4 = inlined_call_operand.vmem [shape: f32[2,24,1], index: 4, kind: input, shape index: {}]
  %s5 = inlined_call_operand.vmem [shape: bf16[2,2,48,24], index: 5, kind: input, shape index: {}]
  %s6 = inlined_call_operand.vmem [shape: f32[2,2,48,1], index: 6, kind: input, shape index: {}]
  %s7 = inlined_call_operand.vmem [shape: bf16[2,2,144,72], index: 7, kind: input, shape index: {}]
  %s8 = inlined_call_operand.vmem [shape: f32[2,2,144,1], index: 8, kind: input, shape index: {}]
  %s9 = inlined_call_operand.vmem [shape: f32[2,1,128], index: 9, kind: input, shape index: {}]
  %s10 = inlined_call_operand.vmem [shape: f32[2,72,2], index: 10, kind: input, shape index: {}]
  %s11 = inlined_call_operand.vmem [shape: f32[2,72,2], index: 11, kind: input, shape index: {}]
  %s12 = inlined_call_operand.vmem [shape: f32[2,13,72,1], index: 12, kind: input, shape index: {}]
  %s13 = inlined_call_operand.vmem [shape: f32[2,72,1], index: 13, kind: input, shape index: {}]
  %s14 = inlined_call_operand.vmem [shape: f32[13,1,128], index: 14, kind: input, shape index: {}]
  %s15 = inlined_call_operand.vmem [shape: bf16[2,24,72], index: 15, kind: input, shape index: {}]
  %s16 = inlined_call_operand.vmem [shape: f32[2,24,1], index: 16, kind: input, shape index: {}]
  %s17 = inlined_call_operand.vmem [shape: f32[2,24,2], index: 17, kind: input, shape index: {}]
  %s18 = inlined_call_operand.vmem [shape: f32[48,128], index: 18, kind: output, shape index: {}]
  %s19 = sld [smem:[#allocation0]]
  $region82: #{lite_hcnet_forward.1} parent=0
    _
  %s21 = ssub.s32 1, %s19
  %s22 = scalar_select 0, %s21, %s19
  // Predicated region
  $region2: #{lite_hcnet_forward.1} parent=0 // pred_check
    _
  $region3: #{lite_hcnet_forward.1} parent=0 // pred_check_branch
    %24 = sbr.rel (0) target = $region5
  $region4: #{lite_hcnet_forward.1} parent=0 // pred_region
    _
  $region5: #{lite_hcnet_forward.1} parent=0 // pred_fallthru
    _
  // Predicated region
  $region6: #{lite_hcnet_forward.1} parent=0 // pred_check
    _
  $region7: #{lite_hcnet_forward.1} parent=0 // pred_check_branch
    %26 = sbr.rel (0) target = $region9
  $region8: #{lite_hcnet_forward.1} parent=0 // pred_region
    _
  $region9: #{lite_hcnet_forward.1} parent=0 // pred_fallthru
    _
  // Predicated region
  $region10: #{lite_hcnet_forward.1} parent=0 // pred_check
    _
  $region11: #{lite_hcnet_forward.1} parent=0 // pred_check_branch
    %28 = sbr.rel (0) target = $region13
  $region12: #{lite_hcnet_forward.1} parent=0 // pred_region
    _
  $region13: #{lite_hcnet_forward.1} parent=0 // pred_fallthru
    _
  // Predicated region
  $region14: #{lite_hcnet_forward.1} parent=0 // pred_check
    _
  $region15: #{lite_hcnet_forward.1} parent=0 // pred_check_branch
    %30 = sbr.rel (0) target = $region17
  $region16: #{lite_hcnet_forward.1} parent=0 // pred_region
    _
  $region17: #{lite_hcnet_forward.1} parent=0 // pred_fallthru
    _
  // Predicated region
  $region18: #{lite_hcnet_forward.1} parent=0 // pred_check
    _
  $region19: #{lite_hcnet_forward.1} parent=0 // pred_check_branch
    %32 = sbr.rel (0) target = $region21
  $region20: #{lite_hcnet_forward.1} parent=0 // pred_region
    _
  $region21: #{lite_hcnet_forward.1} parent=0 // pred_fallthru
    _
  // Predicated region
  $region22: #{lite_hcnet_forward.1} parent=0 // pred_check
    _
  $region23: #{lite_hcnet_forward.1} parent=0 // pred_check_branch
    %34 = sbr.rel (0) target = $region25
  $region24: #{lite_hcnet_forward.1} parent=0 // pred_region
    _
  $region25: #{lite_hcnet_forward.1} parent=0 // pred_fallthru
    _
  // Predicated region
  $region26: #{lite_hcnet_forward.1} parent=0 // pred_check
    _
  $region27: #{lite_hcnet_forward.1} parent=0 // pred_check_branch
    %36 = sbr.rel (0) target = $region29
  $region28: #{lite_hcnet_forward.1} parent=0 // pred_region
    _
  $region29: #{lite_hcnet_forward.1} parent=0 // pred_fallthru
    _
  // Predicated region
  $region30: #{lite_hcnet_forward.1} parent=0 // pred_check
    _
  $region31: #{lite_hcnet_forward.1} parent=0 // pred_check_branch
    %38 = sbr.rel (0) target = $region33
  $region32: #{lite_hcnet_forward.1} parent=0 // pred_region
    _
  $region33: #{lite_hcnet_forward.1} parent=0 // pred_fallthru
    _
  // Predicated region
  $region34: #{lite_hcnet_forward.1} parent=0 // pred_check
    _
  $region35: #{lite_hcnet_forward.1} parent=0 // pred_check_branch
    %40 = sbr.rel (0) target = $region37
  $region36: #{lite_hcnet_forward.1} parent=0 // pred_region
    _
  $region37: #{lite_hcnet_forward.1} parent=0 // pred_fallthru
    _
  // Predicated region
  $region38: #{lite_hcnet_forward.1} parent=0 // pred_check
    _
  $region39: #{lite_hcnet_forward.1} parent=0 // pred_check_branch
    %42 = sbr.rel (0) target = $region41
  $region40: #{lite_hcnet_forward.1} parent=0 // pred_region
    _
  $region41: #{lite_hcnet_forward.1} parent=0 // pred_fallthru
    _
  // Predicated region
  $region42: #{lite_hcnet_forward.1} parent=0 // pred_check
    _
  $region43: #{lite_hcnet_forward.1} parent=0 // pred_check_branch
    %44 = sbr.rel (0) target = $region45
  $region44: #{lite_hcnet_forward.1} parent=0 // pred_region
    _
  $region45: #{lite_hcnet_forward.1} parent=0 // pred_fallthru
    _
  // Predicated region
  $region46: #{lite_hcnet_forward.1} parent=0 // pred_check
    _
  $region47: #{lite_hcnet_forward.1} parent=0 // pred_check_branch
    %46 = sbr.rel (0) target = $region49
  $region48: #{lite_hcnet_forward.1} parent=0 // pred_region
    _
  $region49: #{lite_hcnet_forward.1} parent=0 // pred_fallthru
    _
  // Predicated region
  $region50: #{lite_hcnet_forward.1} parent=0 // pred_check
    _
  $region51: #{lite_hcnet_forward.1} parent=0 // pred_check_branch
    %48 = sbr.rel (0) target = $region53
  $region52: #{lite_hcnet_forward.1} parent=0 // pred_region
    _
  $region53: #{lite_hcnet_forward.1} parent=0 // pred_fallthru
    _
  // Predicated region
  $region54: #{lite_hcnet_forward.1} parent=0 // pred_check
    _
  $region55: #{lite_hcnet_forward.1} parent=0 // pred_check_branch
    %50 = sbr.rel (0) target = $region57
  $region56: #{lite_hcnet_forward.1} parent=0 // pred_region
    _
  $region57: #{lite_hcnet_forward.1} parent=0 // pred_fallthru
    _
  // Predicated region
  $region58: #{lite_hcnet_forward.1} parent=0 // pred_check
    _
  $region59: #{lite_hcnet_forward.1} parent=0 // pred_check_branch
    %52 = sbr.rel (0) target = $region61
  $region60: #{lite_hcnet_forward.1} parent=0 // pred_region
    _
  $region61: #{lite_hcnet_forward.1} parent=0 // pred_fallthru
    _
  // Predicated region
  $region62: #{lite_hcnet_forward.1} parent=0 // pred_check
    _
  $region63: #{lite_hcnet_forward.1} parent=0 // pred_check_branch
    %54 = sbr.rel (0) target = $region65
  $region64: #{lite_hcnet_forward.1} parent=0 // pred_region
    _
  $region65: #{lite_hcnet_forward.1} parent=0 // pred_fallthru
    _
  // Predicated region
  $region66: #{lite_hcnet_forward.1} parent=0 // pred_check
    _
  $region67: #{lite_hcnet_forward.1} parent=0 // pred_check_branch
    %56 = sbr.rel (0) target = $region69
  $region68: #{lite_hcnet_forward.1} parent=0 // pred_region
    _
  $region69: #{lite_hcnet_forward.1} parent=0 // pred_fallthru
    _
  // Predicated region
  $region70: #{lite_hcnet_forward.1} parent=0 // pred_check
    _
  $region71: #{lite_hcnet_forward.1} parent=0 // pred_check_branch
    %58 = sbr.rel (0) target = $region73
  $region72: #{lite_hcnet_forward.1} parent=0 // pred_region
    _
  $region73: #{lite_hcnet_forward.1} parent=0 // pred_fallthru
    _
  %v60 = vld [vmem:[%s0] sm:$0xff]
  %v61 = vld [vmem:[%s0 + $0x8] sm:$0xff]
  %v62 = vld [vmem:[%s0 + $0x10] sm:$0xff]
  %v63 = vld [vmem:[%s9] sm:$0x1]
  %s64 = scalar_lea.vmem %s9, 1
  %v65 = vld [vmem:[%s64] sm:$0x1]
  %vm69 = vcmask 1040384
  %v70 = vrot.slane %v60, 7
  %v71 = vrot.slane %v61, 7
  %v72 = vsel %vm69, %v70, %v71
  %v73 = vrot.slane %v62, 7
  %v74 = vsel %vm69, %v71, %v73
  %v78 = vsel %vm69, 0.0, %v70
  %v79 = vld [vmem:[%s1] sm:$0xff]
  %v80 = vld [vmem:[%s1 + $0x8] sm:$0xff]
  %v81 = vld [vmem:[%s1 + $0x10] sm:$0xff]
  %83 = vset.pattern.permute.xlu0 0
  %84 = vperm.xlu0 %83, %v79
  %v85 = vpop.permute.xlu0 %84
  %88 = vset.pattern.permute.xlu0 0
  %89 = vperm.xlu0 %88, %v80
  %v90 = vpop.permute.xlu0 %89
  %93 = vset.pattern.permute.xlu0 0
  %94 = vperm.xlu0 %93, %v81
  %v95 = vpop.permute.xlu0 %94
  %v97 = vmul.f32 %v78, %v85
  %v98 = vmul.f32 %v72, %v90
  %v99 = vmul.f32 %v74, %v95
  %s100 = scalar_lea.vmem %s1, 24
  %v101 = vld [vmem:[%s100] sm:$0xff]
  %v102 = vld [vmem:[%s100 + $0x8] sm:$0xff]
  %v103 = vld [vmem:[%s100 + $0x10] sm:$0xff]
  %105 = vset.pattern.permute.xlu0 0
  %106 = vperm.xlu0 %105, %v101
  %v107 = vpop.permute.xlu0 %106
  %110 = vset.pattern.permute.xlu0 0
  %111 = vperm.xlu0 %110, %v102
  %v112 = vpop.permute.xlu0 %111
  %115 = vset.pattern.permute.xlu0 0
  %116 = vperm.xlu0 %115, %v103
  %v117 = vpop.permute.xlu0 %116
  %v119 = vmul.f32 %v60, %v107
  %v120 = vmul.f32 %v61, %v112
  %v121 = vmul.f32 %v62, %v117
  %vm122 = vcmask 1046528
  %v123 = vrot.slane %v60, 1
  %v124 = vrot.slane %v61, 1
  %v125 = vsel %vm122, %v123, %v124
  %v126 = vrot.slane %v62, 1
  %v127 = vsel %vm122, %v124, %v126
  %v131 = vsel %vm122, %v126, 0.0
  %s132 = scalar_lea.vmem %s1, 48
  %v133 = vld [vmem:[%s132] sm:$0xff]
  %v134 = vld [vmem:[%s132 + $0x8] sm:$0xff]
  %v135 = vld [vmem:[%s132 + $0x10] sm:$0xff]
  %137 = vset.pattern.permute.xlu0 0
  %138 = vperm.xlu0 %137, %v133
  %v139 = vpop.permute.xlu0 %138
  %142 = vset.pattern.permute.xlu0 0
  %143 = vperm.xlu0 %142, %v134
  %v144 = vpop.permute.xlu0 %143
  %147 = vset.pattern.permute.xlu0 0
  %148 = vperm.xlu0 %147, %v135
  %v149 = vpop.permute.xlu0 %148
  %v151 = vmul.f32 %v125, %v139
  %v152 = vmul.f32 %v127, %v144
  %v153 = vmul.f32 %v131, %v149
  %vm154 = vcmask 1042432
  %v155 = vrot.slane %v60, 5
  %v156 = vrot.slane %v61, 5
  %v157 = vsel %vm154, %v155, %v156
  %v158 = vrot.slane %v62, 5
  %v159 = vsel %vm154, %v156, %v158
  %v163 = vsel %vm154, 0.0, %v155
  %s164 = scalar_lea.vmem %s1, 72
  %v165 = vld [vmem:[%s164] sm:$0xff]
  %v166 = vld [vmem:[%s164 + $0x8] sm:$0xff]
  %v167 = vld [vmem:[%s164 + $0x10] sm:$0xff]
  %169 = vset.pattern.permute.xlu0 0
  %170 = vperm.xlu0 %169, %v165
  %v171 = vpop.permute.xlu0 %170
  %174 = vset.pattern.permute.xlu0 0
  %175 = vperm.xlu0 %174, %v166
  %v176 = vpop.permute.xlu0 %175
  %179 = vset.pattern.permute.xlu0 0
  %180 = vperm.xlu0 %179, %v167
  %v181 = vpop.permute.xlu0 %180
  %v183 = vmul.f32 %v163, %v171
  %v184 = vmul.f32 %v157, %v176
  %v185 = vmul.f32 %v159, %v181
  %vm186 = vcmask 1041408
  %v187 = vrot.slane %v60, 6
  %v188 = vrot.slane %v61, 6
  %v189 = vsel %vm186, %v187, %v188
  %v190 = vrot.slane %v62, 6
  %v191 = vsel %vm186, %v188, %v190
  %v195 = vsel %vm186, 0.0, %v187
  %s196 = scalar_lea.vmem %s1, 96
  %v197 = vld [vmem:[%s196] sm:$0xff]
  %v198 = vld [vmem:[%s196 + $0x8] sm:$0xff]
  %v199 = vld [vmem:[%s196 + $0x10] sm:$0xff]
  %201 = vset.pattern.permute.xlu0 0
  %202 = vperm.xlu0 %201, %v197
  %v203 = vpop.permute.xlu0 %202
  %206 = vset.pattern.permute.xlu0 0
  %207 = vperm.xlu0 %206, %v198
  %v208 = vpop.permute.xlu0 %207
  %211 = vset.pattern.permute.xlu0 0
  %212 = vperm.xlu0 %211, %v199
  %v213 = vpop.permute.xlu0 %212
  %v215 = vmul.f32 %v195, %v203
  %v216 = vmul.f32 %v189, %v208
  %v217 = vmul.f32 %v191, %v213
  %vm218 = vcmask 1045504
  %v219 = vrot.slane %v60, 2
  %v220 = vrot.slane %v61, 2
  %v221 = vsel %vm218, %v219, %v220
  %v222 = vrot.slane %v62, 2
  %v223 = vsel %vm218, %v220, %v222
  %v227 = vsel %vm218, %v222, 0.0
  %s228 = scalar_lea.vmem %s1, 120
  %v229 = vld [vmem:[%s228] sm:$0xff]
  %v230 = vld [vmem:[%s228 + $0x8] sm:$0xff]
  %v231 = vld [vmem:[%s228 + $0x10] sm:$0xff]
  %233 = vset.pattern.permute.xlu0 0
  %234 = vperm.xlu0 %233, %v229
  %v235 = vpop.permute.xlu0 %234
  %238 = vset.pattern.permute.xlu0 0
  %239 = vperm.xlu0 %238, %v230
  %v240 = vpop.permute.xlu0 %239
  %243 = vset.pattern.permute.xlu0 0
  %244 = vperm.xlu0 %243, %v231
  %v245 = vpop.permute.xlu0 %244
  %v247 = vmul.f32 %v221, %v235
  %v248 = vmul.f32 %v223, %v240
  %v249 = vmul.f32 %v227, %v245
  %vm250 = vcmask 1044480
  %v251 = vrot.slane %v60, 3
  %v252 = vrot.slane %v61, 3
  %v253 = vsel %vm250, %v251, %v252
  %v254 = vrot.slane %v62, 3
  %v255 = vsel %vm250, %v252, %v254
  %v259 = vsel %vm250, %v254, 0.0
  %s260 = scalar_lea.vmem %s1, 144
  %v261 = vld [vmem:[%s260] sm:$0xff]
  %v262 = vld [vmem:[%s260 + $0x8] sm:$0xff]
  %v263 = vld [vmem:[%s260 + $0x10] sm:$0xff]
  %265 = vset.pattern.permute.xlu0 0
  %266 = vperm.xlu0 %265, %v261
  %v267 = vpop.permute.xlu0 %266
  %270 = vset.pattern.permute.xlu0 0
  %271 = vperm.xlu0 %270, %v262
  %v272 = vpop.permute.xlu0 %271
  %275 = vset.pattern.permute.xlu0 0
  %276 = vperm.xlu0 %275, %v263
  %v277 = vpop.permute.xlu0 %276
  %v279 = vmul.f32 %v253, %v267
  %v280 = vmul.f32 %v255, %v272
  %v281 = vmul.f32 %v259, %v277
  %v282 = vld [vmem:[%s2] sm:$0xf]
  %v283 = vld [vmem:[%s2 + $0x4] sm:$0xf]
  %v284 = vld [vmem:[%s2 + $0x8] sm:$0xf]
  %v285 = vld [vmem:[%s2 + $0xc] sm:$0xf]
  %v286 = vld [vmem:[%s2 + $0x10] sm:$0xf]
  %v287 = vld [vmem:[%s2 + $0x14] sm:$0xf]
  %v288 = vld [vmem:[%s2 + $0x18] sm:$0xf]
  %v289 = vld [vmem:[%s2 + $0x1c] sm:$0xf]
  %v290 = vld [vmem:[%s2 + $0x20] sm:$0xf]
  %v291 = vld [vmem:[%s2 + $0x24] sm:$0xf]
  %v292 = vld [vmem:[%s2 + $0x28] sm:$0xf]
  %v293 = vld [vmem:[%s2 + $0x2c] sm:$0xf]
  %v294 = vld [vmem:[%s2 + $0x30] sm:$0xf]
  %v295 = vld [vmem:[%s2 + $0x34] sm:$0xf]
  %v296 = vld [vmem:[%s2 + $0x38] sm:$0xf]
  %v297 = vld [vmem:[%s2 + $0x3c] sm:$0xf]
  %v298 = vld [vmem:[%s2 + $0x40] sm:$0xf]
  %v299 = vld [vmem:[%s2 + $0x44] sm:$0xf]
  %v300 = vld [vmem:[%s2 + $0x48] sm:$0xf]
  %v301 = vld [vmem:[%s2 + $0x4c] sm:$0xf]
  %v302 = vld [vmem:[%s2 + $0x50] sm:$0xf]
  %v303 = vld [vmem:[%s2 + $0x54] sm:$0xf]
  %v304 = vld [vmem:[%s2 + $0x58] sm:$0xf]
  %v305 = vld [vmem:[%s2 + $0x5c] sm:$0xf]
  %v306 = vld [vmem:[%s2 + $0x60] sm:$0xf]
  %v307 = vld [vmem:[%s2 + $0x64] sm:$0xf]
  %v308 = vld [vmem:[%s2 + $0x68] sm:$0xf]
  %v309 = vld [vmem:[%s2 + $0x6c] sm:$0xf]
  %v310 = vld [vmem:[%s2 + $0x70] sm:$0xf]
  %v311 = vld [vmem:[%s2 + $0x74] sm:$0xf]
  %v312 = vld [vmem:[%s2 + $0x78] sm:$0xf]
  %v313 = vld [vmem:[%s2 + $0x7c] sm:$0xf]
  %v314 = vld [vmem:[%s2 + $0x80] sm:$0xf]
  %v315 = vld [vmem:[%s2 + $0x84] sm:$0xf]
  %v316 = vld [vmem:[%s2 + $0x88] sm:$0xf]
  %v317 = vld [vmem:[%s2 + $0x8c] sm:$0xf]
  %v318 = vld [vmem:[%s2 + $0x90] sm:$0xf]
  %v319 = vld [vmem:[%s2 + $0x94] sm:$0xf]
  %v320 = vld [vmem:[%s2 + $0x98] sm:$0xf]
  %v321 = vld [vmem:[%s2 + $0x9c] sm:$0xf]
  %v322 = vld [vmem:[%s2 + $0xa0] sm:$0xf]
  %v323 = vld [vmem:[%s2 + $0xa4] sm:$0xf]
  %v324 = vld [vmem:[%s2 + $0xa8] sm:$0xf]
  %v325 = vld [vmem:[%s2 + $0xac] sm:$0xf]
  %v326 = vld [vmem:[%s2 + $0xb0] sm:$0xf]
  %v327 = vld [vmem:[%s2 + $0xb4] sm:$0xf]
  %v328 = vld [vmem:[%s2 + $0xb8] sm:$0xf]
  %v329 = vld [vmem:[%s2 + $0xbc] sm:$0xf]
  %v330 = vld [vmem:[%s2 + $0xc0] sm:$0xf]
  %v331 = vld [vmem:[%s2 + $0xc4] sm:$0xf]
  %v332 = vld [vmem:[%s2 + $0xc8] sm:$0xf]
  %v333 = vld [vmem:[%s2 + $0xcc] sm:$0xf]
  %v334 = vld [vmem:[%s2 + $0xd0] sm:$0xf]
  %v335 = vld [vmem:[%s2 + $0xd4] sm:$0xf]
  %v336 = vld [vmem:[%s2 + $0xd8] sm:$0xf]
  %v337 = vld [vmem:[%s2 + $0xdc] sm:$0xf]
  %v338 = vld [vmem:[%s2 + $0xe0] sm:$0xf]
  %v339 = vld [vmem:[%s2 + $0xe4] sm:$0xf]
  %v340 = vld [vmem:[%s2 + $0xe8] sm:$0xf]
  %v341 = vld [vmem:[%s2 + $0xec] sm:$0xf]
  %v342 = vld [vmem:[%s2 + $0xf0] sm:$0xf]
  %v343 = vld [vmem:[%s2 + $0xf4] sm:$0xf]
  %v344 = vld [vmem:[%s2 + $0xf8] sm:$0xf]
  %v345 = vld [vmem:[%s2 + $0xfc] sm:$0xf]
  %v346 = vpack.c.bf16 %v61, %v60
  %v347 = vpack.c.bf16 %v98, %v97
  %v348 = vpack.c.bf16 %v120, %v119
  %v349 = vpack.c.bf16 %v152, %v151
  %v350 = vpack.c.bf16 %v62, %v62
  %v351 = vpack.c.bf16 %v99, %v99
  %v352 = vpack.c.bf16 %v121, %v121
  %v353 = vpack.c.bf16 %v153, %v153
  %v354 = vld [vmem:[%s4] sm:$0xff]
  %v355 = vld [vmem:[%s4 + $0x8] sm:$0xff]
  %v356 = vld [vmem:[%s4 + $0x10] sm:$0xff]
  %358 = vset.pattern.permute.xlu0 0
  %359 = vperm.xlu0 %358, %v354
  %v360 = vpop.permute.xlu0 %359
  %363 = vset.pattern.permute.xlu0 0
  %364 = vperm.xlu0 %363, %v355
  %v365 = vpop.permute.xlu0 %364
  %368 = vset.pattern.permute.xlu0 0
  %369 = vperm.xlu0 %368, %v356
  %v370 = vpop.permute.xlu0 %369
  %v436 = vunpack.c.l.b16 %v282
  %v437 = vunpack.c.l.b16 %v283
  %v438 = vunpack.c.l.b16 %v284
  %v439 = vunpack.c.l.b16 %v285
  %v440 = vunpack.c.l.b16 %v286
  %v441 = vunpack.c.l.b16 %v287
  %v442 = vunpack.c.l.b16 %v288
  %v443 = vunpack.c.l.b16 %v289
  %v444 = vunpack.c.l.b16 %v290
  %v445 = vunpack.c.l.b16 %v291
  %v446 = vunpack.c.l.b16 %v292
  %v447 = vunpack.c.l.b16 %v293
  %v448 = vunpack.c.l.b16 %v294
  %v449 = vunpack.c.l.b16 %v295
  %v450 = vunpack.c.l.b16 %v296
  %v451 = vunpack.c.l.b16 %v297
  %v452 = vunpack.c.l.b16 %v298
  %v453 = vunpack.c.l.b16 %v299
  %v454 = vunpack.c.l.b16 %v300
  %v455 = vunpack.c.l.b16 %v301
  %v456 = vunpack.c.l.b16 %v302
  %v457 = vunpack.c.l.b16 %v303
  %v458 = vunpack.c.l.b16 %v304
  %v459 = vunpack.c.l.b16 %v305
  %v460 = vunpack.c.l.b16 %v306
  %v461 = vunpack.c.l.b16 %v307
  %v462 = vunpack.c.l.b16 %v308
  %v463 = vunpack.c.l.b16 %v309
  %v464 = vunpack.c.l.b16 %v310
  %v465 = vunpack.c.l.b16 %v311
  %v466 = vunpack.c.l.b16 %v312
  %v467 = vunpack.c.l.b16 %v313
  %v468 = vunpack.c.l.b16 %v314
  %v469 = vunpack.c.l.b16 %v315
  %v470 = vunpack.c.l.b16 %v316
  %v471 = vunpack.c.l.b16 %v317
  %v472 = vunpack.c.l.b16 %v318
  %v473 = vunpack.c.l.b16 %v319
  %v474 = vunpack.c.l.b16 %v320
  %v475 = vunpack.c.l.b16 %v321
  %v476 = vunpack.c.l.b16 %v322
  %v477 = vunpack.c.l.b16 %v323
  %v478 = vunpack.c.l.b16 %v324
  %v479 = vunpack.c.l.b16 %v325
  %v480 = vunpack.c.l.b16 %v326
  %v481 = vunpack.c.l.b16 %v327
  %v482 = vunpack.c.l.b16 %v328
  %v483 = vunpack.c.l.b16 %v329
  %v484 = vunpack.c.l.b16 %v330
  %v485 = vunpack.c.l.b16 %v331
  %v486 = vunpack.c.l.b16 %v332
  %v487 = vunpack.c.l.b16 %v333
  %v488 = vunpack.c.l.b16 %v334
  %v489 = vunpack.c.l.b16 %v335
  %v490 = vunpack.c.l.b16 %v336
  %v491 = vunpack.c.l.b16 %v337
  %v492 = vunpack.c.l.b16 %v338
  %v493 = vunpack.c.l.b16 %v339
  %v494 = vunpack.c.l.b16 %v340
  %v495 = vunpack.c.l.b16 %v341
  %v496 = vunpack.c.l.b16 %v342
  %v497 = vunpack.c.l.b16 %v343
  %v498 = vunpack.c.l.b16 %v344
  %v499 = vunpack.c.l.b16 %v345
  %v500 = vpack.c.b16 %v437, %v436
  %v501 = vpack.c.b16 %v439, %v438
  %v502 = vpack.c.b16 %v441, %v440
  %v503 = vpack.c.b16 %v443, %v442
  %v504 = vpack.c.b16 %v445, %v444
  %v505 = vpack.c.b16 %v447, %v446
  %v506 = vpack.c.b16 %v449, %v448
  %v507 = vpack.c.b16 %v451, %v450
  %v508 = vpack.c.b16 %v453, %v452
  %v509 = vpack.c.b16 %v455, %v454
  %v510 = vpack.c.b16 %v457, %v456
  %v511 = vpack.c.b16 %v459, %v458
  %v512 = vpack.c.b16 %v461, %v460
  %v513 = vpack.c.b16 %v463, %v462
  %v514 = vpack.c.b16 %v465, %v464
  %v515 = vpack.c.b16 %v467, %v466
  %v516 = vpack.c.b16 %v469, %v468
  %v517 = vpack.c.b16 %v471, %v470
  %v518 = vpack.c.b16 %v473, %v472
  %v519 = vpack.c.b16 %v475, %v474
  %v520 = vpack.c.b16 %v477, %v476
  %v521 = vpack.c.b16 %v479, %v478
  %v522 = vpack.c.b16 %v481, %v480
  %v523 = vpack.c.b16 %v483, %v482
  %v524 = vpack.c.b16 %v485, %v484
  %v525 = vpack.c.b16 %v487, %v486
  %v526 = vpack.c.b16 %v489, %v488
  %v527 = vpack.c.b16 %v491, %v490
  %v528 = vpack.c.b16 %v493, %v492
  %v529 = vpack.c.b16 %v495, %v494
  %v530 = vpack.c.b16 %v497, %v496
  %v531 = vpack.c.b16 %v499, %v498
  %564 = vmatpush.bf16.msra.mxu0 %v507
  %565 = vmatpush.bf16.msra.mxu0 %v506
  %566 = vmatpush.bf16.msra.mxu0 %v505
  %567 = vmatpush.bf16.msra.mxu0 %v504
  %568 = vmatpush.bf16.msra.mxu0 %v503
  %569 = vmatpush.bf16.msra.mxu0 %v502
  %570 = vmatpush.bf16.msra.mxu0 %v501
  %571 = vmatpush.bf16.msra.mxu0 %v500
  %572 = vmatmul.bf16.gmra.mxu0 %v346
  %v573 = vpop.f32.mrf.mxu0
  %v574 = vadd.f32 %v360, %v573
  %v575 = vpop.f32.mrf.mxu0
  %v576 = vadd.f32 %v365, %v575
  %577 = vmatmul.bf16.gmra.mxu0 %v350
  %v578 = vpop.f32.mrf.mxu0
  %v579 = vadd.f32 %v370, %v578
  %v580 = vpop.f32.mrf.mxu0
  %581 = vdwg.mxu0
  %582 = vmatpush.bf16.msra.mxu0 %v515
  %583 = vmatpush.bf16.msra.mxu0 %v514
  %584 = vmatpush.bf16.msra.mxu0 %v513
  %585 = vmatpush.bf16.msra.mxu0 %v512
  %586 = vmatpush.bf16.msra.mxu0 %v511
  %587 = vmatpush.bf16.msra.mxu0 %v510
  %588 = vmatpush.bf16.msra.mxu0 %v509
  %589 = vmatpush.bf16.msra.mxu0 %v508
  %590 = vmatmul.bf16.gmra.mxu0 %v347
  %v591 = vpop.f32.mrf.mxu0
  %v592 = vadd.f32 %v574, %v591
  %v593 = vpop.f32.mrf.mxu0
  %v594 = vadd.f32 %v576, %v593
  %595 = vmatmul.bf16.gmra.mxu0 %v351
  %v596 = vpop.f32.mrf.mxu0
  %v597 = vadd.f32 %v579, %v596
  %v598 = vpop.f32.mrf.mxu0
  %599 = vdwg.mxu0
  %600 = vmatpush.bf16.msra.mxu0 %v523
  %601 = vmatpush.bf16.msra.mxu0 %v522
  %602 = vmatpush.bf16.msra.mxu0 %v521
  %603 = vmatpush.bf16.msra.mxu0 %v520
  %604 = vmatpush.bf16.msra.mxu0 %v519
  %605 = vmatpush.bf16.msra.mxu0 %v518
  %606 = vmatpush.bf16.msra.mxu0 %v517
  %607 = vmatpush.bf16.msra.mxu0 %v516
  %608 = vmatmul.bf16.gmra.mxu0 %v348
  %v609 = vpop.f32.mrf.mxu0
  %v610 = vadd.f32 %v592, %v609
  %v611 = vpop.f32.mrf.mxu0
  %v612 = vadd.f32 %v594, %v611
  %613 = vmatmul.bf16.gmra.mxu0 %v352
  %v614 = vpop.f32.mrf.mxu0
  %v615 = vadd.f32 %v597, %v614
  %v616 = vpop.f32.mrf.mxu0
  %617 = vdwg.mxu0
  %618 = vmatpush.bf16.msra.mxu0 %v531
  %619 = vmatpush.bf16.msra.mxu0 %v530
  %620 = vmatpush.bf16.msra.mxu0 %v529
  %621 = vmatpush.bf16.msra.mxu0 %v528
  %622 = vmatpush.bf16.msra.mxu0 %v527
  %623 = vmatpush.bf16.msra.mxu0 %v526
  %624 = vmatpush.bf16.msra.mxu0 %v525
  %625 = vmatpush.bf16.msra.mxu0 %v524
  %626 = vmatmul.bf16.gmra.mxu0 %v349
  %v627 = vpop.f32.mrf.mxu0
  %v628 = vadd.f32 %v610, %v627
  %v629 = vpop.f32.mrf.mxu0
  %v630 = vadd.f32 %v612, %v629
  %631 = vmatmul.bf16.gmra.mxu0 %v353
  %v632 = vpop.f32.mrf.mxu0
  %v633 = vadd.f32 %v615, %v632
  %v634 = vpop.f32.mrf.mxu0
  %635 = vdwg.mxu0
  %v636 = vld [vmem:[%s5] sm:$0xf]
  %v637 = vld [vmem:[%s5 + $0x4] sm:$0xf]
  %v638 = vld [vmem:[%s5 + $0x8] sm:$0xf]
  %v639 = vld [vmem:[%s5 + $0xc] sm:$0xf]
  %v640 = vld [vmem:[%s5 + $0x10] sm:$0xf]
  %v641 = vld [vmem:[%s5 + $0x14] sm:$0xf]
  %v642 = vld [vmem:[%s6] sm:$0xff]
  %v643 = vld [vmem:[%s6 + $0x8] sm:$0xff]
  %v644 = vld [vmem:[%s6 + $0x10] sm:$0xff]
  %v645 = vld [vmem:[%s6 + $0x18] sm:$0xff]
  %v646 = vld [vmem:[%s6 + $0x20] sm:$0xff]
  %v647 = vld [vmem:[%s6 + $0x28] sm:$0xff]
  %v648 = vpack.c.bf16 %v630, %v628
  %v649 = vpack.c.bf16 %v633, %v633
  %v656 = vunpack.c.l.b16 %v636
  %v657 = vunpack.c.l.b16 %v637
  %v658 = vunpack.c.l.b16 %v638
  %v659 = vunpack.c.l.b16 %v639
  %v660 = vunpack.c.l.b16 %v640
  %v661 = vunpack.c.l.b16 %v641
  %v662 = vpack.c.b16 %v657, %v656
  %v663 = vpack.c.b16 %v659, %v658
  %v664 = vpack.c.b16 %v661, %v660
  %vm665 = vcmask 195584
  %v667 = vsel %vm665, %v662, 0
  %v670 = vsel %vm665, %v663, 0
  %v673 = vsel %vm665, %v664, 0
  %vm675 = vcmask 1043456
  %v677 = vsel %vm675, %v649, 0
  %679 = vmatpush.bf16.msra.mxu0 0
  %680 = vmatpush.bf16.msra.mxu0 0
  %681 = vmatpush.bf16.msra.mxu0 0
  %682 = vmatpush.bf16.msra.mxu0 0
  %683 = vmatpush.bf16.msra.mxu0 0
  %684 = vmatpush.bf16.msra.mxu0 0
  %685 = vmatpush.bf16.msra.mxu0 %v677
  %686 = vmatpush.bf16.msra.mxu0 %v648
  %687 = vmatmul.bf16.gmra.mxu0 %v667
  %v688 = vpop.f32.mrf.mxu0
  %v689 = vadd.f32 0.0, %v688
  %v690 = vpop.f32.mrf.mxu0
  %v691 = vadd.f32 0.0, %v690
  %692 = vmatmul.bf16.gmra.mxu0 %v670
  %v693 = vpop.f32.mrf.mxu0
  %v694 = vadd.f32 0.0, %v693
  %v695 = vpop.f32.mrf.mxu0
  %v696 = vadd.f32 0.0, %v695
  %697 = vmatmul.bf16.gmra.mxu0 %v673
  %v698 = vpop.f32.mrf.mxu0
  %v699 = vadd.f32 0.0, %v698
  %v700 = vpop.f32.mrf.mxu0
  %v701 = vadd.f32 0.0, %v700
  %702 = vdwg.mxu0
  %v704 = vperm.slane %v63, 0
  %v706 = vmul.f32 %v689, %v704
  %v707 = vmul.f32 %v691, %v704
  %v708 = vmul.f32 %v694, %v704
  %709 = vadd.xlane.f32.xlu0 %v706
  %v710 = vpop.xlane.xlu0 %709
  %711 = vadd.xlane.f32.xlu0 %v707
  %v712 = vpop.xlane.xlu0 %711
  %713 = vadd.xlane.f32.xlu0 %v708
  %v714 = vpop.xlane.xlu0 %713
  %v716 = vperm.slane %v65, 0
  %v718 = vmul.f32 %v696, %v716
  %v719 = vmul.f32 %v699, %v716
  %v720 = vmul.f32 %v701, %v716
  %721 = vadd.xlane.f32.xlu0 %v718
  %v722 = vpop.xlane.xlu0 %721
  %723 = vadd.xlane.f32.xlu0 %v719
  %v724 = vpop.xlane.xlu0 %723
  %725 = vadd.xlane.f32.xlu0 %v720
  %v726 = vpop.xlane.xlu0 %725
  %v727 = vadd.f32 %v710, %v642
  %v728 = vadd.f32 %v712, %v643
  %v729 = vadd.f32 %v714, %v644
  %v730 = vxor.u32 %v727, 2147483648
  %v731 = vxor.u32 %v728, 2147483648
  %v732 = vxor.u32 %v729, 2147483648
  %v733 = vmul.f32 %v730, 1.442695
  %v734 = vpow.pop %v733
  %v735 = vmul.f32 %v731, 1.442695
  %v736 = vpow.pop %v735
  %v737 = vmul.f32 %v732, 1.442695
  %v738 = vpow.pop %v737
  %v739 = vadd.f32 %v734, 1.0
  %v740 = vadd.f32 %v736, 1.0
  %v741 = vadd.f32 %v738, 1.0
  %v742 = vrcp.pop %v739
  %v743 = vmul.f32 %v739, %v742
  %v744 = vsub.f32 1.0, %v743
  %v745 = vmul.f32 %v742, %v744
  %v746 = vadd.f32 %v742, %v745
  %vm747 = vweird.f32 %v739
  %vm748 = vweird.f32 %v742
  %vm749 = vmor %vm747, %vm748
  %v750 = vsel %vm749, %v742, %v746
  %v751 = vand.u32 2147483647, %v739
  %vm752 = vcmp.eq.f32.partialorder %v751, 8.507059e+37
  %v753 = vand.u32 %v739, 2147483648
  %v754 = vor.u32 1.1754944e-38, %v753
  %v755 = vsel %vm752, %v754, %v750
  %v756 = vmul.f32 1.0, %v755
  %v757 = vrcp.pop %v740
  %v758 = vmul.f32 %v740, %v757
  %v759 = vsub.f32 1.0, %v758
  %v760 = vmul.f32 %v757, %v759
  %v761 = vadd.f32 %v757, %v760
  %vm762 = vweird.f32 %v740
  %vm763 = vweird.f32 %v757
  %vm764 = vmor %vm762, %vm763
  %v765 = vsel %vm764, %v757, %v761
  %v766 = vand.u32 2147483647, %v740
  %vm767 = vcmp.eq.f32.partialorder %v766, 8.507059e+37
  %v768 = vand.u32 %v740, 2147483648
  %v769 = vor.u32 1.1754944e-38, %v768
  %v770 = vsel %vm767, %v769, %v765
  %v771 = vmul.f32 1.0, %v770
  %v772 = vrcp.pop %v741
  %v773 = vmul.f32 %v741, %v772
  %v774 = vsub.f32 1.0, %v773
  %v775 = vmul.f32 %v772, %v774
  %v776 = vadd.f32 %v772, %v775
  %vm777 = vweird.f32 %v741
  %vm778 = vweird.f32 %v772
  %vm779 = vmor %vm777, %vm778
  %v780 = vsel %vm779, %v772, %v776
  %v781 = vand.u32 2147483647, %v741
  %vm782 = vcmp.eq.f32.partialorder %v781, 8.507059e+37
  %v783 = vand.u32 %v741, 2147483648
  %v784 = vor.u32 1.1754944e-38, %v783
  %v785 = vsel %vm782, %v784, %v780
  %v786 = vmul.f32 1.0, %v785
  %v787 = vadd.f32 %v722, %v645
  %v788 = vadd.f32 %v724, %v646
  %v789 = vadd.f32 %v726, %v647
  %v790 = vxor.u32 %v787, 2147483648
  %v791 = vxor.u32 %v788, 2147483648
  %v792 = vxor.u32 %v789, 2147483648
  %v793 = vmul.f32 %v790, 1.442695
  %v794 = vpow.pop %v793
  %v795 = vmul.f32 %v791, 1.442695
  %v796 = vpow.pop %v795
  %v797 = vmul.f32 %v792, 1.442695
  %v798 = vpow.pop %v797
  %v799 = vadd.f32 %v794, 1.0
  %v800 = vadd.f32 %v796, 1.0
  %v801 = vadd.f32 %v798, 1.0
  %v802 = vrcp.pop %v799
  %v803 = vmul.f32 %v799, %v802
  %v804 = vsub.f32 1.0, %v803
  %v805 = vmul.f32 %v802, %v804
  %v806 = vadd.f32 %v802, %v805
  %vm807 = vweird.f32 %v799
  %vm808 = vweird.f32 %v802
  %vm809 = vmor %vm807, %vm808
  %v810 = vsel %vm809, %v802, %v806
  %v811 = vand.u32 2147483647, %v799
  %vm812 = vcmp.eq.f32.partialorder %v811, 8.507059e+37
  %v813 = vand.u32 %v799, 2147483648
  %v814 = vor.u32 1.1754944e-38, %v813
  %v815 = vsel %vm812, %v814, %v810
  %v816 = vmul.f32 1.0, %v815
  %v817 = vrcp.pop %v800
  %v818 = vmul.f32 %v800, %v817
  %v819 = vsub.f32 1.0, %v818
  %v820 = vmul.f32 %v817, %v819
  %v821 = vadd.f32 %v817, %v820
  %vm822 = vweird.f32 %v800
  %vm823 = vweird.f32 %v817
  %vm824 = vmor %vm822, %vm823
  %v825 = vsel %vm824, %v817, %v821
  %v826 = vand.u32 2147483647, %v800
  %vm827 = vcmp.eq.f32.partialorder %v826, 8.507059e+37
  %v828 = vand.u32 %v800, 2147483648
  %v829 = vor.u32 1.1754944e-38, %v828
  %v830 = vsel %vm827, %v829, %v825
  %v831 = vmul.f32 1.0, %v830
  %v832 = vrcp.pop %v801
  %v833 = vmul.f32 %v801, %v832
  %v834 = vsub.f32 1.0, %v833
  %v835 = vmul.f32 %v832, %v834
  %v836 = vadd.f32 %v832, %v835
  %vm837 = vweird.f32 %v801
  %vm838 = vweird.f32 %v832
  %vm839 = vmor %vm837, %vm838
  %v840 = vsel %vm839, %v832, %v836
  %v841 = vand.u32 2147483647, %v801
  %vm842 = vcmp.eq.f32.partialorder %v841, 8.507059e+37
  %v843 = vand.u32 %v801, 2147483648
  %v844 = vor.u32 1.1754944e-38, %v843
  %v845 = vsel %vm842, %v844, %v840
  %v846 = vmul.f32 1.0, %v845
  %v847 = vmul.f32 %v756, %v816
  %v848 = vmul.f32 %v771, %v831
  %v849 = vmul.f32 %v786, %v846
  %v850 = vsub.f32 %v847, 0.2
  %v851 = vsub.f32 %v848, 0.2
  %v852 = vsub.f32 %v849, 0.2
  %v853 = vmul.f32 %v850, 2.0
  %v854 = vmul.f32 %v851, 2.0
  %v855 = vmul.f32 %v852, 2.0
  %v856 = vxor.u32 %v853, 2147483648
  %v857 = vxor.u32 %v854, 2147483648
  %v858 = vxor.u32 %v855, 2147483648
  %v859 = vmul.f32 %v856, 1.442695
  %v860 = vpow.pop %v859
  %v861 = vmul.f32 %v857, 1.442695
  %v862 = vpow.pop %v861
  %v863 = vmul.f32 %v858, 1.442695
  %v864 = vpow.pop %v863
  %v865 = vadd.f32 %v860, 1.0
  %v866 = vadd.f32 %v862, 1.0
  %v867 = vadd.f32 %v864, 1.0
  %v868 = vrcp.pop %v865
  %v869 = vmul.f32 %v865, %v868
  %v870 = vsub.f32 1.0, %v869
  %v871 = vmul.f32 %v868, %v870
  %v872 = vadd.f32 %v868, %v871
  %vm873 = vweird.f32 %v865
  %vm874 = vweird.f32 %v868
  %vm875 = vmor %vm873, %vm874
  %v876 = vsel %vm875, %v868, %v872
  %v877 = vand.u32 2147483647, %v865
  %vm878 = vcmp.eq.f32.partialorder %v877, 8.507059e+37
  %v879 = vand.u32 %v865, 2147483648
  %v880 = vor.u32 1.1754944e-38, %v879
  %v881 = vsel %vm878, %v880, %v876
  %v882 = vmul.f32 1.0, %v881
  %v883 = vrcp.pop %v866
  %v884 = vmul.f32 %v866, %v883
  %v885 = vsub.f32 1.0, %v884
  %v886 = vmul.f32 %v883, %v885
  %v887 = vadd.f32 %v883, %v886
  %vm888 = vweird.f32 %v866
  %vm889 = vweird.f32 %v883
  %vm890 = vmor %vm888, %vm889
  %v891 = vsel %vm890, %v883, %v887
  %v892 = vand.u32 2147483647, %v866
  %vm893 = vcmp.eq.f32.partialorder %v892, 8.507059e+37
  %v894 = vand.u32 %v866, 2147483648
  %v895 = vor.u32 1.1754944e-38, %v894
  %v896 = vsel %vm893, %v895, %v891
  %v897 = vmul.f32 1.0, %v896
  %v898 = vrcp.pop %v867
  %v899 = vmul.f32 %v867, %v898
  %v900 = vsub.f32 1.0, %v899
  %v901 = vmul.f32 %v898, %v900
  %v902 = vadd.f32 %v898, %v901
  %vm903 = vweird.f32 %v867
  %vm904 = vweird.f32 %v898
  %vm905 = vmor %vm903, %vm904
  %v906 = vsel %vm905, %v898, %v902
  %v907 = vand.u32 2147483647, %v867
  %vm908 = vcmp.eq.f32.partialorder %v907, 8.507059e+37
  %v909 = vand.u32 %v867, 2147483648
  %v910 = vor.u32 1.1754944e-38, %v909
  %v911 = vsel %vm908, %v910, %v906
  %v912 = vmul.f32 1.0, %v911
  %914 = vset.pattern.permute.xlu0 0
  %915 = vperm.xlu0 %914, %v882
  %v916 = vpop.permute.xlu0 %915
  %919 = vset.pattern.permute.xlu0 0
  %920 = vperm.xlu0 %919, %v897
  %v921 = vpop.permute.xlu0 %920
  %924 = vset.pattern.permute.xlu0 0
  %925 = vperm.xlu0 %924, %v912
  %v926 = vpop.permute.xlu0 %925
  %v928 = vmul.f32 %v628, %v916
  %v929 = vmul.f32 %v630, %v921
  %v930 = vmul.f32 %v633, %v926
  %v931 = vld [vmem:[%s10] sm:$0xff]
  %v932 = vld [vmem:[%s10 + $0x8] sm:$0xff]
  %v933 = vld [vmem:[%s10 + $0x10] sm:$0xff]
  %v934 = vld [vmem:[%s10 + $0x18] sm:$0xff]
  %v935 = vld [vmem:[%s10 + $0x20] sm:$0xff]
  %v936 = vld [vmem:[%s10 + $0x28] sm:$0xff]
  %v937 = vld [vmem:[%s10 + $0x30] sm:$0xff]
  %v938 = vld [vmem:[%s10 + $0x38] sm:$0xff]
  %v939 = vld [vmem:[%s10 + $0x40] sm:$0xff]
  %941 = vset.pattern.permute.xlu0 0
  %942 = vperm.xlu0 %941, %v931
  %v943 = vpop.permute.xlu0 %942
  %946 = vset.pattern.permute.xlu0 0
  %947 = vperm.xlu0 %946, %v932
  %v948 = vpop.permute.xlu0 %947
  %951 = vset.pattern.permute.xlu0 0
  %952 = vperm.xlu0 %951, %v933
  %v953 = vpop.permute.xlu0 %952
  %956 = vset.pattern.permute.xlu0 0
  %957 = vperm.xlu0 %956, %v934
  %v958 = vpop.permute.xlu0 %957
  %961 = vset.pattern.permute.xlu0 0
  %962 = vperm.xlu0 %961, %v935
  %v963 = vpop.permute.xlu0 %962
  %966 = vset.pattern.permute.xlu0 0
  %967 = vperm.xlu0 %966, %v936
  %v968 = vpop.permute.xlu0 %967
  %971 = vset.pattern.permute.xlu0 0
  %972 = vperm.xlu0 %971, %v937
  %v973 = vpop.permute.xlu0 %972
  %976 = vset.pattern.permute.xlu0 0
  %977 = vperm.xlu0 %976, %v938
  %v978 = vpop.permute.xlu0 %977
  %981 = vset.pattern.permute.xlu0 0
  %982 = vperm.xlu0 %981, %v939
  %v983 = vpop.permute.xlu0 %982
  %v985 = vmul.f32 %v928, %v943
  %v986 = vmul.f32 %v929, %v948
  %v987 = vmul.f32 %v930, %v953
  %v988 = vmul.f32 %v928, %v958
  %v989 = vmul.f32 %v929, %v963
  %v990 = vmul.f32 %v930, %v968
  %v991 = vmul.f32 %v928, %v973
  %v992 = vmul.f32 %v929, %v978
  %v993 = vmul.f32 %v930, %v983
  %994 = vset.pattern.permute.xlu0 1
  %995 = vperm.xlu0 %994, %v931
  %v996 = vpop.permute.xlu0 %995
  %998 = vset.pattern.permute.xlu0 1
  %999 = vperm.xlu0 %998, %v932
  %v1000 = vpop.permute.xlu0 %999
  %1002 = vset.pattern.permute.xlu0 1
  %1003 = vperm.xlu0 %1002, %v933
  %v1004 = vpop.permute.xlu0 %1003
  %1006 = vset.pattern.permute.xlu0 1
  %1007 = vperm.xlu0 %1006, %v934
  %v1008 = vpop.permute.xlu0 %1007
  %1010 = vset.pattern.permute.xlu0 1
  %1011 = vperm.xlu0 %1010, %v935
  %v1012 = vpop.permute.xlu0 %1011
  %1014 = vset.pattern.permute.xlu0 1
  %1015 = vperm.xlu0 %1014, %v936
  %v1016 = vpop.permute.xlu0 %1015
  %1018 = vset.pattern.permute.xlu0 1
  %1019 = vperm.xlu0 %1018, %v937
  %v1020 = vpop.permute.xlu0 %1019
  %1022 = vset.pattern.permute.xlu0 1
  %1023 = vperm.xlu0 %1022, %v938
  %v1024 = vpop.permute.xlu0 %1023
  %1026 = vset.pattern.permute.xlu0 1
  %1027 = vperm.xlu0 %1026, %v939
  %v1028 = vpop.permute.xlu0 %1027
  %v1030 = vadd.f32 %v985, %v996
  %v1031 = vadd.f32 %v986, %v1000
  %v1032 = vadd.f32 %v987, %v1004
  %v1033 = vadd.f32 %v988, %v1008
  %v1034 = vadd.f32 %v989, %v1012
  %v1035 = vadd.f32 %v990, %v1016
  %v1036 = vadd.f32 %v991, %v1020
  %v1037 = vadd.f32 %v992, %v1024
  %v1038 = vadd.f32 %v993, %v1028
  %v1039 = vld [vmem:[%s7] sm:$0xf]
  %v1040 = vld [vmem:[%s7 + $0x4] sm:$0xf]
  %v1041 = vld [vmem:[%s7 + $0x8] sm:$0xf]
  %v1042 = vld [vmem:[%s7 + $0xc] sm:$0xf]
  %v1043 = vld [vmem:[%s7 + $0x10] sm:$0xf]
  %v1044 = vld [vmem:[%s7 + $0x14] sm:$0xf]
  %v1045 = vld [vmem:[%s7 + $0x18] sm:$0xf]
  %v1046 = vld [vmem:[%s7 + $0x1c] sm:$0xf]
  %v1047 = vld [vmem:[%s7 + $0x20] sm:$0xf]
  %v1048 = vld [vmem:[%s7 + $0x24] sm:$0xf]
  %v1049 = vld [vmem:[%s7 + $0x28] sm:$0xf]
  %v1050 = vld [vmem:[%s7 + $0x2c] sm:$0xf]
  %v1051 = vld [vmem:[%s7 + $0x30] sm:$0xf]
  %v1052 = vld [vmem:[%s7 + $0x34] sm:$0xf]
  %v1053 = vld [vmem:[%s7 + $0x38] sm:$0xf]
  %v1054 = vld [vmem:[%s7 + $0x3c] sm:$0xf]
  %v1055 = vld [vmem:[%s7 + $0x40] sm:$0xf]
  %v1056 = vld [vmem:[%s7 + $0x44] sm:$0xf]
  %v1057 = vld [vmem:[%s8] sm:$0xff]
  %v1058 = vld [vmem:[%s8 + $0x8] sm:$0xff]
  %v1059 = vld [vmem:[%s8 + $0x10] sm:$0xff]
  %v1060 = vld [vmem:[%s8 + $0x18] sm:$0xff]
  %v1061 = vld [vmem:[%s8 + $0x20] sm:$0xff]
  %v1062 = vld [vmem:[%s8 + $0x28] sm:$0xff]
  %v1063 = vld [vmem:[%s8 + $0x30] sm:$0xff]
  %v1064 = vld [vmem:[%s8 + $0x38] sm:$0xff]
  %v1065 = vld [vmem:[%s8 + $0x40] sm:$0xff]
  %v1066 = vld [vmem:[%s8 + $0x48] sm:$0xff]
  %v1067 = vld [vmem:[%s8 + $0x50] sm:$0xff]
  %v1068 = vld [vmem:[%s8 + $0x58] sm:$0xff]
  %v1069 = vld [vmem:[%s8 + $0x60] sm:$0xff]
  %v1070 = vld [vmem:[%s8 + $0x68] sm:$0xff]
  %v1071 = vld [vmem:[%s8 + $0x70] sm:$0xff]
  %v1072 = vld [vmem:[%s8 + $0x78] sm:$0xff]
  %v1073 = vld [vmem:[%s8 + $0x80] sm:$0xff]
  %v1074 = vld [vmem:[%s8 + $0x88] sm:$0xff]
  %v1075 = vpack.c.bf16 %v1031, %v1030
  %v1076 = vpack.c.bf16 %v1033, %v1032
  %v1077 = vpack.c.bf16 %v1035, %v1034
  %v1078 = vpack.c.bf16 %v1037, %v1036
  %v1079 = vpack.c.bf16 %v1038, %v1038
  %v1098 = vunpack.c.l.b16 %v1039
  %v1099 = vunpack.c.l.b16 %v1040
  %v1100 = vunpack.c.l.b16 %v1041
  %v1101 = vunpack.c.l.b16 %v1042
  %v1102 = vunpack.c.l.b16 %v1043
  %v1103 = vunpack.c.l.b16 %v1044
  %v1104 = vunpack.c.l.b16 %v1045
  %v1105 = vunpack.c.l.b16 %v1046
  %v1106 = vunpack.c.l.b16 %v1047
  %v1107 = vunpack.c.l.b16 %v1048
  %v1108 = vunpack.c.l.b16 %v1049
  %v1109 = vunpack.c.l.b16 %v1050
  %v1110 = vunpack.c.l.b16 %v1051
  %v1111 = vunpack.c.l.b16 %v1052
  %v1112 = vunpack.c.l.b16 %v1053
  %v1113 = vunpack.c.l.b16 %v1054
  %v1114 = vunpack.c.l.b16 %v1055
  %v1115 = vunpack.c.l.b16 %v1056
  %v1116 = vpack.c.b16 %v1099, %v1098
  %v1117 = vpack.c.b16 %v1101, %v1100
  %v1118 = vpack.c.b16 %v1103, %v1102
  %v1119 = vpack.c.b16 %v1105, %v1104
  %v1120 = vpack.c.b16 %v1107, %v1106
  %v1121 = vpack.c.b16 %v1109, %v1108
  %v1122 = vpack.c.b16 %v1111, %v1110
  %v1123 = vpack.c.b16 %v1113, %v1112
  %v1124 = vpack.c.b16 %v1115, %v1114
  %vm1125 = vcmask 588800
  %v1127 = vsel %vm1125, %v1116, 0
  %v1130 = vsel %vm1125, %v1117, 0
  %v1133 = vsel %vm1125, %v1118, 0
  %v1136 = vsel %vm1125, %v1119, 0
  %v1139 = vsel %vm1125, %v1120, 0
  %v1142 = vsel %vm1125, %v1121, 0
  %v1145 = vsel %vm1125, %v1122, 0
  %v1148 = vsel %vm1125, %v1123, 0
  %v1151 = vsel %vm1125, %v1124, 0
  %v1154 = vsel %vm675, %v1079, 0
  %1156 = vmatpush.bf16.msra.mxu0 0
  %1157 = vmatpush.bf16.msra.mxu0 0
  %1158 = vmatpush.bf16.msra.mxu0 0
  %1159 = vmatpush.bf16.msra.mxu0 %v1154
  %1160 = vmatpush.bf16.msra.mxu0 %v1078
  %1161 = vmatpush.bf16.msra.mxu0 %v1077
  %1162 = vmatpush.bf16.msra.mxu0 %v1076
  %1163 = vmatpush.bf16.msra.mxu0 %v1075
  %1164 = vmatmul.bf16.gmra.mxu0 %v1127
  %v1165 = vpop.f32.mrf.mxu0
  %v1166 = vadd.f32 0.0, %v1165
  %v1167 = vpop.f32.mrf.mxu0
  %v1168 = vadd.f32 0.0, %v1167
  %1169 = vmatmul.bf16.gmra.mxu0 %v1130
  %v1170 = vpop.f32.mrf.mxu0
  %v1171 = vadd.f32 0.0, %v1170
  %v1172 = vpop.f32.mrf.mxu0
  %v1173 = vadd.f32 0.0, %v1172
  %1174 = vmatmul.bf16.gmra.mxu0 %v1133
  %v1175 = vpop.f32.mrf.mxu0
  %v1176 = vadd.f32 0.0, %v1175
  %v1177 = vpop.f32.mrf.mxu0
  %v1178 = vadd.f32 0.0, %v1177
  %1179 = vmatmul.bf16.gmra.mxu0 %v1136
  %v1180 = vpop.f32.mrf.mxu0
  %v1181 = vadd.f32 0.0, %v1180
  %v1182 = vpop.f32.mrf.mxu0
  %v1183 = vadd.f32 0.0, %v1182
  %1184 = vmatmul.bf16.gmra.mxu0 %v1139
  %v1185 = vpop.f32.mrf.mxu0
  %v1186 = vadd.f32 0.0, %v1185
  %v1187 = vpop.f32.mrf.mxu0
  %v1188 = vadd.f32 0.0, %v1187
  %1189 = vmatmul.bf16.gmra.mxu0 %v1142
  %v1190 = vpop.f32.mrf.mxu0
  %v1191 = vadd.f32 0.0, %v1190
  %v1192 = vpop.f32.mrf.mxu0
  %v1193 = vadd.f32 0.0, %v1192
  %1194 = vmatmul.bf16.gmra.mxu0 %v1145
  %v1195 = vpop.f32.mrf.mxu0
  %v1196 = vadd.f32 0.0, %v1195
  %v1197 = vpop.f32.mrf.mxu0
  %v1198 = vadd.f32 0.0, %v1197
  %1199 = vmatmul.bf16.gmra.mxu0 %v1148
  %v1200 = vpop.f32.mrf.mxu0
  %v1201 = vadd.f32 0.0, %v1200
  %v1202 = vpop.f32.mrf.mxu0
  %v1203 = vadd.f32 0.0, %v1202
  %1204 = vmatmul.bf16.gmra.mxu0 %v1151
  %v1205 = vpop.f32.mrf.mxu0
  %v1206 = vadd.f32 0.0, %v1205
  %v1207 = vpop.f32.mrf.mxu0
  %v1208 = vadd.f32 0.0, %v1207
  %1209 = vdwg.mxu0
  %v1210 = vmul.f32 %v1166, %v704
  %v1211 = vmul.f32 %v1168, %v704
  %v1212 = vmul.f32 %v1171, %v704
  %v1213 = vmul.f32 %v1173, %v704
  %v1214 = vmul.f32 %v1176, %v704
  %v1215 = vmul.f32 %v1178, %v704
  %v1216 = vmul.f32 %v1181, %v704
  %v1217 = vmul.f32 %v1183, %v704
  %v1218 = vmul.f32 %v1186, %v704
  %1219 = vadd.xlane.f32.xlu0 %v1210
  %v1220 = vpop.xlane.xlu0 %1219
  %1221 = vadd.xlane.f32.xlu0 %v1211
  %v1222 = vpop.xlane.xlu0 %1221
  %1223 = vadd.xlane.f32.xlu0 %v1212
  %v1224 = vpop.xlane.xlu0 %1223
  %1225 = vadd.xlane.f32.xlu0 %v1213
  %v1226 = vpop.xlane.xlu0 %1225
  %1227 = vadd.xlane.f32.xlu0 %v1214
  %v1228 = vpop.xlane.xlu0 %1227
  %1229 = vadd.xlane.f32.xlu0 %v1215
  %v1230 = vpop.xlane.xlu0 %1229
  %1231 = vadd.xlane.f32.xlu0 %v1216
  %v1232 = vpop.xlane.xlu0 %1231
  %1233 = vadd.xlane.f32.xlu0 %v1217
  %v1234 = vpop.xlane.xlu0 %1233
  %1235 = vadd.xlane.f32.xlu0 %v1218
  %v1236 = vpop.xlane.xlu0 %1235
  %v1237 = vmul.f32 %v1188, %v716
  %v1238 = vmul.f32 %v1191, %v716
  %v1239 = vmul.f32 %v1193, %v716
  %v1240 = vmul.f32 %v1196, %v716
  %v1241 = vmul.f32 %v1198, %v716
  %v1242 = vmul.f32 %v1201, %v716
  %v1243 = vmul.f32 %v1203, %v716
  %v1244 = vmul.f32 %v1206, %v716
  %v1245 = vmul.f32 %v1208, %v716
  %1246 = vadd.xlane.f32.xlu0 %v1237
  %v1247 = vpop.xlane.xlu0 %1246
  %1248 = vadd.xlane.f32.xlu0 %v1238
  %v1249 = vpop.xlane.xlu0 %1248
  %1250 = vadd.xlane.f32.xlu0 %v1239
  %v1251 = vpop.xlane.xlu0 %1250
  %1252 = vadd.xlane.f32.xlu0 %v1240
  %v1253 = vpop.xlane.xlu0 %1252
  %1254 = vadd.xlane.f32.xlu0 %v1241
  %v1255 = vpop.xlane.xlu0 %1254
  %1256 = vadd.xlane.f32.xlu0 %v1242
  %v1257 = vpop.xlane.xlu0 %1256
  %1258 = vadd.xlane.f32.xlu0 %v1243
  %v1259 = vpop.xlane.xlu0 %1258
  %1260 = vadd.xlane.f32.xlu0 %v1244
  %v1261 = vpop.xlane.xlu0 %1260
  %1262 = vadd.xlane.f32.xlu0 %v1245
  %v1263 = vpop.xlane.xlu0 %1262
  %v1264 = vadd.f32 %v1220, %v1057
  %v1265 = vadd.f32 %v1222, %v1058
  %v1266 = vadd.f32 %v1224, %v1059
  %v1267 = vadd.f32 %v1226, %v1060
  %v1268 = vadd.f32 %v1228, %v1061
  %v1269 = vadd.f32 %v1230, %v1062
  %v1270 = vadd.f32 %v1232, %v1063
  %v1271 = vadd.f32 %v1234, %v1064
  %v1272 = vadd.f32 %v1236, %v1065
  %v1273 = vxor.u32 %v1264, 2147483648
  %v1274 = vxor.u32 %v1265, 2147483648
  %v1275 = vxor.u32 %v1266, 2147483648
  %v1276 = vxor.u32 %v1267, 2147483648
  %v1277 = vxor.u32 %v1268, 2147483648
  %v1278 = vxor.u32 %v1269, 2147483648
  %v1279 = vxor.u32 %v1270, 2147483648
  %v1280 = vxor.u32 %v1271, 2147483648
  %v1281 = vxor.u32 %v1272, 2147483648
  %v1282 = vmul.f32 %v1273, 1.442695
  %v1283 = vpow.pop %v1282
  %v1284 = vmul.f32 %v1274, 1.442695
  %v1285 = vpow.pop %v1284
  %v1286 = vmul.f32 %v1275, 1.442695
  %v1287 = vpow.pop %v1286
  %v1288 = vmul.f32 %v1276, 1.442695
  %v1289 = vpow.pop %v1288
  %v1290 = vmul.f32 %v1277, 1.442695
  %v1291 = vpow.pop %v1290
  %v1292 = vmul.f32 %v1278, 1.442695
  %v1293 = vpow.pop %v1292
  %v1294 = vmul.f32 %v1279, 1.442695
  %v1295 = vpow.pop %v1294
  %v1296 = vmul.f32 %v1280, 1.442695
  %v1297 = vpow.pop %v1296
  %v1298 = vmul.f32 %v1281, 1.442695
  %v1299 = vpow.pop %v1298
  %v1300 = vadd.f32 %v1283, 1.0
  %v1301 = vadd.f32 %v1285, 1.0
  %v1302 = vadd.f32 %v1287, 1.0
  %v1303 = vadd.f32 %v1289, 1.0
  %v1304 = vadd.f32 %v1291, 1.0
  %v1305 = vadd.f32 %v1293, 1.0
  %v1306 = vadd.f32 %v1295, 1.0
  %v1307 = vadd.f32 %v1297, 1.0
  %v1308 = vadd.f32 %v1299, 1.0
  %v1309 = vrcp.pop %v1300
  %v1310 = vmul.f32 %v1300, %v1309
  %v1311 = vsub.f32 1.0, %v1310
  %v1312 = vmul.f32 %v1309, %v1311
  %v1313 = vadd.f32 %v1309, %v1312
  %vm1314 = vweird.f32 %v1300
  %vm1315 = vweird.f32 %v1309
  %vm1316 = vmor %vm1314, %vm1315
  %v1317 = vsel %vm1316, %v1309, %v1313
  %v1318 = vand.u32 2147483647, %v1300
  %vm1319 = vcmp.eq.f32.partialorder %v1318, 8.507059e+37
  %v1320 = vand.u32 %v1300, 2147483648
  %v1321 = vor.u32 1.1754944e-38, %v1320
  %v1322 = vsel %vm1319, %v1321, %v1317
  %v1323 = vmul.f32 1.0, %v1322
  %v1324 = vrcp.pop %v1301
  %v1325 = vmul.f32 %v1301, %v1324
  %v1326 = vsub.f32 1.0, %v1325
  %v1327 = vmul.f32 %v1324, %v1326
  %v1328 = vadd.f32 %v1324, %v1327
  %vm1329 = vweird.f32 %v1301
  %vm1330 = vweird.f32 %v1324
  %vm1331 = vmor %vm1329, %vm1330
  %v1332 = vsel %vm1331, %v1324, %v1328
  %v1333 = vand.u32 2147483647, %v1301
  %vm1334 = vcmp.eq.f32.partialorder %v1333, 8.507059e+37
  %v1335 = vand.u32 %v1301, 2147483648
  %v1336 = vor.u32 1.1754944e-38, %v1335
  %v1337 = vsel %vm1334, %v1336, %v1332
  %v1338 = vmul.f32 1.0, %v1337
  %v1339 = vrcp.pop %v1302
  %v1340 = vmul.f32 %v1302, %v1339
  %v1341 = vsub.f32 1.0, %v1340
  %v1342 = vmul.f32 %v1339, %v1341
  %v1343 = vadd.f32 %v1339, %v1342
  %vm1344 = vweird.f32 %v1302
  %vm1345 = vweird.f32 %v1339
  %vm1346 = vmor %vm1344, %vm1345
  %v1347 = vsel %vm1346, %v1339, %v1343
  %v1348 = vand.u32 2147483647, %v1302
  %vm1349 = vcmp.eq.f32.partialorder %v1348, 8.507059e+37
  %v1350 = vand.u32 %v1302, 2147483648
  %v1351 = vor.u32 1.1754944e-38, %v1350
  %v1352 = vsel %vm1349, %v1351, %v1347
  %v1353 = vmul.f32 1.0, %v1352
  %v1354 = vrcp.pop %v1303
  %v1355 = vmul.f32 %v1303, %v1354
  %v1356 = vsub.f32 1.0, %v1355
  %v1357 = vmul.f32 %v1354, %v1356
  %v1358 = vadd.f32 %v1354, %v1357
  %vm1359 = vweird.f32 %v1303
  %vm1360 = vweird.f32 %v1354
  %vm1361 = vmor %vm1359, %vm1360
  %v1362 = vsel %vm1361, %v1354, %v1358
  %v1363 = vand.u32 2147483647, %v1303
  %vm1364 = vcmp.eq.f32.partialorder %v1363, 8.507059e+37
  %v1365 = vand.u32 %v1303, 2147483648
  %v1366 = vor.u32 1.1754944e-38, %v1365
  %v1367 = vsel %vm1364, %v1366, %v1362
  %v1368 = vmul.f32 1.0, %v1367
  %v1369 = vrcp.pop %v1304
  %v1370 = vmul.f32 %v1304, %v1369
  %v1371 = vsub.f32 1.0, %v1370
  %v1372 = vmul.f32 %v1369, %v1371
  %v1373 = vadd.f32 %v1369, %v1372
  %vm1374 = vweird.f32 %v1304
  %vm1375 = vweird.f32 %v1369
  %vm1376 = vmor %vm1374, %vm1375
  %v1377 = vsel %vm1376, %v1369, %v1373
  %v1378 = vand.u32 2147483647, %v1304
  %vm1379 = vcmp.eq.f32.partialorder %v1378, 8.507059e+37
  %v1380 = vand.u32 %v1304, 2147483648
  %v1381 = vor.u32 1.1754944e-38, %v1380
  %v1382 = vsel %vm1379, %v1381, %v1377
  %v1383 = vmul.f32 1.0, %v1382
  %v1384 = vrcp.pop %v1305
  %v1385 = vmul.f32 %v1305, %v1384
  %v1386 = vsub.f32 1.0, %v1385
  %v1387 = vmul.f32 %v1384, %v1386
  %v1388 = vadd.f32 %v1384, %v1387
  %vm1389 = vweird.f32 %v1305
  %vm1390 = vweird.f32 %v1384
  %vm1391 = vmor %vm1389, %vm1390
  %v1392 = vsel %vm1391, %v1384, %v1388
  %v1393 = vand.u32 2147483647, %v1305
  %vm1394 = vcmp.eq.f32.partialorder %v1393, 8.507059e+37
  %v1395 = vand.u32 %v1305, 2147483648
  %v1396 = vor.u32 1.1754944e-38, %v1395
  %v1397 = vsel %vm1394, %v1396, %v1392
  %v1398 = vmul.f32 1.0, %v1397
  %v1399 = vrcp.pop %v1306
  %v1400 = vmul.f32 %v1306, %v1399
  %v1401 = vsub.f32 1.0, %v1400
  %v1402 = vmul.f32 %v1399, %v1401
  %v1403 = vadd.f32 %v1399, %v1402
  %vm1404 = vweird.f32 %v1306
  %vm1405 = vweird.f32 %v1399
  %vm1406 = vmor %vm1404, %vm1405
  %v1407 = vsel %vm1406, %v1399, %v1403
  %v1408 = vand.u32 2147483647, %v1306
  %vm1409 = vcmp.eq.f32.partialorder %v1408, 8.507059e+37
  %v1410 = vand.u32 %v1306, 2147483648
  %v1411 = vor.u32 1.1754944e-38, %v1410
  %v1412 = vsel %vm1409, %v1411, %v1407
  %v1413 = vmul.f32 1.0, %v1412
  %v1414 = vrcp.pop %v1307
  %v1415 = vmul.f32 %v1307, %v1414
  %v1416 = vsub.f32 1.0, %v1415
  %v1417 = vmul.f32 %v1414, %v1416
  %v1418 = vadd.f32 %v1414, %v1417
  %vm1419 = vweird.f32 %v1307
  %vm1420 = vweird.f32 %v1414
  %vm1421 = vmor %vm1419, %vm1420
  %v1422 = vsel %vm1421, %v1414, %v1418
  %v1423 = vand.u32 2147483647, %v1307
  %vm1424 = vcmp.eq.f32.partialorder %v1423, 8.507059e+37
  %v1425 = vand.u32 %v1307, 2147483648
  %v1426 = vor.u32 1.1754944e-38, %v1425
  %v1427 = vsel %vm1424, %v1426, %v1422
  %v1428 = vmul.f32 1.0, %v1427
  %v1429 = vrcp.pop %v1308
  %v1430 = vmul.f32 %v1308, %v1429
  %v1431 = vsub.f32 1.0, %v1430
  %v1432 = vmul.f32 %v1429, %v1431
  %v1433 = vadd.f32 %v1429, %v1432
  %vm1434 = vweird.f32 %v1308
  %vm1435 = vweird.f32 %v1429
  %vm1436 = vmor %vm1434, %vm1435
  %v1437 = vsel %vm1436, %v1429, %v1433
  %v1438 = vand.u32 2147483647, %v1308
  %vm1439 = vcmp.eq.f32.partialorder %v1438, 8.507059e+37
  %v1440 = vand.u32 %v1308, 2147483648
  %v1441 = vor.u32 1.1754944e-38, %v1440
  %v1442 = vsel %vm1439, %v1441, %v1437
  %v1443 = vmul.f32 1.0, %v1442
  %v1444 = vadd.f32 %v1247, %v1066
  %v1445 = vadd.f32 %v1249, %v1067
  %v1446 = vadd.f32 %v1251, %v1068
  %v1447 = vadd.f32 %v1253, %v1069
  %v1448 = vadd.f32 %v1255, %v1070
  %v1449 = vadd.f32 %v1257, %v1071
  %v1450 = vadd.f32 %v1259, %v1072
  %v1451 = vadd.f32 %v1261, %v1073
  %v1452 = vadd.f32 %v1263, %v1074
  %v1453 = vxor.u32 %v1444, 2147483648
  %v1454 = vxor.u32 %v1445, 2147483648
  %v1455 = vxor.u32 %v1446, 2147483648
  %v1456 = vxor.u32 %v1447, 2147483648
  %v1457 = vxor.u32 %v1448, 2147483648
  %v1458 = vxor.u32 %v1449, 2147483648
  %v1459 = vxor.u32 %v1450, 2147483648
  %v1460 = vxor.u32 %v1451, 2147483648
  %v1461 = vxor.u32 %v1452, 2147483648
  %v1462 = vmul.f32 %v1453, 1.442695
  %v1463 = vpow.pop %v1462
  %v1464 = vmul.f32 %v1454, 1.442695
  %v1465 = vpow.pop %v1464
  %v1466 = vmul.f32 %v1455, 1.442695
  %v1467 = vpow.pop %v1466
  %v1468 = vmul.f32 %v1456, 1.442695
  %v1469 = vpow.pop %v1468
  %v1470 = vmul.f32 %v1457, 1.442695
  %v1471 = vpow.pop %v1470
  %v1472 = vmul.f32 %v1458, 1.442695
  %v1473 = vpow.pop %v1472
  %v1474 = vmul.f32 %v1459, 1.442695
  %v1475 = vpow.pop %v1474
  %v1476 = vmul.f32 %v1460, 1.442695
  %v1477 = vpow.pop %v1476
  %v1478 = vmul.f32 %v1461, 1.442695
  %v1479 = vpow.pop %v1478
  %v1480 = vadd.f32 %v1463, 1.0
  %v1481 = vadd.f32 %v1465, 1.0
  %v1482 = vadd.f32 %v1467, 1.0
  %v1483 = vadd.f32 %v1469, 1.0
  %v1484 = vadd.f32 %v1471, 1.0
  %v1485 = vadd.f32 %v1473, 1.0
  %v1486 = vadd.f32 %v1475, 1.0
  %v1487 = vadd.f32 %v1477, 1.0
  %v1488 = vadd.f32 %v1479, 1.0
  %v1489 = vrcp.pop %v1480
  %v1490 = vmul.f32 %v1480, %v1489
  %v1491 = vsub.f32 1.0, %v1490
  %v1492 = vmul.f32 %v1489, %v1491
  %v1493 = vadd.f32 %v1489, %v1492
  %vm1494 = vweird.f32 %v1480
  %vm1495 = vweird.f32 %v1489
  %vm1496 = vmor %vm1494, %vm1495
  %v1497 = vsel %vm1496, %v1489, %v1493
  %v1498 = vand.u32 2147483647, %v1480
  %vm1499 = vcmp.eq.f32.partialorder %v1498, 8.507059e+37
  %v1500 = vand.u32 %v1480, 2147483648
  %v1501 = vor.u32 1.1754944e-38, %v1500
  %v1502 = vsel %vm1499, %v1501, %v1497
  %v1503 = vmul.f32 1.0, %v1502
  %v1504 = vrcp.pop %v1481
  %v1505 = vmul.f32 %v1481, %v1504
  %v1506 = vsub.f32 1.0, %v1505
  %v1507 = vmul.f32 %v1504, %v1506
  %v1508 = vadd.f32 %v1504, %v1507
  %vm1509 = vweird.f32 %v1481
  %vm1510 = vweird.f32 %v1504
  %vm1511 = vmor %vm1509, %vm1510
  %v1512 = vsel %vm1511, %v1504, %v1508
  %v1513 = vand.u32 2147483647, %v1481
  %vm1514 = vcmp.eq.f32.partialorder %v1513, 8.507059e+37
  %v1515 = vand.u32 %v1481, 2147483648
  %v1516 = vor.u32 1.1754944e-38, %v1515
  %v1517 = vsel %vm1514, %v1516, %v1512
  %v1518 = vmul.f32 1.0, %v1517
  %v1519 = vrcp.pop %v1482
  %v1520 = vmul.f32 %v1482, %v1519
  %v1521 = vsub.f32 1.0, %v1520
  %v1522 = vmul.f32 %v1519, %v1521
  %v1523 = vadd.f32 %v1519, %v1522
  %vm1524 = vweird.f32 %v1482
  %vm1525 = vweird.f32 %v1519
  %vm1526 = vmor %vm1524, %vm1525
  %v1527 = vsel %vm1526, %v1519, %v1523
  %v1528 = vand.u32 2147483647, %v1482
  %vm1529 = vcmp.eq.f32.partialorder %v1528, 8.507059e+37
  %v1530 = vand.u32 %v1482, 2147483648
  %v1531 = vor.u32 1.1754944e-38, %v1530
  %v1532 = vsel %vm1529, %v1531, %v1527
  %v1533 = vmul.f32 1.0, %v1532
  %v1534 = vrcp.pop %v1483
  %v1535 = vmul.f32 %v1483, %v1534
  %v1536 = vsub.f32 1.0, %v1535
  %v1537 = vmul.f32 %v1534, %v1536
  %v1538 = vadd.f32 %v1534, %v1537
  %vm1539 = vweird.f32 %v1483
  %vm1540 = vweird.f32 %v1534
  %vm1541 = vmor %vm1539, %vm1540
  %v1542 = vsel %vm1541, %v1534, %v1538
  %v1543 = vand.u32 2147483647, %v1483
  %vm1544 = vcmp.eq.f32.partialorder %v1543, 8.507059e+37
  %v1545 = vand.u32 %v1483, 2147483648
  %v1546 = vor.u32 1.1754944e-38, %v1545
  %v1547 = vsel %vm1544, %v1546, %v1542
  %v1548 = vmul.f32 1.0, %v1547
  %v1549 = vrcp.pop %v1484
  %v1550 = vmul.f32 %v1484, %v1549
  %v1551 = vsub.f32 1.0, %v1550
  %v1552 = vmul.f32 %v1549, %v1551
  %v1553 = vadd.f32 %v1549, %v1552
  %vm1554 = vweird.f32 %v1484
  %vm1555 = vweird.f32 %v1549
  %vm1556 = vmor %vm1554, %vm1555
  %v1557 = vsel %vm1556, %v1549, %v1553
  %v1558 = vand.u32 2147483647, %v1484
  %vm1559 = vcmp.eq.f32.partialorder %v1558, 8.507059e+37
  %v1560 = vand.u32 %v1484, 2147483648
  %v1561 = vor.u32 1.1754944e-38, %v1560
  %v1562 = vsel %vm1559, %v1561, %v1557
  %v1563 = vmul.f32 1.0, %v1562
  %v1564 = vrcp.pop %v1485
  %v1565 = vmul.f32 %v1485, %v1564
  %v1566 = vsub.f32 1.0, %v1565
  %v1567 = vmul.f32 %v1564, %v1566
  %v1568 = vadd.f32 %v1564, %v1567
  %vm1569 = vweird.f32 %v1485
  %vm1570 = vweird.f32 %v1564
  %vm1571 = vmor %vm1569, %vm1570
  %v1572 = vsel %vm1571, %v1564, %v1568
  %v1573 = vand.u32 2147483647, %v1485
  %vm1574 = vcmp.eq.f32.partialorder %v1573, 8.507059e+37
  %v1575 = vand.u32 %v1485, 2147483648
  %v1576 = vor.u32 1.1754944e-38, %v1575
  %v1577 = vsel %vm1574, %v1576, %v1572
  %v1578 = vmul.f32 1.0, %v1577
  %v1579 = vrcp.pop %v1486
  %v1580 = vmul.f32 %v1486, %v1579
  %v1581 = vsub.f32 1.0, %v1580
  %v1582 = vmul.f32 %v1579, %v1581
  %v1583 = vadd.f32 %v1579, %v1582
  %vm1584 = vweird.f32 %v1486
  %vm1585 = vweird.f32 %v1579
  %vm1586 = vmor %vm1584, %vm1585
  %v1587 = vsel %vm1586, %v1579, %v1583
  %v1588 = vand.u32 2147483647, %v1486
  %vm1589 = vcmp.eq.f32.partialorder %v1588, 8.507059e+37
  %v1590 = vand.u32 %v1486, 2147483648
  %v1591 = vor.u32 1.1754944e-38, %v1590
  %v1592 = vsel %vm1589, %v1591, %v1587
  %v1593 = vmul.f32 1.0, %v1592
  %v1594 = vrcp.pop %v1487
  %v1595 = vmul.f32 %v1487, %v1594
  %v1596 = vsub.f32 1.0, %v1595
  %v1597 = vmul.f32 %v1594, %v1596
  %v1598 = vadd.f32 %v1594, %v1597
  %vm1599 = vweird.f32 %v1487
  %vm1600 = vweird.f32 %v1594
  %vm1601 = vmor %vm1599, %vm1600
  %v1602 = vsel %vm1601, %v1594, %v1598
  %v1603 = vand.u32 2147483647, %v1487
  %vm1604 = vcmp.eq.f32.partialorder %v1603, 8.507059e+37
  %v1605 = vand.u32 %v1487, 2147483648
  %v1606 = vor.u32 1.1754944e-38, %v1605
  %v1607 = vsel %vm1604, %v1606, %v1602
  %v1608 = vmul.f32 1.0, %v1607
  %v1609 = vrcp.pop %v1488
  %v1610 = vmul.f32 %v1488, %v1609
  %v1611 = vsub.f32 1.0, %v1610
  %v1612 = vmul.f32 %v1609, %v1611
  %v1613 = vadd.f32 %v1609, %v1612
  %vm1614 = vweird.f32 %v1488
  %vm1615 = vweird.f32 %v1609
  %vm1616 = vmor %vm1614, %vm1615
  %v1617 = vsel %vm1616, %v1609, %v1613
  %v1618 = vand.u32 2147483647, %v1488
  %vm1619 = vcmp.eq.f32.partialorder %v1618, 8.507059e+37
  %v1620 = vand.u32 %v1488, 2147483648
  %v1621 = vor.u32 1.1754944e-38, %v1620
  %v1622 = vsel %vm1619, %v1621, %v1617
  %v1623 = vmul.f32 1.0, %v1622
  %v1624 = vmul.f32 %v1323, %v1503
  %v1625 = vmul.f32 %v1338, %v1518
  %v1626 = vmul.f32 %v1353, %v1533
  %v1627 = vmul.f32 %v1368, %v1548
  %v1628 = vmul.f32 %v1383, %v1563
  %v1629 = vmul.f32 %v1398, %v1578
  %v1630 = vmul.f32 %v1413, %v1593
  %v1631 = vmul.f32 %v1428, %v1608
  %v1632 = vmul.f32 %v1443, %v1623
  %v1633 = vsub.f32 %v1624, 0.2
  %v1634 = vsub.f32 %v1625, 0.2
  %v1635 = vsub.f32 %v1626, 0.2
  %v1636 = vsub.f32 %v1627, 0.2
  %v1637 = vsub.f32 %v1628, 0.2
  %v1638 = vsub.f32 %v1629, 0.2
  %v1639 = vsub.f32 %v1630, 0.2
  %v1640 = vsub.f32 %v1631, 0.2
  %v1641 = vsub.f32 %v1632, 0.2
  %v1642 = vmul.f32 %v1633, 2.0
  %v1643 = vmul.f32 %v1634, 2.0
  %v1644 = vmul.f32 %v1635, 2.0
  %v1645 = vmul.f32 %v1636, 2.0
  %v1646 = vmul.f32 %v1637, 2.0
  %v1647 = vmul.f32 %v1638, 2.0
  %v1648 = vmul.f32 %v1639, 2.0
  %v1649 = vmul.f32 %v1640, 2.0
  %v1650 = vmul.f32 %v1641, 2.0
  %v1651 = vxor.u32 %v1642, 2147483648
  %v1652 = vxor.u32 %v1643, 2147483648
  %v1653 = vxor.u32 %v1644, 2147483648
  %v1654 = vxor.u32 %v1645, 2147483648
  %v1655 = vxor.u32 %v1646, 2147483648
  %v1656 = vxor.u32 %v1647, 2147483648
  %v1657 = vxor.u32 %v1648, 2147483648
  %v1658 = vxor.u32 %v1649, 2147483648
  %v1659 = vxor.u32 %v1650, 2147483648
  %v1660 = vmul.f32 %v1651, 1.442695
  %v1661 = vpow.pop %v1660
  %v1662 = vmul.f32 %v1652, 1.442695
  %v1663 = vpow.pop %v1662
  %v1664 = vmul.f32 %v1653, 1.442695
  %v1665 = vpow.pop %v1664
  %v1666 = vmul.f32 %v1654, 1.442695
  %v1667 = vpow.pop %v1666
  %v1668 = vmul.f32 %v1655, 1.442695
  %v1669 = vpow.pop %v1668
  %v1670 = vmul.f32 %v1656, 1.442695
  %v1671 = vpow.pop %v1670
  %v1672 = vmul.f32 %v1657, 1.442695
  %v1673 = vpow.pop %v1672
  %v1674 = vmul.f32 %v1658, 1.442695
  %v1675 = vpow.pop %v1674
  %v1676 = vmul.f32 %v1659, 1.442695
  %v1677 = vpow.pop %v1676
  %v1678 = vadd.f32 %v1661, 1.0
  %v1679 = vadd.f32 %v1663, 1.0
  %v1680 = vadd.f32 %v1665, 1.0
  %v1681 = vadd.f32 %v1667, 1.0
  %v1682 = vadd.f32 %v1669, 1.0
  %v1683 = vadd.f32 %v1671, 1.0
  %v1684 = vadd.f32 %v1673, 1.0
  %v1685 = vadd.f32 %v1675, 1.0
  %v1686 = vadd.f32 %v1677, 1.0
  %v1687 = vrcp.pop %v1678
  %v1688 = vmul.f32 %v1678, %v1687
  %v1689 = vsub.f32 1.0, %v1688
  %v1690 = vmul.f32 %v1687, %v1689
  %v1691 = vadd.f32 %v1687, %v1690
  %vm1692 = vweird.f32 %v1678
  %vm1693 = vweird.f32 %v1687
  %vm1694 = vmor %vm1692, %vm1693
  %v1695 = vsel %vm1694, %v1687, %v1691
  %v1696 = vand.u32 2147483647, %v1678
  %vm1697 = vcmp.eq.f32.partialorder %v1696, 8.507059e+37
  %v1698 = vand.u32 %v1678, 2147483648
  %v1699 = vor.u32 1.1754944e-38, %v1698
  %v1700 = vsel %vm1697, %v1699, %v1695
  %v1701 = vmul.f32 1.0, %v1700
  %v1702 = vrcp.pop %v1679
  %v1703 = vmul.f32 %v1679, %v1702
  %v1704 = vsub.f32 1.0, %v1703
  %v1705 = vmul.f32 %v1702, %v1704
  %v1706 = vadd.f32 %v1702, %v1705
  %vm1707 = vweird.f32 %v1679
  %vm1708 = vweird.f32 %v1702
  %vm1709 = vmor %vm1707, %vm1708
  %v1710 = vsel %vm1709, %v1702, %v1706
  %v1711 = vand.u32 2147483647, %v1679
  %vm1712 = vcmp.eq.f32.partialorder %v1711, 8.507059e+37
  %v1713 = vand.u32 %v1679, 2147483648
  %v1714 = vor.u32 1.1754944e-38, %v1713
  %v1715 = vsel %vm1712, %v1714, %v1710
  %v1716 = vmul.f32 1.0, %v1715
  %v1717 = vrcp.pop %v1680
  %v1718 = vmul.f32 %v1680, %v1717
  %v1719 = vsub.f32 1.0, %v1718
  %v1720 = vmul.f32 %v1717, %v1719
  %v1721 = vadd.f32 %v1717, %v1720
  %vm1722 = vweird.f32 %v1680
  %vm1723 = vweird.f32 %v1717
  %vm1724 = vmor %vm1722, %vm1723
  %v1725 = vsel %vm1724, %v1717, %v1721
  %v1726 = vand.u32 2147483647, %v1680
  %vm1727 = vcmp.eq.f32.partialorder %v1726, 8.507059e+37
  %v1728 = vand.u32 %v1680, 2147483648
  %v1729 = vor.u32 1.1754944e-38, %v1728
  %v1730 = vsel %vm1727, %v1729, %v1725
  %v1731 = vmul.f32 1.0, %v1730
  %v1732 = vrcp.pop %v1681
  %v1733 = vmul.f32 %v1681, %v1732
  %v1734 = vsub.f32 1.0, %v1733
  %v1735 = vmul.f32 %v1732, %v1734
  %v1736 = vadd.f32 %v1732, %v1735
  %vm1737 = vweird.f32 %v1681
  %vm1738 = vweird.f32 %v1732
  %vm1739 = vmor %vm1737, %vm1738
  %v1740 = vsel %vm1739, %v1732, %v1736
  %v1741 = vand.u32 2147483647, %v1681
  %vm1742 = vcmp.eq.f32.partialorder %v1741, 8.507059e+37
  %v1743 = vand.u32 %v1681, 2147483648
  %v1744 = vor.u32 1.1754944e-38, %v1743
  %v1745 = vsel %vm1742, %v1744, %v1740
  %v1746 = vmul.f32 1.0, %v1745
  %v1747 = vrcp.pop %v1682
  %v1748 = vmul.f32 %v1682, %v1747
  %v1749 = vsub.f32 1.0, %v1748
  %v1750 = vmul.f32 %v1747, %v1749
  %v1751 = vadd.f32 %v1747, %v1750
  %vm1752 = vweird.f32 %v1682
  %vm1753 = vweird.f32 %v1747
  %vm1754 = vmor %vm1752, %vm1753
  %v1755 = vsel %vm1754, %v1747, %v1751
  %v1756 = vand.u32 2147483647, %v1682
  %vm1757 = vcmp.eq.f32.partialorder %v1756, 8.507059e+37
  %v1758 = vand.u32 %v1682, 2147483648
  %v1759 = vor.u32 1.1754944e-38, %v1758
  %v1760 = vsel %vm1757, %v1759, %v1755
  %v1761 = vmul.f32 1.0, %v1760
  %v1762 = vrcp.pop %v1683
  %v1763 = vmul.f32 %v1683, %v1762
  %v1764 = vsub.f32 1.0, %v1763
  %v1765 = vmul.f32 %v1762, %v1764
  %v1766 = vadd.f32 %v1762, %v1765
  %vm1767 = vweird.f32 %v1683
  %vm1768 = vweird.f32 %v1762
  %vm1769 = vmor %vm1767, %vm1768
  %v1770 = vsel %vm1769, %v1762, %v1766
  %v1771 = vand.u32 2147483647, %v1683
  %vm1772 = vcmp.eq.f32.partialorder %v1771, 8.507059e+37
  %v1773 = vand.u32 %v1683, 2147483648
  %v1774 = vor.u32 1.1754944e-38, %v1773
  %v1775 = vsel %vm1772, %v1774, %v1770
  %v1776 = vmul.f32 1.0, %v1775
  %v1777 = vrcp.pop %v1684
  %v1778 = vmul.f32 %v1684, %v1777
  %v1779 = vsub.f32 1.0, %v1778
  %v1780 = vmul.f32 %v1777, %v1779
  %v1781 = vadd.f32 %v1777, %v1780
  %vm1782 = vweird.f32 %v1684
  %vm1783 = vweird.f32 %v1777
  %vm1784 = vmor %vm1782, %vm1783
  %v1785 = vsel %vm1784, %v1777, %v1781
  %v1786 = vand.u32 2147483647, %v1684
  %vm1787 = vcmp.eq.f32.partialorder %v1786, 8.507059e+37
  %v1788 = vand.u32 %v1684, 2147483648
  %v1789 = vor.u32 1.1754944e-38, %v1788
  %v1790 = vsel %vm1787, %v1789, %v1785
  %v1791 = vmul.f32 1.0, %v1790
  %v1792 = vrcp.pop %v1685
  %v1793 = vmul.f32 %v1685, %v1792
  %v1794 = vsub.f32 1.0, %v1793
  %v1795 = vmul.f32 %v1792, %v1794
  %v1796 = vadd.f32 %v1792, %v1795
  %vm1797 = vweird.f32 %v1685
  %vm1798 = vweird.f32 %v1792
  %vm1799 = vmor %vm1797, %vm1798
  %v1800 = vsel %vm1799, %v1792, %v1796
  %v1801 = vand.u32 2147483647, %v1685
  %vm1802 = vcmp.eq.f32.partialorder %v1801, 8.507059e+37
  %v1803 = vand.u32 %v1685, 2147483648
  %v1804 = vor.u32 1.1754944e-38, %v1803
  %v1805 = vsel %vm1802, %v1804, %v1800
  %v1806 = vmul.f32 1.0, %v1805
  %v1807 = vrcp.pop %v1686
  %v1808 = vmul.f32 %v1686, %v1807
  %v1809 = vsub.f32 1.0, %v1808
  %v1810 = vmul.f32 %v1807, %v1809
  %v1811 = vadd.f32 %v1807, %v1810
  %vm1812 = vweird.f32 %v1686
  %vm1813 = vweird.f32 %v1807
  %vm1814 = vmor %vm1812, %vm1813
  %v1815 = vsel %vm1814, %v1807, %v1811
  %v1816 = vand.u32 2147483647, %v1686
  %vm1817 = vcmp.eq.f32.partialorder %v1816, 8.507059e+37
  %v1818 = vand.u32 %v1686, 2147483648
  %v1819 = vor.u32 1.1754944e-38, %v1818
  %v1820 = vsel %vm1817, %v1819, %v1815
  %v1821 = vmul.f32 1.0, %v1820
  %1823 = vset.pattern.permute.xlu0 0
  %1824 = vperm.xlu0 %1823, %v1701
  %v1825 = vpop.permute.xlu0 %1824
  %1828 = vset.pattern.permute.xlu0 0
  %1829 = vperm.xlu0 %1828, %v1716
  %v1830 = vpop.permute.xlu0 %1829
  %1833 = vset.pattern.permute.xlu0 0
  %1834 = vperm.xlu0 %1833, %v1731
  %v1835 = vpop.permute.xlu0 %1834
  %1838 = vset.pattern.permute.xlu0 0
  %1839 = vperm.xlu0 %1838, %v1746
  %v1840 = vpop.permute.xlu0 %1839
  %1843 = vset.pattern.permute.xlu0 0
  %1844 = vperm.xlu0 %1843, %v1761
  %v1845 = vpop.permute.xlu0 %1844
  %1848 = vset.pattern.permute.xlu0 0
  %1849 = vperm.xlu0 %1848, %v1776
  %v1850 = vpop.permute.xlu0 %1849
  %1853 = vset.pattern.permute.xlu0 0
  %1854 = vperm.xlu0 %1853, %v1791
  %v1855 = vpop.permute.xlu0 %1854
  %1858 = vset.pattern.permute.xlu0 0
  %1859 = vperm.xlu0 %1858, %v1806
  %v1860 = vpop.permute.xlu0 %1859
  %1863 = vset.pattern.permute.xlu0 0
  %1864 = vperm.xlu0 %1863, %v1821
  %v1865 = vpop.permute.xlu0 %1864
  %v1867 = vmul.f32 %v1030, %v1825
  %v1868 = vmul.f32 %v1031, %v1830
  %v1869 = vmul.f32 %v1032, %v1835
  %v1870 = vmul.f32 %v1033, %v1840
  %v1871 = vmul.f32 %v1034, %v1845
  %v1872 = vmul.f32 %v1035, %v1850
  %v1873 = vmul.f32 %v1036, %v1855
  %v1874 = vmul.f32 %v1037, %v1860
  %v1875 = vmul.f32 %v1038, %v1865
  %v1876 = vld [vmem:[%s11] sm:$0xff]
  %v1877 = vld [vmem:[%s11 + $0x8] sm:$0xff]
  %v1878 = vld [vmem:[%s11 + $0x10] sm:$0xff]
  %v1879 = vld [vmem:[%s11 + $0x18] sm:$0xff]
  %v1880 = vld [vmem:[%s11 + $0x20] sm:$0xff]
  %v1881 = vld [vmem:[%s11 + $0x28] sm:$0xff]
  %v1882 = vld [vmem:[%s11 + $0x30] sm:$0xff]
  %v1883 = vld [vmem:[%s11 + $0x38] sm:$0xff]
  %v1884 = vld [vmem:[%s11 + $0x40] sm:$0xff]
  %1886 = vset.pattern.permute.xlu0 0
  %1887 = vperm.xlu0 %1886, %v1876
  %v1888 = vpop.permute.xlu0 %1887
  %1891 = vset.pattern.permute.xlu0 0
  %1892 = vperm.xlu0 %1891, %v1877
  %v1893 = vpop.permute.xlu0 %1892
  %1896 = vset.pattern.permute.xlu0 0
  %1897 = vperm.xlu0 %1896, %v1878
  %v1898 = vpop.permute.xlu0 %1897
  %1901 = vset.pattern.permute.xlu0 0
  %1902 = vperm.xlu0 %1901, %v1879
  %v1903 = vpop.permute.xlu0 %1902
  %1906 = vset.pattern.permute.xlu0 0
  %1907 = vperm.xlu0 %1906, %v1880
  %v1908 = vpop.permute.xlu0 %1907
  %1911 = vset.pattern.permute.xlu0 0
  %1912 = vperm.xlu0 %1911, %v1881
  %v1913 = vpop.permute.xlu0 %1912
  %1916 = vset.pattern.permute.xlu0 0
  %1917 = vperm.xlu0 %1916, %v1882
  %v1918 = vpop.permute.xlu0 %1917
  %1921 = vset.pattern.permute.xlu0 0
  %1922 = vperm.xlu0 %1921, %v1883
  %v1923 = vpop.permute.xlu0 %1922
  %1926 = vset.pattern.permute.xlu0 0
  %1927 = vperm.xlu0 %1926, %v1884
  %v1928 = vpop.permute.xlu0 %1927
  %v1930 = vmul.f32 %v1867, %v1888
  %v1931 = vmul.f32 %v1868, %v1893
  %v1932 = vmul.f32 %v1869, %v1898
  %v1933 = vmul.f32 %v1870, %v1903
  %v1934 = vmul.f32 %v1871, %v1908
  %v1935 = vmul.f32 %v1872, %v1913
  %v1936 = vmul.f32 %v1873, %v1918
  %v1937 = vmul.f32 %v1874, %v1923
  %v1938 = vmul.f32 %v1875, %v1928
  %1939 = vset.pattern.permute.xlu0 1
  %1940 = vperm.xlu0 %1939, %v1876
  %v1941 = vpop.permute.xlu0 %1940
  %1943 = vset.pattern.permute.xlu0 1
  %1944 = vperm.xlu0 %1943, %v1877
  %v1945 = vpop.permute.xlu0 %1944
  %1947 = vset.pattern.permute.xlu0 1
  %1948 = vperm.xlu0 %1947, %v1878
  %v1949 = vpop.permute.xlu0 %1948
  %1951 = vset.pattern.permute.xlu0 1
  %1952 = vperm.xlu0 %1951, %v1879
  %v1953 = vpop.permute.xlu0 %1952
  %1955 = vset.pattern.permute.xlu0 1
  %1956 = vperm.xlu0 %1955, %v1880
  %v1957 = vpop.permute.xlu0 %1956
  %1959 = vset.pattern.permute.xlu0 1
  %1960 = vperm.xlu0 %1959, %v1881
  %v1961 = vpop.permute.xlu0 %1960
  %1963 = vset.pattern.permute.xlu0 1
  %1964 = vperm.xlu0 %1963, %v1882
  %v1965 = vpop.permute.xlu0 %1964
  %1967 = vset.pattern.permute.xlu0 1
  %1968 = vperm.xlu0 %1967, %v1883
  %v1969 = vpop.permute.xlu0 %1968
  %1971 = vset.pattern.permute.xlu0 1
  %1972 = vperm.xlu0 %1971, %v1884
  %v1973 = vpop.permute.xlu0 %1972
  %v1975 = vadd.f32 %v1930, %v1941
  %v1976 = vadd.f32 %v1931, %v1945
  %v1977 = vadd.f32 %v1932, %v1949
  %v1978 = vadd.f32 %v1933, %v1953
  %v1979 = vadd.f32 %v1934, %v1957
  %v1980 = vadd.f32 %v1935, %v1961
  %v1981 = vadd.f32 %v1936, %v1965
  %v1982 = vadd.f32 %v1937, %v1969
  %v1983 = vadd.f32 %v1938, %v1973
  %v1984 = vadd.f32 %v1975, 3.0
  %v1985 = vadd.f32 %v1976, 3.0
  %v1986 = vadd.f32 %v1977, 3.0
  %v1987 = vadd.f32 %v1978, 3.0
  %v1988 = vadd.f32 %v1979, 3.0
  %v1989 = vadd.f32 %v1980, 3.0
  %v1990 = vadd.f32 %v1981, 3.0
  %v1991 = vadd.f32 %v1982, 3.0
  %v1992 = vadd.f32 %v1983, 3.0
  %v1993 = vmax.f32 %v1984, 0.0
  %v1994 = vmax.f32 %v1985, 0.0
  %v1995 = vmax.f32 %v1986, 0.0
  %v1996 = vmax.f32 %v1987, 0.0
  %v1997 = vmax.f32 %v1988, 0.0
  %v1998 = vmax.f32 %v1989, 0.0
  %v1999 = vmax.f32 %v1990, 0.0
  %v2000 = vmax.f32 %v1991, 0.0
  %v2001 = vmax.f32 %v1992, 0.0
  %v2002 = vmin.f32 %v1993, 6.0
  %v2003 = vmin.f32 %v1994, 6.0
  %v2004 = vmin.f32 %v1995, 6.0
  %v2005 = vmin.f32 %v1996, 6.0
  %v2006 = vmin.f32 %v1997, 6.0
  %v2007 = vmin.f32 %v1998, 6.0
  %v2008 = vmin.f32 %v1999, 6.0
  %v2009 = vmin.f32 %v2000, 6.0
  %v2010 = vmin.f32 %v2001, 6.0
  %v2011 = vmul.f32 %v1975, %v2002
  %v2012 = vmul.f32 %v1976, %v2003
  %v2013 = vmul.f32 %v1977, %v2004
  %v2014 = vmul.f32 %v1978, %v2005
  %v2015 = vmul.f32 %v1979, %v2006
  %v2016 = vmul.f32 %v1980, %v2007
  %v2017 = vmul.f32 %v1981, %v2008
  %v2018 = vmul.f32 %v1982, %v2009
  %v2019 = vmul.f32 %v1983, %v2010
  %v2020 = vmul.f32 %v2011, 0.16666667
  %v2021 = vmul.f32 %v2012, 0.16666667
  %v2022 = vmul.f32 %v2013, 0.16666667
  %v2023 = vmul.f32 %v2014, 0.16666667
  %v2024 = vmul.f32 %v2015, 0.16666667
  %v2025 = vmul.f32 %v2016, 0.16666667
  %v2026 = vmul.f32 %v2017, 0.16666667
  %v2027 = vmul.f32 %v2018, 0.16666667
  %v2028 = vmul.f32 %v2019, 0.16666667
  %2029 = vrot.lane.b32.xlu0 %v2020, 7
  %v2030 = vpop.permute.xlu0 %2029
  %2031 = vrot.lane.b32.xlu0 %v2021, 7
  %v2032 = vpop.permute.xlu0 %2031
  %2033 = vrot.lane.b32.xlu0 %v2022, 7
  %v2034 = vpop.permute.xlu0 %2033
  %2035 = vrot.lane.b32.xlu0 %v2023, 7
  %v2036 = vpop.permute.xlu0 %2035
  %2037 = vrot.lane.b32.xlu0 %v2024, 7
  %v2038 = vpop.permute.xlu0 %2037
  %2039 = vrot.lane.b32.xlu0 %v2025, 7
  %v2040 = vpop.permute.xlu0 %2039
  %2041 = vrot.lane.b32.xlu0 %v2026, 7
  %v2042 = vpop.permute.xlu0 %2041
  %2043 = vrot.lane.b32.xlu0 %v2027, 7
  %v2044 = vpop.permute.xlu0 %2043
  %2045 = vrot.lane.b32.xlu0 %v2028, 7
  %v2046 = vpop.permute.xlu0 %2045
  %s2047 = scalar_lea.vmem %s14, 2
  %v2048 = vld [vmem:[%s2047] sm:$0x1]
  %v2050 = vperm.slane %v2048, 0
  %v2052 = vmul.f32 %v2030, %v2050
  %v2053 = vmul.f32 %v2032, %v2050
  %v2054 = vmul.f32 %v2034, %v2050
  %v2055 = vmul.f32 %v2036, %v2050
  %v2056 = vmul.f32 %v2038, %v2050
  %v2057 = vmul.f32 %v2040, %v2050
  %v2058 = vmul.f32 %v2042, %v2050
  %v2059 = vmul.f32 %v2044, %v2050
  %v2060 = vmul.f32 %v2046, %v2050
  %s2061 = scalar_lea.vmem %s12, 144
  %v2062 = vld [vmem:[%s2061] sm:$0xff]
  %v2063 = vld [vmem:[%s2061 + $0x8] sm:$0xff]
  %v2064 = vld [vmem:[%s2061 + $0x10] sm:$0xff]
  %v2065 = vld [vmem:[%s2061 + $0x18] sm:$0xff]
  %v2066 = vld [vmem:[%s2061 + $0x20] sm:$0xff]
  %v2067 = vld [vmem:[%s2061 + $0x28] sm:$0xff]
  %v2068 = vld [vmem:[%s2061 + $0x30] sm:$0xff]
  %v2069 = vld [vmem:[%s2061 + $0x38] sm:$0xff]
  %v2070 = vld [vmem:[%s2061 + $0x40] sm:$0xff]
  %2072 = vset.pattern.permute.xlu0 0
  %2073 = vperm.xlu0 %2072, %v2062
  %v2074 = vpop.permute.xlu0 %2073
  %2077 = vset.pattern.permute.xlu0 0
  %2078 = vperm.xlu0 %2077, %v2063
  %v2079 = vpop.permute.xlu0 %2078
  %2082 = vset.pattern.permute.xlu0 0
  %2083 = vperm.xlu0 %2082, %v2064
  %v2084 = vpop.permute.xlu0 %2083
  %2087 = vset.pattern.permute.xlu0 0
  %2088 = vperm.xlu0 %2087, %v2065
  %v2089 = vpop.permute.xlu0 %2088
  %2092 = vset.pattern.permute.xlu0 0
  %2093 = vperm.xlu0 %2092, %v2066
  %v2094 = vpop.permute.xlu0 %2093
  %2097 = vset.pattern.permute.xlu0 0
  %2098 = vperm.xlu0 %2097, %v2067
  %v2099 = vpop.permute.xlu0 %2098
  %2102 = vset.pattern.permute.xlu0 0
  %2103 = vperm.xlu0 %2102, %v2068
  %v2104 = vpop.permute.xlu0 %2103
  %2107 = vset.pattern.permute.xlu0 0
  %2108 = vperm.xlu0 %2107, %v2069
  %v2109 = vpop.permute.xlu0 %2108
  %2112 = vset.pattern.permute.xlu0 0
  %2113 = vperm.xlu0 %2112, %v2070
  %v2114 = vpop.permute.xlu0 %2113
  %v2116 = vmul.f32 %v2074, %v2052
  %v2117 = vmul.f32 %v2079, %v2053
  %v2118 = vmul.f32 %v2084, %v2054
  %v2119 = vmul.f32 %v2089, %v2055
  %v2120 = vmul.f32 %v2094, %v2056
  %v2121 = vmul.f32 %v2099, %v2057
  %v2122 = vmul.f32 %v2104, %v2058
  %v2123 = vmul.f32 %v2109, %v2059
  %v2124 = vmul.f32 %v2114, %v2060
  %s2125 = scalar_lea.vmem %s12, 216
  %v2126 = vld [vmem:[%s2125] sm:$0xff]
  %v2127 = vld [vmem:[%s2125 + $0x8] sm:$0xff]
  %v2128 = vld [vmem:[%s2125 + $0x10] sm:$0xff]
  %v2129 = vld [vmem:[%s2125 + $0x18] sm:$0xff]
  %v2130 = vld [vmem:[%s2125 + $0x20] sm:$0xff]
  %v2131 = vld [vmem:[%s2125 + $0x28] sm:$0xff]
  %v2132 = vld [vmem:[%s2125 + $0x30] sm:$0xff]
  %v2133 = vld [vmem:[%s2125 + $0x38] sm:$0xff]
  %v2134 = vld [vmem:[%s2125 + $0x40] sm:$0xff]
  %2136 = vset.pattern.permute.xlu0 0
  %2137 = vperm.xlu0 %2136, %v2126
  %v2138 = vpop.permute.xlu0 %2137
  %2141 = vset.pattern.permute.xlu0 0
  %2142 = vperm.xlu0 %2141, %v2127
  %v2143 = vpop.permute.xlu0 %2142
  %2146 = vset.pattern.permute.xlu0 0
  %2147 = vperm.xlu0 %2146, %v2128
  %v2148 = vpop.permute.xlu0 %2147
  %2151 = vset.pattern.permute.xlu0 0
  %2152 = vperm.xlu0 %2151, %v2129
  %v2153 = vpop.permute.xlu0 %2152
  %2156 = vset.pattern.permute.xlu0 0
  %2157 = vperm.xlu0 %2156, %v2130
  %v2158 = vpop.permute.xlu0 %2157
  %2161 = vset.pattern.permute.xlu0 0
  %2162 = vperm.xlu0 %2161, %v2131
  %v2163 = vpop.permute.xlu0 %2162
  %2166 = vset.pattern.permute.xlu0 0
  %2167 = vperm.xlu0 %2166, %v2132
  %v2168 = vpop.permute.xlu0 %2167
  %2171 = vset.pattern.permute.xlu0 0
  %2172 = vperm.xlu0 %2171, %v2133
  %v2173 = vpop.permute.xlu0 %2172
  %2176 = vset.pattern.permute.xlu0 0
  %2177 = vperm.xlu0 %2176, %v2134
  %v2178 = vpop.permute.xlu0 %2177
  %v2180 = vmul.f32 %v2138, %v2020
  %v2181 = vmul.f32 %v2143, %v2021
  %v2182 = vmul.f32 %v2148, %v2022
  %v2183 = vmul.f32 %v2153, %v2023
  %v2184 = vmul.f32 %v2158, %v2024
  %v2185 = vmul.f32 %v2163, %v2025
  %v2186 = vmul.f32 %v2168, %v2026
  %v2187 = vmul.f32 %v2173, %v2027
  %v2188 = vmul.f32 %v2178, %v2028
  %2189 = vrot.lane.b32.xlu0 %v2020, 121
  %v2190 = vpop.permute.xlu0 %2189
  %2191 = vrot.lane.b32.xlu0 %v2021, 121
  %v2192 = vpop.permute.xlu0 %2191
  %2193 = vrot.lane.b32.xlu0 %v2022, 121
  %v2194 = vpop.permute.xlu0 %2193
  %2195 = vrot.lane.b32.xlu0 %v2023, 121
  %v2196 = vpop.permute.xlu0 %2195
  %2197 = vrot.lane.b32.xlu0 %v2024, 121
  %v2198 = vpop.permute.xlu0 %2197
  %2199 = vrot.lane.b32.xlu0 %v2025, 121
  %v2200 = vpop.permute.xlu0 %2199
  %2201 = vrot.lane.b32.xlu0 %v2026, 121
  %v2202 = vpop.permute.xlu0 %2201
  %2203 = vrot.lane.b32.xlu0 %v2027, 121
  %v2204 = vpop.permute.xlu0 %2203
  %2205 = vrot.lane.b32.xlu0 %v2028, 121
  %v2206 = vpop.permute.xlu0 %2205
  %s2207 = scalar_lea.vmem %s14, 4
  %v2208 = vld [vmem:[%s2207] sm:$0x1]
  %v2210 = vperm.slane %v2208, 0
  %v2212 = vmul.f32 %v2190, %v2210
  %v2213 = vmul.f32 %v2192, %v2210
  %v2214 = vmul.f32 %v2194, %v2210
  %v2215 = vmul.f32 %v2196, %v2210
  %v2216 = vmul.f32 %v2198, %v2210
  %v2217 = vmul.f32 %v2200, %v2210
  %v2218 = vmul.f32 %v2202, %v2210
  %v2219 = vmul.f32 %v2204, %v2210
  %v2220 = vmul.f32 %v2206, %v2210
  %s2221 = scalar_lea.vmem %s12, 288
  %v2222 = vld [vmem:[%s2221] sm:$0xff]
  %v2223 = vld [vmem:[%s2221 + $0x8] sm:$0xff]
  %v2224 = vld [vmem:[%s2221 + $0x10] sm:$0xff]
  %v2225 = vld [vmem:[%s2221 + $0x18] sm:$0xff]
  %v2226 = vld [vmem:[%s2221 + $0x20] sm:$0xff]
  %v2227 = vld [vmem:[%s2221 + $0x28] sm:$0xff]
  %v2228 = vld [vmem:[%s2221 + $0x30] sm:$0xff]
  %v2229 = vld [vmem:[%s2221 + $0x38] sm:$0xff]
  %v2230 = vld [vmem:[%s2221 + $0x40] sm:$0xff]
  %2232 = vset.pattern.permute.xlu0 0
  %2233 = vperm.xlu0 %2232, %v2222
  %v2234 = vpop.permute.xlu0 %2233
  %2237 = vset.pattern.permute.xlu0 0
  %2238 = vperm.xlu0 %2237, %v2223
  %v2239 = vpop.permute.xlu0 %2238
  %2242 = vset.pattern.permute.xlu0 0
  %2243 = vperm.xlu0 %2242, %v2224
  %v2244 = vpop.permute.xlu0 %2243
  %2247 = vset.pattern.permute.xlu0 0
  %2248 = vperm.xlu0 %2247, %v2225
  %v2249 = vpop.permute.xlu0 %2248
  %2252 = vset.pattern.permute.xlu0 0
  %2253 = vperm.xlu0 %2252, %v2226
  %v2254 = vpop.permute.xlu0 %2253
  %2257 = vset.pattern.permute.xlu0 0
  %2258 = vperm.xlu0 %2257, %v2227
  %v2259 = vpop.permute.xlu0 %2258
  %2262 = vset.pattern.permute.xlu0 0
  %2263 = vperm.xlu0 %2262, %v2228
  %v2264 = vpop.permute.xlu0 %2263
  %2267 = vset.pattern.permute.xlu0 0
  %2268 = vperm.xlu0 %2267, %v2229
  %v2269 = vpop.permute.xlu0 %2268
  %2272 = vset.pattern.permute.xlu0 0
  %2273 = vperm.xlu0 %2272, %v2230
  %v2274 = vpop.permute.xlu0 %2273
  %v2276 = vmul.f32 %v2234, %v2212
  %v2277 = vmul.f32 %v2239, %v2213
  %v2278 = vmul.f32 %v2244, %v2214
  %v2279 = vmul.f32 %v2249, %v2215
  %v2280 = vmul.f32 %v2254, %v2216
  %v2281 = vmul.f32 %v2259, %v2217
  %v2282 = vmul.f32 %v2264, %v2218
  %v2283 = vmul.f32 %v2269, %v2219
  %v2284 = vmul.f32 %v2274, %v2220
  %2285 = vrot.lane.b32.xlu0 %v2020, 1
  %v2286 = vpop.permute.xlu0 %2285
  %2287 = vrot.lane.b32.xlu0 %v2021, 1
  %v2288 = vpop.permute.xlu0 %2287
  %2289 = vrot.lane.b32.xlu0 %v2022, 1
  %v2290 = vpop.permute.xlu0 %2289
  %2291 = vrot.lane.b32.xlu0 %v2023, 1
  %v2292 = vpop.permute.xlu0 %2291
  %2293 = vrot.lane.b32.xlu0 %v2024, 1
  %v2294 = vpop.permute.xlu0 %2293
  %2295 = vrot.lane.b32.xlu0 %v2025, 1
  %v2296 = vpop.permute.xlu0 %2295
  %2297 = vrot.lane.b32.xlu0 %v2026, 1
  %v2298 = vpop.permute.xlu0 %2297
  %2299 = vrot.lane.b32.xlu0 %v2027, 1
  %v2300 = vpop.permute.xlu0 %2299
  %2301 = vrot.lane.b32.xlu0 %v2028, 1
  %v2302 = vpop.permute.xlu0 %2301
  %s2303 = scalar_lea.vmem %s14, 9
  %v2304 = vld [vmem:[%s2303] sm:$0x1]
  %v2306 = vperm.slane %v2304, 0
  %v2308 = vmul.f32 %v2286, %v2306
  %v2309 = vmul.f32 %v2288, %v2306
  %v2310 = vmul.f32 %v2290, %v2306
  %v2311 = vmul.f32 %v2292, %v2306
  %v2312 = vmul.f32 %v2294, %v2306
  %v2313 = vmul.f32 %v2296, %v2306
  %v2314 = vmul.f32 %v2298, %v2306
  %v2315 = vmul.f32 %v2300, %v2306
  %v2316 = vmul.f32 %v2302, %v2306
  %s2317 = scalar_lea.vmem %s12, 648
  %v2318 = vld [vmem:[%s2317] sm:$0xff]
  %v2319 = vld [vmem:[%s2317 + $0x8] sm:$0xff]
  %v2320 = vld [vmem:[%s2317 + $0x10] sm:$0xff]
  %v2321 = vld [vmem:[%s2317 + $0x18] sm:$0xff]
  %v2322 = vld [vmem:[%s2317 + $0x20] sm:$0xff]
  %v2323 = vld [vmem:[%s2317 + $0x28] sm:$0xff]
  %v2324 = vld [vmem:[%s2317 + $0x30] sm:$0xff]
  %v2325 = vld [vmem:[%s2317 + $0x38] sm:$0xff]
  %v2326 = vld [vmem:[%s2317 + $0x40] sm:$0xff]
  %2328 = vset.pattern.permute.xlu0 0
  %2329 = vperm.xlu0 %2328, %v2318
  %v2330 = vpop.permute.xlu0 %2329
  %2333 = vset.pattern.permute.xlu0 0
  %2334 = vperm.xlu0 %2333, %v2319
  %v2335 = vpop.permute.xlu0 %2334
  %2338 = vset.pattern.permute.xlu0 0
  %2339 = vperm.xlu0 %2338, %v2320
  %v2340 = vpop.permute.xlu0 %2339
  %2343 = vset.pattern.permute.xlu0 0
  %2344 = vperm.xlu0 %2343, %v2321
  %v2345 = vpop.permute.xlu0 %2344
  %2348 = vset.pattern.permute.xlu0 0
  %2349 = vperm.xlu0 %2348, %v2322
  %v2350 = vpop.permute.xlu0 %2349
  %2353 = vset.pattern.permute.xlu0 0
  %2354 = vperm.xlu0 %2353, %v2323
  %v2355 = vpop.permute.xlu0 %2354
  %2358 = vset.pattern.permute.xlu0 0
  %2359 = vperm.xlu0 %2358, %v2324
  %v2360 = vpop.permute.xlu0 %2359
  %2363 = vset.pattern.permute.xlu0 0
  %2364 = vperm.xlu0 %2363, %v2325
  %v2365 = vpop.permute.xlu0 %2364
  %2368 = vset.pattern.permute.xlu0 0
  %2369 = vperm.xlu0 %2368, %v2326
  %v2370 = vpop.permute.xlu0 %2369
  %v2372 = vmul.f32 %v2330, %v2308
  %v2373 = vmul.f32 %v2335, %v2309
  %v2374 = vmul.f32 %v2340, %v2310
  %v2375 = vmul.f32 %v2345, %v2311
  %v2376 = vmul.f32 %v2350, %v2312
  %v2377 = vmul.f32 %v2355, %v2313
  %v2378 = vmul.f32 %v2360, %v2314
  %v2379 = vmul.f32 %v2365, %v2315
  %v2380 = vmul.f32 %v2370, %v2316
  %2381 = vrot.lane.b32.xlu0 %v2020, 127
  %v2382 = vpop.permute.xlu0 %2381
  %2383 = vrot.lane.b32.xlu0 %v2021, 127
  %v2384 = vpop.permute.xlu0 %2383
  %2385 = vrot.lane.b32.xlu0 %v2022, 127
  %v2386 = vpop.permute.xlu0 %2385
  %2387 = vrot.lane.b32.xlu0 %v2023, 127
  %v2388 = vpop.permute.xlu0 %2387
  %2389 = vrot.lane.b32.xlu0 %v2024, 127
  %v2390 = vpop.permute.xlu0 %2389
  %2391 = vrot.lane.b32.xlu0 %v2025, 127
  %v2392 = vpop.permute.xlu0 %2391
  %2393 = vrot.lane.b32.xlu0 %v2026, 127
  %v2394 = vpop.permute.xlu0 %2393
  %2395 = vrot.lane.b32.xlu0 %v2027, 127
  %v2396 = vpop.permute.xlu0 %2395
  %2397 = vrot.lane.b32.xlu0 %v2028, 127
  %v2398 = vpop.permute.xlu0 %2397
  %s2399 = scalar_lea.vmem %s14, 10
  %v2400 = vld [vmem:[%s2399] sm:$0x1]
  %v2402 = vperm.slane %v2400, 0
  %v2404 = vmul.f32 %v2382, %v2402
  %v2405 = vmul.f32 %v2384, %v2402
  %v2406 = vmul.f32 %v2386, %v2402
  %v2407 = vmul.f32 %v2388, %v2402
  %v2408 = vmul.f32 %v2390, %v2402
  %v2409 = vmul.f32 %v2392, %v2402
  %v2410 = vmul.f32 %v2394, %v2402
  %v2411 = vmul.f32 %v2396, %v2402
  %v2412 = vmul.f32 %v2398, %v2402
  %s2413 = scalar_lea.vmem %s12, 720
  %v2414 = vld [vmem:[%s2413] sm:$0xff]
  %v2415 = vld [vmem:[%s2413 + $0x8] sm:$0xff]
  %v2416 = vld [vmem:[%s2413 + $0x10] sm:$0xff]
  %v2417 = vld [vmem:[%s2413 + $0x18] sm:$0xff]
  %v2418 = vld [vmem:[%s2413 + $0x20] sm:$0xff]
  %v2419 = vld [vmem:[%s2413 + $0x28] sm:$0xff]
  %v2420 = vld [vmem:[%s2413 + $0x30] sm:$0xff]
  %v2421 = vld [vmem:[%s2413 + $0x38] sm:$0xff]
  %v2422 = vld [vmem:[%s2413 + $0x40] sm:$0xff]
  %2424 = vset.pattern.permute.xlu0 0
  %2425 = vperm.xlu0 %2424, %v2414
  %v2426 = vpop.permute.xlu0 %2425
  %2429 = vset.pattern.permute.xlu0 0
  %2430 = vperm.xlu0 %2429, %v2415
  %v2431 = vpop.permute.xlu0 %2430
  %2434 = vset.pattern.permute.xlu0 0
  %2435 = vperm.xlu0 %2434, %v2416
  %v2436 = vpop.permute.xlu0 %2435
  %2439 = vset.pattern.permute.xlu0 0
  %2440 = vperm.xlu0 %2439, %v2417
  %v2441 = vpop.permute.xlu0 %2440
  %2444 = vset.pattern.permute.xlu0 0
  %2445 = vperm.xlu0 %2444, %v2418
  %v2446 = vpop.permute.xlu0 %2445
  %2449 = vset.pattern.permute.xlu0 0
  %2450 = vperm.xlu0 %2449, %v2419
  %v2451 = vpop.permute.xlu0 %2450
  %2454 = vset.pattern.permute.xlu0 0
  %2455 = vperm.xlu0 %2454, %v2420
  %v2456 = vpop.permute.xlu0 %2455
  %2459 = vset.pattern.permute.xlu0 0
  %2460 = vperm.xlu0 %2459, %v2421
  %v2461 = vpop.permute.xlu0 %2460
  %2464 = vset.pattern.permute.xlu0 0
  %2465 = vperm.xlu0 %2464, %v2422
  %v2466 = vpop.permute.xlu0 %2465
  %v2468 = vmul.f32 %v2426, %v2404
  %v2469 = vmul.f32 %v2431, %v2405
  %v2470 = vmul.f32 %v2436, %v2406
  %v2471 = vmul.f32 %v2441, %v2407
  %v2472 = vmul.f32 %v2446, %v2408
  %v2473 = vmul.f32 %v2451, %v2409
  %v2474 = vmul.f32 %v2456, %v2410
  %v2475 = vmul.f32 %v2461, %v2411
  %v2476 = vmul.f32 %v2466, %v2412
  %v2477 = vadd.f32 %v2116, %v2180
  %v2478 = vadd.f32 %v2117, %v2181
  %v2479 = vadd.f32 %v2118, %v2182
  %v2480 = vadd.f32 %v2119, %v2183
  %v2481 = vadd.f32 %v2120, %v2184
  %v2482 = vadd.f32 %v2121, %v2185
  %v2483 = vadd.f32 %v2122, %v2186
  %v2484 = vadd.f32 %v2123, %v2187
  %v2485 = vadd.f32 %v2124, %v2188
  %v2486 = vadd.f32 %v2276, %v2372
  %v2487 = vadd.f32 %v2277, %v2373
  %v2488 = vadd.f32 %v2278, %v2374
  %v2489 = vadd.f32 %v2279, %v2375
  %v2490 = vadd.f32 %v2280, %v2376
  %v2491 = vadd.f32 %v2281, %v2377
  %v2492 = vadd.f32 %v2282, %v2378
  %v2493 = vadd.f32 %v2283, %v2379
  %v2494 = vadd.f32 %v2284, %v2380
  %v2495 = vadd.f32 %v2477, %v2486
  %v2496 = vadd.f32 %v2478, %v2487
  %v2497 = vadd.f32 %v2479, %v2488
  %v2498 = vadd.f32 %v2480, %v2489
  %v2499 = vadd.f32 %v2481, %v2490
  %v2500 = vadd.f32 %v2482, %v2491
  %v2501 = vadd.f32 %v2483, %v2492
  %v2502 = vadd.f32 %v2484, %v2493
  %v2503 = vadd.f32 %v2485, %v2494
  %v2504 = vadd.f32 %v2495, %v2468
  %v2505 = vadd.f32 %v2496, %v2469
  %v2506 = vadd.f32 %v2497, %v2470
  %v2507 = vadd.f32 %v2498, %v2471
  %v2508 = vadd.f32 %v2499, %v2472
  %v2509 = vadd.f32 %v2500, %v2473
  %v2510 = vadd.f32 %v2501, %v2474
  %v2511 = vadd.f32 %v2502, %v2475
  %v2512 = vadd.f32 %v2503, %v2476
  %v2513 = vld [vmem:[%s13] sm:$0xff]
  %v2514 = vld [vmem:[%s13 + $0x8] sm:$0xff]
  %v2515 = vld [vmem:[%s13 + $0x10] sm:$0xff]
  %v2516 = vld [vmem:[%s13 + $0x18] sm:$0xff]
  %v2517 = vld [vmem:[%s13 + $0x20] sm:$0xff]
  %v2518 = vld [vmem:[%s13 + $0x28] sm:$0xff]
  %v2519 = vld [vmem:[%s13 + $0x30] sm:$0xff]
  %v2520 = vld [vmem:[%s13 + $0x38] sm:$0xff]
  %v2521 = vld [vmem:[%s13 + $0x40] sm:$0xff]
  %2523 = vset.pattern.permute.xlu0 0
  %2524 = vperm.xlu0 %2523, %v2513
  %v2525 = vpop.permute.xlu0 %2524
  %2528 = vset.pattern.permute.xlu0 0
  %2529 = vperm.xlu0 %2528, %v2514
  %v2530 = vpop.permute.xlu0 %2529
  %2533 = vset.pattern.permute.xlu0 0
  %2534 = vperm.xlu0 %2533, %v2515
  %v2535 = vpop.permute.xlu0 %2534
  %2538 = vset.pattern.permute.xlu0 0
  %2539 = vperm.xlu0 %2538, %v2516
  %v2540 = vpop.permute.xlu0 %2539
  %2543 = vset.pattern.permute.xlu0 0
  %2544 = vperm.xlu0 %2543, %v2517
  %v2545 = vpop.permute.xlu0 %2544
  %2548 = vset.pattern.permute.xlu0 0
  %2549 = vperm.xlu0 %2548, %v2518
  %v2550 = vpop.permute.xlu0 %2549
  %2553 = vset.pattern.permute.xlu0 0
  %2554 = vperm.xlu0 %2553, %v2519
  %v2555 = vpop.permute.xlu0 %2554
  %2558 = vset.pattern.permute.xlu0 0
  %2559 = vperm.xlu0 %2558, %v2520
  %v2560 = vpop.permute.xlu0 %2559
  %2563 = vset.pattern.permute.xlu0 0
  %2564 = vperm.xlu0 %2563, %v2521
  %v2565 = vpop.permute.xlu0 %2564
  %v2567 = vadd.f32 %v2504, %v2525
  %v2568 = vadd.f32 %v2505, %v2530
  %v2569 = vadd.f32 %v2506, %v2535
  %v2570 = vadd.f32 %v2507, %v2540
  %v2571 = vadd.f32 %v2508, %v2545
  %v2572 = vadd.f32 %v2509, %v2550
  %v2573 = vadd.f32 %v2510, %v2555
  %v2574 = vadd.f32 %v2511, %v2560
  %v2575 = vadd.f32 %v2512, %v2565
  %s2576 = scalar_lea.vmem %s7, 72
  %v2577 = vld [vmem:[%s2576] sm:$0xf]
  %v2578 = vld [vmem:[%s2576 + $0x4] sm:$0xf]
  %v2579 = vld [vmem:[%s2576 + $0x8] sm:$0xf]
  %v2580 = vld [vmem:[%s2576 + $0xc] sm:$0xf]
  %v2581 = vld [vmem:[%s2576 + $0x10] sm:$0xf]
  %v2582 = vld [vmem:[%s2576 + $0x14] sm:$0xf]
  %v2583 = vld [vmem:[%s2576 + $0x18] sm:$0xf]
  %v2584 = vld [vmem:[%s2576 + $0x1c] sm:$0xf]
  %v2585 = vld [vmem:[%s2576 + $0x20] sm:$0xf]
  %v2586 = vld [vmem:[%s2576 + $0x24] sm:$0xf]
  %v2587 = vld [vmem:[%s2576 + $0x28] sm:$0xf]
  %v2588 = vld [vmem:[%s2576 + $0x2c] sm:$0xf]
  %v2589 = vld [vmem:[%s2576 + $0x30] sm:$0xf]
  %v2590 = vld [vmem:[%s2576 + $0x34] sm:$0xf]
  %v2591 = vld [vmem:[%s2576 + $0x38] sm:$0xf]
  %v2592 = vld [vmem:[%s2576 + $0x3c] sm:$0xf]
  %v2593 = vld [vmem:[%s2576 + $0x40] sm:$0xf]
  %v2594 = vld [vmem:[%s2576 + $0x44] sm:$0xf]
  %s2595 = scalar_lea.vmem %s8, 144
  %v2596 = vld [vmem:[%s2595] sm:$0xff]
  %v2597 = vld [vmem:[%s2595 + $0x8] sm:$0xff]
  %v2598 = vld [vmem:[%s2595 + $0x10] sm:$0xff]
  %v2599 = vld [vmem:[%s2595 + $0x18] sm:$0xff]
  %v2600 = vld [vmem:[%s2595 + $0x20] sm:$0xff]
  %v2601 = vld [vmem:[%s2595 + $0x28] sm:$0xff]
  %v2602 = vld [vmem:[%s2595 + $0x30] sm:$0xff]
  %v2603 = vld [vmem:[%s2595 + $0x38] sm:$0xff]
  %v2604 = vld [vmem:[%s2595 + $0x40] sm:$0xff]
  %v2605 = vld [vmem:[%s2595 + $0x48] sm:$0xff]
  %v2606 = vld [vmem:[%s2595 + $0x50] sm:$0xff]
  %v2607 = vld [vmem:[%s2595 + $0x58] sm:$0xff]
  %v2608 = vld [vmem:[%s2595 + $0x60] sm:$0xff]
  %v2609 = vld [vmem:[%s2595 + $0x68] sm:$0xff]
  %v2610 = vld [vmem:[%s2595 + $0x70] sm:$0xff]
  %v2611 = vld [vmem:[%s2595 + $0x78] sm:$0xff]
  %v2612 = vld [vmem:[%s2595 + $0x80] sm:$0xff]
  %v2613 = vld [vmem:[%s2595 + $0x88] sm:$0xff]
  %v2614 = vpack.c.bf16 %v2568, %v2567
  %v2615 = vpack.c.bf16 %v2570, %v2569
  %v2616 = vpack.c.bf16 %v2572, %v2571
  %v2617 = vpack.c.bf16 %v2574, %v2573
  %v2618 = vpack.c.bf16 %v2575, %v2575
  %v2637 = vunpack.c.l.b16 %v2577
  %v2638 = vunpack.c.l.b16 %v2578
  %v2639 = vunpack.c.l.b16 %v2579
  %v2640 = vunpack.c.l.b16 %v2580
  %v2641 = vunpack.c.l.b16 %v2581
  %v2642 = vunpack.c.l.b16 %v2582
  %v2643 = vunpack.c.l.b16 %v2583
  %v2644 = vunpack.c.l.b16 %v2584
  %v2645 = vunpack.c.l.b16 %v2585
  %v2646 = vunpack.c.l.b16 %v2586
  %v2647 = vunpack.c.l.b16 %v2587
  %v2648 = vunpack.c.l.b16 %v2588
  %v2649 = vunpack.c.l.b16 %v2589
  %v2650 = vunpack.c.l.b16 %v2590
  %v2651 = vunpack.c.l.b16 %v2591
  %v2652 = vunpack.c.l.b16 %v2592
  %v2653 = vunpack.c.l.b16 %v2593
  %v2654 = vunpack.c.l.b16 %v2594
  %v2655 = vpack.c.b16 %v2638, %v2637
  %v2656 = vpack.c.b16 %v2640, %v2639
  %v2657 = vpack.c.b16 %v2642, %v2641
  %v2658 = vpack.c.b16 %v2644, %v2643
  %v2659 = vpack.c.b16 %v2646, %v2645
  %v2660 = vpack.c.b16 %v2648, %v2647
  %v2661 = vpack.c.b16 %v2650, %v2649
  %v2662 = vpack.c.b16 %v2652, %v2651
  %v2663 = vpack.c.b16 %v2654, %v2653
  %v2665 = vsel %vm1125, %v2655, 0
  %v2668 = vsel %vm1125, %v2656, 0
  %v2671 = vsel %vm1125, %v2657, 0
  %v2674 = vsel %vm1125, %v2658, 0
  %v2677 = vsel %vm1125, %v2659, 0
  %v2680 = vsel %vm1125, %v2660, 0
  %v2683 = vsel %vm1125, %v2661, 0
  %v2686 = vsel %vm1125, %v2662, 0
  %v2689 = vsel %vm1125, %v2663, 0
  %v2692 = vsel %vm675, %v2618, 0
  %2694 = vmatpush.bf16.msra.mxu0 0
  %2695 = vmatpush.bf16.msra.mxu0 0
  %2696 = vmatpush.bf16.msra.mxu0 0
  %2697 = vmatpush.bf16.msra.mxu0 %v2692
  %2698 = vmatpush.bf16.msra.mxu0 %v2617
  %2699 = vmatpush.bf16.msra.mxu0 %v2616
  %2700 = vmatpush.bf16.msra.mxu0 %v2615
  %2701 = vmatpush.bf16.msra.mxu0 %v2614
  %2702 = vmatmul.bf16.gmra.mxu0 %v2665
  %v2703 = vpop.f32.mrf.mxu0
  %v2704 = vadd.f32 0.0, %v2703
  %v2705 = vpop.f32.mrf.mxu0
  %v2706 = vadd.f32 0.0, %v2705
  %2707 = vmatmul.bf16.gmra.mxu0 %v2668
  %v2708 = vpop.f32.mrf.mxu0
  %v2709 = vadd.f32 0.0, %v2708
  %v2710 = vpop.f32.mrf.mxu0
  %v2711 = vadd.f32 0.0, %v2710
  %2712 = vmatmul.bf16.gmra.mxu0 %v2671
  %v2713 = vpop.f32.mrf.mxu0
  %v2714 = vadd.f32 0.0, %v2713
  %v2715 = vpop.f32.mrf.mxu0
  %v2716 = vadd.f32 0.0, %v2715
  %2717 = vmatmul.bf16.gmra.mxu0 %v2674
  %v2718 = vpop.f32.mrf.mxu0
  %v2719 = vadd.f32 0.0, %v2718
  %v2720 = vpop.f32.mrf.mxu0
  %v2721 = vadd.f32 0.0, %v2720
  %2722 = vmatmul.bf16.gmra.mxu0 %v2677
  %v2723 = vpop.f32.mrf.mxu0
  %v2724 = vadd.f32 0.0, %v2723
  %v2725 = vpop.f32.mrf.mxu0
  %v2726 = vadd.f32 0.0, %v2725
  %2727 = vmatmul.bf16.gmra.mxu0 %v2680
  %v2728 = vpop.f32.mrf.mxu0
  %v2729 = vadd.f32 0.0, %v2728
  %v2730 = vpop.f32.mrf.mxu0
  %v2731 = vadd.f32 0.0, %v2730
  %2732 = vmatmul.bf16.gmra.mxu0 %v2683
  %v2733 = vpop.f32.mrf.mxu0
  %v2734 = vadd.f32 0.0, %v2733
  %v2735 = vpop.f32.mrf.mxu0
  %v2736 = vadd.f32 0.0, %v2735
  %2737 = vmatmul.bf16.gmra.mxu0 %v2686
  %v2738 = vpop.f32.mrf.mxu0
  %v2739 = vadd.f32 0.0, %v2738
  %v2740 = vpop.f32.mrf.mxu0
  %v2741 = vadd.f32 0.0, %v2740
  %2742 = vmatmul.bf16.gmra.mxu0 %v2689
  %v2743 = vpop.f32.mrf.mxu0
  %v2744 = vadd.f32 0.0, %v2743
  %v2745 = vpop.f32.mrf.mxu0
  %v2746 = vadd.f32 0.0, %v2745
  %2747 = vdwg.mxu0
  %v2748 = vmul.f32 %v2704, %v704
  %v2749 = vmul.f32 %v2706, %v704
  %v2750 = vmul.f32 %v2709, %v704
  %v2751 = vmul.f32 %v2711, %v704
  %v2752 = vmul.f32 %v2714, %v704
  %v2753 = vmul.f32 %v2716, %v704
  %v2754 = vmul.f32 %v2719, %v704
  %v2755 = vmul.f32 %v2721, %v704
  %v2756 = vmul.f32 %v2724, %v704
  %2757 = vadd.xlane.f32.xlu0 %v2748
  %v2758 = vpop.xlane.xlu0 %2757
  %2759 = vadd.xlane.f32.xlu0 %v2749
  %v2760 = vpop.xlane.xlu0 %2759
  %2761 = vadd.xlane.f32.xlu0 %v2750
  %v2762 = vpop.xlane.xlu0 %2761
  %2763 = vadd.xlane.f32.xlu0 %v2751
  %v2764 = vpop.xlane.xlu0 %2763
  %2765 = vadd.xlane.f32.xlu0 %v2752
  %v2766 = vpop.xlane.xlu0 %2765
  %2767 = vadd.xlane.f32.xlu0 %v2753
  %v2768 = vpop.xlane.xlu0 %2767
  %2769 = vadd.xlane.f32.xlu0 %v2754
  %v2770 = vpop.xlane.xlu0 %2769
  %2771 = vadd.xlane.f32.xlu0 %v2755
  %v2772 = vpop.xlane.xlu0 %2771
  %2773 = vadd.xlane.f32.xlu0 %v2756
  %v2774 = vpop.xlane.xlu0 %2773
  %v2775 = vmul.f32 %v2726, %v716
  %v2776 = vmul.f32 %v2729, %v716
  %v2777 = vmul.f32 %v2731, %v716
  %v2778 = vmul.f32 %v2734, %v716
  %v2779 = vmul.f32 %v2736, %v716
  %v2780 = vmul.f32 %v2739, %v716
  %v2781 = vmul.f32 %v2741, %v716
  %v2782 = vmul.f32 %v2744, %v716
  %v2783 = vmul.f32 %v2746, %v716
  %2784 = vadd.xlane.f32.xlu0 %v2775
  %v2785 = vpop.xlane.xlu0 %2784
  %2786 = vadd.xlane.f32.xlu0 %v2776
  %v2787 = vpop.xlane.xlu0 %2786
  %2788 = vadd.xlane.f32.xlu0 %v2777
  %v2789 = vpop.xlane.xlu0 %2788
  %2790 = vadd.xlane.f32.xlu0 %v2778
  %v2791 = vpop.xlane.xlu0 %2790
  %2792 = vadd.xlane.f32.xlu0 %v2779
  %v2793 = vpop.xlane.xlu0 %2792
  %2794 = vadd.xlane.f32.xlu0 %v2780
  %v2795 = vpop.xlane.xlu0 %2794
  %2796 = vadd.xlane.f32.xlu0 %v2781
  %v2797 = vpop.xlane.xlu0 %2796
  %2798 = vadd.xlane.f32.xlu0 %v2782
  %v2799 = vpop.xlane.xlu0 %2798
  %2800 = vadd.xlane.f32.xlu0 %v2783
  %v2801 = vpop.xlane.xlu0 %2800
  %v2802 = vadd.f32 %v2758, %v2596
  %v2803 = vadd.f32 %v2760, %v2597
  %v2804 = vadd.f32 %v2762, %v2598
  %v2805 = vadd.f32 %v2764, %v2599
  %v2806 = vadd.f32 %v2766, %v2600
  %v2807 = vadd.f32 %v2768, %v2601
  %v2808 = vadd.f32 %v2770, %v2602
  %v2809 = vadd.f32 %v2772, %v2603
  %v2810 = vadd.f32 %v2774, %v2604
  %v2811 = vxor.u32 %v2802, 2147483648
  %v2812 = vxor.u32 %v2803, 2147483648
  %v2813 = vxor.u32 %v2804, 2147483648
  %v2814 = vxor.u32 %v2805, 2147483648
  %v2815 = vxor.u32 %v2806, 2147483648
  %v2816 = vxor.u32 %v2807, 2147483648
  %v2817 = vxor.u32 %v2808, 2147483648
  %v2818 = vxor.u32 %v2809, 2147483648
  %v2819 = vxor.u32 %v2810, 2147483648
  %v2820 = vmul.f32 %v2811, 1.442695
  %v2821 = vpow.pop %v2820
  %v2822 = vmul.f32 %v2812, 1.442695
  %v2823 = vpow.pop %v2822
  %v2824 = vmul.f32 %v2813, 1.442695
  %v2825 = vpow.pop %v2824
  %v2826 = vmul.f32 %v2814, 1.442695
  %v2827 = vpow.pop %v2826
  %v2828 = vmul.f32 %v2815, 1.442695
  %v2829 = vpow.pop %v2828
  %v2830 = vmul.f32 %v2816, 1.442695
  %v2831 = vpow.pop %v2830
  %v2832 = vmul.f32 %v2817, 1.442695
  %v2833 = vpow.pop %v2832
  %v2834 = vmul.f32 %v2818, 1.442695
  %v2835 = vpow.pop %v2834
  %v2836 = vmul.f32 %v2819, 1.442695
  %v2837 = vpow.pop %v2836
  %v2838 = vadd.f32 %v2821, 1.0
  %v2839 = vadd.f32 %v2823, 1.0
  %v2840 = vadd.f32 %v2825, 1.0
  %v2841 = vadd.f32 %v2827, 1.0
  %v2842 = vadd.f32 %v2829, 1.0
  %v2843 = vadd.f32 %v2831, 1.0
  %v2844 = vadd.f32 %v2833, 1.0
  %v2845 = vadd.f32 %v2835, 1.0
  %v2846 = vadd.f32 %v2837, 1.0
  %v2847 = vrcp.pop %v2838
  %v2848 = vmul.f32 %v2838, %v2847
  %v2849 = vsub.f32 1.0, %v2848
  %v2850 = vmul.f32 %v2847, %v2849
  %v2851 = vadd.f32 %v2847, %v2850
  %vm2852 = vweird.f32 %v2838
  %vm2853 = vweird.f32 %v2847
  %vm2854 = vmor %vm2852, %vm2853
  %v2855 = vsel %vm2854, %v2847, %v2851
  %v2856 = vand.u32 2147483647, %v2838
  %vm2857 = vcmp.eq.f32.partialorder %v2856, 8.507059e+37
  %v2858 = vand.u32 %v2838, 2147483648
  %v2859 = vor.u32 1.1754944e-38, %v2858
  %v2860 = vsel %vm2857, %v2859, %v2855
  %v2861 = vmul.f32 1.0, %v2860
  %v2862 = vrcp.pop %v2839
  %v2863 = vmul.f32 %v2839, %v2862
  %v2864 = vsub.f32 1.0, %v2863
  %v2865 = vmul.f32 %v2862, %v2864
  %v2866 = vadd.f32 %v2862, %v2865
  %vm2867 = vweird.f32 %v2839
  %vm2868 = vweird.f32 %v2862
  %vm2869 = vmor %vm2867, %vm2868
  %v2870 = vsel %vm2869, %v2862, %v2866
  %v2871 = vand.u32 2147483647, %v2839
  %vm2872 = vcmp.eq.f32.partialorder %v2871, 8.507059e+37
  %v2873 = vand.u32 %v2839, 2147483648
  %v2874 = vor.u32 1.1754944e-38, %v2873
  %v2875 = vsel %vm2872, %v2874, %v2870
  %v2876 = vmul.f32 1.0, %v2875
  %v2877 = vrcp.pop %v2840
  %v2878 = vmul.f32 %v2840, %v2877
  %v2879 = vsub.f32 1.0, %v2878
  %v2880 = vmul.f32 %v2877, %v2879
  %v2881 = vadd.f32 %v2877, %v2880
  %vm2882 = vweird.f32 %v2840
  %vm2883 = vweird.f32 %v2877
  %vm2884 = vmor %vm2882, %vm2883
  %v2885 = vsel %vm2884, %v2877, %v2881
  %v2886 = vand.u32 2147483647, %v2840
  %vm2887 = vcmp.eq.f32.partialorder %v2886, 8.507059e+37
  %v2888 = vand.u32 %v2840, 2147483648
  %v2889 = vor.u32 1.1754944e-38, %v2888
  %v2890 = vsel %vm2887, %v2889, %v2885
  %v2891 = vmul.f32 1.0, %v2890
  %v2892 = vrcp.pop %v2841
  %v2893 = vmul.f32 %v2841, %v2892
  %v2894 = vsub.f32 1.0, %v2893
  %v2895 = vmul.f32 %v2892, %v2894
  %v2896 = vadd.f32 %v2892, %v2895
  %vm2897 = vweird.f32 %v2841
  %vm2898 = vweird.f32 %v2892
  %vm2899 = vmor %vm2897, %vm2898
  %v2900 = vsel %vm2899, %v2892, %v2896
  %v2901 = vand.u32 2147483647, %v2841
  %vm2902 = vcmp.eq.f32.partialorder %v2901, 8.507059e+37
  %v2903 = vand.u32 %v2841, 2147483648
  %v2904 = vor.u32 1.1754944e-38, %v2903
  %v2905 = vsel %vm2902, %v2904, %v2900
  %v2906 = vmul.f32 1.0, %v2905
  %v2907 = vrcp.pop %v2842
  %v2908 = vmul.f32 %v2842, %v2907
  %v2909 = vsub.f32 1.0, %v2908
  %v2910 = vmul.f32 %v2907, %v2909
  %v2911 = vadd.f32 %v2907, %v2910
  %vm2912 = vweird.f32 %v2842
  %vm2913 = vweird.f32 %v2907
  %vm2914 = vmor %vm2912, %vm2913
  %v2915 = vsel %vm2914, %v2907, %v2911
  %v2916 = vand.u32 2147483647, %v2842
  %vm2917 = vcmp.eq.f32.partialorder %v2916, 8.507059e+37
  %v2918 = vand.u32 %v2842, 2147483648
  %v2919 = vor.u32 1.1754944e-38, %v2918
  %v2920 = vsel %vm2917, %v2919, %v2915
  %v2921 = vmul.f32 1.0, %v2920
  %v2922 = vrcp.pop %v2843
  %v2923 = vmul.f32 %v2843, %v2922
  %v2924 = vsub.f32 1.0, %v2923
  %v2925 = vmul.f32 %v2922, %v2924
  %v2926 = vadd.f32 %v2922, %v2925
  %vm2927 = vweird.f32 %v2843
  %vm2928 = vweird.f32 %v2922
  %vm2929 = vmor %vm2927, %vm2928
  %v2930 = vsel %vm2929, %v2922, %v2926
  %v2931 = vand.u32 2147483647, %v2843
  %vm2932 = vcmp.eq.f32.partialorder %v2931, 8.507059e+37
  %v2933 = vand.u32 %v2843, 2147483648
  %v2934 = vor.u32 1.1754944e-38, %v2933
  %v2935 = vsel %vm2932, %v2934, %v2930
  %v2936 = vmul.f32 1.0, %v2935
  %v2937 = vrcp.pop %v2844
  %v2938 = vmul.f32 %v2844, %v2937
  %v2939 = vsub.f32 1.0, %v2938
  %v2940 = vmul.f32 %v2937, %v2939
  %v2941 = vadd.f32 %v2937, %v2940
  %vm2942 = vweird.f32 %v2844
  %vm2943 = vweird.f32 %v2937
  %vm2944 = vmor %vm2942, %vm2943
  %v2945 = vsel %vm2944, %v2937, %v2941
  %v2946 = vand.u32 2147483647, %v2844
  %vm2947 = vcmp.eq.f32.partialorder %v2946, 8.507059e+37
  %v2948 = vand.u32 %v2844, 2147483648
  %v2949 = vor.u32 1.1754944e-38, %v2948
  %v2950 = vsel %vm2947, %v2949, %v2945
  %v2951 = vmul.f32 1.0, %v2950
  %v2952 = vrcp.pop %v2845
  %v2953 = vmul.f32 %v2845, %v2952
  %v2954 = vsub.f32 1.0, %v2953
  %v2955 = vmul.f32 %v2952, %v2954
  %v2956 = vadd.f32 %v2952, %v2955
  %vm2957 = vweird.f32 %v2845
  %vm2958 = vweird.f32 %v2952
  %vm2959 = vmor %vm2957, %vm2958
  %v2960 = vsel %vm2959, %v2952, %v2956
  %v2961 = vand.u32 2147483647, %v2845
  %vm2962 = vcmp.eq.f32.partialorder %v2961, 8.507059e+37
  %v2963 = vand.u32 %v2845, 2147483648
  %v2964 = vor.u32 1.1754944e-38, %v2963
  %v2965 = vsel %vm2962, %v2964, %v2960
  %v2966 = vmul.f32 1.0, %v2965
  %v2967 = vrcp.pop %v2846
  %v2968 = vmul.f32 %v2846, %v2967
  %v2969 = vsub.f32 1.0, %v2968
  %v2970 = vmul.f32 %v2967, %v2969
  %v2971 = vadd.f32 %v2967, %v2970
  %vm2972 = vweird.f32 %v2846
  %vm2973 = vweird.f32 %v2967
  %vm2974 = vmor %vm2972, %vm2973
  %v2975 = vsel %vm2974, %v2967, %v2971
  %v2976 = vand.u32 2147483647, %v2846
  %vm2977 = vcmp.eq.f32.partialorder %v2976, 8.507059e+37
  %v2978 = vand.u32 %v2846, 2147483648
  %v2979 = vor.u32 1.1754944e-38, %v2978
  %v2980 = vsel %vm2977, %v2979, %v2975
  %v2981 = vmul.f32 1.0, %v2980
  %v2982 = vadd.f32 %v2785, %v2605
  %v2983 = vadd.f32 %v2787, %v2606
  %v2984 = vadd.f32 %v2789, %v2607
  %v2985 = vadd.f32 %v2791, %v2608
  %v2986 = vadd.f32 %v2793, %v2609
  %v2987 = vadd.f32 %v2795, %v2610
  %v2988 = vadd.f32 %v2797, %v2611
  %v2989 = vadd.f32 %v2799, %v2612
  %v2990 = vadd.f32 %v2801, %v2613
  %v2991 = vxor.u32 %v2982, 2147483648
  %v2992 = vxor.u32 %v2983, 2147483648
  %v2993 = vxor.u32 %v2984, 2147483648
  %v2994 = vxor.u32 %v2985, 2147483648
  %v2995 = vxor.u32 %v2986, 2147483648
  %v2996 = vxor.u32 %v2987, 2147483648
  %v2997 = vxor.u32 %v2988, 2147483648
  %v2998 = vxor.u32 %v2989, 2147483648
  %v2999 = vxor.u32 %v2990, 2147483648
  %v3000 = vmul.f32 %v2991, 1.442695
  %v3001 = vpow.pop %v3000
  %v3002 = vmul.f32 %v2992, 1.442695
  %v3003 = vpow.pop %v3002
  %v3004 = vmul.f32 %v2993, 1.442695
  %v3005 = vpow.pop %v3004
  %v3006 = vmul.f32 %v2994, 1.442695
  %v3007 = vpow.pop %v3006
  %v3008 = vmul.f32 %v2995, 1.442695
  %v3009 = vpow.pop %v3008
  %v3010 = vmul.f32 %v2996, 1.442695
  %v3011 = vpow.pop %v3010
  %v3012 = vmul.f32 %v2997, 1.442695
  %v3013 = vpow.pop %v3012
  %v3014 = vmul.f32 %v2998, 1.442695
  %v3015 = vpow.pop %v3014
  %v3016 = vmul.f32 %v2999, 1.442695
  %v3017 = vpow.pop %v3016
  %v3018 = vadd.f32 %v3001, 1.0
  %v3019 = vadd.f32 %v3003, 1.0
  %v3020 = vadd.f32 %v3005, 1.0
  %v3021 = vadd.f32 %v3007, 1.0
  %v3022 = vadd.f32 %v3009, 1.0
  %v3023 = vadd.f32 %v3011, 1.0
  %v3024 = vadd.f32 %v3013, 1.0
  %v3025 = vadd.f32 %v3015, 1.0
  %v3026 = vadd.f32 %v3017, 1.0
  %v3027 = vrcp.pop %v3018
  %v3028 = vmul.f32 %v3018, %v3027
  %v3029 = vsub.f32 1.0, %v3028
  %v3030 = vmul.f32 %v3027, %v3029
  %v3031 = vadd.f32 %v3027, %v3030
  %vm3032 = vweird.f32 %v3018
  %vm3033 = vweird.f32 %v3027
  %vm3034 = vmor %vm3032, %vm3033
  %v3035 = vsel %vm3034, %v3027, %v3031
  %v3036 = vand.u32 2147483647, %v3018
  %vm3037 = vcmp.eq.f32.partialorder %v3036, 8.507059e+37
  %v3038 = vand.u32 %v3018, 2147483648
  %v3039 = vor.u32 1.1754944e-38, %v3038
  %v3040 = vsel %vm3037, %v3039, %v3035
  %v3041 = vmul.f32 1.0, %v3040
  %v3042 = vrcp.pop %v3019
  %v3043 = vmul.f32 %v3019, %v3042
  %v3044 = vsub.f32 1.0, %v3043
  %v3045 = vmul.f32 %v3042, %v3044
  %v3046 = vadd.f32 %v3042, %v3045
  %vm3047 = vweird.f32 %v3019
  %vm3048 = vweird.f32 %v3042
  %vm3049 = vmor %vm3047, %vm3048
  %v3050 = vsel %vm3049, %v3042, %v3046
  %v3051 = vand.u32 2147483647, %v3019
  %vm3052 = vcmp.eq.f32.partialorder %v3051, 8.507059e+37
  %v3053 = vand.u32 %v3019, 2147483648
  %v3054 = vor.u32 1.1754944e-38, %v3053
  %v3055 = vsel %vm3052, %v3054, %v3050
  %v3056 = vmul.f32 1.0, %v3055
  %v3057 = vrcp.pop %v3020
  %v3058 = vmul.f32 %v3020, %v3057
  %v3059 = vsub.f32 1.0, %v3058
  %v3060 = vmul.f32 %v3057, %v3059
  %v3061 = vadd.f32 %v3057, %v3060
  %vm3062 = vweird.f32 %v3020
  %vm3063 = vweird.f32 %v3057
  %vm3064 = vmor %vm3062, %vm3063
  %v3065 = vsel %vm3064, %v3057, %v3061
  %v3066 = vand.u32 2147483647, %v3020
  %vm3067 = vcmp.eq.f32.partialorder %v3066, 8.507059e+37
  %v3068 = vand.u32 %v3020, 2147483648
  %v3069 = vor.u32 1.1754944e-38, %v3068
  %v3070 = vsel %vm3067, %v3069, %v3065
  %v3071 = vmul.f32 1.0, %v3070
  %v3072 = vrcp.pop %v3021
  %v3073 = vmul.f32 %v3021, %v3072
  %v3074 = vsub.f32 1.0, %v3073
  %v3075 = vmul.f32 %v3072, %v3074
  %v3076 = vadd.f32 %v3072, %v3075
  %vm3077 = vweird.f32 %v3021
  %vm3078 = vweird.f32 %v3072
  %vm3079 = vmor %vm3077, %vm3078
  %v3080 = vsel %vm3079, %v3072, %v3076
  %v3081 = vand.u32 2147483647, %v3021
  %vm3082 = vcmp.eq.f32.partialorder %v3081, 8.507059e+37
  %v3083 = vand.u32 %v3021, 2147483648
  %v3084 = vor.u32 1.1754944e-38, %v3083
  %v3085 = vsel %vm3082, %v3084, %v3080
  %v3086 = vmul.f32 1.0, %v3085
  %v3087 = vrcp.pop %v3022
  %v3088 = vmul.f32 %v3022, %v3087
  %v3089 = vsub.f32 1.0, %v3088
  %v3090 = vmul.f32 %v3087, %v3089
  %v3091 = vadd.f32 %v3087, %v3090
  %vm3092 = vweird.f32 %v3022
  %vm3093 = vweird.f32 %v3087
  %vm3094 = vmor %vm3092, %vm3093
  %v3095 = vsel %vm3094, %v3087, %v3091
  %v3096 = vand.u32 2147483647, %v3022
  %vm3097 = vcmp.eq.f32.partialorder %v3096, 8.507059e+37
  %v3098 = vand.u32 %v3022, 2147483648
  %v3099 = vor.u32 1.1754944e-38, %v3098
  %v3100 = vsel %vm3097, %v3099, %v3095
  %v3101 = vmul.f32 1.0, %v3100
  %v3102 = vrcp.pop %v3023
  %v3103 = vmul.f32 %v3023, %v3102
  %v3104 = vsub.f32 1.0, %v3103
  %v3105 = vmul.f32 %v3102, %v3104
  %v3106 = vadd.f32 %v3102, %v3105
  %vm3107 = vweird.f32 %v3023
  %vm3108 = vweird.f32 %v3102
  %vm3109 = vmor %vm3107, %vm3108
  %v3110 = vsel %vm3109, %v3102, %v3106
  %v3111 = vand.u32 2147483647, %v3023
  %vm3112 = vcmp.eq.f32.partialorder %v3111, 8.507059e+37
  %v3113 = vand.u32 %v3023, 2147483648
  %v3114 = vor.u32 1.1754944e-38, %v3113
  %v3115 = vsel %vm3112, %v3114, %v3110
  %v3116 = vmul.f32 1.0, %v3115
  %v3117 = vrcp.pop %v3024
  %v3118 = vmul.f32 %v3024, %v3117
  %v3119 = vsub.f32 1.0, %v3118
  %v3120 = vmul.f32 %v3117, %v3119
  %v3121 = vadd.f32 %v3117, %v3120
  %vm3122 = vweird.f32 %v3024
  %vm3123 = vweird.f32 %v3117
  %vm3124 = vmor %vm3122, %vm3123
  %v3125 = vsel %vm3124, %v3117, %v3121
  %v3126 = vand.u32 2147483647, %v3024
  %vm3127 = vcmp.eq.f32.partialorder %v3126, 8.507059e+37
  %v3128 = vand.u32 %v3024, 2147483648
  %v3129 = vor.u32 1.1754944e-38, %v3128
  %v3130 = vsel %vm3127, %v3129, %v3125
  %v3131 = vmul.f32 1.0, %v3130
  %v3132 = vrcp.pop %v3025
  %v3133 = vmul.f32 %v3025, %v3132
  %v3134 = vsub.f32 1.0, %v3133
  %v3135 = vmul.f32 %v3132, %v3134
  %v3136 = vadd.f32 %v3132, %v3135
  %vm3137 = vweird.f32 %v3025
  %vm3138 = vweird.f32 %v3132
  %vm3139 = vmor %vm3137, %vm3138
  %v3140 = vsel %vm3139, %v3132, %v3136
  %v3141 = vand.u32 2147483647, %v3025
  %vm3142 = vcmp.eq.f32.partialorder %v3141, 8.507059e+37
  %v3143 = vand.u32 %v3025, 2147483648
  %v3144 = vor.u32 1.1754944e-38, %v3143
  %v3145 = vsel %vm3142, %v3144, %v3140
  %v3146 = vmul.f32 1.0, %v3145
  %v3147 = vrcp.pop %v3026
  %v3148 = vmul.f32 %v3026, %v3147
  %v3149 = vsub.f32 1.0, %v3148
  %v3150 = vmul.f32 %v3147, %v3149
  %v3151 = vadd.f32 %v3147, %v3150
  %vm3152 = vweird.f32 %v3026
  %vm3153 = vweird.f32 %v3147
  %vm3154 = vmor %vm3152, %vm3153
  %v3155 = vsel %vm3154, %v3147, %v3151
  %v3156 = vand.u32 2147483647, %v3026
  %vm3157 = vcmp.eq.f32.partialorder %v3156, 8.507059e+37
  %v3158 = vand.u32 %v3026, 2147483648
  %v3159 = vor.u32 1.1754944e-38, %v3158
  %v3160 = vsel %vm3157, %v3159, %v3155
  %v3161 = vmul.f32 1.0, %v3160
  %v3162 = vmul.f32 %v2861, %v3041
  %v3163 = vmul.f32 %v2876, %v3056
  %v3164 = vmul.f32 %v2891, %v3071
  %v3165 = vmul.f32 %v2906, %v3086
  %v3166 = vmul.f32 %v2921, %v3101
  %v3167 = vmul.f32 %v2936, %v3116
  %v3168 = vmul.f32 %v2951, %v3131
  %v3169 = vmul.f32 %v2966, %v3146
  %v3170 = vmul.f32 %v2981, %v3161
  %v3171 = vsub.f32 %v3162, 0.2
  %v3172 = vsub.f32 %v3163, 0.2
  %v3173 = vsub.f32 %v3164, 0.2
  %v3174 = vsub.f32 %v3165, 0.2
  %v3175 = vsub.f32 %v3166, 0.2
  %v3176 = vsub.f32 %v3167, 0.2
  %v3177 = vsub.f32 %v3168, 0.2
  %v3178 = vsub.f32 %v3169, 0.2
  %v3179 = vsub.f32 %v3170, 0.2
  %v3180 = vmul.f32 %v3171, 2.0
  %v3181 = vmul.f32 %v3172, 2.0
  %v3182 = vmul.f32 %v3173, 2.0
  %v3183 = vmul.f32 %v3174, 2.0
  %v3184 = vmul.f32 %v3175, 2.0
  %v3185 = vmul.f32 %v3176, 2.0
  %v3186 = vmul.f32 %v3177, 2.0
  %v3187 = vmul.f32 %v3178, 2.0
  %v3188 = vmul.f32 %v3179, 2.0
  %v3189 = vxor.u32 %v3180, 2147483648
  %v3190 = vxor.u32 %v3181, 2147483648
  %v3191 = vxor.u32 %v3182, 2147483648
  %v3192 = vxor.u32 %v3183, 2147483648
  %v3193 = vxor.u32 %v3184, 2147483648
  %v3194 = vxor.u32 %v3185, 2147483648
  %v3195 = vxor.u32 %v3186, 2147483648
  %v3196 = vxor.u32 %v3187, 2147483648
  %v3197 = vxor.u32 %v3188, 2147483648
  %v3198 = vmul.f32 %v3189, 1.442695
  %v3199 = vpow.pop %v3198
  %v3200 = vmul.f32 %v3190, 1.442695
  %v3201 = vpow.pop %v3200
  %v3202 = vmul.f32 %v3191, 1.442695
  %v3203 = vpow.pop %v3202
  %v3204 = vmul.f32 %v3192, 1.442695
  %v3205 = vpow.pop %v3204
  %v3206 = vmul.f32 %v3193, 1.442695
  %v3207 = vpow.pop %v3206
  %v3208 = vmul.f32 %v3194, 1.442695
  %v3209 = vpow.pop %v3208
  %v3210 = vmul.f32 %v3195, 1.442695
  %v3211 = vpow.pop %v3210
  %v3212 = vmul.f32 %v3196, 1.442695
  %v3213 = vpow.pop %v3212
  %v3214 = vmul.f32 %v3197, 1.442695
  %v3215 = vpow.pop %v3214
  %v3216 = vadd.f32 %v3199, 1.0
  %v3217 = vadd.f32 %v3201, 1.0
  %v3218 = vadd.f32 %v3203, 1.0
  %v3219 = vadd.f32 %v3205, 1.0
  %v3220 = vadd.f32 %v3207, 1.0
  %v3221 = vadd.f32 %v3209, 1.0
  %v3222 = vadd.f32 %v3211, 1.0
  %v3223 = vadd.f32 %v3213, 1.0
  %v3224 = vadd.f32 %v3215, 1.0
  %v3225 = vrcp.pop %v3216
  %v3226 = vmul.f32 %v3216, %v3225
  %v3227 = vsub.f32 1.0, %v3226
  %v3228 = vmul.f32 %v3225, %v3227
  %v3229 = vadd.f32 %v3225, %v3228
  %vm3230 = vweird.f32 %v3216
  %vm3231 = vweird.f32 %v3225
  %vm3232 = vmor %vm3230, %vm3231
  %v3233 = vsel %vm3232, %v3225, %v3229
  %v3234 = vand.u32 2147483647, %v3216
  %vm3235 = vcmp.eq.f32.partialorder %v3234, 8.507059e+37
  %v3236 = vand.u32 %v3216, 2147483648
  %v3237 = vor.u32 1.1754944e-38, %v3236
  %v3238 = vsel %vm3235, %v3237, %v3233
  %v3239 = vmul.f32 1.0, %v3238
  %v3240 = vrcp.pop %v3217
  %v3241 = vmul.f32 %v3217, %v3240
  %v3242 = vsub.f32 1.0, %v3241
  %v3243 = vmul.f32 %v3240, %v3242
  %v3244 = vadd.f32 %v3240, %v3243
  %vm3245 = vweird.f32 %v3217
  %vm3246 = vweird.f32 %v3240
  %vm3247 = vmor %vm3245, %vm3246
  %v3248 = vsel %vm3247, %v3240, %v3244
  %v3249 = vand.u32 2147483647, %v3217
  %vm3250 = vcmp.eq.f32.partialorder %v3249, 8.507059e+37
  %v3251 = vand.u32 %v3217, 2147483648
  %v3252 = vor.u32 1.1754944e-38, %v3251
  %v3253 = vsel %vm3250, %v3252, %v3248
  %v3254 = vmul.f32 1.0, %v3253
  %v3255 = vrcp.pop %v3218
  %v3256 = vmul.f32 %v3218, %v3255
  %v3257 = vsub.f32 1.0, %v3256
  %v3258 = vmul.f32 %v3255, %v3257
  %v3259 = vadd.f32 %v3255, %v3258
  %vm3260 = vweird.f32 %v3218
  %vm3261 = vweird.f32 %v3255
  %vm3262 = vmor %vm3260, %vm3261
  %v3263 = vsel %vm3262, %v3255, %v3259
  %v3264 = vand.u32 2147483647, %v3218
  %vm3265 = vcmp.eq.f32.partialorder %v3264, 8.507059e+37
  %v3266 = vand.u32 %v3218, 2147483648
  %v3267 = vor.u32 1.1754944e-38, %v3266
  %v3268 = vsel %vm3265, %v3267, %v3263
  %v3269 = vmul.f32 1.0, %v3268
  %v3270 = vrcp.pop %v3219
  %v3271 = vmul.f32 %v3219, %v3270
  %v3272 = vsub.f32 1.0, %v3271
  %v3273 = vmul.f32 %v3270, %v3272
  %v3274 = vadd.f32 %v3270, %v3273
  %vm3275 = vweird.f32 %v3219
  %vm3276 = vweird.f32 %v3270
  %vm3277 = vmor %vm3275, %vm3276
  %v3278 = vsel %vm3277, %v3270, %v3274
  %v3279 = vand.u32 2147483647, %v3219
  %vm3280 = vcmp.eq.f32.partialorder %v3279, 8.507059e+37
  %v3281 = vand.u32 %v3219, 2147483648
  %v3282 = vor.u32 1.1754944e-38, %v3281
  %v3283 = vsel %vm3280, %v3282, %v3278
  %v3284 = vmul.f32 1.0, %v3283
  %v3285 = vrcp.pop %v3220
  %v3286 = vmul.f32 %v3220, %v3285
  %v3287 = vsub.f32 1.0, %v3286
  %v3288 = vmul.f32 %v3285, %v3287
  %v3289 = vadd.f32 %v3285, %v3288
  %vm3290 = vweird.f32 %v3220
  %vm3291 = vweird.f32 %v3285
  %vm3292 = vmor %vm3290, %vm3291
  %v3293 = vsel %vm3292, %v3285, %v3289
  %v3294 = vand.u32 2147483647, %v3220
  %vm3295 = vcmp.eq.f32.partialorder %v3294, 8.507059e+37
  %v3296 = vand.u32 %v3220, 2147483648
  %v3297 = vor.u32 1.1754944e-38, %v3296
  %v3298 = vsel %vm3295, %v3297, %v3293
  %v3299 = vmul.f32 1.0, %v3298
  %v3300 = vrcp.pop %v3221
  %v3301 = vmul.f32 %v3221, %v3300
  %v3302 = vsub.f32 1.0, %v3301
  %v3303 = vmul.f32 %v3300, %v3302
  %v3304 = vadd.f32 %v3300, %v3303
  %vm3305 = vweird.f32 %v3221
  %vm3306 = vweird.f32 %v3300
  %vm3307 = vmor %vm3305, %vm3306
  %v3308 = vsel %vm3307, %v3300, %v3304
  %v3309 = vand.u32 2147483647, %v3221
  %vm3310 = vcmp.eq.f32.partialorder %v3309, 8.507059e+37
  %v3311 = vand.u32 %v3221, 2147483648
  %v3312 = vor.u32 1.1754944e-38, %v3311
  %v3313 = vsel %vm3310, %v3312, %v3308
  %v3314 = vmul.f32 1.0, %v3313
  %v3315 = vrcp.pop %v3222
  %v3316 = vmul.f32 %v3222, %v3315
  %v3317 = vsub.f32 1.0, %v3316
  %v3318 = vmul.f32 %v3315, %v3317
  %v3319 = vadd.f32 %v3315, %v3318
  %vm3320 = vweird.f32 %v3222
  %vm3321 = vweird.f32 %v3315
  %vm3322 = vmor %vm3320, %vm3321
  %v3323 = vsel %vm3322, %v3315, %v3319
  %v3324 = vand.u32 2147483647, %v3222
  %vm3325 = vcmp.eq.f32.partialorder %v3324, 8.507059e+37
  %v3326 = vand.u32 %v3222, 2147483648
  %v3327 = vor.u32 1.1754944e-38, %v3326
  %v3328 = vsel %vm3325, %v3327, %v3323
  %v3329 = vmul.f32 1.0, %v3328
  %v3330 = vrcp.pop %v3223
  %v3331 = vmul.f32 %v3223, %v3330
  %v3332 = vsub.f32 1.0, %v3331
  %v3333 = vmul.f32 %v3330, %v3332
  %v3334 = vadd.f32 %v3330, %v3333
  %vm3335 = vweird.f32 %v3223
  %vm3336 = vweird.f32 %v3330
  %vm3337 = vmor %vm3335, %vm3336
  %v3338 = vsel %vm3337, %v3330, %v3334
  %v3339 = vand.u32 2147483647, %v3223
  %vm3340 = vcmp.eq.f32.partialorder %v3339, 8.507059e+37
  %v3341 = vand.u32 %v3223, 2147483648
  %v3342 = vor.u32 1.1754944e-38, %v3341
  %v3343 = vsel %vm3340, %v3342, %v3338
  %v3344 = vmul.f32 1.0, %v3343
  %v3345 = vrcp.pop %v3224
  %v3346 = vmul.f32 %v3224, %v3345
  %v3347 = vsub.f32 1.0, %v3346
  %v3348 = vmul.f32 %v3345, %v3347
  %v3349 = vadd.f32 %v3345, %v3348
  %vm3350 = vweird.f32 %v3224
  %vm3351 = vweird.f32 %v3345
  %vm3352 = vmor %vm3350, %vm3351
  %v3353 = vsel %vm3352, %v3345, %v3349
  %v3354 = vand.u32 2147483647, %v3224
  %vm3355 = vcmp.eq.f32.partialorder %v3354, 8.507059e+37
  %v3356 = vand.u32 %v3224, 2147483648
  %v3357 = vor.u32 1.1754944e-38, %v3356
  %v3358 = vsel %vm3355, %v3357, %v3353
  %v3359 = vmul.f32 1.0, %v3358
  %3361 = vset.pattern.permute.xlu0 0
  %3362 = vperm.xlu0 %3361, %v3239
  %v3363 = vpop.permute.xlu0 %3362
  %3366 = vset.pattern.permute.xlu0 0
  %3367 = vperm.xlu0 %3366, %v3254
  %v3368 = vpop.permute.xlu0 %3367
  %3371 = vset.pattern.permute.xlu0 0
  %3372 = vperm.xlu0 %3371, %v3269
  %v3373 = vpop.permute.xlu0 %3372
  %3376 = vset.pattern.permute.xlu0 0
  %3377 = vperm.xlu0 %3376, %v3284
  %v3378 = vpop.permute.xlu0 %3377
  %3381 = vset.pattern.permute.xlu0 0
  %3382 = vperm.xlu0 %3381, %v3299
  %v3383 = vpop.permute.xlu0 %3382
  %3386 = vset.pattern.permute.xlu0 0
  %3387 = vperm.xlu0 %3386, %v3314
  %v3388 = vpop.permute.xlu0 %3387
  %3391 = vset.pattern.permute.xlu0 0
  %3392 = vperm.xlu0 %3391, %v3329
  %v3393 = vpop.permute.xlu0 %3392
  %3396 = vset.pattern.permute.xlu0 0
  %3397 = vperm.xlu0 %3396, %v3344
  %v3398 = vpop.permute.xlu0 %3397
  %3401 = vset.pattern.permute.xlu0 0
  %3402 = vperm.xlu0 %3401, %v3359
  %v3403 = vpop.permute.xlu0 %3402
  %v3405 = vmul.f32 %v2567, %v3363
  %v3406 = vmul.f32 %v2568, %v3368
  %v3407 = vmul.f32 %v2569, %v3373
  %v3408 = vmul.f32 %v2570, %v3378
  %v3409 = vmul.f32 %v2571, %v3383
  %v3410 = vmul.f32 %v2572, %v3388
  %v3411 = vmul.f32 %v2573, %v3393
  %v3412 = vmul.f32 %v2574, %v3398
  %v3413 = vmul.f32 %v2575, %v3403
  %v3414 = vld [vmem:[%s15] sm:$0xf]
  %v3415 = vld [vmem:[%s15 + $0x4] sm:$0xf]
  %v3416 = vld [vmem:[%s15 + $0x8] sm:$0xf]
  %v3417 = vpack.c.bf16 %v3406, %v3405
  %v3418 = vpack.c.bf16 %v3408, %v3407
  %v3419 = vpack.c.bf16 %v3410, %v3409
  %v3420 = vpack.c.bf16 %v3412, %v3411
  %v3421 = vpack.c.bf16 %v3413, %v3413
  %v3422 = vld [vmem:[%s16] sm:$0xff]
  %v3423 = vld [vmem:[%s16 + $0x8] sm:$0xff]
  %v3424 = vld [vmem:[%s16 + $0x10] sm:$0xff]
  %3426 = vset.pattern.permute.xlu0 0
  %3427 = vperm.xlu0 %3426, %v3422
  %v3428 = vpop.permute.xlu0 %3427
  %3431 = vset.pattern.permute.xlu0 0
  %3432 = vperm.xlu0 %3431, %v3423
  %v3433 = vpop.permute.xlu0 %3432
  %3436 = vset.pattern.permute.xlu0 0
  %3437 = vperm.xlu0 %3436, %v3424
  %v3438 = vpop.permute.xlu0 %3437
  %v3443 = vunpack.c.l.b16 %v3414
  %v3444 = vunpack.c.l.b16 %v3415
  %v3445 = vunpack.c.l.b16 %v3416
  %v3446 = vpack.c.b16 %v3444, %v3443
  %v3447 = vpack.c.b16 %v3445, %v3445
  %v3449 = vsel %vm1125, %v3446, 0
  %v3452 = vsel %vm1125, %v3447, 0
  %v3455 = vsel %vm675, %v3421, 0
  %3457 = vmatpush.bf16.msra.mxu0 0
  %3458 = vmatpush.bf16.msra.mxu0 0
  %3459 = vmatpush.bf16.msra.mxu0 0
  %3460 = vmatpush.bf16.msra.mxu0 %v3455
  %3461 = vmatpush.bf16.msra.mxu0 %v3420
  %3462 = vmatpush.bf16.msra.mxu0 %v3419
  %3463 = vmatpush.bf16.msra.mxu0 %v3418
  %3464 = vmatpush.bf16.msra.mxu0 %v3417
  %3465 = vmatmul.bf16.gmra.mxu0 %v3449
  %v3466 = vpop.f32.mrf.mxu0
  %v3467 = vadd.f32 %v3428, %v3466
  %v3468 = vpop.f32.mrf.mxu0
  %v3469 = vadd.f32 %v3433, %v3468
  %3470 = vmatmul.bf16.gmra.mxu0 %v3452
  %v3471 = vpop.f32.mrf.mxu0
  %v3472 = vadd.f32 %v3438, %v3471
  %v3473 = vpop.f32.mrf.mxu0
  %3474 = vdwg.mxu0
  %s3475 = scalar_lea.vmem %s5, 24
  %v3476 = vld [vmem:[%s3475] sm:$0xf]
  %v3477 = vld [vmem:[%s3475 + $0x4] sm:$0xf]
  %v3478 = vld [vmem:[%s3475 + $0x8] sm:$0xf]
  %v3479 = vld [vmem:[%s3475 + $0xc] sm:$0xf]
  %v3480 = vld [vmem:[%s3475 + $0x10] sm:$0xf]
  %v3481 = vld [vmem:[%s3475 + $0x14] sm:$0xf]
  %s3482 = scalar_lea.vmem %s6, 48
  %v3483 = vld [vmem:[%s3482] sm:$0xff]
  %v3484 = vld [vmem:[%s3482 + $0x8] sm:$0xff]
  %v3485 = vld [vmem:[%s3482 + $0x10] sm:$0xff]
  %v3486 = vld [vmem:[%s3482 + $0x18] sm:$0xff]
  %v3487 = vld [vmem:[%s3482 + $0x20] sm:$0xff]
  %v3488 = vld [vmem:[%s3482 + $0x28] sm:$0xff]
  %v3489 = vpack.c.bf16 %v3469, %v3467
  %v3490 = vpack.c.bf16 %v3472, %v3472
  %v3497 = vunpack.c.l.b16 %v3476
  %v3498 = vunpack.c.l.b16 %v3477
  %v3499 = vunpack.c.l.b16 %v3478
  %v3500 = vunpack.c.l.b16 %v3479
  %v3501 = vunpack.c.l.b16 %v3480
  %v3502 = vunpack.c.l.b16 %v3481
  %v3503 = vpack.c.b16 %v3498, %v3497
  %v3504 = vpack.c.b16 %v3500, %v3499
  %v3505 = vpack.c.b16 %v3502, %v3501
  %v3507 = vsel %vm665, %v3503, 0
  %v3510 = vsel %vm665, %v3504, 0
  %v3513 = vsel %vm665, %v3505, 0
  %v3516 = vsel %vm675, %v3490, 0
  %3518 = vmatpush.bf16.msra.mxu0 0
  %3519 = vmatpush.bf16.msra.mxu0 0
  %3520 = vmatpush.bf16.msra.mxu0 0
  %3521 = vmatpush.bf16.msra.mxu0 0
  %3522 = vmatpush.bf16.msra.mxu0 0
  %3523 = vmatpush.bf16.msra.mxu0 0
  %3524 = vmatpush.bf16.msra.mxu0 %v3516
  %3525 = vmatpush.bf16.msra.mxu0 %v3489
  %3526 = vmatmul.bf16.gmra.mxu0 %v3507
  %v3527 = vpop.f32.mrf.mxu0
  %v3528 = vadd.f32 0.0, %v3527
  %v3529 = vpop.f32.mrf.mxu0
  %v3530 = vadd.f32 0.0, %v3529
  %3531 = vmatmul.bf16.gmra.mxu0 %v3510
  %v3532 = vpop.f32.mrf.mxu0
  %v3533 = vadd.f32 0.0, %v3532
  %v3534 = vpop.f32.mrf.mxu0
  %v3535 = vadd.f32 0.0, %v3534
  %3536 = vmatmul.bf16.gmra.mxu0 %v3513
  %v3537 = vpop.f32.mrf.mxu0
  %v3538 = vadd.f32 0.0, %v3537
  %v3539 = vpop.f32.mrf.mxu0
  %v3540 = vadd.f32 0.0, %v3539
  %3541 = vdwg.mxu0
  %v3542 = vmul.f32 %v3528, %v704
  %v3543 = vmul.f32 %v3530, %v704
  %v3544 = vmul.f32 %v3533, %v704
  %3545 = vadd.xlane.f32.xlu0 %v3542
  %v3546 = vpop.xlane.xlu0 %3545
  %3547 = vadd.xlane.f32.xlu0 %v3543
  %v3548 = vpop.xlane.xlu0 %3547
  %3549 = vadd.xlane.f32.xlu0 %v3544
  %v3550 = vpop.xlane.xlu0 %3549
  %v3551 = vmul.f32 %v3535, %v716
  %v3552 = vmul.f32 %v3538, %v716
  %v3553 = vmul.f32 %v3540, %v716
  %3554 = vadd.xlane.f32.xlu0 %v3551
  %v3555 = vpop.xlane.xlu0 %3554
  %3556 = vadd.xlane.f32.xlu0 %v3552
  %v3557 = vpop.xlane.xlu0 %3556
  %3558 = vadd.xlane.f32.xlu0 %v3553
  %v3559 = vpop.xlane.xlu0 %3558
  %v3560 = vadd.f32 %v3546, %v3483
  %v3561 = vadd.f32 %v3548, %v3484
  %v3562 = vadd.f32 %v3550, %v3485
  %v3563 = vxor.u32 %v3560, 2147483648
  %v3564 = vxor.u32 %v3561, 2147483648
  %v3565 = vxor.u32 %v3562, 2147483648
  %v3566 = vmul.f32 %v3563, 1.442695
  %v3567 = vpow.pop %v3566
  %v3568 = vmul.f32 %v3564, 1.442695
  %v3569 = vpow.pop %v3568
  %v3570 = vmul.f32 %v3565, 1.442695
  %v3571 = vpow.pop %v3570
  %v3572 = vadd.f32 %v3567, 1.0
  %v3573 = vadd.f32 %v3569, 1.0
  %v3574 = vadd.f32 %v3571, 1.0
  %v3575 = vrcp.pop %v3572
  %v3576 = vmul.f32 %v3572, %v3575
  %v3577 = vsub.f32 1.0, %v3576
  %v3578 = vmul.f32 %v3575, %v3577
  %v3579 = vadd.f32 %v3575, %v3578
  %vm3580 = vweird.f32 %v3572
  %vm3581 = vweird.f32 %v3575
  %vm3582 = vmor %vm3580, %vm3581
  %v3583 = vsel %vm3582, %v3575, %v3579
  %v3584 = vand.u32 2147483647, %v3572
  %vm3585 = vcmp.eq.f32.partialorder %v3584, 8.507059e+37
  %v3586 = vand.u32 %v3572, 2147483648
  %v3587 = vor.u32 1.1754944e-38, %v3586
  %v3588 = vsel %vm3585, %v3587, %v3583
  %v3589 = vmul.f32 1.0, %v3588
  %v3590 = vrcp.pop %v3573
  %v3591 = vmul.f32 %v3573, %v3590
  %v3592 = vsub.f32 1.0, %v3591
  %v3593 = vmul.f32 %v3590, %v3592
  %v3594 = vadd.f32 %v3590, %v3593
  %vm3595 = vweird.f32 %v3573
  %vm3596 = vweird.f32 %v3590
  %vm3597 = vmor %vm3595, %vm3596
  %v3598 = vsel %vm3597, %v3590, %v3594
  %v3599 = vand.u32 2147483647, %v3573
  %vm3600 = vcmp.eq.f32.partialorder %v3599, 8.507059e+37
  %v3601 = vand.u32 %v3573, 2147483648
  %v3602 = vor.u32 1.1754944e-38, %v3601
  %v3603 = vsel %vm3600, %v3602, %v3598
  %v3604 = vmul.f32 1.0, %v3603
  %v3605 = vrcp.pop %v3574
  %v3606 = vmul.f32 %v3574, %v3605
  %v3607 = vsub.f32 1.0, %v3606
  %v3608 = vmul.f32 %v3605, %v3607
  %v3609 = vadd.f32 %v3605, %v3608
  %vm3610 = vweird.f32 %v3574
  %vm3611 = vweird.f32 %v3605
  %vm3612 = vmor %vm3610, %vm3611
  %v3613 = vsel %vm3612, %v3605, %v3609
  %v3614 = vand.u32 2147483647, %v3574
  %vm3615 = vcmp.eq.f32.partialorder %v3614, 8.507059e+37
  %v3616 = vand.u32 %v3574, 2147483648
  %v3617 = vor.u32 1.1754944e-38, %v3616
  %v3618 = vsel %vm3615, %v3617, %v3613
  %v3619 = vmul.f32 1.0, %v3618
  %v3620 = vadd.f32 %v3555, %v3486
  %v3621 = vadd.f32 %v3557, %v3487
  %v3622 = vadd.f32 %v3559, %v3488
  %v3623 = vxor.u32 %v3620, 2147483648
  %v3624 = vxor.u32 %v3621, 2147483648
  %v3625 = vxor.u32 %v3622, 2147483648
  %v3626 = vmul.f32 %v3623, 1.442695
  %v3627 = vpow.pop %v3626
  %v3628 = vmul.f32 %v3624, 1.442695
  %v3629 = vpow.pop %v3628
  %v3630 = vmul.f32 %v3625, 1.442695
  %v3631 = vpow.pop %v3630
  %v3632 = vadd.f32 %v3627, 1.0
  %v3633 = vadd.f32 %v3629, 1.0
  %v3634 = vadd.f32 %v3631, 1.0
  %v3635 = vrcp.pop %v3632
  %v3636 = vmul.f32 %v3632, %v3635
  %v3637 = vsub.f32 1.0, %v3636
  %v3638 = vmul.f32 %v3635, %v3637
  %v3639 = vadd.f32 %v3635, %v3638
  %vm3640 = vweird.f32 %v3632
  %vm3641 = vweird.f32 %v3635
  %vm3642 = vmor %vm3640, %vm3641
  %v3643 = vsel %vm3642, %v3635, %v3639
  %v3644 = vand.u32 2147483647, %v3632
  %vm3645 = vcmp.eq.f32.partialorder %v3644, 8.507059e+37
  %v3646 = vand.u32 %v3632, 2147483648
  %v3647 = vor.u32 1.1754944e-38, %v3646
  %v3648 = vsel %vm3645, %v3647, %v3643
  %v3649 = vmul.f32 1.0, %v3648
  %v3650 = vrcp.pop %v3633
  %v3651 = vmul.f32 %v3633, %v3650
  %v3652 = vsub.f32 1.0, %v3651
  %v3653 = vmul.f32 %v3650, %v3652
  %v3654 = vadd.f32 %v3650, %v3653
  %vm3655 = vweird.f32 %v3633
  %vm3656 = vweird.f32 %v3650
  %vm3657 = vmor %vm3655, %vm3656
  %v3658 = vsel %vm3657, %v3650, %v3654
  %v3659 = vand.u32 2147483647, %v3633
  %vm3660 = vcmp.eq.f32.partialorder %v3659, 8.507059e+37
  %v3661 = vand.u32 %v3633, 2147483648
  %v3662 = vor.u32 1.1754944e-38, %v3661
  %v3663 = vsel %vm3660, %v3662, %v3658
  %v3664 = vmul.f32 1.0, %v3663
  %v3665 = vrcp.pop %v3634
  %v3666 = vmul.f32 %v3634, %v3665
  %v3667 = vsub.f32 1.0, %v3666
  %v3668 = vmul.f32 %v3665, %v3667
  %v3669 = vadd.f32 %v3665, %v3668
  %vm3670 = vweird.f32 %v3634
  %vm3671 = vweird.f32 %v3665
  %vm3672 = vmor %vm3670, %vm3671
  %v3673 = vsel %vm3672, %v3665, %v3669
  %v3674 = vand.u32 2147483647, %v3634
  %vm3675 = vcmp.eq.f32.partialorder %v3674, 8.507059e+37
  %v3676 = vand.u32 %v3634, 2147483648
  %v3677 = vor.u32 1.1754944e-38, %v3676
  %v3678 = vsel %vm3675, %v3677, %v3673
  %v3679 = vmul.f32 1.0, %v3678
  %v3680 = vmul.f32 %v3589, %v3649
  %v3681 = vmul.f32 %v3604, %v3664
  %v3682 = vmul.f32 %v3619, %v3679
  %v3683 = vsub.f32 %v3680, 0.2
  %v3684 = vsub.f32 %v3681, 0.2
  %v3685 = vsub.f32 %v3682, 0.2
  %v3686 = vmul.f32 %v3683, 2.0
  %v3687 = vmul.f32 %v3684, 2.0
  %v3688 = vmul.f32 %v3685, 2.0
  %v3689 = vxor.u32 %v3686, 2147483648
  %v3690 = vxor.u32 %v3687, 2147483648
  %v3691 = vxor.u32 %v3688, 2147483648
  %v3692 = vmul.f32 %v3689, 1.442695
  %v3693 = vpow.pop %v3692
  %v3694 = vmul.f32 %v3690, 1.442695
  %v3695 = vpow.pop %v3694
  %v3696 = vmul.f32 %v3691, 1.442695
  %v3697 = vpow.pop %v3696
  %v3698 = vadd.f32 %v3693, 1.0
  %v3699 = vadd.f32 %v3695, 1.0
  %v3700 = vadd.f32 %v3697, 1.0
  %v3701 = vrcp.pop %v3698
  %v3702 = vmul.f32 %v3698, %v3701
  %v3703 = vsub.f32 1.0, %v3702
  %v3704 = vmul.f32 %v3701, %v3703
  %v3705 = vadd.f32 %v3701, %v3704
  %vm3706 = vweird.f32 %v3698
  %vm3707 = vweird.f32 %v3701
  %vm3708 = vmor %vm3706, %vm3707
  %v3709 = vsel %vm3708, %v3701, %v3705
  %v3710 = vand.u32 2147483647, %v3698
  %vm3711 = vcmp.eq.f32.partialorder %v3710, 8.507059e+37
  %v3712 = vand.u32 %v3698, 2147483648
  %v3713 = vor.u32 1.1754944e-38, %v3712
  %v3714 = vsel %vm3711, %v3713, %v3709
  %v3715 = vmul.f32 1.0, %v3714
  %v3716 = vrcp.pop %v3699
  %v3717 = vmul.f32 %v3699, %v3716
  %v3718 = vsub.f32 1.0, %v3717
  %v3719 = vmul.f32 %v3716, %v3718
  %v3720 = vadd.f32 %v3716, %v3719
  %vm3721 = vweird.f32 %v3699
  %vm3722 = vweird.f32 %v3716
  %vm3723 = vmor %vm3721, %vm3722
  %v3724 = vsel %vm3723, %v3716, %v3720
  %v3725 = vand.u32 2147483647, %v3699
  %vm3726 = vcmp.eq.f32.partialorder %v3725, 8.507059e+37
  %v3727 = vand.u32 %v3699, 2147483648
  %v3728 = vor.u32 1.1754944e-38, %v3727
  %v3729 = vsel %vm3726, %v3728, %v3724
  %v3730 = vmul.f32 1.0, %v3729
  %v3731 = vrcp.pop %v3700
  %v3732 = vmul.f32 %v3700, %v3731
  %v3733 = vsub.f32 1.0, %v3732
  %v3734 = vmul.f32 %v3731, %v3733
  %v3735 = vadd.f32 %v3731, %v3734
  %vm3736 = vweird.f32 %v3700
  %vm3737 = vweird.f32 %v3731
  %vm3738 = vmor %vm3736, %vm3737
  %v3739 = vsel %vm3738, %v3731, %v3735
  %v3740 = vand.u32 2147483647, %v3700
  %vm3741 = vcmp.eq.f32.partialorder %v3740, 8.507059e+37
  %v3742 = vand.u32 %v3700, 2147483648
  %v3743 = vor.u32 1.1754944e-38, %v3742
  %v3744 = vsel %vm3741, %v3743, %v3739
  %v3745 = vmul.f32 1.0, %v3744
  %3747 = vset.pattern.permute.xlu0 0
  %3748 = vperm.xlu0 %3747, %v3715
  %v3749 = vpop.permute.xlu0 %3748
  %3752 = vset.pattern.permute.xlu0 0
  %3753 = vperm.xlu0 %3752, %v3730
  %v3754 = vpop.permute.xlu0 %3753
  %3757 = vset.pattern.permute.xlu0 0
  %3758 = vperm.xlu0 %3757, %v3745
  %v3759 = vpop.permute.xlu0 %3758
  %v3761 = vmul.f32 %v3467, %v3749
  %v3762 = vmul.f32 %v3469, %v3754
  %v3763 = vmul.f32 %v3472, %v3759
  %v3764 = vld [vmem:[%s17] sm:$0xff]
  %v3765 = vld [vmem:[%s17 + $0x8] sm:$0xff]
  %v3766 = vld [vmem:[%s17 + $0x10] sm:$0xff]
  %3768 = vset.pattern.permute.xlu0 0
  %3769 = vperm.xlu0 %3768, %v3764
  %v3770 = vpop.permute.xlu0 %3769
  %3773 = vset.pattern.permute.xlu0 0
  %3774 = vperm.xlu0 %3773, %v3765
  %v3775 = vpop.permute.xlu0 %3774
  %3778 = vset.pattern.permute.xlu0 0
  %3779 = vperm.xlu0 %3778, %v3766
  %v3780 = vpop.permute.xlu0 %3779
  %v3782 = vmul.f32 %v3761, %v3770
  %v3783 = vmul.f32 %v3762, %v3775
  %v3784 = vmul.f32 %v3763, %v3780
  %3785 = vset.pattern.permute.xlu0 1
  %3786 = vperm.xlu0 %3785, %v3764
  %v3787 = vpop.permute.xlu0 %3786
  %3789 = vset.pattern.permute.xlu0 1
  %3790 = vperm.xlu0 %3789, %v3765
  %v3791 = vpop.permute.xlu0 %3790
  %3793 = vset.pattern.permute.xlu0 1
  %3794 = vperm.xlu0 %3793, %v3766
  %v3795 = vpop.permute.xlu0 %3794
  %v3797 = vadd.f32 %v3782, %v3787
  %v3798 = vadd.f32 %v3783, %v3791
  %v3799 = vadd.f32 %v3784, %v3795
  %v3800 = vadd.f32 %v3797, 3.0
  %v3801 = vadd.f32 %v3798, 3.0
  %v3802 = vadd.f32 %v3799, 3.0
  %v3803 = vmax.f32 %v3800, 0.0
  %v3804 = vmax.f32 %v3801, 0.0
  %v3805 = vmax.f32 %v3802, 0.0
  %v3806 = vmin.f32 %v3803, 6.0
  %v3807 = vmin.f32 %v3804, 6.0
  %v3808 = vmin.f32 %v3805, 6.0
  %v3809 = vmul.f32 %v3797, %v3806
  %v3810 = vmul.f32 %v3798, %v3807
  %v3811 = vmul.f32 %v3799, %v3808
  %v3812 = vmul.f32 %v3809, 0.16666667
  %v3813 = vmul.f32 %v3810, 0.16666667
  %v3814 = vmul.f32 %v3811, 0.16666667
  %v3815 = vadd.f32 %v3812, %v60
  %v3816 = vadd.f32 %v3813, %v61
  %v3817 = vadd.f32 %v3814, %v62
  %v3818 = vld [vmem:[%s3] sm:$0xf]
  %v3819 = vld [vmem:[%s3 + $0x4] sm:$0xf]
  %v3820 = vld [vmem:[%s3 + $0x8] sm:$0xf]
  %v3821 = vld [vmem:[%s3 + $0xc] sm:$0xf]
  %v3822 = vld [vmem:[%s3 + $0x10] sm:$0xf]
  %v3823 = vld [vmem:[%s3 + $0x14] sm:$0xf]
  %v3824 = vld [vmem:[%s3 + $0x18] sm:$0xf]
  %v3825 = vld [vmem:[%s3 + $0x1c] sm:$0xf]
  %v3826 = vld [vmem:[%s3 + $0x20] sm:$0xf]
  %v3827 = vld [vmem:[%s3 + $0x24] sm:$0xf]
  %v3828 = vld [vmem:[%s3 + $0x28] sm:$0xf]
  %v3829 = vld [vmem:[%s3 + $0x2c] sm:$0xf]
  %v3830 = vld [vmem:[%s3 + $0x30] sm:$0xf]
  %v3831 = vld [vmem:[%s3 + $0x34] sm:$0xf]
  %v3832 = vld [vmem:[%s3 + $0x38] sm:$0xf]
  %v3833 = vld [vmem:[%s3 + $0x3c] sm:$0xf]
  %v3834 = vld [vmem:[%s3 + $0x40] sm:$0xf]
  %v3835 = vld [vmem:[%s3 + $0x44] sm:$0xf]
  %v3836 = vld [vmem:[%s3 + $0x48] sm:$0xf]
  %v3837 = vld [vmem:[%s3 + $0x4c] sm:$0xf]
  %v3838 = vld [vmem:[%s3 + $0x50] sm:$0xf]
  %v3839 = vld [vmem:[%s3 + $0x54] sm:$0xf]
  %v3840 = vld [vmem:[%s3 + $0x58] sm:$0xf]
  %v3841 = vld [vmem:[%s3 + $0x5c] sm:$0xf]
  %v3842 = vld [vmem:[%s3 + $0x60] sm:$0xf]
  %v3843 = vld [vmem:[%s3 + $0x64] sm:$0xf]
  %v3844 = vld [vmem:[%s3 + $0x68] sm:$0xf]
  %v3845 = vld [vmem:[%s3 + $0x6c] sm:$0xf]
  %v3846 = vld [vmem:[%s3 + $0x70] sm:$0xf]
  %v3847 = vld [vmem:[%s3 + $0x74] sm:$0xf]
  %v3848 = vld [vmem:[%s3 + $0x78] sm:$0xf]
  %v3849 = vld [vmem:[%s3 + $0x7c] sm:$0xf]
  %v3850 = vld [vmem:[%s3 + $0x80] sm:$0xf]
  %v3851 = vld [vmem:[%s3 + $0x84] sm:$0xf]
  %v3852 = vld [vmem:[%s3 + $0x88] sm:$0xf]
  %v3853 = vld [vmem:[%s3 + $0x8c] sm:$0xf]
  %v3854 = vld [vmem:[%s3 + $0x90] sm:$0xf]
  %v3855 = vld [vmem:[%s3 + $0x94] sm:$0xf]
  %v3856 = vld [vmem:[%s3 + $0x98] sm:$0xf]
  %v3857 = vld [vmem:[%s3 + $0x9c] sm:$0xf]
  %v3858 = vld [vmem:[%s3 + $0xa0] sm:$0xf]
  %v3859 = vld [vmem:[%s3 + $0xa4] sm:$0xf]
  %v3860 = vld [vmem:[%s3 + $0xa8] sm:$0xf]
  %v3861 = vld [vmem:[%s3 + $0xac] sm:$0xf]
  %v3862 = vld [vmem:[%s3 + $0xb0] sm:$0xf]
  %v3863 = vld [vmem:[%s3 + $0xb4] sm:$0xf]
  %v3864 = vld [vmem:[%s3 + $0xb8] sm:$0xf]
  %v3865 = vld [vmem:[%s3 + $0xbc] sm:$0xf]
  %v3866 = vld [vmem:[%s3 + $0xc0] sm:$0xf]
  %v3867 = vld [vmem:[%s3 + $0xc4] sm:$0xf]
  %v3868 = vld [vmem:[%s3 + $0xc8] sm:$0xf]
  %v3869 = vld [vmem:[%s3 + $0xcc] sm:$0xf]
  %v3870 = vld [vmem:[%s3 + $0xd0] sm:$0xf]
  %v3871 = vld [vmem:[%s3 + $0xd4] sm:$0xf]
  %v3872 = vld [vmem:[%s3 + $0xd8] sm:$0xf]
  %v3873 = vld [vmem:[%s3 + $0xdc] sm:$0xf]
  %v3874 = vld [vmem:[%s3 + $0xe0] sm:$0xf]
  %v3875 = vld [vmem:[%s3 + $0xe4] sm:$0xf]
  %v3876 = vld [vmem:[%s3 + $0xe8] sm:$0xf]
  %v3877 = vld [vmem:[%s3 + $0xec] sm:$0xf]
  %v3878 = vld [vmem:[%s3 + $0xf0] sm:$0xf]
  %v3879 = vld [vmem:[%s3 + $0xf4] sm:$0xf]
  %v3880 = vld [vmem:[%s3 + $0xf8] sm:$0xf]
  %v3881 = vld [vmem:[%s3 + $0xfc] sm:$0xf]
  %v3882 = vld [vmem:[%s3 + $0x100] sm:$0xf]
  %v3883 = vld [vmem:[%s3 + $0x104] sm:$0xf]
  %v3884 = vld [vmem:[%s3 + $0x108] sm:$0xf]
  %v3885 = vld [vmem:[%s3 + $0x10c] sm:$0xf]
  %v3886 = vld [vmem:[%s3 + $0x110] sm:$0xf]
  %v3887 = vld [vmem:[%s3 + $0x114] sm:$0xf]
  %v3888 = vld [vmem:[%s3 + $0x118] sm:$0xf]
  %v3889 = vld [vmem:[%s3 + $0x11c] sm:$0xf]
  %v3890 = vld [vmem:[%s3 + $0x120] sm:$0xf]
  %v3891 = vld [vmem:[%s3 + $0x124] sm:$0xf]
  %v3892 = vld [vmem:[%s3 + $0x128] sm:$0xf]
  %v3893 = vld [vmem:[%s3 + $0x12c] sm:$0xf]
  %v3894 = vld [vmem:[%s3 + $0x130] sm:$0xf]
  %v3895 = vld [vmem:[%s3 + $0x134] sm:$0xf]
  %v3896 = vld [vmem:[%s3 + $0x138] sm:$0xf]
  %v3897 = vld [vmem:[%s3 + $0x13c] sm:$0xf]
  %v3898 = vld [vmem:[%s3 + $0x140] sm:$0xf]
  %v3899 = vld [vmem:[%s3 + $0x144] sm:$0xf]
  %v3900 = vld [vmem:[%s3 + $0x148] sm:$0xf]
  %v3901 = vld [vmem:[%s3 + $0x14c] sm:$0xf]
  %v3902 = vld [vmem:[%s3 + $0x150] sm:$0xf]
  %v3903 = vld [vmem:[%s3 + $0x154] sm:$0xf]
  %v3904 = vld [vmem:[%s3 + $0x158] sm:$0xf]
  %v3905 = vld [vmem:[%s3 + $0x15c] sm:$0xf]
  %v3906 = vld [vmem:[%s3 + $0x160] sm:$0xf]
  %v3907 = vld [vmem:[%s3 + $0x164] sm:$0xf]
  %v3908 = vld [vmem:[%s3 + $0x168] sm:$0xf]
  %v3909 = vld [vmem:[%s3 + $0x16c] sm:$0xf]
  %v3910 = vld [vmem:[%s3 + $0x170] sm:$0xf]
  %v3911 = vld [vmem:[%s3 + $0x174] sm:$0xf]
  %v3912 = vld [vmem:[%s3 + $0x178] sm:$0xf]
  %v3913 = vld [vmem:[%s3 + $0x17c] sm:$0xf]
  %v3914 = vld [vmem:[%s3 + $0x180] sm:$0xf]
  %v3915 = vld [vmem:[%s3 + $0x184] sm:$0xf]
  %v3916 = vld [vmem:[%s3 + $0x188] sm:$0xf]
  %v3917 = vld [vmem:[%s3 + $0x18c] sm:$0xf]
  %v3918 = vld [vmem:[%s3 + $0x190] sm:$0xf]
  %v3919 = vld [vmem:[%s3 + $0x194] sm:$0xf]
  %v3920 = vld [vmem:[%s3 + $0x198] sm:$0xf]
  %v3921 = vld [vmem:[%s3 + $0x19c] sm:$0xf]
  %v3922 = vld [vmem:[%s3 + $0x1a0] sm:$0xf]
  %v3923 = vld [vmem:[%s3 + $0x1a4] sm:$0xf]
  %v3924 = vld [vmem:[%s3 + $0x1a8] sm:$0xf]
  %v3925 = vld [vmem:[%s3 + $0x1ac] sm:$0xf]
  %v3926 = vld [vmem:[%s3 + $0x1b0] sm:$0xf]
  %v3927 = vld [vmem:[%s3 + $0x1b4] sm:$0xf]
  %v3928 = vld [vmem:[%s3 + $0x1b8] sm:$0xf]
  %v3929 = vld [vmem:[%s3 + $0x1bc] sm:$0xf]
  %v3930 = vld [vmem:[%s3 + $0x1c0] sm:$0xf]
  %v3931 = vld [vmem:[%s3 + $0x1c4] sm:$0xf]
  %v3932 = vld [vmem:[%s3 + $0x1c8] sm:$0xf]
  %v3933 = vld [vmem:[%s3 + $0x1cc] sm:$0xf]
  %v3934 = vld [vmem:[%s3 + $0x1d0] sm:$0xf]
  %v3935 = vld [vmem:[%s3 + $0x1d4] sm:$0xf]
  %v3936 = vld [vmem:[%s3 + $0x1d8] sm:$0xf]
  %v3937 = vld [vmem:[%s3 + $0x1dc] sm:$0xf]
  %v3938 = vld [vmem:[%s3 + $0x1e0] sm:$0xf]
  %v3939 = vld [vmem:[%s3 + $0x1e4] sm:$0xf]
  %v3940 = vld [vmem:[%s3 + $0x1e8] sm:$0xf]
  %v3941 = vld [vmem:[%s3 + $0x1ec] sm:$0xf]
  %v3942 = vld [vmem:[%s3 + $0x1f0] sm:$0xf]
  %v3943 = vld [vmem:[%s3 + $0x1f4] sm:$0xf]
  %v3944 = vld [vmem:[%s3 + $0x1f8] sm:$0xf]
  %v3945 = vld [vmem:[%s3 + $0x1fc] sm:$0xf]
  %v3946 = vpack.c.bf16 %v184, %v183
  %v3947 = vpack.c.bf16 %v216, %v215
  %v3948 = vpack.c.bf16 %v248, %v247
  %v3949 = vpack.c.bf16 %v280, %v279
  %v3950 = vpack.c.bf16 %v185, %v185
  %v3951 = vpack.c.bf16 %v217, %v217
  %v3952 = vpack.c.bf16 %v249, %v249
  %v3953 = vpack.c.bf16 %v281, %v281
  %s3954 = scalar_lea.vmem %s4, 24
  %v3955 = vld [vmem:[%s3954] sm:$0xff]
  %v3956 = vld [vmem:[%s3954 + $0x8] sm:$0xff]
  %v3957 = vld [vmem:[%s3954 + $0x10] sm:$0xff]
  %3959 = vset.pattern.permute.xlu0 0
  %3960 = vperm.xlu0 %3959, %v3955
  %v3961 = vpop.permute.xlu0 %3960
  %3964 = vset.pattern.permute.xlu0 0
  %3965 = vperm.xlu0 %3964, %v3956
  %v3966 = vpop.permute.xlu0 %3965
  %3969 = vset.pattern.permute.xlu0 0
  %3970 = vperm.xlu0 %3969, %v3957
  %v3971 = vpop.permute.xlu0 %3970
  %v4101 = vunpack.c.l.b16 %v3818
  %v4102 = vunpack.c.l.b16 %v3819
  %v4103 = vunpack.c.l.b16 %v3820
  %v4104 = vunpack.c.l.b16 %v3821
  %v4105 = vunpack.c.l.b16 %v3822
  %v4106 = vunpack.c.l.b16 %v3823
  %v4107 = vunpack.c.l.b16 %v3824
  %v4108 = vunpack.c.l.b16 %v3825
  %v4109 = vunpack.c.l.b16 %v3826
  %v4110 = vunpack.c.l.b16 %v3827
  %v4111 = vunpack.c.l.b16 %v3828
  %v4112 = vunpack.c.l.b16 %v3829
  %v4113 = vunpack.c.l.b16 %v3830
  %v4114 = vunpack.c.l.b16 %v3831
  %v4115 = vunpack.c.l.b16 %v3832
  %v4116 = vunpack.c.l.b16 %v3833
  %v4117 = vunpack.c.l.b16 %v3834
  %v4118 = vunpack.c.l.b16 %v3835
  %v4119 = vunpack.c.l.b16 %v3836
  %v4120 = vunpack.c.l.b16 %v3837
  %v4121 = vunpack.c.l.b16 %v3838
  %v4122 = vunpack.c.l.b16 %v3839
  %v4123 = vunpack.c.l.b16 %v3840
  %v4124 = vunpack.c.l.b16 %v3841
  %v4125 = vunpack.c.l.b16 %v3842
  %v4126 = vunpack.c.l.b16 %v3843
  %v4127 = vunpack.c.l.b16 %v3844
  %v4128 = vunpack.c.l.b16 %v3845
  %v4129 = vunpack.c.l.b16 %v3846
  %v4130 = vunpack.c.l.b16 %v3847
  %v4131 = vunpack.c.l.b16 %v3848
  %v4132 = vunpack.c.l.b16 %v3849
  %v4133 = vunpack.c.l.b16 %v3850
  %v4134 = vunpack.c.l.b16 %v3851
  %v4135 = vunpack.c.l.b16 %v3852
  %v4136 = vunpack.c.l.b16 %v3853
  %v4137 = vunpack.c.l.b16 %v3854
  %v4138 = vunpack.c.l.b16 %v3855
  %v4139 = vunpack.c.l.b16 %v3856
  %v4140 = vunpack.c.l.b16 %v3857
  %v4141 = vunpack.c.l.b16 %v3858
  %v4142 = vunpack.c.l.b16 %v3859
  %v4143 = vunpack.c.l.b16 %v3860
  %v4144 = vunpack.c.l.b16 %v3861
  %v4145 = vunpack.c.l.b16 %v3862
  %v4146 = vunpack.c.l.b16 %v3863
  %v4147 = vunpack.c.l.b16 %v3864
  %v4148 = vunpack.c.l.b16 %v3865
  %v4149 = vunpack.c.l.b16 %v3866
  %v4150 = vunpack.c.l.b16 %v3867
  %v4151 = vunpack.c.l.b16 %v3868
  %v4152 = vunpack.c.l.b16 %v3869
  %v4153 = vunpack.c.l.b16 %v3870
  %v4154 = vunpack.c.l.b16 %v3871
  %v4155 = vunpack.c.l.b16 %v3872
  %v4156 = vunpack.c.l.b16 %v3873
  %v4157 = vunpack.c.l.b16 %v3874
  %v4158 = vunpack.c.l.b16 %v3875
  %v4159 = vunpack.c.l.b16 %v3876
  %v4160 = vunpack.c.l.b16 %v3877
  %v4161 = vunpack.c.l.b16 %v3878
  %v4162 = vunpack.c.l.b16 %v3879
  %v4163 = vunpack.c.l.b16 %v3880
  %v4164 = vunpack.c.l.b16 %v3881
  %v4165 = vunpack.c.l.b16 %v3882
  %v4166 = vunpack.c.l.b16 %v3883
  %v4167 = vunpack.c.l.b16 %v3884
  %v4168 = vunpack.c.l.b16 %v3885
  %v4169 = vunpack.c.l.b16 %v3886
  %v4170 = vunpack.c.l.b16 %v3887
  %v4171 = vunpack.c.l.b16 %v3888
  %v4172 = vunpack.c.l.b16 %v3889
  %v4173 = vunpack.c.l.b16 %v3890
  %v4174 = vunpack.c.l.b16 %v3891
  %v4175 = vunpack.c.l.b16 %v3892
  %v4176 = vunpack.c.l.b16 %v3893
  %v4177 = vunpack.c.l.b16 %v3894
  %v4178 = vunpack.c.l.b16 %v3895
  %v4179 = vunpack.c.l.b16 %v3896
  %v4180 = vunpack.c.l.b16 %v3897
  %v4181 = vunpack.c.l.b16 %v3898
  %v4182 = vunpack.c.l.b16 %v3899
  %v4183 = vunpack.c.l.b16 %v3900
  %v4184 = vunpack.c.l.b16 %v3901
  %v4185 = vunpack.c.l.b16 %v3902
  %v4186 = vunpack.c.l.b16 %v3903
  %v4187 = vunpack.c.l.b16 %v3904
  %v4188 = vunpack.c.l.b16 %v3905
  %v4189 = vunpack.c.l.b16 %v3906
  %v4190 = vunpack.c.l.b16 %v3907
  %v4191 = vunpack.c.l.b16 %v3908
  %v4192 = vunpack.c.l.b16 %v3909
  %v4193 = vunpack.c.l.b16 %v3910
  %v4194 = vunpack.c.l.b16 %v3911
  %v4195 = vunpack.c.l.b16 %v3912
  %v4196 = vunpack.c.l.b16 %v3913
  %v4197 = vunpack.c.l.b16 %v3914
  %v4198 = vunpack.c.l.b16 %v3915
  %v4199 = vunpack.c.l.b16 %v3916
  %v4200 = vunpack.c.l.b16 %v3917
  %v4201 = vunpack.c.l.b16 %v3918
  %v4202 = vunpack.c.l.b16 %v3919
  %v4203 = vunpack.c.l.b16 %v3920
  %v4204 = vunpack.c.l.b16 %v3921
  %v4205 = vunpack.c.l.b16 %v3922
  %v4206 = vunpack.c.l.b16 %v3923
  %v4207 = vunpack.c.l.b16 %v3924
  %v4208 = vunpack.c.l.b16 %v3925
  %v4209 = vunpack.c.l.b16 %v3926
  %v4210 = vunpack.c.l.b16 %v3927
  %v4211 = vunpack.c.l.b16 %v3928
  %v4212 = vunpack.c.l.b16 %v3929
  %v4213 = vunpack.c.l.b16 %v3930
  %v4214 = vunpack.c.l.b16 %v3931
  %v4215 = vunpack.c.l.b16 %v3932
  %v4216 = vunpack.c.l.b16 %v3933
  %v4217 = vunpack.c.l.b16 %v3934
  %v4218 = vunpack.c.l.b16 %v3935
  %v4219 = vunpack.c.l.b16 %v3936
  %v4220 = vunpack.c.l.b16 %v3937
  %v4221 = vunpack.c.l.b16 %v3938
  %v4222 = vunpack.c.l.b16 %v3939
  %v4223 = vunpack.c.l.b16 %v3940
  %v4224 = vunpack.c.l.b16 %v3941
  %v4225 = vunpack.c.l.b16 %v3942
  %v4226 = vunpack.c.l.b16 %v3943
  %v4227 = vunpack.c.l.b16 %v3944
  %v4228 = vunpack.c.l.b16 %v3945
  %v4229 = vpack.c.b16 %v4102, %v4101
  %v4230 = vpack.c.b16 %v4104, %v4103
  %v4231 = vpack.c.b16 %v4106, %v4105
  %v4232 = vpack.c.b16 %v4108, %v4107
  %v4233 = vpack.c.b16 %v4110, %v4109
  %v4234 = vpack.c.b16 %v4112, %v4111
  %v4235 = vpack.c.b16 %v4114, %v4113
  %v4236 = vpack.c.b16 %v4116, %v4115
  %v4237 = vpack.c.b16 %v4118, %v4117
  %v4238 = vpack.c.b16 %v4120, %v4119
  %v4239 = vpack.c.b16 %v4122, %v4121
  %v4240 = vpack.c.b16 %v4124, %v4123
  %v4241 = vpack.c.b16 %v4126, %v4125
  %v4242 = vpack.c.b16 %v4128, %v4127
  %v4243 = vpack.c.b16 %v4130, %v4129
  %v4244 = vpack.c.b16 %v4132, %v4131
  %v4245 = vpack.c.b16 %v4134, %v4133
  %v4246 = vpack.c.b16 %v4136, %v4135
  %v4247 = vpack.c.b16 %v4138, %v4137
  %v4248 = vpack.c.b16 %v4140, %v4139
  %v4249 = vpack.c.b16 %v4142, %v4141
  %v4250 = vpack.c.b16 %v4144, %v4143
  %v4251 = vpack.c.b16 %v4146, %v4145
  %v4252 = vpack.c.b16 %v4148, %v4147
  %v4253 = vpack.c.b16 %v4150, %v4149
  %v4254 = vpack.c.b16 %v4152, %v4151
  %v4255 = vpack.c.b16 %v4154, %v4153
  %v4256 = vpack.c.b16 %v4156, %v4155
  %v4257 = vpack.c.b16 %v4158, %v4157
  %v4258 = vpack.c.b16 %v4160, %v4159
  %v4259 = vpack.c.b16 %v4162, %v4161
  %v4260 = vpack.c.b16 %v4164, %v4163
  %v4261 = vpack.c.b16 %v4166, %v4165
  %v4262 = vpack.c.b16 %v4168, %v4167
  %v4263 = vpack.c.b16 %v4170, %v4169
  %v4264 = vpack.c.b16 %v4172, %v4171
  %v4265 = vpack.c.b16 %v4174, %v4173
  %v4266 = vpack.c.b16 %v4176, %v4175
  %v4267 = vpack.c.b16 %v4178, %v4177
  %v4268 = vpack.c.b16 %v4180, %v4179
  %v4269 = vpack.c.b16 %v4182, %v4181
  %v4270 = vpack.c.b16 %v4184, %v4183
  %v4271 = vpack.c.b16 %v4186, %v4185
  %v4272 = vpack.c.b16 %v4188, %v4187
  %v4273 = vpack.c.b16 %v4190, %v4189
  %v4274 = vpack.c.b16 %v4192, %v4191
  %v4275 = vpack.c.b16 %v4194, %v4193
  %v4276 = vpack.c.b16 %v4196, %v4195
  %v4277 = vpack.c.b16 %v4198, %v4197
  %v4278 = vpack.c.b16 %v4200, %v4199
  %v4279 = vpack.c.b16 %v4202, %v4201
  %v4280 = vpack.c.b16 %v4204, %v4203
  %v4281 = vpack.c.b16 %v4206, %v4205
  %v4282 = vpack.c.b16 %v4208, %v4207
  %v4283 = vpack.c.b16 %v4210, %v4209
  %v4284 = vpack.c.b16 %v4212, %v4211
  %v4285 = vpack.c.b16 %v4214, %v4213
  %v4286 = vpack.c.b16 %v4216, %v4215
  %v4287 = vpack.c.b16 %v4218, %v4217
  %v4288 = vpack.c.b16 %v4220, %v4219
  %v4289 = vpack.c.b16 %v4222, %v4221
  %v4290 = vpack.c.b16 %v4224, %v4223
  %v4291 = vpack.c.b16 %v4226, %v4225
  %v4292 = vpack.c.b16 %v4228, %v4227
  %4357 = vmatpush.bf16.msra.mxu0 %v4236
  %4358 = vmatpush.bf16.msra.mxu0 %v4235
  %4359 = vmatpush.bf16.msra.mxu0 %v4234
  %4360 = vmatpush.bf16.msra.mxu0 %v4233
  %4361 = vmatpush.bf16.msra.mxu0 %v4232
  %4362 = vmatpush.bf16.msra.mxu0 %v4231
  %4363 = vmatpush.bf16.msra.mxu0 %v4230
  %4364 = vmatpush.bf16.msra.mxu0 %v4229
  %4365 = vmatmul.bf16.gmra.mxu0 %v346
  %v4366 = vpop.f32.mrf.mxu0
  %v4367 = vadd.f32 %v3961, %v4366
  %v4368 = vpop.f32.mrf.mxu0
  %v4369 = vadd.f32 %v3966, %v4368
  %4370 = vmatmul.bf16.gmra.mxu0 %v350
  %v4371 = vpop.f32.mrf.mxu0
  %v4372 = vadd.f32 %v3971, %v4371
  %v4373 = vpop.f32.mrf.mxu0
  %4374 = vdwg.mxu0
  %4375 = vmatpush.bf16.msra.mxu0 %v4244
  %4376 = vmatpush.bf16.msra.mxu0 %v4243
  %4377 = vmatpush.bf16.msra.mxu0 %v4242
  %4378 = vmatpush.bf16.msra.mxu0 %v4241
  %4379 = vmatpush.bf16.msra.mxu0 %v4240
  %4380 = vmatpush.bf16.msra.mxu0 %v4239
  %4381 = vmatpush.bf16.msra.mxu0 %v4238
  %4382 = vmatpush.bf16.msra.mxu0 %v4237
  %4383 = vmatmul.bf16.gmra.mxu0 %v347
  %v4384 = vpop.f32.mrf.mxu0
  %v4385 = vadd.f32 %v4367, %v4384
  %v4386 = vpop.f32.mrf.mxu0
  %v4387 = vadd.f32 %v4369, %v4386
  %4388 = vmatmul.bf16.gmra.mxu0 %v351
  %v4389 = vpop.f32.mrf.mxu0
  %v4390 = vadd.f32 %v4372, %v4389
  %v4391 = vpop.f32.mrf.mxu0
  %4392 = vdwg.mxu0
  %4393 = vmatpush.bf16.msra.mxu0 %v4252
  %4394 = vmatpush.bf16.msra.mxu0 %v4251
  %4395 = vmatpush.bf16.msra.mxu0 %v4250
  %4396 = vmatpush.bf16.msra.mxu0 %v4249
  %4397 = vmatpush.bf16.msra.mxu0 %v4248
  %4398 = vmatpush.bf16.msra.mxu0 %v4247
  %4399 = vmatpush.bf16.msra.mxu0 %v4246
  %4400 = vmatpush.bf16.msra.mxu0 %v4245
  %4401 = vmatmul.bf16.gmra.mxu0 %v348
  %v4402 = vpop.f32.mrf.mxu0
  %v4403 = vadd.f32 %v4385, %v4402
  %v4404 = vpop.f32.mrf.mxu0
  %v4405 = vadd.f32 %v4387, %v4404
  %4406 = vmatmul.bf16.gmra.mxu0 %v352
  %v4407 = vpop.f32.mrf.mxu0
  %v4408 = vadd.f32 %v4390, %v4407
  %v4409 = vpop.f32.mrf.mxu0
  %4410 = vdwg.mxu0
  %4411 = vmatpush.bf16.msra.mxu0 %v4260
  %4412 = vmatpush.bf16.msra.mxu0 %v4259
  %4413 = vmatpush.bf16.msra.mxu0 %v4258
  %4414 = vmatpush.bf16.msra.mxu0 %v4257
  %4415 = vmatpush.bf16.msra.mxu0 %v4256
  %4416 = vmatpush.bf16.msra.mxu0 %v4255
  %4417 = vmatpush.bf16.msra.mxu0 %v4254
  %4418 = vmatpush.bf16.msra.mxu0 %v4253
  %4419 = vmatmul.bf16.gmra.mxu0 %v349
  %v4420 = vpop.f32.mrf.mxu0
  %v4421 = vadd.f32 %v4403, %v4420
  %v4422 = vpop.f32.mrf.mxu0
  %v4423 = vadd.f32 %v4405, %v4422
  %4424 = vmatmul.bf16.gmra.mxu0 %v353
  %v4425 = vpop.f32.mrf.mxu0
  %v4426 = vadd.f32 %v4408, %v4425
  %v4427 = vpop.f32.mrf.mxu0
  %4428 = vdwg.mxu0
  %4429 = vmatpush.bf16.msra.mxu0 %v4268
  %4430 = vmatpush.bf16.msra.mxu0 %v4267
  %4431 = vmatpush.bf16.msra.mxu0 %v4266
  %4432 = vmatpush.bf16.msra.mxu0 %v4265
  %4433 = vmatpush.bf16.msra.mxu0 %v4264
  %4434 = vmatpush.bf16.msra.mxu0 %v4263
  %4435 = vmatpush.bf16.msra.mxu0 %v4262
  %4436 = vmatpush.bf16.msra.mxu0 %v4261
  %4437 = vmatmul.bf16.gmra.mxu0 %v3946
  %v4438 = vpop.f32.mrf.mxu0
  %v4439 = vadd.f32 %v4421, %v4438
  %v4440 = vpop.f32.mrf.mxu0
  %v4441 = vadd.f32 %v4423, %v4440
  %4442 = vmatmul.bf16.gmra.mxu0 %v3950
  %v4443 = vpop.f32.mrf.mxu0
  %v4444 = vadd.f32 %v4426, %v4443
  %v4445 = vpop.f32.mrf.mxu0
  %4446 = vdwg.mxu0
  %4447 = vmatpush.bf16.msra.mxu0 %v4276
  %4448 = vmatpush.bf16.msra.mxu0 %v4275
  %4449 = vmatpush.bf16.msra.mxu0 %v4274
  %4450 = vmatpush.bf16.msra.mxu0 %v4273
  %4451 = vmatpush.bf16.msra.mxu0 %v4272
  %4452 = vmatpush.bf16.msra.mxu0 %v4271
  %4453 = vmatpush.bf16.msra.mxu0 %v4270
  %4454 = vmatpush.bf16.msra.mxu0 %v4269
  %4455 = vmatmul.bf16.gmra.mxu0 %v3947
  %v4456 = vpop.f32.mrf.mxu0
  %v4457 = vadd.f32 %v4439, %v4456
  %v4458 = vpop.f32.mrf.mxu0
  %v4459 = vadd.f32 %v4441, %v4458
  %4460 = vmatmul.bf16.gmra.mxu0 %v3951
  %v4461 = vpop.f32.mrf.mxu0
  %v4462 = vadd.f32 %v4444, %v4461
  %v4463 = vpop.f32.mrf.mxu0
  %4464 = vdwg.mxu0
  %4465 = vmatpush.bf16.msra.mxu0 %v4284
  %4466 = vmatpush.bf16.msra.mxu0 %v4283
  %4467 = vmatpush.bf16.msra.mxu0 %v4282
  %4468 = vmatpush.bf16.msra.mxu0 %v4281
  %4469 = vmatpush.bf16.msra.mxu0 %v4280
  %4470 = vmatpush.bf16.msra.mxu0 %v4279
  %4471 = vmatpush.bf16.msra.mxu0 %v4278
  %4472 = vmatpush.bf16.msra.mxu0 %v4277
  %4473 = vmatmul.bf16.gmra.mxu0 %v3948
  %v4474 = vpop.f32.mrf.mxu0
  %v4475 = vadd.f32 %v4457, %v4474
  %v4476 = vpop.f32.mrf.mxu0
  %v4477 = vadd.f32 %v4459, %v4476
  %4478 = vmatmul.bf16.gmra.mxu0 %v3952
  %v4479 = vpop.f32.mrf.mxu0
  %v4480 = vadd.f32 %v4462, %v4479
  %v4481 = vpop.f32.mrf.mxu0
  %4482 = vdwg.mxu0
  %4483 = vmatpush.bf16.msra.mxu0 %v4292
  %4484 = vmatpush.bf16.msra.mxu0 %v4291
  %4485 = vmatpush.bf16.msra.mxu0 %v4290
  %4486 = vmatpush.bf16.msra.mxu0 %v4289
  %4487 = vmatpush.bf16.msra.mxu0 %v4288
  %4488 = vmatpush.bf16.msra.mxu0 %v4287
  %4489 = vmatpush.bf16.msra.mxu0 %v4286
  %4490 = vmatpush.bf16.msra.mxu0 %v4285
  %4491 = vmatmul.bf16.gmra.mxu0 %v3949
  %v4492 = vpop.f32.mrf.mxu0
  %v4493 = vadd.f32 %v4475, %v4492
  %v4494 = vpop.f32.mrf.mxu0
  %v4495 = vadd.f32 %v4477, %v4494
  %4496 = vmatmul.bf16.gmra.mxu0 %v3953
  %v4497 = vpop.f32.mrf.mxu0
  %v4498 = vadd.f32 %v4480, %v4497
  %v4499 = vpop.f32.mrf.mxu0
  %4500 = vdwg.mxu0
  %s4501 = scalar_lea.vmem %s5, 48
  %v4502 = vld [vmem:[%s4501] sm:$0xf]
  %v4503 = vld [vmem:[%s4501 + $0x4] sm:$0xf]
  %v4504 = vld [vmem:[%s4501 + $0x8] sm:$0xf]
  %v4505 = vld [vmem:[%s4501 + $0xc] sm:$0xf]
  %v4506 = vld [vmem:[%s4501 + $0x10] sm:$0xf]
  %v4507 = vld [vmem:[%s4501 + $0x14] sm:$0xf]
  %s4508 = scalar_lea.vmem %s6, 96
  %v4509 = vld [vmem:[%s4508] sm:$0xff]
  %v4510 = vld [vmem:[%s4508 + $0x8] sm:$0xff]
  %v4511 = vld [vmem:[%s4508 + $0x10] sm:$0xff]
  %v4512 = vld [vmem:[%s4508 + $0x18] sm:$0xff]
  %v4513 = vld [vmem:[%s4508 + $0x20] sm:$0xff]
  %v4514 = vld [vmem:[%s4508 + $0x28] sm:$0xff]
  %v4515 = vpack.c.bf16 %v4495, %v4493
  %v4516 = vpack.c.bf16 %v4498, %v4498
  %v4523 = vunpack.c.l.b16 %v4502
  %v4524 = vunpack.c.l.b16 %v4503
  %v4525 = vunpack.c.l.b16 %v4504
  %v4526 = vunpack.c.l.b16 %v4505
  %v4527 = vunpack.c.l.b16 %v4506
  %v4528 = vunpack.c.l.b16 %v4507
  %v4529 = vpack.c.b16 %v4524, %v4523
  %v4530 = vpack.c.b16 %v4526, %v4525
  %v4531 = vpack.c.b16 %v4528, %v4527
  %v4533 = vsel %vm665, %v4529, 0
  %v4536 = vsel %vm665, %v4530, 0
  %v4539 = vsel %vm665, %v4531, 0
  %v4542 = vsel %vm675, %v4516, 0
  %4544 = vmatpush.bf16.msra.mxu0 0
  %4545 = vmatpush.bf16.msra.mxu0 0
  %4546 = vmatpush.bf16.msra.mxu0 0
  %4547 = vmatpush.bf16.msra.mxu0 0
  %4548 = vmatpush.bf16.msra.mxu0 0
  %4549 = vmatpush.bf16.msra.mxu0 0
  %4550 = vmatpush.bf16.msra.mxu0 %v4542
  %4551 = vmatpush.bf16.msra.mxu0 %v4515
  %4552 = vmatmul.bf16.gmra.mxu0 %v4533
  %v4553 = vpop.f32.mrf.mxu0
  %v4554 = vadd.f32 0.0, %v4553
  %v4555 = vpop.f32.mrf.mxu0
  %v4556 = vadd.f32 0.0, %v4555
  %4557 = vmatmul.bf16.gmra.mxu0 %v4536
  %v4558 = vpop.f32.mrf.mxu0
  %v4559 = vadd.f32 0.0, %v4558
  %v4560 = vpop.f32.mrf.mxu0
  %v4561 = vadd.f32 0.0, %v4560
  %4562 = vmatmul.bf16.gmra.mxu0 %v4539
  %v4563 = vpop.f32.mrf.mxu0
  %v4564 = vadd.f32 0.0, %v4563
  %v4565 = vpop.f32.mrf.mxu0
  %v4566 = vadd.f32 0.0, %v4565
  %4567 = vdwg.mxu0
  %v4568 = vmul.f32 %v4554, %v704
  %v4569 = vmul.f32 %v4556, %v704
  %v4570 = vmul.f32 %v4559, %v704
  %4571 = vadd.xlane.f32.xlu0 %v4568
  %v4572 = vpop.xlane.xlu0 %4571
  %4573 = vadd.xlane.f32.xlu0 %v4569
  %v4574 = vpop.xlane.xlu0 %4573
  %4575 = vadd.xlane.f32.xlu0 %v4570
  %v4576 = vpop.xlane.xlu0 %4575
  %v4577 = vmul.f32 %v4561, %v716
  %v4578 = vmul.f32 %v4564, %v716
  %v4579 = vmul.f32 %v4566, %v716
  %4580 = vadd.xlane.f32.xlu0 %v4577
  %v4581 = vpop.xlane.xlu0 %4580
  %4582 = vadd.xlane.f32.xlu0 %v4578
  %v4583 = vpop.xlane.xlu0 %4582
  %4584 = vadd.xlane.f32.xlu0 %v4579
  %v4585 = vpop.xlane.xlu0 %4584
  %v4586 = vadd.f32 %v4572, %v4509
  %v4587 = vadd.f32 %v4574, %v4510
  %v4588 = vadd.f32 %v4576, %v4511
  %v4589 = vxor.u32 %v4586, 2147483648
  %v4590 = vxor.u32 %v4587, 2147483648
  %v4591 = vxor.u32 %v4588, 2147483648
  %v4592 = vmul.f32 %v4589, 1.442695
  %v4593 = vpow.pop %v4592
  %v4594 = vmul.f32 %v4590, 1.442695
  %v4595 = vpow.pop %v4594
  %v4596 = vmul.f32 %v4591, 1.442695
  %v4597 = vpow.pop %v4596
  %v4598 = vadd.f32 %v4593, 1.0
  %v4599 = vadd.f32 %v4595, 1.0
  %v4600 = vadd.f32 %v4597, 1.0
  %v4601 = vrcp.pop %v4598
  %v4602 = vmul.f32 %v4598, %v4601
  %v4603 = vsub.f32 1.0, %v4602
  %v4604 = vmul.f32 %v4601, %v4603
  %v4605 = vadd.f32 %v4601, %v4604
  %vm4606 = vweird.f32 %v4598
  %vm4607 = vweird.f32 %v4601
  %vm4608 = vmor %vm4606, %vm4607
  %v4609 = vsel %vm4608, %v4601, %v4605
  %v4610 = vand.u32 2147483647, %v4598
  %vm4611 = vcmp.eq.f32.partialorder %v4610, 8.507059e+37
  %v4612 = vand.u32 %v4598, 2147483648
  %v4613 = vor.u32 1.1754944e-38, %v4612
  %v4614 = vsel %vm4611, %v4613, %v4609
  %v4615 = vmul.f32 1.0, %v4614
  %v4616 = vrcp.pop %v4599
  %v4617 = vmul.f32 %v4599, %v4616
  %v4618 = vsub.f32 1.0, %v4617
  %v4619 = vmul.f32 %v4616, %v4618
  %v4620 = vadd.f32 %v4616, %v4619
  %vm4621 = vweird.f32 %v4599
  %vm4622 = vweird.f32 %v4616
  %vm4623 = vmor %vm4621, %vm4622
  %v4624 = vsel %vm4623, %v4616, %v4620
  %v4625 = vand.u32 2147483647, %v4599
  %vm4626 = vcmp.eq.f32.partialorder %v4625, 8.507059e+37
  %v4627 = vand.u32 %v4599, 2147483648
  %v4628 = vor.u32 1.1754944e-38, %v4627
  %v4629 = vsel %vm4626, %v4628, %v4624
  %v4630 = vmul.f32 1.0, %v4629
  %v4631 = vrcp.pop %v4600
  %v4632 = vmul.f32 %v4600, %v4631
  %v4633 = vsub.f32 1.0, %v4632
  %v4634 = vmul.f32 %v4631, %v4633
  %v4635 = vadd.f32 %v4631, %v4634
  %vm4636 = vweird.f32 %v4600
  %vm4637 = vweird.f32 %v4631
  %vm4638 = vmor %vm4636, %vm4637
  %v4639 = vsel %vm4638, %v4631, %v4635
  %v4640 = vand.u32 2147483647, %v4600
  %vm4641 = vcmp.eq.f32.partialorder %v4640, 8.507059e+37
  %v4642 = vand.u32 %v4600, 2147483648
  %v4643 = vor.u32 1.1754944e-38, %v4642
  %v4644 = vsel %vm4641, %v4643, %v4639
  %v4645 = vmul.f32 1.0, %v4644
  %v4646 = vadd.f32 %v4581, %v4512
  %v4647 = vadd.f32 %v4583, %v4513
  %v4648 = vadd.f32 %v4585, %v4514
  %v4649 = vxor.u32 %v4646, 2147483648
  %v4650 = vxor.u32 %v4647, 2147483648
  %v4651 = vxor.u32 %v4648, 2147483648
  %v4652 = vmul.f32 %v4649, 1.442695
  %v4653 = vpow.pop %v4652
  %v4654 = vmul.f32 %v4650, 1.442695
  %v4655 = vpow.pop %v4654
  %v4656 = vmul.f32 %v4651, 1.442695
  %v4657 = vpow.pop %v4656
  %v4658 = vadd.f32 %v4653, 1.0
  %v4659 = vadd.f32 %v4655, 1.0
  %v4660 = vadd.f32 %v4657, 1.0
  %v4661 = vrcp.pop %v4658
  %v4662 = vmul.f32 %v4658, %v4661
  %v4663 = vsub.f32 1.0, %v4662
  %v4664 = vmul.f32 %v4661, %v4663
  %v4665 = vadd.f32 %v4661, %v4664
  %vm4666 = vweird.f32 %v4658
  %vm4667 = vweird.f32 %v4661
  %vm4668 = vmor %vm4666, %vm4667
  %v4669 = vsel %vm4668, %v4661, %v4665
  %v4670 = vand.u32 2147483647, %v4658
  %vm4671 = vcmp.eq.f32.partialorder %v4670, 8.507059e+37
  %v4672 = vand.u32 %v4658, 2147483648
  %v4673 = vor.u32 1.1754944e-38, %v4672
  %v4674 = vsel %vm4671, %v4673, %v4669
  %v4675 = vmul.f32 1.0, %v4674
  %v4676 = vrcp.pop %v4659
  %v4677 = vmul.f32 %v4659, %v4676
  %v4678 = vsub.f32 1.0, %v4677
  %v4679 = vmul.f32 %v4676, %v4678
  %v4680 = vadd.f32 %v4676, %v4679
  %vm4681 = vweird.f32 %v4659
  %vm4682 = vweird.f32 %v4676
  %vm4683 = vmor %vm4681, %vm4682
  %v4684 = vsel %vm4683, %v4676, %v4680
  %v4685 = vand.u32 2147483647, %v4659
  %vm4686 = vcmp.eq.f32.partialorder %v4685, 8.507059e+37
  %v4687 = vand.u32 %v4659, 2147483648
  %v4688 = vor.u32 1.1754944e-38, %v4687
  %v4689 = vsel %vm4686, %v4688, %v4684
  %v4690 = vmul.f32 1.0, %v4689
  %v4691 = vrcp.pop %v4660
  %v4692 = vmul.f32 %v4660, %v4691
  %v4693 = vsub.f32 1.0, %v4692
  %v4694 = vmul.f32 %v4691, %v4693
  %v4695 = vadd.f32 %v4691, %v4694
  %vm4696 = vweird.f32 %v4660
  %vm4697 = vweird.f32 %v4691
  %vm4698 = vmor %vm4696, %vm4697
  %v4699 = vsel %vm4698, %v4691, %v4695
  %v4700 = vand.u32 2147483647, %v4660
  %vm4701 = vcmp.eq.f32.partialorder %v4700, 8.507059e+37
  %v4702 = vand.u32 %v4660, 2147483648
  %v4703 = vor.u32 1.1754944e-38, %v4702
  %v4704 = vsel %vm4701, %v4703, %v4699
  %v4705 = vmul.f32 1.0, %v4704
  %v4706 = vmul.f32 %v4615, %v4675
  %v4707 = vmul.f32 %v4630, %v4690
  %v4708 = vmul.f32 %v4645, %v4705
  %v4709 = vsub.f32 %v4706, 0.2
  %v4710 = vsub.f32 %v4707, 0.2
  %v4711 = vsub.f32 %v4708, 0.2
  %v4712 = vmul.f32 %v4709, 2.0
  %v4713 = vmul.f32 %v4710, 2.0
  %v4714 = vmul.f32 %v4711, 2.0
  %v4715 = vxor.u32 %v4712, 2147483648
  %v4716 = vxor.u32 %v4713, 2147483648
  %v4717 = vxor.u32 %v4714, 2147483648
  %v4718 = vmul.f32 %v4715, 1.442695
  %v4719 = vpow.pop %v4718
  %v4720 = vmul.f32 %v4716, 1.442695
  %v4721 = vpow.pop %v4720
  %v4722 = vmul.f32 %v4717, 1.442695
  %v4723 = vpow.pop %v4722
  %v4724 = vadd.f32 %v4719, 1.0
  %v4725 = vadd.f32 %v4721, 1.0
  %v4726 = vadd.f32 %v4723, 1.0
  %v4727 = vrcp.pop %v4724
  %v4728 = vmul.f32 %v4724, %v4727
  %v4729 = vsub.f32 1.0, %v4728
  %v4730 = vmul.f32 %v4727, %v4729
  %v4731 = vadd.f32 %v4727, %v4730
  %vm4732 = vweird.f32 %v4724
  %vm4733 = vweird.f32 %v4727
  %vm4734 = vmor %vm4732, %vm4733
  %v4735 = vsel %vm4734, %v4727, %v4731
  %v4736 = vand.u32 2147483647, %v4724
  %vm4737 = vcmp.eq.f32.partialorder %v4736, 8.507059e+37
  %v4738 = vand.u32 %v4724, 2147483648
  %v4739 = vor.u32 1.1754944e-38, %v4738
  %v4740 = vsel %vm4737, %v4739, %v4735
  %v4741 = vmul.f32 1.0, %v4740
  %v4742 = vrcp.pop %v4725
  %v4743 = vmul.f32 %v4725, %v4742
  %v4744 = vsub.f32 1.0, %v4743
  %v4745 = vmul.f32 %v4742, %v4744
  %v4746 = vadd.f32 %v4742, %v4745
  %vm4747 = vweird.f32 %v4725
  %vm4748 = vweird.f32 %v4742
  %vm4749 = vmor %vm4747, %vm4748
  %v4750 = vsel %vm4749, %v4742, %v4746
  %v4751 = vand.u32 2147483647, %v4725
  %vm4752 = vcmp.eq.f32.partialorder %v4751, 8.507059e+37
  %v4753 = vand.u32 %v4725, 2147483648
  %v4754 = vor.u32 1.1754944e-38, %v4753
  %v4755 = vsel %vm4752, %v4754, %v4750
  %v4756 = vmul.f32 1.0, %v4755
  %v4757 = vrcp.pop %v4726
  %v4758 = vmul.f32 %v4726, %v4757
  %v4759 = vsub.f32 1.0, %v4758
  %v4760 = vmul.f32 %v4757, %v4759
  %v4761 = vadd.f32 %v4757, %v4760
  %vm4762 = vweird.f32 %v4726
  %vm4763 = vweird.f32 %v4757
  %vm4764 = vmor %vm4762, %vm4763
  %v4765 = vsel %vm4764, %v4757, %v4761
  %v4766 = vand.u32 2147483647, %v4726
  %vm4767 = vcmp.eq.f32.partialorder %v4766, 8.507059e+37
  %v4768 = vand.u32 %v4726, 2147483648
  %v4769 = vor.u32 1.1754944e-38, %v4768
  %v4770 = vsel %vm4767, %v4769, %v4765
  %v4771 = vmul.f32 1.0, %v4770
  %4773 = vset.pattern.permute.xlu0 0
  %4774 = vperm.xlu0 %4773, %v4741
  %v4775 = vpop.permute.xlu0 %4774
  %4778 = vset.pattern.permute.xlu0 0
  %4779 = vperm.xlu0 %4778, %v4756
  %v4780 = vpop.permute.xlu0 %4779
  %4783 = vset.pattern.permute.xlu0 0
  %4784 = vperm.xlu0 %4783, %v4771
  %v4785 = vpop.permute.xlu0 %4784
  %v4787 = vmul.f32 %v4493, %v4775
  %v4788 = vmul.f32 %v4495, %v4780
  %v4789 = vmul.f32 %v4498, %v4785
  %s4790 = scalar_lea.vmem %s10, 72
  %v4791 = vld [vmem:[%s4790] sm:$0xff]
  %v4792 = vld [vmem:[%s4790 + $0x8] sm:$0xff]
  %v4793 = vld [vmem:[%s4790 + $0x10] sm:$0xff]
  %v4794 = vld [vmem:[%s4790 + $0x18] sm:$0xff]
  %v4795 = vld [vmem:[%s4790 + $0x20] sm:$0xff]
  %v4796 = vld [vmem:[%s4790 + $0x28] sm:$0xff]
  %v4797 = vld [vmem:[%s4790 + $0x30] sm:$0xff]
  %v4798 = vld [vmem:[%s4790 + $0x38] sm:$0xff]
  %v4799 = vld [vmem:[%s4790 + $0x40] sm:$0xff]
  %4801 = vset.pattern.permute.xlu0 0
  %4802 = vperm.xlu0 %4801, %v4791
  %v4803 = vpop.permute.xlu0 %4802
  %4806 = vset.pattern.permute.xlu0 0
  %4807 = vperm.xlu0 %4806, %v4792
  %v4808 = vpop.permute.xlu0 %4807
  %4811 = vset.pattern.permute.xlu0 0
  %4812 = vperm.xlu0 %4811, %v4793
  %v4813 = vpop.permute.xlu0 %4812
  %4816 = vset.pattern.permute.xlu0 0
  %4817 = vperm.xlu0 %4816, %v4794
  %v4818 = vpop.permute.xlu0 %4817
  %4821 = vset.pattern.permute.xlu0 0
  %4822 = vperm.xlu0 %4821, %v4795
  %v4823 = vpop.permute.xlu0 %4822
  %4826 = vset.pattern.permute.xlu0 0
  %4827 = vperm.xlu0 %4826, %v4796
  %v4828 = vpop.permute.xlu0 %4827
  %4831 = vset.pattern.permute.xlu0 0
  %4832 = vperm.xlu0 %4831, %v4797
  %v4833 = vpop.permute.xlu0 %4832
  %4836 = vset.pattern.permute.xlu0 0
  %4837 = vperm.xlu0 %4836, %v4798
  %v4838 = vpop.permute.xlu0 %4837
  %4841 = vset.pattern.permute.xlu0 0
  %4842 = vperm.xlu0 %4841, %v4799
  %v4843 = vpop.permute.xlu0 %4842
  %v4845 = vmul.f32 %v4787, %v4803
  %v4846 = vmul.f32 %v4788, %v4808
  %v4847 = vmul.f32 %v4789, %v4813
  %v4848 = vmul.f32 %v4787, %v4818
  %v4849 = vmul.f32 %v4788, %v4823
  %v4850 = vmul.f32 %v4789, %v4828
  %v4851 = vmul.f32 %v4787, %v4833
  %v4852 = vmul.f32 %v4788, %v4838
  %v4853 = vmul.f32 %v4789, %v4843
  %4854 = vset.pattern.permute.xlu0 1
  %4855 = vperm.xlu0 %4854, %v4791
  %v4856 = vpop.permute.xlu0 %4855
  %4858 = vset.pattern.permute.xlu0 1
  %4859 = vperm.xlu0 %4858, %v4792
  %v4860 = vpop.permute.xlu0 %4859
  %4862 = vset.pattern.permute.xlu0 1
  %4863 = vperm.xlu0 %4862, %v4793
  %v4864 = vpop.permute.xlu0 %4863
  %4866 = vset.pattern.permute.xlu0 1
  %4867 = vperm.xlu0 %4866, %v4794
  %v4868 = vpop.permute.xlu0 %4867
  %4870 = vset.pattern.permute.xlu0 1
  %4871 = vperm.xlu0 %4870, %v4795
  %v4872 = vpop.permute.xlu0 %4871
  %4874 = vset.pattern.permute.xlu0 1
  %4875 = vperm.xlu0 %4874, %v4796
  %v4876 = vpop.permute.xlu0 %4875
  %4878 = vset.pattern.permute.xlu0 1
  %4879 = vperm.xlu0 %4878, %v4797
  %v4880 = vpop.permute.xlu0 %4879
  %4882 = vset.pattern.permute.xlu0 1
  %4883 = vperm.xlu0 %4882, %v4798
  %v4884 = vpop.permute.xlu0 %4883
  %4886 = vset.pattern.permute.xlu0 1
  %4887 = vperm.xlu0 %4886, %v4799
  %v4888 = vpop.permute.xlu0 %4887
  %v4890 = vadd.f32 %v4845, %v4856
  %v4891 = vadd.f32 %v4846, %v4860
  %v4892 = vadd.f32 %v4847, %v4864
  %v4893 = vadd.f32 %v4848, %v4868
  %v4894 = vadd.f32 %v4849, %v4872
  %v4895 = vadd.f32 %v4850, %v4876
  %v4896 = vadd.f32 %v4851, %v4880
  %v4897 = vadd.f32 %v4852, %v4884
  %v4898 = vadd.f32 %v4853, %v4888
  %s4899 = scalar_lea.vmem %s7, 144
  %v4900 = vld [vmem:[%s4899] sm:$0xf]
  %v4901 = vld [vmem:[%s4899 + $0x4] sm:$0xf]
  %v4902 = vld [vmem:[%s4899 + $0x8] sm:$0xf]
  %v4903 = vld [vmem:[%s4899 + $0xc] sm:$0xf]
  %v4904 = vld [vmem:[%s4899 + $0x10] sm:$0xf]
  %v4905 = vld [vmem:[%s4899 + $0x14] sm:$0xf]
  %v4906 = vld [vmem:[%s4899 + $0x18] sm:$0xf]
  %v4907 = vld [vmem:[%s4899 + $0x1c] sm:$0xf]
  %v4908 = vld [vmem:[%s4899 + $0x20] sm:$0xf]
  %v4909 = vld [vmem:[%s4899 + $0x24] sm:$0xf]
  %v4910 = vld [vmem:[%s4899 + $0x28] sm:$0xf]
  %v4911 = vld [vmem:[%s4899 + $0x2c] sm:$0xf]
  %v4912 = vld [vmem:[%s4899 + $0x30] sm:$0xf]
  %v4913 = vld [vmem:[%s4899 + $0x34] sm:$0xf]
  %v4914 = vld [vmem:[%s4899 + $0x38] sm:$0xf]
  %v4915 = vld [vmem:[%s4899 + $0x3c] sm:$0xf]
  %v4916 = vld [vmem:[%s4899 + $0x40] sm:$0xf]
  %v4917 = vld [vmem:[%s4899 + $0x44] sm:$0xf]
  %s4918 = scalar_lea.vmem %s8, 288
  %v4919 = vld [vmem:[%s4918] sm:$0xff]
  %v4920 = vld [vmem:[%s4918 + $0x8] sm:$0xff]
  %v4921 = vld [vmem:[%s4918 + $0x10] sm:$0xff]
  %v4922 = vld [vmem:[%s4918 + $0x18] sm:$0xff]
  %v4923 = vld [vmem:[%s4918 + $0x20] sm:$0xff]
  %v4924 = vld [vmem:[%s4918 + $0x28] sm:$0xff]
  %v4925 = vld [vmem:[%s4918 + $0x30] sm:$0xff]
  %v4926 = vld [vmem:[%s4918 + $0x38] sm:$0xff]
  %v4927 = vld [vmem:[%s4918 + $0x40] sm:$0xff]
  %v4928 = vld [vmem:[%s4918 + $0x48] sm:$0xff]
  %v4929 = vld [vmem:[%s4918 + $0x50] sm:$0xff]
  %v4930 = vld [vmem:[%s4918 + $0x58] sm:$0xff]
  %v4931 = vld [vmem:[%s4918 + $0x60] sm:$0xff]
  %v4932 = vld [vmem:[%s4918 + $0x68] sm:$0xff]
  %v4933 = vld [vmem:[%s4918 + $0x70] sm:$0xff]
  %v4934 = vld [vmem:[%s4918 + $0x78] sm:$0xff]
  %v4935 = vld [vmem:[%s4918 + $0x80] sm:$0xff]
  %v4936 = vld [vmem:[%s4918 + $0x88] sm:$0xff]
  %v4937 = vpack.c.bf16 %v4891, %v4890
  %v4938 = vpack.c.bf16 %v4893, %v4892
  %v4939 = vpack.c.bf16 %v4895, %v4894
  %v4940 = vpack.c.bf16 %v4897, %v4896
  %v4941 = vpack.c.bf16 %v4898, %v4898
  %v4960 = vunpack.c.l.b16 %v4900
  %v4961 = vunpack.c.l.b16 %v4901
  %v4962 = vunpack.c.l.b16 %v4902
  %v4963 = vunpack.c.l.b16 %v4903
  %v4964 = vunpack.c.l.b16 %v4904
  %v4965 = vunpack.c.l.b16 %v4905
  %v4966 = vunpack.c.l.b16 %v4906
  %v4967 = vunpack.c.l.b16 %v4907
  %v4968 = vunpack.c.l.b16 %v4908
  %v4969 = vunpack.c.l.b16 %v4909
  %v4970 = vunpack.c.l.b16 %v4910
  %v4971 = vunpack.c.l.b16 %v4911
  %v4972 = vunpack.c.l.b16 %v4912
  %v4973 = vunpack.c.l.b16 %v4913
  %v4974 = vunpack.c.l.b16 %v4914
  %v4975 = vunpack.c.l.b16 %v4915
  %v4976 = vunpack.c.l.b16 %v4916
  %v4977 = vunpack.c.l.b16 %v4917
  %v4978 = vpack.c.b16 %v4961, %v4960
  %v4979 = vpack.c.b16 %v4963, %v4962
  %v4980 = vpack.c.b16 %v4965, %v4964
  %v4981 = vpack.c.b16 %v4967, %v4966
  %v4982 = vpack.c.b16 %v4969, %v4968
  %v4983 = vpack.c.b16 %v4971, %v4970
  %v4984 = vpack.c.b16 %v4973, %v4972
  %v4985 = vpack.c.b16 %v4975, %v4974
  %v4986 = vpack.c.b16 %v4977, %v4976
  %v4988 = vsel %vm1125, %v4978, 0
  %v4991 = vsel %vm1125, %v4979, 0
  %v4994 = vsel %vm1125, %v4980, 0
  %v4997 = vsel %vm1125, %v4981, 0
  %v5000 = vsel %vm1125, %v4982, 0
  %v5003 = vsel %vm1125, %v4983, 0
  %v5006 = vsel %vm1125, %v4984, 0
  %v5009 = vsel %vm1125, %v4985, 0
  %v5012 = vsel %vm1125, %v4986, 0
  %v5015 = vsel %vm675, %v4941, 0
  %5017 = vmatpush.bf16.msra.mxu0 0
  %5018 = vmatpush.bf16.msra.mxu0 0
  %5019 = vmatpush.bf16.msra.mxu0 0
  %5020 = vmatpush.bf16.msra.mxu0 %v5015
  %5021 = vmatpush.bf16.msra.mxu0 %v4940
  %5022 = vmatpush.bf16.msra.mxu0 %v4939
  %5023 = vmatpush.bf16.msra.mxu0 %v4938
  %5024 = vmatpush.bf16.msra.mxu0 %v4937
  %5025 = vmatmul.bf16.gmra.mxu0 %v4988
  %v5026 = vpop.f32.mrf.mxu0
  %v5027 = vadd.f32 0.0, %v5026
  %v5028 = vpop.f32.mrf.mxu0
  %v5029 = vadd.f32 0.0, %v5028
  %5030 = vmatmul.bf16.gmra.mxu0 %v4991
  %v5031 = vpop.f32.mrf.mxu0
  %v5032 = vadd.f32 0.0, %v5031
  %v5033 = vpop.f32.mrf.mxu0
  %v5034 = vadd.f32 0.0, %v5033
  %5035 = vmatmul.bf16.gmra.mxu0 %v4994
  %v5036 = vpop.f32.mrf.mxu0
  %v5037 = vadd.f32 0.0, %v5036
  %v5038 = vpop.f32.mrf.mxu0
  %v5039 = vadd.f32 0.0, %v5038
  %5040 = vmatmul.bf16.gmra.mxu0 %v4997
  %v5041 = vpop.f32.mrf.mxu0
  %v5042 = vadd.f32 0.0, %v5041
  %v5043 = vpop.f32.mrf.mxu0
  %v5044 = vadd.f32 0.0, %v5043
  %5045 = vmatmul.bf16.gmra.mxu0 %v5000
  %v5046 = vpop.f32.mrf.mxu0
  %v5047 = vadd.f32 0.0, %v5046
  %v5048 = vpop.f32.mrf.mxu0
  %v5049 = vadd.f32 0.0, %v5048
  %5050 = vmatmul.bf16.gmra.mxu0 %v5003
  %v5051 = vpop.f32.mrf.mxu0
  %v5052 = vadd.f32 0.0, %v5051
  %v5053 = vpop.f32.mrf.mxu0
  %v5054 = vadd.f32 0.0, %v5053
  %5055 = vmatmul.bf16.gmra.mxu0 %v5006
  %v5056 = vpop.f32.mrf.mxu0
  %v5057 = vadd.f32 0.0, %v5056
  %v5058 = vpop.f32.mrf.mxu0
  %v5059 = vadd.f32 0.0, %v5058
  %5060 = vmatmul.bf16.gmra.mxu0 %v5009
  %v5061 = vpop.f32.mrf.mxu0
  %v5062 = vadd.f32 0.0, %v5061
  %v5063 = vpop.f32.mrf.mxu0
  %v5064 = vadd.f32 0.0, %v5063
  %5065 = vmatmul.bf16.gmra.mxu0 %v5012
  %v5066 = vpop.f32.mrf.mxu0
  %v5067 = vadd.f32 0.0, %v5066
  %v5068 = vpop.f32.mrf.mxu0
  %v5069 = vadd.f32 0.0, %v5068
  %5070 = vdwg.mxu0
  %v5071 = vmul.f32 %v5027, %v704
  %v5072 = vmul.f32 %v5029, %v704
  %v5073 = vmul.f32 %v5032, %v704
  %v5074 = vmul.f32 %v5034, %v704
  %v5075 = vmul.f32 %v5037, %v704
  %v5076 = vmul.f32 %v5039, %v704
  %v5077 = vmul.f32 %v5042, %v704
  %v5078 = vmul.f32 %v5044, %v704
  %v5079 = vmul.f32 %v5047, %v704
  %5080 = vadd.xlane.f32.xlu0 %v5071
  %v5081 = vpop.xlane.xlu0 %5080
  %5082 = vadd.xlane.f32.xlu0 %v5072
  %v5083 = vpop.xlane.xlu0 %5082
  %5084 = vadd.xlane.f32.xlu0 %v5073
  %v5085 = vpop.xlane.xlu0 %5084
  %5086 = vadd.xlane.f32.xlu0 %v5074
  %v5087 = vpop.xlane.xlu0 %5086
  %5088 = vadd.xlane.f32.xlu0 %v5075
  %v5089 = vpop.xlane.xlu0 %5088
  %5090 = vadd.xlane.f32.xlu0 %v5076
  %v5091 = vpop.xlane.xlu0 %5090
  %5092 = vadd.xlane.f32.xlu0 %v5077
  %v5093 = vpop.xlane.xlu0 %5092
  %5094 = vadd.xlane.f32.xlu0 %v5078
  %v5095 = vpop.xlane.xlu0 %5094
  %5096 = vadd.xlane.f32.xlu0 %v5079
  %v5097 = vpop.xlane.xlu0 %5096
  %v5098 = vmul.f32 %v5049, %v716
  %v5099 = vmul.f32 %v5052, %v716
  %v5100 = vmul.f32 %v5054, %v716
  %v5101 = vmul.f32 %v5057, %v716
  %v5102 = vmul.f32 %v5059, %v716
  %v5103 = vmul.f32 %v5062, %v716
  %v5104 = vmul.f32 %v5064, %v716
  %v5105 = vmul.f32 %v5067, %v716
  %v5106 = vmul.f32 %v5069, %v716
  %5107 = vadd.xlane.f32.xlu0 %v5098
  %v5108 = vpop.xlane.xlu0 %5107
  %5109 = vadd.xlane.f32.xlu0 %v5099
  %v5110 = vpop.xlane.xlu0 %5109
  %5111 = vadd.xlane.f32.xlu0 %v5100
  %v5112 = vpop.xlane.xlu0 %5111
  %5113 = vadd.xlane.f32.xlu0 %v5101
  %v5114 = vpop.xlane.xlu0 %5113
  %5115 = vadd.xlane.f32.xlu0 %v5102
  %v5116 = vpop.xlane.xlu0 %5115
  %5117 = vadd.xlane.f32.xlu0 %v5103
  %v5118 = vpop.xlane.xlu0 %5117
  %5119 = vadd.xlane.f32.xlu0 %v5104
  %v5120 = vpop.xlane.xlu0 %5119
  %5121 = vadd.xlane.f32.xlu0 %v5105
  %v5122 = vpop.xlane.xlu0 %5121
  %5123 = vadd.xlane.f32.xlu0 %v5106
  %v5124 = vpop.xlane.xlu0 %5123
  %v5125 = vadd.f32 %v5081, %v4919
  %v5126 = vadd.f32 %v5083, %v4920
  %v5127 = vadd.f32 %v5085, %v4921
  %v5128 = vadd.f32 %v5087, %v4922
  %v5129 = vadd.f32 %v5089, %v4923
  %v5130 = vadd.f32 %v5091, %v4924
  %v5131 = vadd.f32 %v5093, %v4925
  %v5132 = vadd.f32 %v5095, %v4926
  %v5133 = vadd.f32 %v5097, %v4927
  %v5134 = vxor.u32 %v5125, 2147483648
  %v5135 = vxor.u32 %v5126, 2147483648
  %v5136 = vxor.u32 %v5127, 2147483648
  %v5137 = vxor.u32 %v5128, 2147483648
  %v5138 = vxor.u32 %v5129, 2147483648
  %v5139 = vxor.u32 %v5130, 2147483648
  %v5140 = vxor.u32 %v5131, 2147483648
  %v5141 = vxor.u32 %v5132, 2147483648
  %v5142 = vxor.u32 %v5133, 2147483648
  %v5143 = vmul.f32 %v5134, 1.442695
  %v5144 = vpow.pop %v5143
  %v5145 = vmul.f32 %v5135, 1.442695
  %v5146 = vpow.pop %v5145
  %v5147 = vmul.f32 %v5136, 1.442695
  %v5148 = vpow.pop %v5147
  %v5149 = vmul.f32 %v5137, 1.442695
  %v5150 = vpow.pop %v5149
  %v5151 = vmul.f32 %v5138, 1.442695
  %v5152 = vpow.pop %v5151
  %v5153 = vmul.f32 %v5139, 1.442695
  %v5154 = vpow.pop %v5153
  %v5155 = vmul.f32 %v5140, 1.442695
  %v5156 = vpow.pop %v5155
  %v5157 = vmul.f32 %v5141, 1.442695
  %v5158 = vpow.pop %v5157
  %v5159 = vmul.f32 %v5142, 1.442695
  %v5160 = vpow.pop %v5159
  %v5161 = vadd.f32 %v5144, 1.0
  %v5162 = vadd.f32 %v5146, 1.0
  %v5163 = vadd.f32 %v5148, 1.0
  %v5164 = vadd.f32 %v5150, 1.0
  %v5165 = vadd.f32 %v5152, 1.0
  %v5166 = vadd.f32 %v5154, 1.0
  %v5167 = vadd.f32 %v5156, 1.0
  %v5168 = vadd.f32 %v5158, 1.0
  %v5169 = vadd.f32 %v5160, 1.0
  %v5170 = vrcp.pop %v5161
  %v5171 = vmul.f32 %v5161, %v5170
  %v5172 = vsub.f32 1.0, %v5171
  %v5173 = vmul.f32 %v5170, %v5172
  %v5174 = vadd.f32 %v5170, %v5173
  %vm5175 = vweird.f32 %v5161
  %vm5176 = vweird.f32 %v5170
  %vm5177 = vmor %vm5175, %vm5176
  %v5178 = vsel %vm5177, %v5170, %v5174
  %v5179 = vand.u32 2147483647, %v5161
  %vm5180 = vcmp.eq.f32.partialorder %v5179, 8.507059e+37
  %v5181 = vand.u32 %v5161, 2147483648
  %v5182 = vor.u32 1.1754944e-38, %v5181
  %v5183 = vsel %vm5180, %v5182, %v5178
  %v5184 = vmul.f32 1.0, %v5183
  %v5185 = vrcp.pop %v5162
  %v5186 = vmul.f32 %v5162, %v5185
  %v5187 = vsub.f32 1.0, %v5186
  %v5188 = vmul.f32 %v5185, %v5187
  %v5189 = vadd.f32 %v5185, %v5188
  %vm5190 = vweird.f32 %v5162
  %vm5191 = vweird.f32 %v5185
  %vm5192 = vmor %vm5190, %vm5191
  %v5193 = vsel %vm5192, %v5185, %v5189
  %v5194 = vand.u32 2147483647, %v5162
  %vm5195 = vcmp.eq.f32.partialorder %v5194, 8.507059e+37
  %v5196 = vand.u32 %v5162, 2147483648
  %v5197 = vor.u32 1.1754944e-38, %v5196
  %v5198 = vsel %vm5195, %v5197, %v5193
  %v5199 = vmul.f32 1.0, %v5198
  %v5200 = vrcp.pop %v5163
  %v5201 = vmul.f32 %v5163, %v5200
  %v5202 = vsub.f32 1.0, %v5201
  %v5203 = vmul.f32 %v5200, %v5202
  %v5204 = vadd.f32 %v5200, %v5203
  %vm5205 = vweird.f32 %v5163
  %vm5206 = vweird.f32 %v5200
  %vm5207 = vmor %vm5205, %vm5206
  %v5208 = vsel %vm5207, %v5200, %v5204
  %v5209 = vand.u32 2147483647, %v5163
  %vm5210 = vcmp.eq.f32.partialorder %v5209, 8.507059e+37
  %v5211 = vand.u32 %v5163, 2147483648
  %v5212 = vor.u32 1.1754944e-38, %v5211
  %v5213 = vsel %vm5210, %v5212, %v5208
  %v5214 = vmul.f32 1.0, %v5213
  %v5215 = vrcp.pop %v5164
  %v5216 = vmul.f32 %v5164, %v5215
  %v5217 = vsub.f32 1.0, %v5216
  %v5218 = vmul.f32 %v5215, %v5217
  %v5219 = vadd.f32 %v5215, %v5218
  %vm5220 = vweird.f32 %v5164
  %vm5221 = vweird.f32 %v5215
  %vm5222 = vmor %vm5220, %vm5221
  %v5223 = vsel %vm5222, %v5215, %v5219
  %v5224 = vand.u32 2147483647, %v5164
  %vm5225 = vcmp.eq.f32.partialorder %v5224, 8.507059e+37
  %v5226 = vand.u32 %v5164, 2147483648
  %v5227 = vor.u32 1.1754944e-38, %v5226
  %v5228 = vsel %vm5225, %v5227, %v5223
  %v5229 = vmul.f32 1.0, %v5228
  %v5230 = vrcp.pop %v5165
  %v5231 = vmul.f32 %v5165, %v5230
  %v5232 = vsub.f32 1.0, %v5231
  %v5233 = vmul.f32 %v5230, %v5232
  %v5234 = vadd.f32 %v5230, %v5233
  %vm5235 = vweird.f32 %v5165
  %vm5236 = vweird.f32 %v5230
  %vm5237 = vmor %vm5235, %vm5236
  %v5238 = vsel %vm5237, %v5230, %v5234
  %v5239 = vand.u32 2147483647, %v5165
  %vm5240 = vcmp.eq.f32.partialorder %v5239, 8.507059e+37
  %v5241 = vand.u32 %v5165, 2147483648
  %v5242 = vor.u32 1.1754944e-38, %v5241
  %v5243 = vsel %vm5240, %v5242, %v5238
  %v5244 = vmul.f32 1.0, %v5243
  %v5245 = vrcp.pop %v5166
  %v5246 = vmul.f32 %v5166, %v5245
  %v5247 = vsub.f32 1.0, %v5246
  %v5248 = vmul.f32 %v5245, %v5247
  %v5249 = vadd.f32 %v5245, %v5248
  %vm5250 = vweird.f32 %v5166
  %vm5251 = vweird.f32 %v5245
  %vm5252 = vmor %vm5250, %vm5251
  %v5253 = vsel %vm5252, %v5245, %v5249
  %v5254 = vand.u32 2147483647, %v5166
  %vm5255 = vcmp.eq.f32.partialorder %v5254, 8.507059e+37
  %v5256 = vand.u32 %v5166, 2147483648
  %v5257 = vor.u32 1.1754944e-38, %v5256
  %v5258 = vsel %vm5255, %v5257, %v5253
  %v5259 = vmul.f32 1.0, %v5258
  %v5260 = vrcp.pop %v5167
  %v5261 = vmul.f32 %v5167, %v5260
  %v5262 = vsub.f32 1.0, %v5261
  %v5263 = vmul.f32 %v5260, %v5262
  %v5264 = vadd.f32 %v5260, %v5263
  %vm5265 = vweird.f32 %v5167
  %vm5266 = vweird.f32 %v5260
  %vm5267 = vmor %vm5265, %vm5266
  %v5268 = vsel %vm5267, %v5260, %v5264
  %v5269 = vand.u32 2147483647, %v5167
  %vm5270 = vcmp.eq.f32.partialorder %v5269, 8.507059e+37
  %v5271 = vand.u32 %v5167, 2147483648
  %v5272 = vor.u32 1.1754944e-38, %v5271
  %v5273 = vsel %vm5270, %v5272, %v5268
  %v5274 = vmul.f32 1.0, %v5273
  %v5275 = vrcp.pop %v5168
  %v5276 = vmul.f32 %v5168, %v5275
  %v5277 = vsub.f32 1.0, %v5276
  %v5278 = vmul.f32 %v5275, %v5277
  %v5279 = vadd.f32 %v5275, %v5278
  %vm5280 = vweird.f32 %v5168
  %vm5281 = vweird.f32 %v5275
  %vm5282 = vmor %vm5280, %vm5281
  %v5283 = vsel %vm5282, %v5275, %v5279
  %v5284 = vand.u32 2147483647, %v5168
  %vm5285 = vcmp.eq.f32.partialorder %v5284, 8.507059e+37
  %v5286 = vand.u32 %v5168, 2147483648
  %v5287 = vor.u32 1.1754944e-38, %v5286
  %v5288 = vsel %vm5285, %v5287, %v5283
  %v5289 = vmul.f32 1.0, %v5288
  %v5290 = vrcp.pop %v5169
  %v5291 = vmul.f32 %v5169, %v5290
  %v5292 = vsub.f32 1.0, %v5291
  %v5293 = vmul.f32 %v5290, %v5292
  %v5294 = vadd.f32 %v5290, %v5293
  %vm5295 = vweird.f32 %v5169
  %vm5296 = vweird.f32 %v5290
  %vm5297 = vmor %vm5295, %vm5296
  %v5298 = vsel %vm5297, %v5290, %v5294
  %v5299 = vand.u32 2147483647, %v5169
  %vm5300 = vcmp.eq.f32.partialorder %v5299, 8.507059e+37
  %v5301 = vand.u32 %v5169, 2147483648
  %v5302 = vor.u32 1.1754944e-38, %v5301
  %v5303 = vsel %vm5300, %v5302, %v5298
  %v5304 = vmul.f32 1.0, %v5303
  %v5305 = vadd.f32 %v5108, %v4928
  %v5306 = vadd.f32 %v5110, %v4929
  %v5307 = vadd.f32 %v5112, %v4930
  %v5308 = vadd.f32 %v5114, %v4931
  %v5309 = vadd.f32 %v5116, %v4932
  %v5310 = vadd.f32 %v5118, %v4933
  %v5311 = vadd.f32 %v5120, %v4934
  %v5312 = vadd.f32 %v5122, %v4935
  %v5313 = vadd.f32 %v5124, %v4936
  %v5314 = vxor.u32 %v5305, 2147483648
  %v5315 = vxor.u32 %v5306, 2147483648
  %v5316 = vxor.u32 %v5307, 2147483648
  %v5317 = vxor.u32 %v5308, 2147483648
  %v5318 = vxor.u32 %v5309, 2147483648
  %v5319 = vxor.u32 %v5310, 2147483648
  %v5320 = vxor.u32 %v5311, 2147483648
  %v5321 = vxor.u32 %v5312, 2147483648
  %v5322 = vxor.u32 %v5313, 2147483648
  %v5323 = vmul.f32 %v5314, 1.442695
  %v5324 = vpow.pop %v5323
  %v5325 = vmul.f32 %v5315, 1.442695
  %v5326 = vpow.pop %v5325
  %v5327 = vmul.f32 %v5316, 1.442695
  %v5328 = vpow.pop %v5327
  %v5329 = vmul.f32 %v5317, 1.442695
  %v5330 = vpow.pop %v5329
  %v5331 = vmul.f32 %v5318, 1.442695
  %v5332 = vpow.pop %v5331
  %v5333 = vmul.f32 %v5319, 1.442695
  %v5334 = vpow.pop %v5333
  %v5335 = vmul.f32 %v5320, 1.442695
  %v5336 = vpow.pop %v5335
  %v5337 = vmul.f32 %v5321, 1.442695
  %v5338 = vpow.pop %v5337
  %v5339 = vmul.f32 %v5322, 1.442695
  %v5340 = vpow.pop %v5339
  %v5341 = vadd.f32 %v5324, 1.0
  %v5342 = vadd.f32 %v5326, 1.0
  %v5343 = vadd.f32 %v5328, 1.0
  %v5344 = vadd.f32 %v5330, 1.0
  %v5345 = vadd.f32 %v5332, 1.0
  %v5346 = vadd.f32 %v5334, 1.0
  %v5347 = vadd.f32 %v5336, 1.0
  %v5348 = vadd.f32 %v5338, 1.0
  %v5349 = vadd.f32 %v5340, 1.0
  %v5350 = vrcp.pop %v5341
  %v5351 = vmul.f32 %v5341, %v5350
  %v5352 = vsub.f32 1.0, %v5351
  %v5353 = vmul.f32 %v5350, %v5352
  %v5354 = vadd.f32 %v5350, %v5353
  %vm5355 = vweird.f32 %v5341
  %vm5356 = vweird.f32 %v5350
  %vm5357 = vmor %vm5355, %vm5356
  %v5358 = vsel %vm5357, %v5350, %v5354
  %v5359 = vand.u32 2147483647, %v5341
  %vm5360 = vcmp.eq.f32.partialorder %v5359, 8.507059e+37
  %v5361 = vand.u32 %v5341, 2147483648
  %v5362 = vor.u32 1.1754944e-38, %v5361
  %v5363 = vsel %vm5360, %v5362, %v5358
  %v5364 = vmul.f32 1.0, %v5363
  %v5365 = vrcp.pop %v5342
  %v5366 = vmul.f32 %v5342, %v5365
  %v5367 = vsub.f32 1.0, %v5366
  %v5368 = vmul.f32 %v5365, %v5367
  %v5369 = vadd.f32 %v5365, %v5368
  %vm5370 = vweird.f32 %v5342
  %vm5371 = vweird.f32 %v5365
  %vm5372 = vmor %vm5370, %vm5371
  %v5373 = vsel %vm5372, %v5365, %v5369
  %v5374 = vand.u32 2147483647, %v5342
  %vm5375 = vcmp.eq.f32.partialorder %v5374, 8.507059e+37
  %v5376 = vand.u32 %v5342, 2147483648
  %v5377 = vor.u32 1.1754944e-38, %v5376
  %v5378 = vsel %vm5375, %v5377, %v5373
  %v5379 = vmul.f32 1.0, %v5378
  %v5380 = vrcp.pop %v5343
  %v5381 = vmul.f32 %v5343, %v5380
  %v5382 = vsub.f32 1.0, %v5381
  %v5383 = vmul.f32 %v5380, %v5382
  %v5384 = vadd.f32 %v5380, %v5383
  %vm5385 = vweird.f32 %v5343
  %vm5386 = vweird.f32 %v5380
  %vm5387 = vmor %vm5385, %vm5386
  %v5388 = vsel %vm5387, %v5380, %v5384
  %v5389 = vand.u32 2147483647, %v5343
  %vm5390 = vcmp.eq.f32.partialorder %v5389, 8.507059e+37
  %v5391 = vand.u32 %v5343, 2147483648
  %v5392 = vor.u32 1.1754944e-38, %v5391
  %v5393 = vsel %vm5390, %v5392, %v5388
  %v5394 = vmul.f32 1.0, %v5393
  %v5395 = vrcp.pop %v5344
  %v5396 = vmul.f32 %v5344, %v5395
  %v5397 = vsub.f32 1.0, %v5396
  %v5398 = vmul.f32 %v5395, %v5397
  %v5399 = vadd.f32 %v5395, %v5398
  %vm5400 = vweird.f32 %v5344
  %vm5401 = vweird.f32 %v5395
  %vm5402 = vmor %vm5400, %vm5401
  %v5403 = vsel %vm5402, %v5395, %v5399
  %v5404 = vand.u32 2147483647, %v5344
  %vm5405 = vcmp.eq.f32.partialorder %v5404, 8.507059e+37
  %v5406 = vand.u32 %v5344, 2147483648
  %v5407 = vor.u32 1.1754944e-38, %v5406
  %v5408 = vsel %vm5405, %v5407, %v5403
  %v5409 = vmul.f32 1.0, %v5408
  %v5410 = vrcp.pop %v5345
  %v5411 = vmul.f32 %v5345, %v5410
  %v5412 = vsub.f32 1.0, %v5411
  %v5413 = vmul.f32 %v5410, %v5412
  %v5414 = vadd.f32 %v5410, %v5413
  %vm5415 = vweird.f32 %v5345
  %vm5416 = vweird.f32 %v5410
  %vm5417 = vmor %vm5415, %vm5416
  %v5418 = vsel %vm5417, %v5410, %v5414
  %v5419 = vand.u32 2147483647, %v5345
  %vm5420 = vcmp.eq.f32.partialorder %v5419, 8.507059e+37
  %v5421 = vand.u32 %v5345, 2147483648
  %v5422 = vor.u32 1.1754944e-38, %v5421
  %v5423 = vsel %vm5420, %v5422, %v5418
  %v5424 = vmul.f32 1.0, %v5423
  %v5425 = vrcp.pop %v5346
  %v5426 = vmul.f32 %v5346, %v5425
  %v5427 = vsub.f32 1.0, %v5426
  %v5428 = vmul.f32 %v5425, %v5427
  %v5429 = vadd.f32 %v5425, %v5428
  %vm5430 = vweird.f32 %v5346
  %vm5431 = vweird.f32 %v5425
  %vm5432 = vmor %vm5430, %vm5431
  %v5433 = vsel %vm5432, %v5425, %v5429
  %v5434 = vand.u32 2147483647, %v5346
  %vm5435 = vcmp.eq.f32.partialorder %v5434, 8.507059e+37
  %v5436 = vand.u32 %v5346, 2147483648
  %v5437 = vor.u32 1.1754944e-38, %v5436
  %v5438 = vsel %vm5435, %v5437, %v5433
  %v5439 = vmul.f32 1.0, %v5438
  %v5440 = vrcp.pop %v5347
  %v5441 = vmul.f32 %v5347, %v5440
  %v5442 = vsub.f32 1.0, %v5441
  %v5443 = vmul.f32 %v5440, %v5442
  %v5444 = vadd.f32 %v5440, %v5443
  %vm5445 = vweird.f32 %v5347
  %vm5446 = vweird.f32 %v5440
  %vm5447 = vmor %vm5445, %vm5446
  %v5448 = vsel %vm5447, %v5440, %v5444
  %v5449 = vand.u32 2147483647, %v5347
  %vm5450 = vcmp.eq.f32.partialorder %v5449, 8.507059e+37
  %v5451 = vand.u32 %v5347, 2147483648
  %v5452 = vor.u32 1.1754944e-38, %v5451
  %v5453 = vsel %vm5450, %v5452, %v5448
  %v5454 = vmul.f32 1.0, %v5453
  %v5455 = vrcp.pop %v5348
  %v5456 = vmul.f32 %v5348, %v5455
  %v5457 = vsub.f32 1.0, %v5456
  %v5458 = vmul.f32 %v5455, %v5457
  %v5459 = vadd.f32 %v5455, %v5458
  %vm5460 = vweird.f32 %v5348
  %vm5461 = vweird.f32 %v5455
  %vm5462 = vmor %vm5460, %vm5461
  %v5463 = vsel %vm5462, %v5455, %v5459
  %v5464 = vand.u32 2147483647, %v5348
  %vm5465 = vcmp.eq.f32.partialorder %v5464, 8.507059e+37
  %v5466 = vand.u32 %v5348, 2147483648
  %v5467 = vor.u32 1.1754944e-38, %v5466
  %v5468 = vsel %vm5465, %v5467, %v5463
  %v5469 = vmul.f32 1.0, %v5468
  %v5470 = vrcp.pop %v5349
  %v5471 = vmul.f32 %v5349, %v5470
  %v5472 = vsub.f32 1.0, %v5471
  %v5473 = vmul.f32 %v5470, %v5472
  %v5474 = vadd.f32 %v5470, %v5473
  %vm5475 = vweird.f32 %v5349
  %vm5476 = vweird.f32 %v5470
  %vm5477 = vmor %vm5475, %vm5476
  %v5478 = vsel %vm5477, %v5470, %v5474
  %v5479 = vand.u32 2147483647, %v5349
  %vm5480 = vcmp.eq.f32.partialorder %v5479, 8.507059e+37
  %v5481 = vand.u32 %v5349, 2147483648
  %v5482 = vor.u32 1.1754944e-38, %v5481
  %v5483 = vsel %vm5480, %v5482, %v5478
  %v5484 = vmul.f32 1.0, %v5483
  %v5485 = vmul.f32 %v5184, %v5364
  %v5486 = vmul.f32 %v5199, %v5379
  %v5487 = vmul.f32 %v5214, %v5394
  %v5488 = vmul.f32 %v5229, %v5409
  %v5489 = vmul.f32 %v5244, %v5424
  %v5490 = vmul.f32 %v5259, %v5439
  %v5491 = vmul.f32 %v5274, %v5454
  %v5492 = vmul.f32 %v5289, %v5469
  %v5493 = vmul.f32 %v5304, %v5484
  %v5494 = vsub.f32 %v5485, 0.2
  %v5495 = vsub.f32 %v5486, 0.2
  %v5496 = vsub.f32 %v5487, 0.2
  %v5497 = vsub.f32 %v5488, 0.2
  %v5498 = vsub.f32 %v5489, 0.2
  %v5499 = vsub.f32 %v5490, 0.2
  %v5500 = vsub.f32 %v5491, 0.2
  %v5501 = vsub.f32 %v5492, 0.2
  %v5502 = vsub.f32 %v5493, 0.2
  %v5503 = vmul.f32 %v5494, 2.0
  %v5504 = vmul.f32 %v5495, 2.0
  %v5505 = vmul.f32 %v5496, 2.0
  %v5506 = vmul.f32 %v5497, 2.0
  %v5507 = vmul.f32 %v5498, 2.0
  %v5508 = vmul.f32 %v5499, 2.0
  %v5509 = vmul.f32 %v5500, 2.0
  %v5510 = vmul.f32 %v5501, 2.0
  %v5511 = vmul.f32 %v5502, 2.0
  %v5512 = vxor.u32 %v5503, 2147483648
  %v5513 = vxor.u32 %v5504, 2147483648
  %v5514 = vxor.u32 %v5505, 2147483648
  %v5515 = vxor.u32 %v5506, 2147483648
  %v5516 = vxor.u32 %v5507, 2147483648
  %v5517 = vxor.u32 %v5508, 2147483648
  %v5518 = vxor.u32 %v5509, 2147483648
  %v5519 = vxor.u32 %v5510, 2147483648
  %v5520 = vxor.u32 %v5511, 2147483648
  %v5521 = vmul.f32 %v5512, 1.442695
  %v5522 = vpow.pop %v5521
  %v5523 = vmul.f32 %v5513, 1.442695
  %v5524 = vpow.pop %v5523
  %v5525 = vmul.f32 %v5514, 1.442695
  %v5526 = vpow.pop %v5525
  %v5527 = vmul.f32 %v5515, 1.442695
  %v5528 = vpow.pop %v5527
  %v5529 = vmul.f32 %v5516, 1.442695
  %v5530 = vpow.pop %v5529
  %v5531 = vmul.f32 %v5517, 1.442695
  %v5532 = vpow.pop %v5531
  %v5533 = vmul.f32 %v5518, 1.442695
  %v5534 = vpow.pop %v5533
  %v5535 = vmul.f32 %v5519, 1.442695
  %v5536 = vpow.pop %v5535
  %v5537 = vmul.f32 %v5520, 1.442695
  %v5538 = vpow.pop %v5537
  %v5539 = vadd.f32 %v5522, 1.0
  %v5540 = vadd.f32 %v5524, 1.0
  %v5541 = vadd.f32 %v5526, 1.0
  %v5542 = vadd.f32 %v5528, 1.0
  %v5543 = vadd.f32 %v5530, 1.0
  %v5544 = vadd.f32 %v5532, 1.0
  %v5545 = vadd.f32 %v5534, 1.0
  %v5546 = vadd.f32 %v5536, 1.0
  %v5547 = vadd.f32 %v5538, 1.0
  %v5548 = vrcp.pop %v5539
  %v5549 = vmul.f32 %v5539, %v5548
  %v5550 = vsub.f32 1.0, %v5549
  %v5551 = vmul.f32 %v5548, %v5550
  %v5552 = vadd.f32 %v5548, %v5551
  %vm5553 = vweird.f32 %v5539
  %vm5554 = vweird.f32 %v5548
  %vm5555 = vmor %vm5553, %vm5554
  %v5556 = vsel %vm5555, %v5548, %v5552
  %v5557 = vand.u32 2147483647, %v5539
  %vm5558 = vcmp.eq.f32.partialorder %v5557, 8.507059e+37
  %v5559 = vand.u32 %v5539, 2147483648
  %v5560 = vor.u32 1.1754944e-38, %v5559
  %v5561 = vsel %vm5558, %v5560, %v5556
  %v5562 = vmul.f32 1.0, %v5561
  %v5563 = vrcp.pop %v5540
  %v5564 = vmul.f32 %v5540, %v5563
  %v5565 = vsub.f32 1.0, %v5564
  %v5566 = vmul.f32 %v5563, %v5565
  %v5567 = vadd.f32 %v5563, %v5566
  %vm5568 = vweird.f32 %v5540
  %vm5569 = vweird.f32 %v5563
  %vm5570 = vmor %vm5568, %vm5569
  %v5571 = vsel %vm5570, %v5563, %v5567
  %v5572 = vand.u32 2147483647, %v5540
  %vm5573 = vcmp.eq.f32.partialorder %v5572, 8.507059e+37
  %v5574 = vand.u32 %v5540, 2147483648
  %v5575 = vor.u32 1.1754944e-38, %v5574
  %v5576 = vsel %vm5573, %v5575, %v5571
  %v5577 = vmul.f32 1.0, %v5576
  %v5578 = vrcp.pop %v5541
  %v5579 = vmul.f32 %v5541, %v5578
  %v5580 = vsub.f32 1.0, %v5579
  %v5581 = vmul.f32 %v5578, %v5580
  %v5582 = vadd.f32 %v5578, %v5581
  %vm5583 = vweird.f32 %v5541
  %vm5584 = vweird.f32 %v5578
  %vm5585 = vmor %vm5583, %vm5584
  %v5586 = vsel %vm5585, %v5578, %v5582
  %v5587 = vand.u32 2147483647, %v5541
  %vm5588 = vcmp.eq.f32.partialorder %v5587, 8.507059e+37
  %v5589 = vand.u32 %v5541, 2147483648
  %v5590 = vor.u32 1.1754944e-38, %v5589
  %v5591 = vsel %vm5588, %v5590, %v5586
  %v5592 = vmul.f32 1.0, %v5591
  %v5593 = vrcp.pop %v5542
  %v5594 = vmul.f32 %v5542, %v5593
  %v5595 = vsub.f32 1.0, %v5594
  %v5596 = vmul.f32 %v5593, %v5595
  %v5597 = vadd.f32 %v5593, %v5596
  %vm5598 = vweird.f32 %v5542
  %vm5599 = vweird.f32 %v5593
  %vm5600 = vmor %vm5598, %vm5599
  %v5601 = vsel %vm5600, %v5593, %v5597
  %v5602 = vand.u32 2147483647, %v5542
  %vm5603 = vcmp.eq.f32.partialorder %v5602, 8.507059e+37
  %v5604 = vand.u32 %v5542, 2147483648
  %v5605 = vor.u32 1.1754944e-38, %v5604
  %v5606 = vsel %vm5603, %v5605, %v5601
  %v5607 = vmul.f32 1.0, %v5606
  %v5608 = vrcp.pop %v5543
  %v5609 = vmul.f32 %v5543, %v5608
  %v5610 = vsub.f32 1.0, %v5609
  %v5611 = vmul.f32 %v5608, %v5610
  %v5612 = vadd.f32 %v5608, %v5611
  %vm5613 = vweird.f32 %v5543
  %vm5614 = vweird.f32 %v5608
  %vm5615 = vmor %vm5613, %vm5614
  %v5616 = vsel %vm5615, %v5608, %v5612
  %v5617 = vand.u32 2147483647, %v5543
  %vm5618 = vcmp.eq.f32.partialorder %v5617, 8.507059e+37
  %v5619 = vand.u32 %v5543, 2147483648
  %v5620 = vor.u32 1.1754944e-38, %v5619
  %v5621 = vsel %vm5618, %v5620, %v5616
  %v5622 = vmul.f32 1.0, %v5621
  %v5623 = vrcp.pop %v5544
  %v5624 = vmul.f32 %v5544, %v5623
  %v5625 = vsub.f32 1.0, %v5624
  %v5626 = vmul.f32 %v5623, %v5625
  %v5627 = vadd.f32 %v5623, %v5626
  %vm5628 = vweird.f32 %v5544
  %vm5629 = vweird.f32 %v5623
  %vm5630 = vmor %vm5628, %vm5629
  %v5631 = vsel %vm5630, %v5623, %v5627
  %v5632 = vand.u32 2147483647, %v5544
  %vm5633 = vcmp.eq.f32.partialorder %v5632, 8.507059e+37
  %v5634 = vand.u32 %v5544, 2147483648
  %v5635 = vor.u32 1.1754944e-38, %v5634
  %v5636 = vsel %vm5633, %v5635, %v5631
  %v5637 = vmul.f32 1.0, %v5636
  %v5638 = vrcp.pop %v5545
  %v5639 = vmul.f32 %v5545, %v5638
  %v5640 = vsub.f32 1.0, %v5639
  %v5641 = vmul.f32 %v5638, %v5640
  %v5642 = vadd.f32 %v5638, %v5641
  %vm5643 = vweird.f32 %v5545
  %vm5644 = vweird.f32 %v5638
  %vm5645 = vmor %vm5643, %vm5644
  %v5646 = vsel %vm5645, %v5638, %v5642
  %v5647 = vand.u32 2147483647, %v5545
  %vm5648 = vcmp.eq.f32.partialorder %v5647, 8.507059e+37
  %v5649 = vand.u32 %v5545, 2147483648
  %v5650 = vor.u32 1.1754944e-38, %v5649
  %v5651 = vsel %vm5648, %v5650, %v5646
  %v5652 = vmul.f32 1.0, %v5651
  %v5653 = vrcp.pop %v5546
  %v5654 = vmul.f32 %v5546, %v5653
  %v5655 = vsub.f32 1.0, %v5654
  %v5656 = vmul.f32 %v5653, %v5655
  %v5657 = vadd.f32 %v5653, %v5656
  %vm5658 = vweird.f32 %v5546
  %vm5659 = vweird.f32 %v5653
  %vm5660 = vmor %vm5658, %vm5659
  %v5661 = vsel %vm5660, %v5653, %v5657
  %v5662 = vand.u32 2147483647, %v5546
  %vm5663 = vcmp.eq.f32.partialorder %v5662, 8.507059e+37
  %v5664 = vand.u32 %v5546, 2147483648
  %v5665 = vor.u32 1.1754944e-38, %v5664
  %v5666 = vsel %vm5663, %v5665, %v5661
  %v5667 = vmul.f32 1.0, %v5666
  %v5668 = vrcp.pop %v5547
  %v5669 = vmul.f32 %v5547, %v5668
  %v5670 = vsub.f32 1.0, %v5669
  %v5671 = vmul.f32 %v5668, %v5670
  %v5672 = vadd.f32 %v5668, %v5671
  %vm5673 = vweird.f32 %v5547
  %vm5674 = vweird.f32 %v5668
  %vm5675 = vmor %vm5673, %vm5674
  %v5676 = vsel %vm5675, %v5668, %v5672
  %v5677 = vand.u32 2147483647, %v5547
  %vm5678 = vcmp.eq.f32.partialorder %v5677, 8.507059e+37
  %v5679 = vand.u32 %v5547, 2147483648
  %v5680 = vor.u32 1.1754944e-38, %v5679
  %v5681 = vsel %vm5678, %v5680, %v5676
  %v5682 = vmul.f32 1.0, %v5681
  %5684 = vset.pattern.permute.xlu0 0
  %5685 = vperm.xlu0 %5684, %v5562
  %v5686 = vpop.permute.xlu0 %5685
  %5689 = vset.pattern.permute.xlu0 0
  %5690 = vperm.xlu0 %5689, %v5577
  %v5691 = vpop.permute.xlu0 %5690
  %5694 = vset.pattern.permute.xlu0 0
  %5695 = vperm.xlu0 %5694, %v5592
  %v5696 = vpop.permute.xlu0 %5695
  %5699 = vset.pattern.permute.xlu0 0
  %5700 = vperm.xlu0 %5699, %v5607
  %v5701 = vpop.permute.xlu0 %5700
  %5704 = vset.pattern.permute.xlu0 0
  %5705 = vperm.xlu0 %5704, %v5622
  %v5706 = vpop.permute.xlu0 %5705
  %5709 = vset.pattern.permute.xlu0 0
  %5710 = vperm.xlu0 %5709, %v5637
  %v5711 = vpop.permute.xlu0 %5710
  %5714 = vset.pattern.permute.xlu0 0
  %5715 = vperm.xlu0 %5714, %v5652
  %v5716 = vpop.permute.xlu0 %5715
  %5719 = vset.pattern.permute.xlu0 0
  %5720 = vperm.xlu0 %5719, %v5667
  %v5721 = vpop.permute.xlu0 %5720
  %5724 = vset.pattern.permute.xlu0 0
  %5725 = vperm.xlu0 %5724, %v5682
  %v5726 = vpop.permute.xlu0 %5725
  %v5728 = vmul.f32 %v4890, %v5686
  %v5729 = vmul.f32 %v4891, %v5691
  %v5730 = vmul.f32 %v4892, %v5696
  %v5731 = vmul.f32 %v4893, %v5701
  %v5732 = vmul.f32 %v4894, %v5706
  %v5733 = vmul.f32 %v4895, %v5711
  %v5734 = vmul.f32 %v4896, %v5716
  %v5735 = vmul.f32 %v4897, %v5721
  %v5736 = vmul.f32 %v4898, %v5726
  %s5737 = scalar_lea.vmem %s11, 72
  %v5738 = vld [vmem:[%s5737] sm:$0xff]
  %v5739 = vld [vmem:[%s5737 + $0x8] sm:$0xff]
  %v5740 = vld [vmem:[%s5737 + $0x10] sm:$0xff]
  %v5741 = vld [vmem:[%s5737 + $0x18] sm:$0xff]
  %v5742 = vld [vmem:[%s5737 + $0x20] sm:$0xff]
  %v5743 = vld [vmem:[%s5737 + $0x28] sm:$0xff]
  %v5744 = vld [vmem:[%s5737 + $0x30] sm:$0xff]
  %v5745 = vld [vmem:[%s5737 + $0x38] sm:$0xff]
  %v5746 = vld [vmem:[%s5737 + $0x40] sm:$0xff]
  %5748 = vset.pattern.permute.xlu0 0
  %5749 = vperm.xlu0 %5748, %v5738
  %v5750 = vpop.permute.xlu0 %5749
  %5753 = vset.pattern.permute.xlu0 0
  %5754 = vperm.xlu0 %5753, %v5739
  %v5755 = vpop.permute.xlu0 %5754
  %5758 = vset.pattern.permute.xlu0 0
  %5759 = vperm.xlu0 %5758, %v5740
  %v5760 = vpop.permute.xlu0 %5759
  %5763 = vset.pattern.permute.xlu0 0
  %5764 = vperm.xlu0 %5763, %v5741
  %v5765 = vpop.permute.xlu0 %5764
  %5768 = vset.pattern.permute.xlu0 0
  %5769 = vperm.xlu0 %5768, %v5742
  %v5770 = vpop.permute.xlu0 %5769
  %5773 = vset.pattern.permute.xlu0 0
  %5774 = vperm.xlu0 %5773, %v5743
  %v5775 = vpop.permute.xlu0 %5774
  %5778 = vset.pattern.permute.xlu0 0
  %5779 = vperm.xlu0 %5778, %v5744
  %v5780 = vpop.permute.xlu0 %5779
  %5783 = vset.pattern.permute.xlu0 0
  %5784 = vperm.xlu0 %5783, %v5745
  %v5785 = vpop.permute.xlu0 %5784
  %5788 = vset.pattern.permute.xlu0 0
  %5789 = vperm.xlu0 %5788, %v5746
  %v5790 = vpop.permute.xlu0 %5789
  %v5792 = vmul.f32 %v5728, %v5750
  %v5793 = vmul.f32 %v5729, %v5755
  %v5794 = vmul.f32 %v5730, %v5760
  %v5795 = vmul.f32 %v5731, %v5765
  %v5796 = vmul.f32 %v5732, %v5770
  %v5797 = vmul.f32 %v5733, %v5775
  %v5798 = vmul.f32 %v5734, %v5780
  %v5799 = vmul.f32 %v5735, %v5785
  %v5800 = vmul.f32 %v5736, %v5790
  %5801 = vset.pattern.permute.xlu0 1
  %5802 = vperm.xlu0 %5801, %v5738
  %v5803 = vpop.permute.xlu0 %5802
  %5805 = vset.pattern.permute.xlu0 1
  %5806 = vperm.xlu0 %5805, %v5739
  %v5807 = vpop.permute.xlu0 %5806
  %5809 = vset.pattern.permute.xlu0 1
  %5810 = vperm.xlu0 %5809, %v5740
  %v5811 = vpop.permute.xlu0 %5810
  %5813 = vset.pattern.permute.xlu0 1
  %5814 = vperm.xlu0 %5813, %v5741
  %v5815 = vpop.permute.xlu0 %5814
  %5817 = vset.pattern.permute.xlu0 1
  %5818 = vperm.xlu0 %5817, %v5742
  %v5819 = vpop.permute.xlu0 %5818
  %5821 = vset.pattern.permute.xlu0 1
  %5822 = vperm.xlu0 %5821, %v5743
  %v5823 = vpop.permute.xlu0 %5822
  %5825 = vset.pattern.permute.xlu0 1
  %5826 = vperm.xlu0 %5825, %v5744
  %v5827 = vpop.permute.xlu0 %5826
  %5829 = vset.pattern.permute.xlu0 1
  %5830 = vperm.xlu0 %5829, %v5745
  %v5831 = vpop.permute.xlu0 %5830
  %5833 = vset.pattern.permute.xlu0 1
  %5834 = vperm.xlu0 %5833, %v5746
  %v5835 = vpop.permute.xlu0 %5834
  %v5837 = vadd.f32 %v5792, %v5803
  %v5838 = vadd.f32 %v5793, %v5807
  %v5839 = vadd.f32 %v5794, %v5811
  %v5840 = vadd.f32 %v5795, %v5815
  %v5841 = vadd.f32 %v5796, %v5819
  %v5842 = vadd.f32 %v5797, %v5823
  %v5843 = vadd.f32 %v5798, %v5827
  %v5844 = vadd.f32 %v5799, %v5831
  %v5845 = vadd.f32 %v5800, %v5835
  %v5846 = vadd.f32 %v5837, 3.0
  %v5847 = vadd.f32 %v5838, 3.0
  %v5848 = vadd.f32 %v5839, 3.0
  %v5849 = vadd.f32 %v5840, 3.0
  %v5850 = vadd.f32 %v5841, 3.0
  %v5851 = vadd.f32 %v5842, 3.0
  %v5852 = vadd.f32 %v5843, 3.0
  %v5853 = vadd.f32 %v5844, 3.0
  %v5854 = vadd.f32 %v5845, 3.0
  %v5855 = vmax.f32 %v5846, 0.0
  %v5856 = vmax.f32 %v5847, 0.0
  %v5857 = vmax.f32 %v5848, 0.0
  %v5858 = vmax.f32 %v5849, 0.0
  %v5859 = vmax.f32 %v5850, 0.0
  %v5860 = vmax.f32 %v5851, 0.0
  %v5861 = vmax.f32 %v5852, 0.0
  %v5862 = vmax.f32 %v5853, 0.0
  %v5863 = vmax.f32 %v5854, 0.0
  %v5864 = vmin.f32 %v5855, 6.0
  %v5865 = vmin.f32 %v5856, 6.0
  %v5866 = vmin.f32 %v5857, 6.0
  %v5867 = vmin.f32 %v5858, 6.0
  %v5868 = vmin.f32 %v5859, 6.0
  %v5869 = vmin.f32 %v5860, 6.0
  %v5870 = vmin.f32 %v5861, 6.0
  %v5871 = vmin.f32 %v5862, 6.0
  %v5872 = vmin.f32 %v5863, 6.0
  %v5873 = vmul.f32 %v5837, %v5864
  %v5874 = vmul.f32 %v5838, %v5865
  %v5875 = vmul.f32 %v5839, %v5866
  %v5876 = vmul.f32 %v5840, %v5867
  %v5877 = vmul.f32 %v5841, %v5868
  %v5878 = vmul.f32 %v5842, %v5869
  %v5879 = vmul.f32 %v5843, %v5870
  %v5880 = vmul.f32 %v5844, %v5871
  %v5881 = vmul.f32 %v5845, %v5872
  %v5882 = vmul.f32 %v5873, 0.16666667
  %v5883 = vmul.f32 %v5874, 0.16666667
  %v5884 = vmul.f32 %v5875, 0.16666667
  %v5885 = vmul.f32 %v5876, 0.16666667
  %v5886 = vmul.f32 %v5877, 0.16666667
  %v5887 = vmul.f32 %v5878, 0.16666667
  %v5888 = vmul.f32 %v5879, 0.16666667
  %v5889 = vmul.f32 %v5880, 0.16666667
  %v5890 = vmul.f32 %v5881, 0.16666667
  %5891 = vrot.lane.b32.xlu0 %v5882, 21
  %v5892 = vpop.permute.xlu0 %5891
  %5893 = vrot.lane.b32.xlu0 %v5883, 21
  %v5894 = vpop.permute.xlu0 %5893
  %5895 = vrot.lane.b32.xlu0 %v5884, 21
  %v5896 = vpop.permute.xlu0 %5895
  %5897 = vrot.lane.b32.xlu0 %v5885, 21
  %v5898 = vpop.permute.xlu0 %5897
  %5899 = vrot.lane.b32.xlu0 %v5886, 21
  %v5900 = vpop.permute.xlu0 %5899
  %5901 = vrot.lane.b32.xlu0 %v5887, 21
  %v5902 = vpop.permute.xlu0 %5901
  %5903 = vrot.lane.b32.xlu0 %v5888, 21
  %v5904 = vpop.permute.xlu0 %5903
  %5905 = vrot.lane.b32.xlu0 %v5889, 21
  %v5906 = vpop.permute.xlu0 %5905
  %5907 = vrot.lane.b32.xlu0 %v5890, 21
  %v5908 = vpop.permute.xlu0 %5907
  %v5909 = vld [vmem:[%s14] sm:$0x1]
  %v5911 = vperm.slane %v5909, 0
  %v5913 = vmul.f32 %v5892, %v5911
  %v5914 = vmul.f32 %v5894, %v5911
  %v5915 = vmul.f32 %v5896, %v5911
  %v5916 = vmul.f32 %v5898, %v5911
  %v5917 = vmul.f32 %v5900, %v5911
  %v5918 = vmul.f32 %v5902, %v5911
  %v5919 = vmul.f32 %v5904, %v5911
  %v5920 = vmul.f32 %v5906, %v5911
  %v5921 = vmul.f32 %v5908, %v5911
  %s5922 = scalar_lea.vmem %s12, 936
  %v5923 = vld [vmem:[%s5922] sm:$0xff]
  %v5924 = vld [vmem:[%s5922 + $0x8] sm:$0xff]
  %v5925 = vld [vmem:[%s5922 + $0x10] sm:$0xff]
  %v5926 = vld [vmem:[%s5922 + $0x18] sm:$0xff]
  %v5927 = vld [vmem:[%s5922 + $0x20] sm:$0xff]
  %v5928 = vld [vmem:[%s5922 + $0x28] sm:$0xff]
  %v5929 = vld [vmem:[%s5922 + $0x30] sm:$0xff]
  %v5930 = vld [vmem:[%s5922 + $0x38] sm:$0xff]
  %v5931 = vld [vmem:[%s5922 + $0x40] sm:$0xff]
  %5933 = vset.pattern.permute.xlu0 0
  %5934 = vperm.xlu0 %5933, %v5923
  %v5935 = vpop.permute.xlu0 %5934
  %5938 = vset.pattern.permute.xlu0 0
  %5939 = vperm.xlu0 %5938, %v5924
  %v5940 = vpop.permute.xlu0 %5939
  %5943 = vset.pattern.permute.xlu0 0
  %5944 = vperm.xlu0 %5943, %v5925
  %v5945 = vpop.permute.xlu0 %5944
  %5948 = vset.pattern.permute.xlu0 0
  %5949 = vperm.xlu0 %5948, %v5926
  %v5950 = vpop.permute.xlu0 %5949
  %5953 = vset.pattern.permute.xlu0 0
  %5954 = vperm.xlu0 %5953, %v5927
  %v5955 = vpop.permute.xlu0 %5954
  %5958 = vset.pattern.permute.xlu0 0
  %5959 = vperm.xlu0 %5958, %v5928
  %v5960 = vpop.permute.xlu0 %5959
  %5963 = vset.pattern.permute.xlu0 0
  %5964 = vperm.xlu0 %5963, %v5929
  %v5965 = vpop.permute.xlu0 %5964
  %5968 = vset.pattern.permute.xlu0 0
  %5969 = vperm.xlu0 %5968, %v5930
  %v5970 = vpop.permute.xlu0 %5969
  %5973 = vset.pattern.permute.xlu0 0
  %5974 = vperm.xlu0 %5973, %v5931
  %v5975 = vpop.permute.xlu0 %5974
  %v5977 = vmul.f32 %v5935, %v5913
  %v5978 = vmul.f32 %v5940, %v5914
  %v5979 = vmul.f32 %v5945, %v5915
  %v5980 = vmul.f32 %v5950, %v5916
  %v5981 = vmul.f32 %v5955, %v5917
  %v5982 = vmul.f32 %v5960, %v5918
  %v5983 = vmul.f32 %v5965, %v5919
  %v5984 = vmul.f32 %v5970, %v5920
  %v5985 = vmul.f32 %v5975, %v5921
  %5986 = vrot.lane.b32.xlu0 %v5882, 14
  %v5987 = vpop.permute.xlu0 %5986
  %5988 = vrot.lane.b32.xlu0 %v5883, 14
  %v5989 = vpop.permute.xlu0 %5988
  %5990 = vrot.lane.b32.xlu0 %v5884, 14
  %v5991 = vpop.permute.xlu0 %5990
  %5992 = vrot.lane.b32.xlu0 %v5885, 14
  %v5993 = vpop.permute.xlu0 %5992
  %5994 = vrot.lane.b32.xlu0 %v5886, 14
  %v5995 = vpop.permute.xlu0 %5994
  %5996 = vrot.lane.b32.xlu0 %v5887, 14
  %v5997 = vpop.permute.xlu0 %5996
  %5998 = vrot.lane.b32.xlu0 %v5888, 14
  %v5999 = vpop.permute.xlu0 %5998
  %6000 = vrot.lane.b32.xlu0 %v5889, 14
  %v6001 = vpop.permute.xlu0 %6000
  %6002 = vrot.lane.b32.xlu0 %v5890, 14
  %v6003 = vpop.permute.xlu0 %6002
  %s6004 = scalar_lea.vmem %s14, 1
  %v6005 = vld [vmem:[%s6004] sm:$0x1]
  %v6007 = vperm.slane %v6005, 0
  %v6009 = vmul.f32 %v5987, %v6007
  %v6010 = vmul.f32 %v5989, %v6007
  %v6011 = vmul.f32 %v5991, %v6007
  %v6012 = vmul.f32 %v5993, %v6007
  %v6013 = vmul.f32 %v5995, %v6007
  %v6014 = vmul.f32 %v5997, %v6007
  %v6015 = vmul.f32 %v5999, %v6007
  %v6016 = vmul.f32 %v6001, %v6007
  %v6017 = vmul.f32 %v6003, %v6007
  %s6018 = scalar_lea.vmem %s12, 1008
  %v6019 = vld [vmem:[%s6018] sm:$0xff]
  %v6020 = vld [vmem:[%s6018 + $0x8] sm:$0xff]
  %v6021 = vld [vmem:[%s6018 + $0x10] sm:$0xff]
  %v6022 = vld [vmem:[%s6018 + $0x18] sm:$0xff]
  %v6023 = vld [vmem:[%s6018 + $0x20] sm:$0xff]
  %v6024 = vld [vmem:[%s6018 + $0x28] sm:$0xff]
  %v6025 = vld [vmem:[%s6018 + $0x30] sm:$0xff]
  %v6026 = vld [vmem:[%s6018 + $0x38] sm:$0xff]
  %v6027 = vld [vmem:[%s6018 + $0x40] sm:$0xff]
  %6029 = vset.pattern.permute.xlu0 0
  %6030 = vperm.xlu0 %6029, %v6019
  %v6031 = vpop.permute.xlu0 %6030
  %6034 = vset.pattern.permute.xlu0 0
  %6035 = vperm.xlu0 %6034, %v6020
  %v6036 = vpop.permute.xlu0 %6035
  %6039 = vset.pattern.permute.xlu0 0
  %6040 = vperm.xlu0 %6039, %v6021
  %v6041 = vpop.permute.xlu0 %6040
  %6044 = vset.pattern.permute.xlu0 0
  %6045 = vperm.xlu0 %6044, %v6022
  %v6046 = vpop.permute.xlu0 %6045
  %6049 = vset.pattern.permute.xlu0 0
  %6050 = vperm.xlu0 %6049, %v6023
  %v6051 = vpop.permute.xlu0 %6050
  %6054 = vset.pattern.permute.xlu0 0
  %6055 = vperm.xlu0 %6054, %v6024
  %v6056 = vpop.permute.xlu0 %6055
  %6059 = vset.pattern.permute.xlu0 0
  %6060 = vperm.xlu0 %6059, %v6025
  %v6061 = vpop.permute.xlu0 %6060
  %6064 = vset.pattern.permute.xlu0 0
  %6065 = vperm.xlu0 %6064, %v6026
  %v6066 = vpop.permute.xlu0 %6065
  %6069 = vset.pattern.permute.xlu0 0
  %6070 = vperm.xlu0 %6069, %v6027
  %v6071 = vpop.permute.xlu0 %6070
  %v6073 = vmul.f32 %v6031, %v6009
  %v6074 = vmul.f32 %v6036, %v6010
  %v6075 = vmul.f32 %v6041, %v6011
  %v6076 = vmul.f32 %v6046, %v6012
  %v6077 = vmul.f32 %v6051, %v6013
  %v6078 = vmul.f32 %v6056, %v6014
  %v6079 = vmul.f32 %v6061, %v6015
  %v6080 = vmul.f32 %v6066, %v6016
  %v6081 = vmul.f32 %v6071, %v6017
  %6082 = vrot.lane.b32.xlu0 %v5882, 7
  %v6083 = vpop.permute.xlu0 %6082
  %6084 = vrot.lane.b32.xlu0 %v5883, 7
  %v6085 = vpop.permute.xlu0 %6084
  %6086 = vrot.lane.b32.xlu0 %v5884, 7
  %v6087 = vpop.permute.xlu0 %6086
  %6088 = vrot.lane.b32.xlu0 %v5885, 7
  %v6089 = vpop.permute.xlu0 %6088
  %6090 = vrot.lane.b32.xlu0 %v5886, 7
  %v6091 = vpop.permute.xlu0 %6090
  %6092 = vrot.lane.b32.xlu0 %v5887, 7
  %v6093 = vpop.permute.xlu0 %6092
  %6094 = vrot.lane.b32.xlu0 %v5888, 7
  %v6095 = vpop.permute.xlu0 %6094
  %6096 = vrot.lane.b32.xlu0 %v5889, 7
  %v6097 = vpop.permute.xlu0 %6096
  %6098 = vrot.lane.b32.xlu0 %v5890, 7
  %v6099 = vpop.permute.xlu0 %6098
  %v6100 = vmul.f32 %v6083, %v2050
  %v6101 = vmul.f32 %v6085, %v2050
  %v6102 = vmul.f32 %v6087, %v2050
  %v6103 = vmul.f32 %v6089, %v2050
  %v6104 = vmul.f32 %v6091, %v2050
  %v6105 = vmul.f32 %v6093, %v2050
  %v6106 = vmul.f32 %v6095, %v2050
  %v6107 = vmul.f32 %v6097, %v2050
  %v6108 = vmul.f32 %v6099, %v2050
  %s6109 = scalar_lea.vmem %s12, 1080
  %v6110 = vld [vmem:[%s6109] sm:$0xff]
  %v6111 = vld [vmem:[%s6109 + $0x8] sm:$0xff]
  %v6112 = vld [vmem:[%s6109 + $0x10] sm:$0xff]
  %v6113 = vld [vmem:[%s6109 + $0x18] sm:$0xff]
  %v6114 = vld [vmem:[%s6109 + $0x20] sm:$0xff]
  %v6115 = vld [vmem:[%s6109 + $0x28] sm:$0xff]
  %v6116 = vld [vmem:[%s6109 + $0x30] sm:$0xff]
  %v6117 = vld [vmem:[%s6109 + $0x38] sm:$0xff]
  %v6118 = vld [vmem:[%s6109 + $0x40] sm:$0xff]
  %6120 = vset.pattern.permute.xlu0 0
  %6121 = vperm.xlu0 %6120, %v6110
  %v6122 = vpop.permute.xlu0 %6121
  %6125 = vset.pattern.permute.xlu0 0
  %6126 = vperm.xlu0 %6125, %v6111
  %v6127 = vpop.permute.xlu0 %6126
  %6130 = vset.pattern.permute.xlu0 0
  %6131 = vperm.xlu0 %6130, %v6112
  %v6132 = vpop.permute.xlu0 %6131
  %6135 = vset.pattern.permute.xlu0 0
  %6136 = vperm.xlu0 %6135, %v6113
  %v6137 = vpop.permute.xlu0 %6136
  %6140 = vset.pattern.permute.xlu0 0
  %6141 = vperm.xlu0 %6140, %v6114
  %v6142 = vpop.permute.xlu0 %6141
  %6145 = vset.pattern.permute.xlu0 0
  %6146 = vperm.xlu0 %6145, %v6115
  %v6147 = vpop.permute.xlu0 %6146
  %6150 = vset.pattern.permute.xlu0 0
  %6151 = vperm.xlu0 %6150, %v6116
  %v6152 = vpop.permute.xlu0 %6151
  %6155 = vset.pattern.permute.xlu0 0
  %6156 = vperm.xlu0 %6155, %v6117
  %v6157 = vpop.permute.xlu0 %6156
  %6160 = vset.pattern.permute.xlu0 0
  %6161 = vperm.xlu0 %6160, %v6118
  %v6162 = vpop.permute.xlu0 %6161
  %v6164 = vmul.f32 %v6122, %v6100
  %v6165 = vmul.f32 %v6127, %v6101
  %v6166 = vmul.f32 %v6132, %v6102
  %v6167 = vmul.f32 %v6137, %v6103
  %v6168 = vmul.f32 %v6142, %v6104
  %v6169 = vmul.f32 %v6147, %v6105
  %v6170 = vmul.f32 %v6152, %v6106
  %v6171 = vmul.f32 %v6157, %v6107
  %v6172 = vmul.f32 %v6162, %v6108
  %s6173 = scalar_lea.vmem %s12, 1152
  %v6174 = vld [vmem:[%s6173] sm:$0xff]
  %v6175 = vld [vmem:[%s6173 + $0x8] sm:$0xff]
  %v6176 = vld [vmem:[%s6173 + $0x10] sm:$0xff]
  %v6177 = vld [vmem:[%s6173 + $0x18] sm:$0xff]
  %v6178 = vld [vmem:[%s6173 + $0x20] sm:$0xff]
  %v6179 = vld [vmem:[%s6173 + $0x28] sm:$0xff]
  %v6180 = vld [vmem:[%s6173 + $0x30] sm:$0xff]
  %v6181 = vld [vmem:[%s6173 + $0x38] sm:$0xff]
  %v6182 = vld [vmem:[%s6173 + $0x40] sm:$0xff]
  %6184 = vset.pattern.permute.xlu0 0
  %6185 = vperm.xlu0 %6184, %v6174
  %v6186 = vpop.permute.xlu0 %6185
  %6189 = vset.pattern.permute.xlu0 0
  %6190 = vperm.xlu0 %6189, %v6175
  %v6191 = vpop.permute.xlu0 %6190
  %6194 = vset.pattern.permute.xlu0 0
  %6195 = vperm.xlu0 %6194, %v6176
  %v6196 = vpop.permute.xlu0 %6195
  %6199 = vset.pattern.permute.xlu0 0
  %6200 = vperm.xlu0 %6199, %v6177
  %v6201 = vpop.permute.xlu0 %6200
  %6204 = vset.pattern.permute.xlu0 0
  %6205 = vperm.xlu0 %6204, %v6178
  %v6206 = vpop.permute.xlu0 %6205
  %6209 = vset.pattern.permute.xlu0 0
  %6210 = vperm.xlu0 %6209, %v6179
  %v6211 = vpop.permute.xlu0 %6210
  %6214 = vset.pattern.permute.xlu0 0
  %6215 = vperm.xlu0 %6214, %v6180
  %v6216 = vpop.permute.xlu0 %6215
  %6219 = vset.pattern.permute.xlu0 0
  %6220 = vperm.xlu0 %6219, %v6181
  %v6221 = vpop.permute.xlu0 %6220
  %6224 = vset.pattern.permute.xlu0 0
  %6225 = vperm.xlu0 %6224, %v6182
  %v6226 = vpop.permute.xlu0 %6225
  %v6228 = vmul.f32 %v6186, %v5882
  %v6229 = vmul.f32 %v6191, %v5883
  %v6230 = vmul.f32 %v6196, %v5884
  %v6231 = vmul.f32 %v6201, %v5885
  %v6232 = vmul.f32 %v6206, %v5886
  %v6233 = vmul.f32 %v6211, %v5887
  %v6234 = vmul.f32 %v6216, %v5888
  %v6235 = vmul.f32 %v6221, %v5889
  %v6236 = vmul.f32 %v6226, %v5890
  %6237 = vrot.lane.b32.xlu0 %v5882, 121
  %v6238 = vpop.permute.xlu0 %6237
  %6239 = vrot.lane.b32.xlu0 %v5883, 121
  %v6240 = vpop.permute.xlu0 %6239
  %6241 = vrot.lane.b32.xlu0 %v5884, 121
  %v6242 = vpop.permute.xlu0 %6241
  %6243 = vrot.lane.b32.xlu0 %v5885, 121
  %v6244 = vpop.permute.xlu0 %6243
  %6245 = vrot.lane.b32.xlu0 %v5886, 121
  %v6246 = vpop.permute.xlu0 %6245
  %6247 = vrot.lane.b32.xlu0 %v5887, 121
  %v6248 = vpop.permute.xlu0 %6247
  %6249 = vrot.lane.b32.xlu0 %v5888, 121
  %v6250 = vpop.permute.xlu0 %6249
  %6251 = vrot.lane.b32.xlu0 %v5889, 121
  %v6252 = vpop.permute.xlu0 %6251
  %6253 = vrot.lane.b32.xlu0 %v5890, 121
  %v6254 = vpop.permute.xlu0 %6253
  %v6255 = vmul.f32 %v6238, %v2210
  %v6256 = vmul.f32 %v6240, %v2210
  %v6257 = vmul.f32 %v6242, %v2210
  %v6258 = vmul.f32 %v6244, %v2210
  %v6259 = vmul.f32 %v6246, %v2210
  %v6260 = vmul.f32 %v6248, %v2210
  %v6261 = vmul.f32 %v6250, %v2210
  %v6262 = vmul.f32 %v6252, %v2210
  %v6263 = vmul.f32 %v6254, %v2210
  %s6264 = scalar_lea.vmem %s12, 1224
  %v6265 = vld [vmem:[%s6264] sm:$0xff]
  %v6266 = vld [vmem:[%s6264 + $0x8] sm:$0xff]
  %v6267 = vld [vmem:[%s6264 + $0x10] sm:$0xff]
  %v6268 = vld [vmem:[%s6264 + $0x18] sm:$0xff]
  %v6269 = vld [vmem:[%s6264 + $0x20] sm:$0xff]
  %v6270 = vld [vmem:[%s6264 + $0x28] sm:$0xff]
  %v6271 = vld [vmem:[%s6264 + $0x30] sm:$0xff]
  %v6272 = vld [vmem:[%s6264 + $0x38] sm:$0xff]
  %v6273 = vld [vmem:[%s6264 + $0x40] sm:$0xff]
  %6275 = vset.pattern.permute.xlu0 0
  %6276 = vperm.xlu0 %6275, %v6265
  %v6277 = vpop.permute.xlu0 %6276
  %6280 = vset.pattern.permute.xlu0 0
  %6281 = vperm.xlu0 %6280, %v6266
  %v6282 = vpop.permute.xlu0 %6281
  %6285 = vset.pattern.permute.xlu0 0
  %6286 = vperm.xlu0 %6285, %v6267
  %v6287 = vpop.permute.xlu0 %6286
  %6290 = vset.pattern.permute.xlu0 0
  %6291 = vperm.xlu0 %6290, %v6268
  %v6292 = vpop.permute.xlu0 %6291
  %6295 = vset.pattern.permute.xlu0 0
  %6296 = vperm.xlu0 %6295, %v6269
  %v6297 = vpop.permute.xlu0 %6296
  %6300 = vset.pattern.permute.xlu0 0
  %6301 = vperm.xlu0 %6300, %v6270
  %v6302 = vpop.permute.xlu0 %6301
  %6305 = vset.pattern.permute.xlu0 0
  %6306 = vperm.xlu0 %6305, %v6271
  %v6307 = vpop.permute.xlu0 %6306
  %6310 = vset.pattern.permute.xlu0 0
  %6311 = vperm.xlu0 %6310, %v6272
  %v6312 = vpop.permute.xlu0 %6311
  %6315 = vset.pattern.permute.xlu0 0
  %6316 = vperm.xlu0 %6315, %v6273
  %v6317 = vpop.permute.xlu0 %6316
  %v6319 = vmul.f32 %v6277, %v6255
  %v6320 = vmul.f32 %v6282, %v6256
  %v6321 = vmul.f32 %v6287, %v6257
  %v6322 = vmul.f32 %v6292, %v6258
  %v6323 = vmul.f32 %v6297, %v6259
  %v6324 = vmul.f32 %v6302, %v6260
  %v6325 = vmul.f32 %v6307, %v6261
  %v6326 = vmul.f32 %v6312, %v6262
  %v6327 = vmul.f32 %v6317, %v6263
  %6328 = vrot.lane.b32.xlu0 %v5882, 114
  %v6329 = vpop.permute.xlu0 %6328
  %6330 = vrot.lane.b32.xlu0 %v5883, 114
  %v6331 = vpop.permute.xlu0 %6330
  %6332 = vrot.lane.b32.xlu0 %v5884, 114
  %v6333 = vpop.permute.xlu0 %6332
  %6334 = vrot.lane.b32.xlu0 %v5885, 114
  %v6335 = vpop.permute.xlu0 %6334
  %6336 = vrot.lane.b32.xlu0 %v5886, 114
  %v6337 = vpop.permute.xlu0 %6336
  %6338 = vrot.lane.b32.xlu0 %v5887, 114
  %v6339 = vpop.permute.xlu0 %6338
  %6340 = vrot.lane.b32.xlu0 %v5888, 114
  %v6341 = vpop.permute.xlu0 %6340
  %6342 = vrot.lane.b32.xlu0 %v5889, 114
  %v6343 = vpop.permute.xlu0 %6342
  %6344 = vrot.lane.b32.xlu0 %v5890, 114
  %v6345 = vpop.permute.xlu0 %6344
  %s6346 = scalar_lea.vmem %s14, 5
  %v6347 = vld [vmem:[%s6346] sm:$0x1]
  %v6349 = vperm.slane %v6347, 0
  %v6351 = vmul.f32 %v6329, %v6349
  %v6352 = vmul.f32 %v6331, %v6349
  %v6353 = vmul.f32 %v6333, %v6349
  %v6354 = vmul.f32 %v6335, %v6349
  %v6355 = vmul.f32 %v6337, %v6349
  %v6356 = vmul.f32 %v6339, %v6349
  %v6357 = vmul.f32 %v6341, %v6349
  %v6358 = vmul.f32 %v6343, %v6349
  %v6359 = vmul.f32 %v6345, %v6349
  %s6360 = scalar_lea.vmem %s12, 1296
  %v6361 = vld [vmem:[%s6360] sm:$0xff]
  %v6362 = vld [vmem:[%s6360 + $0x8] sm:$0xff]
  %v6363 = vld [vmem:[%s6360 + $0x10] sm:$0xff]
  %v6364 = vld [vmem:[%s6360 + $0x18] sm:$0xff]
  %v6365 = vld [vmem:[%s6360 + $0x20] sm:$0xff]
  %v6366 = vld [vmem:[%s6360 + $0x28] sm:$0xff]
  %v6367 = vld [vmem:[%s6360 + $0x30] sm:$0xff]
  %v6368 = vld [vmem:[%s6360 + $0x38] sm:$0xff]
  %v6369 = vld [vmem:[%s6360 + $0x40] sm:$0xff]
  %6371 = vset.pattern.permute.xlu0 0
  %6372 = vperm.xlu0 %6371, %v6361
  %v6373 = vpop.permute.xlu0 %6372
  %6376 = vset.pattern.permute.xlu0 0
  %6377 = vperm.xlu0 %6376, %v6362
  %v6378 = vpop.permute.xlu0 %6377
  %6381 = vset.pattern.permute.xlu0 0
  %6382 = vperm.xlu0 %6381, %v6363
  %v6383 = vpop.permute.xlu0 %6382
  %6386 = vset.pattern.permute.xlu0 0
  %6387 = vperm.xlu0 %6386, %v6364
  %v6388 = vpop.permute.xlu0 %6387
  %6391 = vset.pattern.permute.xlu0 0
  %6392 = vperm.xlu0 %6391, %v6365
  %v6393 = vpop.permute.xlu0 %6392
  %6396 = vset.pattern.permute.xlu0 0
  %6397 = vperm.xlu0 %6396, %v6366
  %v6398 = vpop.permute.xlu0 %6397
  %6401 = vset.pattern.permute.xlu0 0
  %6402 = vperm.xlu0 %6401, %v6367
  %v6403 = vpop.permute.xlu0 %6402
  %6406 = vset.pattern.permute.xlu0 0
  %6407 = vperm.xlu0 %6406, %v6368
  %v6408 = vpop.permute.xlu0 %6407
  %6411 = vset.pattern.permute.xlu0 0
  %6412 = vperm.xlu0 %6411, %v6369
  %v6413 = vpop.permute.xlu0 %6412
  %v6415 = vmul.f32 %v6373, %v6351
  %v6416 = vmul.f32 %v6378, %v6352
  %v6417 = vmul.f32 %v6383, %v6353
  %v6418 = vmul.f32 %v6388, %v6354
  %v6419 = vmul.f32 %v6393, %v6355
  %v6420 = vmul.f32 %v6398, %v6356
  %v6421 = vmul.f32 %v6403, %v6357
  %v6422 = vmul.f32 %v6408, %v6358
  %v6423 = vmul.f32 %v6413, %v6359
  %6424 = vrot.lane.b32.xlu0 %v5882, 107
  %v6425 = vpop.permute.xlu0 %6424
  %6426 = vrot.lane.b32.xlu0 %v5883, 107
  %v6427 = vpop.permute.xlu0 %6426
  %6428 = vrot.lane.b32.xlu0 %v5884, 107
  %v6429 = vpop.permute.xlu0 %6428
  %6430 = vrot.lane.b32.xlu0 %v5885, 107
  %v6431 = vpop.permute.xlu0 %6430
  %6432 = vrot.lane.b32.xlu0 %v5886, 107
  %v6433 = vpop.permute.xlu0 %6432
  %6434 = vrot.lane.b32.xlu0 %v5887, 107
  %v6435 = vpop.permute.xlu0 %6434
  %6436 = vrot.lane.b32.xlu0 %v5888, 107
  %v6437 = vpop.permute.xlu0 %6436
  %6438 = vrot.lane.b32.xlu0 %v5889, 107
  %v6439 = vpop.permute.xlu0 %6438
  %6440 = vrot.lane.b32.xlu0 %v5890, 107
  %v6441 = vpop.permute.xlu0 %6440
  %s6442 = scalar_lea.vmem %s14, 6
  %v6443 = vld [vmem:[%s6442] sm:$0x1]
  %v6445 = vperm.slane %v6443, 0
  %v6447 = vmul.f32 %v6425, %v6445
  %v6448 = vmul.f32 %v6427, %v6445
  %v6449 = vmul.f32 %v6429, %v6445
  %v6450 = vmul.f32 %v6431, %v6445
  %v6451 = vmul.f32 %v6433, %v6445
  %v6452 = vmul.f32 %v6435, %v6445
  %v6453 = vmul.f32 %v6437, %v6445
  %v6454 = vmul.f32 %v6439, %v6445
  %v6455 = vmul.f32 %v6441, %v6445
  %s6456 = scalar_lea.vmem %s12, 1368
  %v6457 = vld [vmem:[%s6456] sm:$0xff]
  %v6458 = vld [vmem:[%s6456 + $0x8] sm:$0xff]
  %v6459 = vld [vmem:[%s6456 + $0x10] sm:$0xff]
  %v6460 = vld [vmem:[%s6456 + $0x18] sm:$0xff]
  %v6461 = vld [vmem:[%s6456 + $0x20] sm:$0xff]
  %v6462 = vld [vmem:[%s6456 + $0x28] sm:$0xff]
  %v6463 = vld [vmem:[%s6456 + $0x30] sm:$0xff]
  %v6464 = vld [vmem:[%s6456 + $0x38] sm:$0xff]
  %v6465 = vld [vmem:[%s6456 + $0x40] sm:$0xff]
  %6467 = vset.pattern.permute.xlu0 0
  %6468 = vperm.xlu0 %6467, %v6457
  %v6469 = vpop.permute.xlu0 %6468
  %6472 = vset.pattern.permute.xlu0 0
  %6473 = vperm.xlu0 %6472, %v6458
  %v6474 = vpop.permute.xlu0 %6473
  %6477 = vset.pattern.permute.xlu0 0
  %6478 = vperm.xlu0 %6477, %v6459
  %v6479 = vpop.permute.xlu0 %6478
  %6482 = vset.pattern.permute.xlu0 0
  %6483 = vperm.xlu0 %6482, %v6460
  %v6484 = vpop.permute.xlu0 %6483
  %6487 = vset.pattern.permute.xlu0 0
  %6488 = vperm.xlu0 %6487, %v6461
  %v6489 = vpop.permute.xlu0 %6488
  %6492 = vset.pattern.permute.xlu0 0
  %6493 = vperm.xlu0 %6492, %v6462
  %v6494 = vpop.permute.xlu0 %6493
  %6497 = vset.pattern.permute.xlu0 0
  %6498 = vperm.xlu0 %6497, %v6463
  %v6499 = vpop.permute.xlu0 %6498
  %6502 = vset.pattern.permute.xlu0 0
  %6503 = vperm.xlu0 %6502, %v6464
  %v6504 = vpop.permute.xlu0 %6503
  %6507 = vset.pattern.permute.xlu0 0
  %6508 = vperm.xlu0 %6507, %v6465
  %v6509 = vpop.permute.xlu0 %6508
  %v6511 = vmul.f32 %v6469, %v6447
  %v6512 = vmul.f32 %v6474, %v6448
  %v6513 = vmul.f32 %v6479, %v6449
  %v6514 = vmul.f32 %v6484, %v6450
  %v6515 = vmul.f32 %v6489, %v6451
  %v6516 = vmul.f32 %v6494, %v6452
  %v6517 = vmul.f32 %v6499, %v6453
  %v6518 = vmul.f32 %v6504, %v6454
  %v6519 = vmul.f32 %v6509, %v6455
  %6520 = vrot.lane.b32.xlu0 %v5882, 3
  %v6521 = vpop.permute.xlu0 %6520
  %6522 = vrot.lane.b32.xlu0 %v5883, 3
  %v6523 = vpop.permute.xlu0 %6522
  %6524 = vrot.lane.b32.xlu0 %v5884, 3
  %v6525 = vpop.permute.xlu0 %6524
  %6526 = vrot.lane.b32.xlu0 %v5885, 3
  %v6527 = vpop.permute.xlu0 %6526
  %6528 = vrot.lane.b32.xlu0 %v5886, 3
  %v6529 = vpop.permute.xlu0 %6528
  %6530 = vrot.lane.b32.xlu0 %v5887, 3
  %v6531 = vpop.permute.xlu0 %6530
  %6532 = vrot.lane.b32.xlu0 %v5888, 3
  %v6533 = vpop.permute.xlu0 %6532
  %6534 = vrot.lane.b32.xlu0 %v5889, 3
  %v6535 = vpop.permute.xlu0 %6534
  %6536 = vrot.lane.b32.xlu0 %v5890, 3
  %v6537 = vpop.permute.xlu0 %6536
  %s6538 = scalar_lea.vmem %s14, 7
  %v6539 = vld [vmem:[%s6538] sm:$0x1]
  %v6541 = vperm.slane %v6539, 0
  %v6543 = vmul.f32 %v6521, %v6541
  %v6544 = vmul.f32 %v6523, %v6541
  %v6545 = vmul.f32 %v6525, %v6541
  %v6546 = vmul.f32 %v6527, %v6541
  %v6547 = vmul.f32 %v6529, %v6541
  %v6548 = vmul.f32 %v6531, %v6541
  %v6549 = vmul.f32 %v6533, %v6541
  %v6550 = vmul.f32 %v6535, %v6541
  %v6551 = vmul.f32 %v6537, %v6541
  %s6552 = scalar_lea.vmem %s12, 1440
  %v6553 = vld [vmem:[%s6552] sm:$0xff]
  %v6554 = vld [vmem:[%s6552 + $0x8] sm:$0xff]
  %v6555 = vld [vmem:[%s6552 + $0x10] sm:$0xff]
  %v6556 = vld [vmem:[%s6552 + $0x18] sm:$0xff]
  %v6557 = vld [vmem:[%s6552 + $0x20] sm:$0xff]
  %v6558 = vld [vmem:[%s6552 + $0x28] sm:$0xff]
  %v6559 = vld [vmem:[%s6552 + $0x30] sm:$0xff]
  %v6560 = vld [vmem:[%s6552 + $0x38] sm:$0xff]
  %v6561 = vld [vmem:[%s6552 + $0x40] sm:$0xff]
  %6563 = vset.pattern.permute.xlu0 0
  %6564 = vperm.xlu0 %6563, %v6553
  %v6565 = vpop.permute.xlu0 %6564
  %6568 = vset.pattern.permute.xlu0 0
  %6569 = vperm.xlu0 %6568, %v6554
  %v6570 = vpop.permute.xlu0 %6569
  %6573 = vset.pattern.permute.xlu0 0
  %6574 = vperm.xlu0 %6573, %v6555
  %v6575 = vpop.permute.xlu0 %6574
  %6578 = vset.pattern.permute.xlu0 0
  %6579 = vperm.xlu0 %6578, %v6556
  %v6580 = vpop.permute.xlu0 %6579
  %6583 = vset.pattern.permute.xlu0 0
  %6584 = vperm.xlu0 %6583, %v6557
  %v6585 = vpop.permute.xlu0 %6584
  %6588 = vset.pattern.permute.xlu0 0
  %6589 = vperm.xlu0 %6588, %v6558
  %v6590 = vpop.permute.xlu0 %6589
  %6593 = vset.pattern.permute.xlu0 0
  %6594 = vperm.xlu0 %6593, %v6559
  %v6595 = vpop.permute.xlu0 %6594
  %6598 = vset.pattern.permute.xlu0 0
  %6599 = vperm.xlu0 %6598, %v6560
  %v6600 = vpop.permute.xlu0 %6599
  %6603 = vset.pattern.permute.xlu0 0
  %6604 = vperm.xlu0 %6603, %v6561
  %v6605 = vpop.permute.xlu0 %6604
  %v6607 = vmul.f32 %v6565, %v6543
  %v6608 = vmul.f32 %v6570, %v6544
  %v6609 = vmul.f32 %v6575, %v6545
  %v6610 = vmul.f32 %v6580, %v6546
  %v6611 = vmul.f32 %v6585, %v6547
  %v6612 = vmul.f32 %v6590, %v6548
  %v6613 = vmul.f32 %v6595, %v6549
  %v6614 = vmul.f32 %v6600, %v6550
  %v6615 = vmul.f32 %v6605, %v6551
  %6616 = vrot.lane.b32.xlu0 %v5882, 2
  %v6617 = vpop.permute.xlu0 %6616
  %6618 = vrot.lane.b32.xlu0 %v5883, 2
  %v6619 = vpop.permute.xlu0 %6618
  %6620 = vrot.lane.b32.xlu0 %v5884, 2
  %v6621 = vpop.permute.xlu0 %6620
  %6622 = vrot.lane.b32.xlu0 %v5885, 2
  %v6623 = vpop.permute.xlu0 %6622
  %6624 = vrot.lane.b32.xlu0 %v5886, 2
  %v6625 = vpop.permute.xlu0 %6624
  %6626 = vrot.lane.b32.xlu0 %v5887, 2
  %v6627 = vpop.permute.xlu0 %6626
  %6628 = vrot.lane.b32.xlu0 %v5888, 2
  %v6629 = vpop.permute.xlu0 %6628
  %6630 = vrot.lane.b32.xlu0 %v5889, 2
  %v6631 = vpop.permute.xlu0 %6630
  %6632 = vrot.lane.b32.xlu0 %v5890, 2
  %v6633 = vpop.permute.xlu0 %6632
  %s6634 = scalar_lea.vmem %s14, 8
  %v6635 = vld [vmem:[%s6634] sm:$0x1]
  %v6637 = vperm.slane %v6635, 0
  %v6639 = vmul.f32 %v6617, %v6637
  %v6640 = vmul.f32 %v6619, %v6637
  %v6641 = vmul.f32 %v6621, %v6637
  %v6642 = vmul.f32 %v6623, %v6637
  %v6643 = vmul.f32 %v6625, %v6637
  %v6644 = vmul.f32 %v6627, %v6637
  %v6645 = vmul.f32 %v6629, %v6637
  %v6646 = vmul.f32 %v6631, %v6637
  %v6647 = vmul.f32 %v6633, %v6637
  %s6648 = scalar_lea.vmem %s12, 1512
  %v6649 = vld [vmem:[%s6648] sm:$0xff]
  %v6650 = vld [vmem:[%s6648 + $0x8] sm:$0xff]
  %v6651 = vld [vmem:[%s6648 + $0x10] sm:$0xff]
  %v6652 = vld [vmem:[%s6648 + $0x18] sm:$0xff]
  %v6653 = vld [vmem:[%s6648 + $0x20] sm:$0xff]
  %v6654 = vld [vmem:[%s6648 + $0x28] sm:$0xff]
  %v6655 = vld [vmem:[%s6648 + $0x30] sm:$0xff]
  %v6656 = vld [vmem:[%s6648 + $0x38] sm:$0xff]
  %v6657 = vld [vmem:[%s6648 + $0x40] sm:$0xff]
  %6659 = vset.pattern.permute.xlu0 0
  %6660 = vperm.xlu0 %6659, %v6649
  %v6661 = vpop.permute.xlu0 %6660
  %6664 = vset.pattern.permute.xlu0 0
  %6665 = vperm.xlu0 %6664, %v6650
  %v6666 = vpop.permute.xlu0 %6665
  %6669 = vset.pattern.permute.xlu0 0
  %6670 = vperm.xlu0 %6669, %v6651
  %v6671 = vpop.permute.xlu0 %6670
  %6674 = vset.pattern.permute.xlu0 0
  %6675 = vperm.xlu0 %6674, %v6652
  %v6676 = vpop.permute.xlu0 %6675
  %6679 = vset.pattern.permute.xlu0 0
  %6680 = vperm.xlu0 %6679, %v6653
  %v6681 = vpop.permute.xlu0 %6680
  %6684 = vset.pattern.permute.xlu0 0
  %6685 = vperm.xlu0 %6684, %v6654
  %v6686 = vpop.permute.xlu0 %6685
  %6689 = vset.pattern.permute.xlu0 0
  %6690 = vperm.xlu0 %6689, %v6655
  %v6691 = vpop.permute.xlu0 %6690
  %6694 = vset.pattern.permute.xlu0 0
  %6695 = vperm.xlu0 %6694, %v6656
  %v6696 = vpop.permute.xlu0 %6695
  %6699 = vset.pattern.permute.xlu0 0
  %6700 = vperm.xlu0 %6699, %v6657
  %v6701 = vpop.permute.xlu0 %6700
  %v6703 = vmul.f32 %v6661, %v6639
  %v6704 = vmul.f32 %v6666, %v6640
  %v6705 = vmul.f32 %v6671, %v6641
  %v6706 = vmul.f32 %v6676, %v6642
  %v6707 = vmul.f32 %v6681, %v6643
  %v6708 = vmul.f32 %v6686, %v6644
  %v6709 = vmul.f32 %v6691, %v6645
  %v6710 = vmul.f32 %v6696, %v6646
  %v6711 = vmul.f32 %v6701, %v6647
  %6712 = vrot.lane.b32.xlu0 %v5882, 1
  %v6713 = vpop.permute.xlu0 %6712
  %6714 = vrot.lane.b32.xlu0 %v5883, 1
  %v6715 = vpop.permute.xlu0 %6714
  %6716 = vrot.lane.b32.xlu0 %v5884, 1
  %v6717 = vpop.permute.xlu0 %6716
  %6718 = vrot.lane.b32.xlu0 %v5885, 1
  %v6719 = vpop.permute.xlu0 %6718
  %6720 = vrot.lane.b32.xlu0 %v5886, 1
  %v6721 = vpop.permute.xlu0 %6720
  %6722 = vrot.lane.b32.xlu0 %v5887, 1
  %v6723 = vpop.permute.xlu0 %6722
  %6724 = vrot.lane.b32.xlu0 %v5888, 1
  %v6725 = vpop.permute.xlu0 %6724
  %6726 = vrot.lane.b32.xlu0 %v5889, 1
  %v6727 = vpop.permute.xlu0 %6726
  %6728 = vrot.lane.b32.xlu0 %v5890, 1
  %v6729 = vpop.permute.xlu0 %6728
  %v6730 = vmul.f32 %v6713, %v2306
  %v6731 = vmul.f32 %v6715, %v2306
  %v6732 = vmul.f32 %v6717, %v2306
  %v6733 = vmul.f32 %v6719, %v2306
  %v6734 = vmul.f32 %v6721, %v2306
  %v6735 = vmul.f32 %v6723, %v2306
  %v6736 = vmul.f32 %v6725, %v2306
  %v6737 = vmul.f32 %v6727, %v2306
  %v6738 = vmul.f32 %v6729, %v2306
  %s6739 = scalar_lea.vmem %s12, 1584
  %v6740 = vld [vmem:[%s6739] sm:$0xff]
  %v6741 = vld [vmem:[%s6739 + $0x8] sm:$0xff]
  %v6742 = vld [vmem:[%s6739 + $0x10] sm:$0xff]
  %v6743 = vld [vmem:[%s6739 + $0x18] sm:$0xff]
  %v6744 = vld [vmem:[%s6739 + $0x20] sm:$0xff]
  %v6745 = vld [vmem:[%s6739 + $0x28] sm:$0xff]
  %v6746 = vld [vmem:[%s6739 + $0x30] sm:$0xff]
  %v6747 = vld [vmem:[%s6739 + $0x38] sm:$0xff]
  %v6748 = vld [vmem:[%s6739 + $0x40] sm:$0xff]
  %6750 = vset.pattern.permute.xlu0 0
  %6751 = vperm.xlu0 %6750, %v6740
  %v6752 = vpop.permute.xlu0 %6751
  %6755 = vset.pattern.permute.xlu0 0
  %6756 = vperm.xlu0 %6755, %v6741
  %v6757 = vpop.permute.xlu0 %6756
  %6760 = vset.pattern.permute.xlu0 0
  %6761 = vperm.xlu0 %6760, %v6742
  %v6762 = vpop.permute.xlu0 %6761
  %6765 = vset.pattern.permute.xlu0 0
  %6766 = vperm.xlu0 %6765, %v6743
  %v6767 = vpop.permute.xlu0 %6766
  %6770 = vset.pattern.permute.xlu0 0
  %6771 = vperm.xlu0 %6770, %v6744
  %v6772 = vpop.permute.xlu0 %6771
  %6775 = vset.pattern.permute.xlu0 0
  %6776 = vperm.xlu0 %6775, %v6745
  %v6777 = vpop.permute.xlu0 %6776
  %6780 = vset.pattern.permute.xlu0 0
  %6781 = vperm.xlu0 %6780, %v6746
  %v6782 = vpop.permute.xlu0 %6781
  %6785 = vset.pattern.permute.xlu0 0
  %6786 = vperm.xlu0 %6785, %v6747
  %v6787 = vpop.permute.xlu0 %6786
  %6790 = vset.pattern.permute.xlu0 0
  %6791 = vperm.xlu0 %6790, %v6748
  %v6792 = vpop.permute.xlu0 %6791
  %v6794 = vmul.f32 %v6752, %v6730
  %v6795 = vmul.f32 %v6757, %v6731
  %v6796 = vmul.f32 %v6762, %v6732
  %v6797 = vmul.f32 %v6767, %v6733
  %v6798 = vmul.f32 %v6772, %v6734
  %v6799 = vmul.f32 %v6777, %v6735
  %v6800 = vmul.f32 %v6782, %v6736
  %v6801 = vmul.f32 %v6787, %v6737
  %v6802 = vmul.f32 %v6792, %v6738
  %6803 = vrot.lane.b32.xlu0 %v5882, 127
  %v6804 = vpop.permute.xlu0 %6803
  %6805 = vrot.lane.b32.xlu0 %v5883, 127
  %v6806 = vpop.permute.xlu0 %6805
  %6807 = vrot.lane.b32.xlu0 %v5884, 127
  %v6808 = vpop.permute.xlu0 %6807
  %6809 = vrot.lane.b32.xlu0 %v5885, 127
  %v6810 = vpop.permute.xlu0 %6809
  %6811 = vrot.lane.b32.xlu0 %v5886, 127
  %v6812 = vpop.permute.xlu0 %6811
  %6813 = vrot.lane.b32.xlu0 %v5887, 127
  %v6814 = vpop.permute.xlu0 %6813
  %6815 = vrot.lane.b32.xlu0 %v5888, 127
  %v6816 = vpop.permute.xlu0 %6815
  %6817 = vrot.lane.b32.xlu0 %v5889, 127
  %v6818 = vpop.permute.xlu0 %6817
  %6819 = vrot.lane.b32.xlu0 %v5890, 127
  %v6820 = vpop.permute.xlu0 %6819
  %v6821 = vmul.f32 %v6804, %v2402
  %v6822 = vmul.f32 %v6806, %v2402
  %v6823 = vmul.f32 %v6808, %v2402
  %v6824 = vmul.f32 %v6810, %v2402
  %v6825 = vmul.f32 %v6812, %v2402
  %v6826 = vmul.f32 %v6814, %v2402
  %v6827 = vmul.f32 %v6816, %v2402
  %v6828 = vmul.f32 %v6818, %v2402
  %v6829 = vmul.f32 %v6820, %v2402
  %s6830 = scalar_lea.vmem %s12, 1656
  %v6831 = vld [vmem:[%s6830] sm:$0xff]
  %v6832 = vld [vmem:[%s6830 + $0x8] sm:$0xff]
  %v6833 = vld [vmem:[%s6830 + $0x10] sm:$0xff]
  %v6834 = vld [vmem:[%s6830 + $0x18] sm:$0xff]
  %v6835 = vld [vmem:[%s6830 + $0x20] sm:$0xff]
  %v6836 = vld [vmem:[%s6830 + $0x28] sm:$0xff]
  %v6837 = vld [vmem:[%s6830 + $0x30] sm:$0xff]
  %v6838 = vld [vmem:[%s6830 + $0x38] sm:$0xff]
  %v6839 = vld [vmem:[%s6830 + $0x40] sm:$0xff]
  %6841 = vset.pattern.permute.xlu0 0
  %6842 = vperm.xlu0 %6841, %v6831
  %v6843 = vpop.permute.xlu0 %6842
  %6846 = vset.pattern.permute.xlu0 0
  %6847 = vperm.xlu0 %6846, %v6832
  %v6848 = vpop.permute.xlu0 %6847
  %6851 = vset.pattern.permute.xlu0 0
  %6852 = vperm.xlu0 %6851, %v6833
  %v6853 = vpop.permute.xlu0 %6852
  %6856 = vset.pattern.permute.xlu0 0
  %6857 = vperm.xlu0 %6856, %v6834
  %v6858 = vpop.permute.xlu0 %6857
  %6861 = vset.pattern.permute.xlu0 0
  %6862 = vperm.xlu0 %6861, %v6835
  %v6863 = vpop.permute.xlu0 %6862
  %6866 = vset.pattern.permute.xlu0 0
  %6867 = vperm.xlu0 %6866, %v6836
  %v6868 = vpop.permute.xlu0 %6867
  %6871 = vset.pattern.permute.xlu0 0
  %6872 = vperm.xlu0 %6871, %v6837
  %v6873 = vpop.permute.xlu0 %6872
  %6876 = vset.pattern.permute.xlu0 0
  %6877 = vperm.xlu0 %6876, %v6838
  %v6878 = vpop.permute.xlu0 %6877
  %6881 = vset.pattern.permute.xlu0 0
  %6882 = vperm.xlu0 %6881, %v6839
  %v6883 = vpop.permute.xlu0 %6882
  %v6885 = vmul.f32 %v6843, %v6821
  %v6886 = vmul.f32 %v6848, %v6822
  %v6887 = vmul.f32 %v6853, %v6823
  %v6888 = vmul.f32 %v6858, %v6824
  %v6889 = vmul.f32 %v6863, %v6825
  %v6890 = vmul.f32 %v6868, %v6826
  %v6891 = vmul.f32 %v6873, %v6827
  %v6892 = vmul.f32 %v6878, %v6828
  %v6893 = vmul.f32 %v6883, %v6829
  %6894 = vrot.lane.b32.xlu0 %v5882, 126
  %v6895 = vpop.permute.xlu0 %6894
  %6896 = vrot.lane.b32.xlu0 %v5883, 126
  %v6897 = vpop.permute.xlu0 %6896
  %6898 = vrot.lane.b32.xlu0 %v5884, 126
  %v6899 = vpop.permute.xlu0 %6898
  %6900 = vrot.lane.b32.xlu0 %v5885, 126
  %v6901 = vpop.permute.xlu0 %6900
  %6902 = vrot.lane.b32.xlu0 %v5886, 126
  %v6903 = vpop.permute.xlu0 %6902
  %6904 = vrot.lane.b32.xlu0 %v5887, 126
  %v6905 = vpop.permute.xlu0 %6904
  %6906 = vrot.lane.b32.xlu0 %v5888, 126
  %v6907 = vpop.permute.xlu0 %6906
  %6908 = vrot.lane.b32.xlu0 %v5889, 126
  %v6909 = vpop.permute.xlu0 %6908
  %6910 = vrot.lane.b32.xlu0 %v5890, 126
  %v6911 = vpop.permute.xlu0 %6910
  %s6912 = scalar_lea.vmem %s14, 11
  %v6913 = vld [vmem:[%s6912] sm:$0x1]
  %v6915 = vperm.slane %v6913, 0
  %v6917 = vmul.f32 %v6895, %v6915
  %v6918 = vmul.f32 %v6897, %v6915
  %v6919 = vmul.f32 %v6899, %v6915
  %v6920 = vmul.f32 %v6901, %v6915
  %v6921 = vmul.f32 %v6903, %v6915
  %v6922 = vmul.f32 %v6905, %v6915
  %v6923 = vmul.f32 %v6907, %v6915
  %v6924 = vmul.f32 %v6909, %v6915
  %v6925 = vmul.f32 %v6911, %v6915
  %s6926 = scalar_lea.vmem %s12, 1728
  %v6927 = vld [vmem:[%s6926] sm:$0xff]
  %v6928 = vld [vmem:[%s6926 + $0x8] sm:$0xff]
  %v6929 = vld [vmem:[%s6926 + $0x10] sm:$0xff]
  %v6930 = vld [vmem:[%s6926 + $0x18] sm:$0xff]
  %v6931 = vld [vmem:[%s6926 + $0x20] sm:$0xff]
  %v6932 = vld [vmem:[%s6926 + $0x28] sm:$0xff]
  %v6933 = vld [vmem:[%s6926 + $0x30] sm:$0xff]
  %v6934 = vld [vmem:[%s6926 + $0x38] sm:$0xff]
  %v6935 = vld [vmem:[%s6926 + $0x40] sm:$0xff]
  %6937 = vset.pattern.permute.xlu0 0
  %6938 = vperm.xlu0 %6937, %v6927
  %v6939 = vpop.permute.xlu0 %6938
  %6942 = vset.pattern.permute.xlu0 0
  %6943 = vperm.xlu0 %6942, %v6928
  %v6944 = vpop.permute.xlu0 %6943
  %6947 = vset.pattern.permute.xlu0 0
  %6948 = vperm.xlu0 %6947, %v6929
  %v6949 = vpop.permute.xlu0 %6948
  %6952 = vset.pattern.permute.xlu0 0
  %6953 = vperm.xlu0 %6952, %v6930
  %v6954 = vpop.permute.xlu0 %6953
  %6957 = vset.pattern.permute.xlu0 0
  %6958 = vperm.xlu0 %6957, %v6931
  %v6959 = vpop.permute.xlu0 %6958
  %6962 = vset.pattern.permute.xlu0 0
  %6963 = vperm.xlu0 %6962, %v6932
  %v6964 = vpop.permute.xlu0 %6963
  %6967 = vset.pattern.permute.xlu0 0
  %6968 = vperm.xlu0 %6967, %v6933
  %v6969 = vpop.permute.xlu0 %6968
  %6972 = vset.pattern.permute.xlu0 0
  %6973 = vperm.xlu0 %6972, %v6934
  %v6974 = vpop.permute.xlu0 %6973
  %6977 = vset.pattern.permute.xlu0 0
  %6978 = vperm.xlu0 %6977, %v6935
  %v6979 = vpop.permute.xlu0 %6978
  %v6981 = vmul.f32 %v6939, %v6917
  %v6982 = vmul.f32 %v6944, %v6918
  %v6983 = vmul.f32 %v6949, %v6919
  %v6984 = vmul.f32 %v6954, %v6920
  %v6985 = vmul.f32 %v6959, %v6921
  %v6986 = vmul.f32 %v6964, %v6922
  %v6987 = vmul.f32 %v6969, %v6923
  %v6988 = vmul.f32 %v6974, %v6924
  %v6989 = vmul.f32 %v6979, %v6925
  %6990 = vrot.lane.b32.xlu0 %v5882, 125
  %v6991 = vpop.permute.xlu0 %6990
  %6992 = vrot.lane.b32.xlu0 %v5883, 125
  %v6993 = vpop.permute.xlu0 %6992
  %6994 = vrot.lane.b32.xlu0 %v5884, 125
  %v6995 = vpop.permute.xlu0 %6994
  %6996 = vrot.lane.b32.xlu0 %v5885, 125
  %v6997 = vpop.permute.xlu0 %6996
  %6998 = vrot.lane.b32.xlu0 %v5886, 125
  %v6999 = vpop.permute.xlu0 %6998
  %7000 = vrot.lane.b32.xlu0 %v5887, 125
  %v7001 = vpop.permute.xlu0 %7000
  %7002 = vrot.lane.b32.xlu0 %v5888, 125
  %v7003 = vpop.permute.xlu0 %7002
  %7004 = vrot.lane.b32.xlu0 %v5889, 125
  %v7005 = vpop.permute.xlu0 %7004
  %7006 = vrot.lane.b32.xlu0 %v5890, 125
  %v7007 = vpop.permute.xlu0 %7006
  %s7008 = scalar_lea.vmem %s14, 12
  %v7009 = vld [vmem:[%s7008] sm:$0x1]
  %v7011 = vperm.slane %v7009, 0
  %v7013 = vmul.f32 %v6991, %v7011
  %v7014 = vmul.f32 %v6993, %v7011
  %v7015 = vmul.f32 %v6995, %v7011
  %v7016 = vmul.f32 %v6997, %v7011
  %v7017 = vmul.f32 %v6999, %v7011
  %v7018 = vmul.f32 %v7001, %v7011
  %v7019 = vmul.f32 %v7003, %v7011
  %v7020 = vmul.f32 %v7005, %v7011
  %v7021 = vmul.f32 %v7007, %v7011
  %s7022 = scalar_lea.vmem %s12, 1800
  %v7023 = vld [vmem:[%s7022] sm:$0xff]
  %v7024 = vld [vmem:[%s7022 + $0x8] sm:$0xff]
  %v7025 = vld [vmem:[%s7022 + $0x10] sm:$0xff]
  %v7026 = vld [vmem:[%s7022 + $0x18] sm:$0xff]
  %v7027 = vld [vmem:[%s7022 + $0x20] sm:$0xff]
  %v7028 = vld [vmem:[%s7022 + $0x28] sm:$0xff]
  %v7029 = vld [vmem:[%s7022 + $0x30] sm:$0xff]
  %v7030 = vld [vmem:[%s7022 + $0x38] sm:$0xff]
  %v7031 = vld [vmem:[%s7022 + $0x40] sm:$0xff]
  %7033 = vset.pattern.permute.xlu0 0
  %7034 = vperm.xlu0 %7033, %v7023
  %v7035 = vpop.permute.xlu0 %7034
  %7038 = vset.pattern.permute.xlu0 0
  %7039 = vperm.xlu0 %7038, %v7024
  %v7040 = vpop.permute.xlu0 %7039
  %7043 = vset.pattern.permute.xlu0 0
  %7044 = vperm.xlu0 %7043, %v7025
  %v7045 = vpop.permute.xlu0 %7044
  %7048 = vset.pattern.permute.xlu0 0
  %7049 = vperm.xlu0 %7048, %v7026
  %v7050 = vpop.permute.xlu0 %7049
  %7053 = vset.pattern.permute.xlu0 0
  %7054 = vperm.xlu0 %7053, %v7027
  %v7055 = vpop.permute.xlu0 %7054
  %7058 = vset.pattern.permute.xlu0 0
  %7059 = vperm.xlu0 %7058, %v7028
  %v7060 = vpop.permute.xlu0 %7059
  %7063 = vset.pattern.permute.xlu0 0
  %7064 = vperm.xlu0 %7063, %v7029
  %v7065 = vpop.permute.xlu0 %7064
  %7068 = vset.pattern.permute.xlu0 0
  %7069 = vperm.xlu0 %7068, %v7030
  %v7070 = vpop.permute.xlu0 %7069
  %7073 = vset.pattern.permute.xlu0 0
  %7074 = vperm.xlu0 %7073, %v7031
  %v7075 = vpop.permute.xlu0 %7074
  %v7077 = vmul.f32 %v7035, %v7013
  %v7078 = vmul.f32 %v7040, %v7014
  %v7079 = vmul.f32 %v7045, %v7015
  %v7080 = vmul.f32 %v7050, %v7016
  %v7081 = vmul.f32 %v7055, %v7017
  %v7082 = vmul.f32 %v7060, %v7018
  %v7083 = vmul.f32 %v7065, %v7019
  %v7084 = vmul.f32 %v7070, %v7020
  %v7085 = vmul.f32 %v7075, %v7021
  %v7086 = vadd.f32 %v5977, %v6073
  %v7087 = vadd.f32 %v5978, %v6074
  %v7088 = vadd.f32 %v5979, %v6075
  %v7089 = vadd.f32 %v5980, %v6076
  %v7090 = vadd.f32 %v5981, %v6077
  %v7091 = vadd.f32 %v5982, %v6078
  %v7092 = vadd.f32 %v5983, %v6079
  %v7093 = vadd.f32 %v5984, %v6080
  %v7094 = vadd.f32 %v5985, %v6081
  %v7095 = vadd.f32 %v6164, %v6228
  %v7096 = vadd.f32 %v6165, %v6229
  %v7097 = vadd.f32 %v6166, %v6230
  %v7098 = vadd.f32 %v6167, %v6231
  %v7099 = vadd.f32 %v6168, %v6232
  %v7100 = vadd.f32 %v6169, %v6233
  %v7101 = vadd.f32 %v6170, %v6234
  %v7102 = vadd.f32 %v6171, %v6235
  %v7103 = vadd.f32 %v6172, %v6236
  %v7104 = vadd.f32 %v6319, %v6415
  %v7105 = vadd.f32 %v6320, %v6416
  %v7106 = vadd.f32 %v6321, %v6417
  %v7107 = vadd.f32 %v6322, %v6418
  %v7108 = vadd.f32 %v6323, %v6419
  %v7109 = vadd.f32 %v6324, %v6420
  %v7110 = vadd.f32 %v6325, %v6421
  %v7111 = vadd.f32 %v6326, %v6422
  %v7112 = vadd.f32 %v6327, %v6423
  %v7113 = vadd.f32 %v6511, %v6607
  %v7114 = vadd.f32 %v6512, %v6608
  %v7115 = vadd.f32 %v6513, %v6609
  %v7116 = vadd.f32 %v6514, %v6610
  %v7117 = vadd.f32 %v6515, %v6611
  %v7118 = vadd.f32 %v6516, %v6612
  %v7119 = vadd.f32 %v6517, %v6613
  %v7120 = vadd.f32 %v6518, %v6614
  %v7121 = vadd.f32 %v6519, %v6615
  %v7122 = vadd.f32 %v6703, %v6794
  %v7123 = vadd.f32 %v6704, %v6795
  %v7124 = vadd.f32 %v6705, %v6796
  %v7125 = vadd.f32 %v6706, %v6797
  %v7126 = vadd.f32 %v6707, %v6798
  %v7127 = vadd.f32 %v6708, %v6799
  %v7128 = vadd.f32 %v6709, %v6800
  %v7129 = vadd.f32 %v6710, %v6801
  %v7130 = vadd.f32 %v6711, %v6802
  %v7131 = vadd.f32 %v6885, %v6981
  %v7132 = vadd.f32 %v6886, %v6982
  %v7133 = vadd.f32 %v6887, %v6983
  %v7134 = vadd.f32 %v6888, %v6984
  %v7135 = vadd.f32 %v6889, %v6985
  %v7136 = vadd.f32 %v6890, %v6986
  %v7137 = vadd.f32 %v6891, %v6987
  %v7138 = vadd.f32 %v6892, %v6988
  %v7139 = vadd.f32 %v6893, %v6989
  %v7140 = vadd.f32 %v7086, %v7095
  %v7141 = vadd.f32 %v7087, %v7096
  %v7142 = vadd.f32 %v7088, %v7097
  %v7143 = vadd.f32 %v7089, %v7098
  %v7144 = vadd.f32 %v7090, %v7099
  %v7145 = vadd.f32 %v7091, %v7100
  %v7146 = vadd.f32 %v7092, %v7101
  %v7147 = vadd.f32 %v7093, %v7102
  %v7148 = vadd.f32 %v7094, %v7103
  %v7149 = vadd.f32 %v7104, %v7113
  %v7150 = vadd.f32 %v7105, %v7114
  %v7151 = vadd.f32 %v7106, %v7115
  %v7152 = vadd.f32 %v7107, %v7116
  %v7153 = vadd.f32 %v7108, %v7117
  %v7154 = vadd.f32 %v7109, %v7118
  %v7155 = vadd.f32 %v7110, %v7119
  %v7156 = vadd.f32 %v7111, %v7120
  %v7157 = vadd.f32 %v7112, %v7121
  %v7158 = vadd.f32 %v7122, %v7131
  %v7159 = vadd.f32 %v7123, %v7132
  %v7160 = vadd.f32 %v7124, %v7133
  %v7161 = vadd.f32 %v7125, %v7134
  %v7162 = vadd.f32 %v7126, %v7135
  %v7163 = vadd.f32 %v7127, %v7136
  %v7164 = vadd.f32 %v7128, %v7137
  %v7165 = vadd.f32 %v7129, %v7138
  %v7166 = vadd.f32 %v7130, %v7139
  %v7167 = vadd.f32 %v7140, %v7149
  %v7168 = vadd.f32 %v7141, %v7150
  %v7169 = vadd.f32 %v7142, %v7151
  %v7170 = vadd.f32 %v7143, %v7152
  %v7171 = vadd.f32 %v7144, %v7153
  %v7172 = vadd.f32 %v7145, %v7154
  %v7173 = vadd.f32 %v7146, %v7155
  %v7174 = vadd.f32 %v7147, %v7156
  %v7175 = vadd.f32 %v7148, %v7157
  %v7176 = vadd.f32 %v7158, %v7077
  %v7177 = vadd.f32 %v7159, %v7078
  %v7178 = vadd.f32 %v7160, %v7079
  %v7179 = vadd.f32 %v7161, %v7080
  %v7180 = vadd.f32 %v7162, %v7081
  %v7181 = vadd.f32 %v7163, %v7082
  %v7182 = vadd.f32 %v7164, %v7083
  %v7183 = vadd.f32 %v7165, %v7084
  %v7184 = vadd.f32 %v7166, %v7085
  %v7185 = vadd.f32 %v7167, %v7176
  %v7186 = vadd.f32 %v7168, %v7177
  %v7187 = vadd.f32 %v7169, %v7178
  %v7188 = vadd.f32 %v7170, %v7179
  %v7189 = vadd.f32 %v7171, %v7180
  %v7190 = vadd.f32 %v7172, %v7181
  %v7191 = vadd.f32 %v7173, %v7182
  %v7192 = vadd.f32 %v7174, %v7183
  %v7193 = vadd.f32 %v7175, %v7184
  %s7194 = scalar_lea.vmem %s13, 72
  %v7195 = vld [vmem:[%s7194] sm:$0xff]
  %v7196 = vld [vmem:[%s7194 + $0x8] sm:$0xff]
  %v7197 = vld [vmem:[%s7194 + $0x10] sm:$0xff]
  %v7198 = vld [vmem:[%s7194 + $0x18] sm:$0xff]
  %v7199 = vld [vmem:[%s7194 + $0x20] sm:$0xff]
  %v7200 = vld [vmem:[%s7194 + $0x28] sm:$0xff]
  %v7201 = vld [vmem:[%s7194 + $0x30] sm:$0xff]
  %v7202 = vld [vmem:[%s7194 + $0x38] sm:$0xff]
  %v7203 = vld [vmem:[%s7194 + $0x40] sm:$0xff]
  %7205 = vset.pattern.permute.xlu0 0
  %7206 = vperm.xlu0 %7205, %v7195
  %v7207 = vpop.permute.xlu0 %7206
  %7210 = vset.pattern.permute.xlu0 0
  %7211 = vperm.xlu0 %7210, %v7196
  %v7212 = vpop.permute.xlu0 %7211
  %7215 = vset.pattern.permute.xlu0 0
  %7216 = vperm.xlu0 %7215, %v7197
  %v7217 = vpop.permute.xlu0 %7216
  %7220 = vset.pattern.permute.xlu0 0
  %7221 = vperm.xlu0 %7220, %v7198
  %v7222 = vpop.permute.xlu0 %7221
  %7225 = vset.pattern.permute.xlu0 0
  %7226 = vperm.xlu0 %7225, %v7199
  %v7227 = vpop.permute.xlu0 %7226
  %7230 = vset.pattern.permute.xlu0 0
  %7231 = vperm.xlu0 %7230, %v7200
  %v7232 = vpop.permute.xlu0 %7231
  %7235 = vset.pattern.permute.xlu0 0
  %7236 = vperm.xlu0 %7235, %v7201
  %v7237 = vpop.permute.xlu0 %7236
  %7240 = vset.pattern.permute.xlu0 0
  %7241 = vperm.xlu0 %7240, %v7202
  %v7242 = vpop.permute.xlu0 %7241
  %7245 = vset.pattern.permute.xlu0 0
  %7246 = vperm.xlu0 %7245, %v7203
  %v7247 = vpop.permute.xlu0 %7246
  %v7249 = vadd.f32 %v7185, %v7207
  %v7250 = vadd.f32 %v7186, %v7212
  %v7251 = vadd.f32 %v7187, %v7217
  %v7252 = vadd.f32 %v7188, %v7222
  %v7253 = vadd.f32 %v7189, %v7227
  %v7254 = vadd.f32 %v7190, %v7232
  %v7255 = vadd.f32 %v7191, %v7237
  %v7256 = vadd.f32 %v7192, %v7242
  %v7257 = vadd.f32 %v7193, %v7247
  %s7258 = scalar_lea.vmem %s7, 216
  %v7259 = vld [vmem:[%s7258] sm:$0xf]
  %v7260 = vld [vmem:[%s7258 + $0x4] sm:$0xf]
  %v7261 = vld [vmem:[%s7258 + $0x8] sm:$0xf]
  %v7262 = vld [vmem:[%s7258 + $0xc] sm:$0xf]
  %v7263 = vld [vmem:[%s7258 + $0x10] sm:$0xf]
  %v7264 = vld [vmem:[%s7258 + $0x14] sm:$0xf]
  %v7265 = vld [vmem:[%s7258 + $0x18] sm:$0xf]
  %v7266 = vld [vmem:[%s7258 + $0x1c] sm:$0xf]
  %v7267 = vld [vmem:[%s7258 + $0x20] sm:$0xf]
  %v7268 = vld [vmem:[%s7258 + $0x24] sm:$0xf]
  %v7269 = vld [vmem:[%s7258 + $0x28] sm:$0xf]
  %v7270 = vld [vmem:[%s7258 + $0x2c] sm:$0xf]
  %v7271 = vld [vmem:[%s7258 + $0x30] sm:$0xf]
  %v7272 = vld [vmem:[%s7258 + $0x34] sm:$0xf]
  %v7273 = vld [vmem:[%s7258 + $0x38] sm:$0xf]
  %v7274 = vld [vmem:[%s7258 + $0x3c] sm:$0xf]
  %v7275 = vld [vmem:[%s7258 + $0x40] sm:$0xf]
  %v7276 = vld [vmem:[%s7258 + $0x44] sm:$0xf]
  %s7277 = scalar_lea.vmem %s8, 432
  %v7278 = vld [vmem:[%s7277] sm:$0xff]
  %v7279 = vld [vmem:[%s7277 + $0x8] sm:$0xff]
  %v7280 = vld [vmem:[%s7277 + $0x10] sm:$0xff]
  %v7281 = vld [vmem:[%s7277 + $0x18] sm:$0xff]
  %v7282 = vld [vmem:[%s7277 + $0x20] sm:$0xff]
  %v7283 = vld [vmem:[%s7277 + $0x28] sm:$0xff]
  %v7284 = vld [vmem:[%s7277 + $0x30] sm:$0xff]
  %v7285 = vld [vmem:[%s7277 + $0x38] sm:$0xff]
  %v7286 = vld [vmem:[%s7277 + $0x40] sm:$0xff]
  %v7287 = vld [vmem:[%s7277 + $0x48] sm:$0xff]
  %v7288 = vld [vmem:[%s7277 + $0x50] sm:$0xff]
  %v7289 = vld [vmem:[%s7277 + $0x58] sm:$0xff]
  %v7290 = vld [vmem:[%s7277 + $0x60] sm:$0xff]
  %v7291 = vld [vmem:[%s7277 + $0x68] sm:$0xff]
  %v7292 = vld [vmem:[%s7277 + $0x70] sm:$0xff]
  %v7293 = vld [vmem:[%s7277 + $0x78] sm:$0xff]
  %v7294 = vld [vmem:[%s7277 + $0x80] sm:$0xff]
  %v7295 = vld [vmem:[%s7277 + $0x88] sm:$0xff]
  %v7296 = vpack.c.bf16 %v7250, %v7249
  %v7297 = vpack.c.bf16 %v7252, %v7251
  %v7298 = vpack.c.bf16 %v7254, %v7253
  %v7299 = vpack.c.bf16 %v7256, %v7255
  %v7300 = vpack.c.bf16 %v7257, %v7257
  %v7319 = vunpack.c.l.b16 %v7259
  %v7320 = vunpack.c.l.b16 %v7260
  %v7321 = vunpack.c.l.b16 %v7261
  %v7322 = vunpack.c.l.b16 %v7262
  %v7323 = vunpack.c.l.b16 %v7263
  %v7324 = vunpack.c.l.b16 %v7264
  %v7325 = vunpack.c.l.b16 %v7265
  %v7326 = vunpack.c.l.b16 %v7266
  %v7327 = vunpack.c.l.b16 %v7267
  %v7328 = vunpack.c.l.b16 %v7268
  %v7329 = vunpack.c.l.b16 %v7269
  %v7330 = vunpack.c.l.b16 %v7270
  %v7331 = vunpack.c.l.b16 %v7271
  %v7332 = vunpack.c.l.b16 %v7272
  %v7333 = vunpack.c.l.b16 %v7273
  %v7334 = vunpack.c.l.b16 %v7274
  %v7335 = vunpack.c.l.b16 %v7275
  %v7336 = vunpack.c.l.b16 %v7276
  %v7337 = vpack.c.b16 %v7320, %v7319
  %v7338 = vpack.c.b16 %v7322, %v7321
  %v7339 = vpack.c.b16 %v7324, %v7323
  %v7340 = vpack.c.b16 %v7326, %v7325
  %v7341 = vpack.c.b16 %v7328, %v7327
  %v7342 = vpack.c.b16 %v7330, %v7329
  %v7343 = vpack.c.b16 %v7332, %v7331
  %v7344 = vpack.c.b16 %v7334, %v7333
  %v7345 = vpack.c.b16 %v7336, %v7335
  %v7347 = vsel %vm1125, %v7337, 0
  %v7350 = vsel %vm1125, %v7338, 0
  %v7353 = vsel %vm1125, %v7339, 0
  %v7356 = vsel %vm1125, %v7340, 0
  %v7359 = vsel %vm1125, %v7341, 0
  %v7362 = vsel %vm1125, %v7342, 0
  %v7365 = vsel %vm1125, %v7343, 0
  %v7368 = vsel %vm1125, %v7344, 0
  %v7371 = vsel %vm1125, %v7345, 0
  %v7374 = vsel %vm675, %v7300, 0
  %7376 = vmatpush.bf16.msra.mxu0 0
  %7377 = vmatpush.bf16.msra.mxu0 0
  %7378 = vmatpush.bf16.msra.mxu0 0
  %7379 = vmatpush.bf16.msra.mxu0 %v7374
  %7380 = vmatpush.bf16.msra.mxu0 %v7299
  %7381 = vmatpush.bf16.msra.mxu0 %v7298
  %7382 = vmatpush.bf16.msra.mxu0 %v7297
  %7383 = vmatpush.bf16.msra.mxu0 %v7296
  %7384 = vmatmul.bf16.gmra.mxu0 %v7347
  %v7385 = vpop.f32.mrf.mxu0
  %v7386 = vadd.f32 0.0, %v7385
  %v7387 = vpop.f32.mrf.mxu0
  %v7388 = vadd.f32 0.0, %v7387
  %7389 = vmatmul.bf16.gmra.mxu0 %v7350
  %v7390 = vpop.f32.mrf.mxu0
  %v7391 = vadd.f32 0.0, %v7390
  %v7392 = vpop.f32.mrf.mxu0
  %v7393 = vadd.f32 0.0, %v7392
  %7394 = vmatmul.bf16.gmra.mxu0 %v7353
  %v7395 = vpop.f32.mrf.mxu0
  %v7396 = vadd.f32 0.0, %v7395
  %v7397 = vpop.f32.mrf.mxu0
  %v7398 = vadd.f32 0.0, %v7397
  %7399 = vmatmul.bf16.gmra.mxu0 %v7356
  %v7400 = vpop.f32.mrf.mxu0
  %v7401 = vadd.f32 0.0, %v7400
  %v7402 = vpop.f32.mrf.mxu0
  %v7403 = vadd.f32 0.0, %v7402
  %7404 = vmatmul.bf16.gmra.mxu0 %v7359
  %v7405 = vpop.f32.mrf.mxu0
  %v7406 = vadd.f32 0.0, %v7405
  %v7407 = vpop.f32.mrf.mxu0
  %v7408 = vadd.f32 0.0, %v7407
  %7409 = vmatmul.bf16.gmra.mxu0 %v7362
  %v7410 = vpop.f32.mrf.mxu0
  %v7411 = vadd.f32 0.0, %v7410
  %v7412 = vpop.f32.mrf.mxu0
  %v7413 = vadd.f32 0.0, %v7412
  %7414 = vmatmul.bf16.gmra.mxu0 %v7365
  %v7415 = vpop.f32.mrf.mxu0
  %v7416 = vadd.f32 0.0, %v7415
  %v7417 = vpop.f32.mrf.mxu0
  %v7418 = vadd.f32 0.0, %v7417
  %7419 = vmatmul.bf16.gmra.mxu0 %v7368
  %v7420 = vpop.f32.mrf.mxu0
  %v7421 = vadd.f32 0.0, %v7420
  %v7422 = vpop.f32.mrf.mxu0
  %v7423 = vadd.f32 0.0, %v7422
  %7424 = vmatmul.bf16.gmra.mxu0 %v7371
  %v7425 = vpop.f32.mrf.mxu0
  %v7426 = vadd.f32 0.0, %v7425
  %v7427 = vpop.f32.mrf.mxu0
  %v7428 = vadd.f32 0.0, %v7427
  %7429 = vdwg.mxu0
  %v7430 = vmul.f32 %v7386, %v704
  %v7431 = vmul.f32 %v7388, %v704
  %v7432 = vmul.f32 %v7391, %v704
  %v7433 = vmul.f32 %v7393, %v704
  %v7434 = vmul.f32 %v7396, %v704
  %v7435 = vmul.f32 %v7398, %v704
  %v7436 = vmul.f32 %v7401, %v704
  %v7437 = vmul.f32 %v7403, %v704
  %v7438 = vmul.f32 %v7406, %v704
  %7439 = vadd.xlane.f32.xlu0 %v7430
  %v7440 = vpop.xlane.xlu0 %7439
  %7441 = vadd.xlane.f32.xlu0 %v7431
  %v7442 = vpop.xlane.xlu0 %7441
  %7443 = vadd.xlane.f32.xlu0 %v7432
  %v7444 = vpop.xlane.xlu0 %7443
  %7445 = vadd.xlane.f32.xlu0 %v7433
  %v7446 = vpop.xlane.xlu0 %7445
  %7447 = vadd.xlane.f32.xlu0 %v7434
  %v7448 = vpop.xlane.xlu0 %7447
  %7449 = vadd.xlane.f32.xlu0 %v7435
  %v7450 = vpop.xlane.xlu0 %7449
  %7451 = vadd.xlane.f32.xlu0 %v7436
  %v7452 = vpop.xlane.xlu0 %7451
  %7453 = vadd.xlane.f32.xlu0 %v7437
  %v7454 = vpop.xlane.xlu0 %7453
  %7455 = vadd.xlane.f32.xlu0 %v7438
  %v7456 = vpop.xlane.xlu0 %7455
  %v7457 = vmul.f32 %v7408, %v716
  %v7458 = vmul.f32 %v7411, %v716
  %v7459 = vmul.f32 %v7413, %v716
  %v7460 = vmul.f32 %v7416, %v716
  %v7461 = vmul.f32 %v7418, %v716
  %v7462 = vmul.f32 %v7421, %v716
  %v7463 = vmul.f32 %v7423, %v716
  %v7464 = vmul.f32 %v7426, %v716
  %v7465 = vmul.f32 %v7428, %v716
  %7466 = vadd.xlane.f32.xlu0 %v7457
  %v7467 = vpop.xlane.xlu0 %7466
  %7468 = vadd.xlane.f32.xlu0 %v7458
  %v7469 = vpop.xlane.xlu0 %7468
  %7470 = vadd.xlane.f32.xlu0 %v7459
  %v7471 = vpop.xlane.xlu0 %7470
  %7472 = vadd.xlane.f32.xlu0 %v7460
  %v7473 = vpop.xlane.xlu0 %7472
  %7474 = vadd.xlane.f32.xlu0 %v7461
  %v7475 = vpop.xlane.xlu0 %7474
  %7476 = vadd.xlane.f32.xlu0 %v7462
  %v7477 = vpop.xlane.xlu0 %7476
  %7478 = vadd.xlane.f32.xlu0 %v7463
  %v7479 = vpop.xlane.xlu0 %7478
  %7480 = vadd.xlane.f32.xlu0 %v7464
  %v7481 = vpop.xlane.xlu0 %7480
  %7482 = vadd.xlane.f32.xlu0 %v7465
  %v7483 = vpop.xlane.xlu0 %7482
  %v7484 = vadd.f32 %v7440, %v7278
  %v7485 = vadd.f32 %v7442, %v7279
  %v7486 = vadd.f32 %v7444, %v7280
  %v7487 = vadd.f32 %v7446, %v7281
  %v7488 = vadd.f32 %v7448, %v7282
  %v7489 = vadd.f32 %v7450, %v7283
  %v7490 = vadd.f32 %v7452, %v7284
  %v7491 = vadd.f32 %v7454, %v7285
  %v7492 = vadd.f32 %v7456, %v7286
  %v7493 = vxor.u32 %v7484, 2147483648
  %v7494 = vxor.u32 %v7485, 2147483648
  %v7495 = vxor.u32 %v7486, 2147483648
  %v7496 = vxor.u32 %v7487, 2147483648
  %v7497 = vxor.u32 %v7488, 2147483648
  %v7498 = vxor.u32 %v7489, 2147483648
  %v7499 = vxor.u32 %v7490, 2147483648
  %v7500 = vxor.u32 %v7491, 2147483648
  %v7501 = vxor.u32 %v7492, 2147483648
  %v7502 = vmul.f32 %v7493, 1.442695
  %v7503 = vpow.pop %v7502
  %v7504 = vmul.f32 %v7494, 1.442695
  %v7505 = vpow.pop %v7504
  %v7506 = vmul.f32 %v7495, 1.442695
  %v7507 = vpow.pop %v7506
  %v7508 = vmul.f32 %v7496, 1.442695
  %v7509 = vpow.pop %v7508
  %v7510 = vmul.f32 %v7497, 1.442695
  %v7511 = vpow.pop %v7510
  %v7512 = vmul.f32 %v7498, 1.442695
  %v7513 = vpow.pop %v7512
  %v7514 = vmul.f32 %v7499, 1.442695
  %v7515 = vpow.pop %v7514
  %v7516 = vmul.f32 %v7500, 1.442695
  %v7517 = vpow.pop %v7516
  %v7518 = vmul.f32 %v7501, 1.442695
  %v7519 = vpow.pop %v7518
  %v7520 = vadd.f32 %v7503, 1.0
  %v7521 = vadd.f32 %v7505, 1.0
  %v7522 = vadd.f32 %v7507, 1.0
  %v7523 = vadd.f32 %v7509, 1.0
  %v7524 = vadd.f32 %v7511, 1.0
  %v7525 = vadd.f32 %v7513, 1.0
  %v7526 = vadd.f32 %v7515, 1.0
  %v7527 = vadd.f32 %v7517, 1.0
  %v7528 = vadd.f32 %v7519, 1.0
  %v7529 = vrcp.pop %v7520
  %v7530 = vmul.f32 %v7520, %v7529
  %v7531 = vsub.f32 1.0, %v7530
  %v7532 = vmul.f32 %v7529, %v7531
  %v7533 = vadd.f32 %v7529, %v7532
  %vm7534 = vweird.f32 %v7520
  %vm7535 = vweird.f32 %v7529
  %vm7536 = vmor %vm7534, %vm7535
  %v7537 = vsel %vm7536, %v7529, %v7533
  %v7538 = vand.u32 2147483647, %v7520
  %vm7539 = vcmp.eq.f32.partialorder %v7538, 8.507059e+37
  %v7540 = vand.u32 %v7520, 2147483648
  %v7541 = vor.u32 1.1754944e-38, %v7540
  %v7542 = vsel %vm7539, %v7541, %v7537
  %v7543 = vmul.f32 1.0, %v7542
  %v7544 = vrcp.pop %v7521
  %v7545 = vmul.f32 %v7521, %v7544
  %v7546 = vsub.f32 1.0, %v7545
  %v7547 = vmul.f32 %v7544, %v7546
  %v7548 = vadd.f32 %v7544, %v7547
  %vm7549 = vweird.f32 %v7521
  %vm7550 = vweird.f32 %v7544
  %vm7551 = vmor %vm7549, %vm7550
  %v7552 = vsel %vm7551, %v7544, %v7548
  %v7553 = vand.u32 2147483647, %v7521
  %vm7554 = vcmp.eq.f32.partialorder %v7553, 8.507059e+37
  %v7555 = vand.u32 %v7521, 2147483648
  %v7556 = vor.u32 1.1754944e-38, %v7555
  %v7557 = vsel %vm7554, %v7556, %v7552
  %v7558 = vmul.f32 1.0, %v7557
  %v7559 = vrcp.pop %v7522
  %v7560 = vmul.f32 %v7522, %v7559
  %v7561 = vsub.f32 1.0, %v7560
  %v7562 = vmul.f32 %v7559, %v7561
  %v7563 = vadd.f32 %v7559, %v7562
  %vm7564 = vweird.f32 %v7522
  %vm7565 = vweird.f32 %v7559
  %vm7566 = vmor %vm7564, %vm7565
  %v7567 = vsel %vm7566, %v7559, %v7563
  %v7568 = vand.u32 2147483647, %v7522
  %vm7569 = vcmp.eq.f32.partialorder %v7568, 8.507059e+37
  %v7570 = vand.u32 %v7522, 2147483648
  %v7571 = vor.u32 1.1754944e-38, %v7570
  %v7572 = vsel %vm7569, %v7571, %v7567
  %v7573 = vmul.f32 1.0, %v7572
  %v7574 = vrcp.pop %v7523
  %v7575 = vmul.f32 %v7523, %v7574
  %v7576 = vsub.f32 1.0, %v7575
  %v7577 = vmul.f32 %v7574, %v7576
  %v7578 = vadd.f32 %v7574, %v7577
  %vm7579 = vweird.f32 %v7523
  %vm7580 = vweird.f32 %v7574
  %vm7581 = vmor %vm7579, %vm7580
  %v7582 = vsel %vm7581, %v7574, %v7578
  %v7583 = vand.u32 2147483647, %v7523
  %vm7584 = vcmp.eq.f32.partialorder %v7583, 8.507059e+37
  %v7585 = vand.u32 %v7523, 2147483648
  %v7586 = vor.u32 1.1754944e-38, %v7585
  %v7587 = vsel %vm7584, %v7586, %v7582
  %v7588 = vmul.f32 1.0, %v7587
  %v7589 = vrcp.pop %v7524
  %v7590 = vmul.f32 %v7524, %v7589
  %v7591 = vsub.f32 1.0, %v7590
  %v7592 = vmul.f32 %v7589, %v7591
  %v7593 = vadd.f32 %v7589, %v7592
  %vm7594 = vweird.f32 %v7524
  %vm7595 = vweird.f32 %v7589
  %vm7596 = vmor %vm7594, %vm7595
  %v7597 = vsel %vm7596, %v7589, %v7593
  %v7598 = vand.u32 2147483647, %v7524
  %vm7599 = vcmp.eq.f32.partialorder %v7598, 8.507059e+37
  %v7600 = vand.u32 %v7524, 2147483648
  %v7601 = vor.u32 1.1754944e-38, %v7600
  %v7602 = vsel %vm7599, %v7601, %v7597
  %v7603 = vmul.f32 1.0, %v7602
  %v7604 = vrcp.pop %v7525
  %v7605 = vmul.f32 %v7525, %v7604
  %v7606 = vsub.f32 1.0, %v7605
  %v7607 = vmul.f32 %v7604, %v7606
  %v7608 = vadd.f32 %v7604, %v7607
  %vm7609 = vweird.f32 %v7525
  %vm7610 = vweird.f32 %v7604
  %vm7611 = vmor %vm7609, %vm7610
  %v7612 = vsel %vm7611, %v7604, %v7608
  %v7613 = vand.u32 2147483647, %v7525
  %vm7614 = vcmp.eq.f32.partialorder %v7613, 8.507059e+37
  %v7615 = vand.u32 %v7525, 2147483648
  %v7616 = vor.u32 1.1754944e-38, %v7615
  %v7617 = vsel %vm7614, %v7616, %v7612
  %v7618 = vmul.f32 1.0, %v7617
  %v7619 = vrcp.pop %v7526
  %v7620 = vmul.f32 %v7526, %v7619
  %v7621 = vsub.f32 1.0, %v7620
  %v7622 = vmul.f32 %v7619, %v7621
  %v7623 = vadd.f32 %v7619, %v7622
  %vm7624 = vweird.f32 %v7526
  %vm7625 = vweird.f32 %v7619
  %vm7626 = vmor %vm7624, %vm7625
  %v7627 = vsel %vm7626, %v7619, %v7623
  %v7628 = vand.u32 2147483647, %v7526
  %vm7629 = vcmp.eq.f32.partialorder %v7628, 8.507059e+37
  %v7630 = vand.u32 %v7526, 2147483648
  %v7631 = vor.u32 1.1754944e-38, %v7630
  %v7632 = vsel %vm7629, %v7631, %v7627
  %v7633 = vmul.f32 1.0, %v7632
  %v7634 = vrcp.pop %v7527
  %v7635 = vmul.f32 %v7527, %v7634
  %v7636 = vsub.f32 1.0, %v7635
  %v7637 = vmul.f32 %v7634, %v7636
  %v7638 = vadd.f32 %v7634, %v7637
  %vm7639 = vweird.f32 %v7527
  %vm7640 = vweird.f32 %v7634
  %vm7641 = vmor %vm7639, %vm7640
  %v7642 = vsel %vm7641, %v7634, %v7638
  %v7643 = vand.u32 2147483647, %v7527
  %vm7644 = vcmp.eq.f32.partialorder %v7643, 8.507059e+37
  %v7645 = vand.u32 %v7527, 2147483648
  %v7646 = vor.u32 1.1754944e-38, %v7645
  %v7647 = vsel %vm7644, %v7646, %v7642
  %v7648 = vmul.f32 1.0, %v7647
  %v7649 = vrcp.pop %v7528
  %v7650 = vmul.f32 %v7528, %v7649
  %v7651 = vsub.f32 1.0, %v7650
  %v7652 = vmul.f32 %v7649, %v7651
  %v7653 = vadd.f32 %v7649, %v7652
  %vm7654 = vweird.f32 %v7528
  %vm7655 = vweird.f32 %v7649
  %vm7656 = vmor %vm7654, %vm7655
  %v7657 = vsel %vm7656, %v7649, %v7653
  %v7658 = vand.u32 2147483647, %v7528
  %vm7659 = vcmp.eq.f32.partialorder %v7658, 8.507059e+37
  %v7660 = vand.u32 %v7528, 2147483648
  %v7661 = vor.u32 1.1754944e-38, %v7660
  %v7662 = vsel %vm7659, %v7661, %v7657
  %v7663 = vmul.f32 1.0, %v7662
  %v7664 = vadd.f32 %v7467, %v7287
  %v7665 = vadd.f32 %v7469, %v7288
  %v7666 = vadd.f32 %v7471, %v7289
  %v7667 = vadd.f32 %v7473, %v7290
  %v7668 = vadd.f32 %v7475, %v7291
  %v7669 = vadd.f32 %v7477, %v7292
  %v7670 = vadd.f32 %v7479, %v7293
  %v7671 = vadd.f32 %v7481, %v7294
  %v7672 = vadd.f32 %v7483, %v7295
  %v7673 = vxor.u32 %v7664, 2147483648
  %v7674 = vxor.u32 %v7665, 2147483648
  %v7675 = vxor.u32 %v7666, 2147483648
  %v7676 = vxor.u32 %v7667, 2147483648
  %v7677 = vxor.u32 %v7668, 2147483648
  %v7678 = vxor.u32 %v7669, 2147483648
  %v7679 = vxor.u32 %v7670, 2147483648
  %v7680 = vxor.u32 %v7671, 2147483648
  %v7681 = vxor.u32 %v7672, 2147483648
  %v7682 = vmul.f32 %v7673, 1.442695
  %v7683 = vpow.pop %v7682
  %v7684 = vmul.f32 %v7674, 1.442695
  %v7685 = vpow.pop %v7684
  %v7686 = vmul.f32 %v7675, 1.442695
  %v7687 = vpow.pop %v7686
  %v7688 = vmul.f32 %v7676, 1.442695
  %v7689 = vpow.pop %v7688
  %v7690 = vmul.f32 %v7677, 1.442695
  %v7691 = vpow.pop %v7690
  %v7692 = vmul.f32 %v7678, 1.442695
  %v7693 = vpow.pop %v7692
  %v7694 = vmul.f32 %v7679, 1.442695
  %v7695 = vpow.pop %v7694
  %v7696 = vmul.f32 %v7680, 1.442695
  %v7697 = vpow.pop %v7696
  %v7698 = vmul.f32 %v7681, 1.442695
  %v7699 = vpow.pop %v7698
  %v7700 = vadd.f32 %v7683, 1.0
  %v7701 = vadd.f32 %v7685, 1.0
  %v7702 = vadd.f32 %v7687, 1.0
  %v7703 = vadd.f32 %v7689, 1.0
  %v7704 = vadd.f32 %v7691, 1.0
  %v7705 = vadd.f32 %v7693, 1.0
  %v7706 = vadd.f32 %v7695, 1.0
  %v7707 = vadd.f32 %v7697, 1.0
  %v7708 = vadd.f32 %v7699, 1.0
  %v7709 = vrcp.pop %v7700
  %v7710 = vmul.f32 %v7700, %v7709
  %v7711 = vsub.f32 1.0, %v7710
  %v7712 = vmul.f32 %v7709, %v7711
  %v7713 = vadd.f32 %v7709, %v7712
  %vm7714 = vweird.f32 %v7700
  %vm7715 = vweird.f32 %v7709
  %vm7716 = vmor %vm7714, %vm7715
  %v7717 = vsel %vm7716, %v7709, %v7713
  %v7718 = vand.u32 2147483647, %v7700
  %vm7719 = vcmp.eq.f32.partialorder %v7718, 8.507059e+37
  %v7720 = vand.u32 %v7700, 2147483648
  %v7721 = vor.u32 1.1754944e-38, %v7720
  %v7722 = vsel %vm7719, %v7721, %v7717
  %v7723 = vmul.f32 1.0, %v7722
  %v7724 = vrcp.pop %v7701
  %v7725 = vmul.f32 %v7701, %v7724
  %v7726 = vsub.f32 1.0, %v7725
  %v7727 = vmul.f32 %v7724, %v7726
  %v7728 = vadd.f32 %v7724, %v7727
  %vm7729 = vweird.f32 %v7701
  %vm7730 = vweird.f32 %v7724
  %vm7731 = vmor %vm7729, %vm7730
  %v7732 = vsel %vm7731, %v7724, %v7728
  %v7733 = vand.u32 2147483647, %v7701
  %vm7734 = vcmp.eq.f32.partialorder %v7733, 8.507059e+37
  %v7735 = vand.u32 %v7701, 2147483648
  %v7736 = vor.u32 1.1754944e-38, %v7735
  %v7737 = vsel %vm7734, %v7736, %v7732
  %v7738 = vmul.f32 1.0, %v7737
  %v7739 = vrcp.pop %v7702
  %v7740 = vmul.f32 %v7702, %v7739
  %v7741 = vsub.f32 1.0, %v7740
  %v7742 = vmul.f32 %v7739, %v7741
  %v7743 = vadd.f32 %v7739, %v7742
  %vm7744 = vweird.f32 %v7702
  %vm7745 = vweird.f32 %v7739
  %vm7746 = vmor %vm7744, %vm7745
  %v7747 = vsel %vm7746, %v7739, %v7743
  %v7748 = vand.u32 2147483647, %v7702
  %vm7749 = vcmp.eq.f32.partialorder %v7748, 8.507059e+37
  %v7750 = vand.u32 %v7702, 2147483648
  %v7751 = vor.u32 1.1754944e-38, %v7750
  %v7752 = vsel %vm7749, %v7751, %v7747
  %v7753 = vmul.f32 1.0, %v7752
  %v7754 = vrcp.pop %v7703
  %v7755 = vmul.f32 %v7703, %v7754
  %v7756 = vsub.f32 1.0, %v7755
  %v7757 = vmul.f32 %v7754, %v7756
  %v7758 = vadd.f32 %v7754, %v7757
  %vm7759 = vweird.f32 %v7703
  %vm7760 = vweird.f32 %v7754
  %vm7761 = vmor %vm7759, %vm7760
  %v7762 = vsel %vm7761, %v7754, %v7758
  %v7763 = vand.u32 2147483647, %v7703
  %vm7764 = vcmp.eq.f32.partialorder %v7763, 8.507059e+37
  %v7765 = vand.u32 %v7703, 2147483648
  %v7766 = vor.u32 1.1754944e-38, %v7765
  %v7767 = vsel %vm7764, %v7766, %v7762
  %v7768 = vmul.f32 1.0, %v7767
  %v7769 = vrcp.pop %v7704
  %v7770 = vmul.f32 %v7704, %v7769
  %v7771 = vsub.f32 1.0, %v7770
  %v7772 = vmul.f32 %v7769, %v7771
  %v7773 = vadd.f32 %v7769, %v7772
  %vm7774 = vweird.f32 %v7704
  %vm7775 = vweird.f32 %v7769
  %vm7776 = vmor %vm7774, %vm7775
  %v7777 = vsel %vm7776, %v7769, %v7773
  %v7778 = vand.u32 2147483647, %v7704
  %vm7779 = vcmp.eq.f32.partialorder %v7778, 8.507059e+37
  %v7780 = vand.u32 %v7704, 2147483648
  %v7781 = vor.u32 1.1754944e-38, %v7780
  %v7782 = vsel %vm7779, %v7781, %v7777
  %v7783 = vmul.f32 1.0, %v7782
  %v7784 = vrcp.pop %v7705
  %v7785 = vmul.f32 %v7705, %v7784
  %v7786 = vsub.f32 1.0, %v7785
  %v7787 = vmul.f32 %v7784, %v7786
  %v7788 = vadd.f32 %v7784, %v7787
  %vm7789 = vweird.f32 %v7705
  %vm7790 = vweird.f32 %v7784
  %vm7791 = vmor %vm7789, %vm7790
  %v7792 = vsel %vm7791, %v7784, %v7788
  %v7793 = vand.u32 2147483647, %v7705
  %vm7794 = vcmp.eq.f32.partialorder %v7793, 8.507059e+37
  %v7795 = vand.u32 %v7705, 2147483648
  %v7796 = vor.u32 1.1754944e-38, %v7795
  %v7797 = vsel %vm7794, %v7796, %v7792
  %v7798 = vmul.f32 1.0, %v7797
  %v7799 = vrcp.pop %v7706
  %v7800 = vmul.f32 %v7706, %v7799
  %v7801 = vsub.f32 1.0, %v7800
  %v7802 = vmul.f32 %v7799, %v7801
  %v7803 = vadd.f32 %v7799, %v7802
  %vm7804 = vweird.f32 %v7706
  %vm7805 = vweird.f32 %v7799
  %vm7806 = vmor %vm7804, %vm7805
  %v7807 = vsel %vm7806, %v7799, %v7803
  %v7808 = vand.u32 2147483647, %v7706
  %vm7809 = vcmp.eq.f32.partialorder %v7808, 8.507059e+37
  %v7810 = vand.u32 %v7706, 2147483648
  %v7811 = vor.u32 1.1754944e-38, %v7810
  %v7812 = vsel %vm7809, %v7811, %v7807
  %v7813 = vmul.f32 1.0, %v7812
  %v7814 = vrcp.pop %v7707
  %v7815 = vmul.f32 %v7707, %v7814
  %v7816 = vsub.f32 1.0, %v7815
  %v7817 = vmul.f32 %v7814, %v7816
  %v7818 = vadd.f32 %v7814, %v7817
  %vm7819 = vweird.f32 %v7707
  %vm7820 = vweird.f32 %v7814
  %vm7821 = vmor %vm7819, %vm7820
  %v7822 = vsel %vm7821, %v7814, %v7818
  %v7823 = vand.u32 2147483647, %v7707
  %vm7824 = vcmp.eq.f32.partialorder %v7823, 8.507059e+37
  %v7825 = vand.u32 %v7707, 2147483648
  %v7826 = vor.u32 1.1754944e-38, %v7825
  %v7827 = vsel %vm7824, %v7826, %v7822
  %v7828 = vmul.f32 1.0, %v7827
  %v7829 = vrcp.pop %v7708
  %v7830 = vmul.f32 %v7708, %v7829
  %v7831 = vsub.f32 1.0, %v7830
  %v7832 = vmul.f32 %v7829, %v7831
  %v7833 = vadd.f32 %v7829, %v7832
  %vm7834 = vweird.f32 %v7708
  %vm7835 = vweird.f32 %v7829
  %vm7836 = vmor %vm7834, %vm7835
  %v7837 = vsel %vm7836, %v7829, %v7833
  %v7838 = vand.u32 2147483647, %v7708
  %vm7839 = vcmp.eq.f32.partialorder %v7838, 8.507059e+37
  %v7840 = vand.u32 %v7708, 2147483648
  %v7841 = vor.u32 1.1754944e-38, %v7840
  %v7842 = vsel %vm7839, %v7841, %v7837
  %v7843 = vmul.f32 1.0, %v7842
  %v7844 = vmul.f32 %v7543, %v7723
  %v7845 = vmul.f32 %v7558, %v7738
  %v7846 = vmul.f32 %v7573, %v7753
  %v7847 = vmul.f32 %v7588, %v7768
  %v7848 = vmul.f32 %v7603, %v7783
  %v7849 = vmul.f32 %v7618, %v7798
  %v7850 = vmul.f32 %v7633, %v7813
  %v7851 = vmul.f32 %v7648, %v7828
  %v7852 = vmul.f32 %v7663, %v7843
  %v7853 = vsub.f32 %v7844, 0.2
  %v7854 = vsub.f32 %v7845, 0.2
  %v7855 = vsub.f32 %v7846, 0.2
  %v7856 = vsub.f32 %v7847, 0.2
  %v7857 = vsub.f32 %v7848, 0.2
  %v7858 = vsub.f32 %v7849, 0.2
  %v7859 = vsub.f32 %v7850, 0.2
  %v7860 = vsub.f32 %v7851, 0.2
  %v7861 = vsub.f32 %v7852, 0.2
  %v7862 = vmul.f32 %v7853, 2.0
  %v7863 = vmul.f32 %v7854, 2.0
  %v7864 = vmul.f32 %v7855, 2.0
  %v7865 = vmul.f32 %v7856, 2.0
  %v7866 = vmul.f32 %v7857, 2.0
  %v7867 = vmul.f32 %v7858, 2.0
  %v7868 = vmul.f32 %v7859, 2.0
  %v7869 = vmul.f32 %v7860, 2.0
  %v7870 = vmul.f32 %v7861, 2.0
  %v7871 = vxor.u32 %v7862, 2147483648
  %v7872 = vxor.u32 %v7863, 2147483648
  %v7873 = vxor.u32 %v7864, 2147483648
  %v7874 = vxor.u32 %v7865, 2147483648
  %v7875 = vxor.u32 %v7866, 2147483648
  %v7876 = vxor.u32 %v7867, 2147483648
  %v7877 = vxor.u32 %v7868, 2147483648
  %v7878 = vxor.u32 %v7869, 2147483648
  %v7879 = vxor.u32 %v7870, 2147483648
  %v7880 = vmul.f32 %v7871, 1.442695
  %v7881 = vpow.pop %v7880
  %v7882 = vmul.f32 %v7872, 1.442695
  %v7883 = vpow.pop %v7882
  %v7884 = vmul.f32 %v7873, 1.442695
  %v7885 = vpow.pop %v7884
  %v7886 = vmul.f32 %v7874, 1.442695
  %v7887 = vpow.pop %v7886
  %v7888 = vmul.f32 %v7875, 1.442695
  %v7889 = vpow.pop %v7888
  %v7890 = vmul.f32 %v7876, 1.442695
  %v7891 = vpow.pop %v7890
  %v7892 = vmul.f32 %v7877, 1.442695
  %v7893 = vpow.pop %v7892
  %v7894 = vmul.f32 %v7878, 1.442695
  %v7895 = vpow.pop %v7894
  %v7896 = vmul.f32 %v7879, 1.442695
  %v7897 = vpow.pop %v7896
  %v7898 = vadd.f32 %v7881, 1.0
  %v7899 = vadd.f32 %v7883, 1.0
  %v7900 = vadd.f32 %v7885, 1.0
  %v7901 = vadd.f32 %v7887, 1.0
  %v7902 = vadd.f32 %v7889, 1.0
  %v7903 = vadd.f32 %v7891, 1.0
  %v7904 = vadd.f32 %v7893, 1.0
  %v7905 = vadd.f32 %v7895, 1.0
  %v7906 = vadd.f32 %v7897, 1.0
  %v7907 = vrcp.pop %v7898
  %v7908 = vmul.f32 %v7898, %v7907
  %v7909 = vsub.f32 1.0, %v7908
  %v7910 = vmul.f32 %v7907, %v7909
  %v7911 = vadd.f32 %v7907, %v7910
  %vm7912 = vweird.f32 %v7898
  %vm7913 = vweird.f32 %v7907
  %vm7914 = vmor %vm7912, %vm7913
  %v7915 = vsel %vm7914, %v7907, %v7911
  %v7916 = vand.u32 2147483647, %v7898
  %vm7917 = vcmp.eq.f32.partialorder %v7916, 8.507059e+37
  %v7918 = vand.u32 %v7898, 2147483648
  %v7919 = vor.u32 1.1754944e-38, %v7918
  %v7920 = vsel %vm7917, %v7919, %v7915
  %v7921 = vmul.f32 1.0, %v7920
  %v7922 = vrcp.pop %v7899
  %v7923 = vmul.f32 %v7899, %v7922
  %v7924 = vsub.f32 1.0, %v7923
  %v7925 = vmul.f32 %v7922, %v7924
  %v7926 = vadd.f32 %v7922, %v7925
  %vm7927 = vweird.f32 %v7899
  %vm7928 = vweird.f32 %v7922
  %vm7929 = vmor %vm7927, %vm7928
  %v7930 = vsel %vm7929, %v7922, %v7926
  %v7931 = vand.u32 2147483647, %v7899
  %vm7932 = vcmp.eq.f32.partialorder %v7931, 8.507059e+37
  %v7933 = vand.u32 %v7899, 2147483648
  %v7934 = vor.u32 1.1754944e-38, %v7933
  %v7935 = vsel %vm7932, %v7934, %v7930
  %v7936 = vmul.f32 1.0, %v7935
  %v7937 = vrcp.pop %v7900
  %v7938 = vmul.f32 %v7900, %v7937
  %v7939 = vsub.f32 1.0, %v7938
  %v7940 = vmul.f32 %v7937, %v7939
  %v7941 = vadd.f32 %v7937, %v7940
  %vm7942 = vweird.f32 %v7900
  %vm7943 = vweird.f32 %v7937
  %vm7944 = vmor %vm7942, %vm7943
  %v7945 = vsel %vm7944, %v7937, %v7941
  %v7946 = vand.u32 2147483647, %v7900
  %vm7947 = vcmp.eq.f32.partialorder %v7946, 8.507059e+37
  %v7948 = vand.u32 %v7900, 2147483648
  %v7949 = vor.u32 1.1754944e-38, %v7948
  %v7950 = vsel %vm7947, %v7949, %v7945
  %v7951 = vmul.f32 1.0, %v7950
  %v7952 = vrcp.pop %v7901
  %v7953 = vmul.f32 %v7901, %v7952
  %v7954 = vsub.f32 1.0, %v7953
  %v7955 = vmul.f32 %v7952, %v7954
  %v7956 = vadd.f32 %v7952, %v7955
  %vm7957 = vweird.f32 %v7901
  %vm7958 = vweird.f32 %v7952
  %vm7959 = vmor %vm7957, %vm7958
  %v7960 = vsel %vm7959, %v7952, %v7956
  %v7961 = vand.u32 2147483647, %v7901
  %vm7962 = vcmp.eq.f32.partialorder %v7961, 8.507059e+37
  %v7963 = vand.u32 %v7901, 2147483648
  %v7964 = vor.u32 1.1754944e-38, %v7963
  %v7965 = vsel %vm7962, %v7964, %v7960
  %v7966 = vmul.f32 1.0, %v7965
  %v7967 = vrcp.pop %v7902
  %v7968 = vmul.f32 %v7902, %v7967
  %v7969 = vsub.f32 1.0, %v7968
  %v7970 = vmul.f32 %v7967, %v7969
  %v7971 = vadd.f32 %v7967, %v7970
  %vm7972 = vweird.f32 %v7902
  %vm7973 = vweird.f32 %v7967
  %vm7974 = vmor %vm7972, %vm7973
  %v7975 = vsel %vm7974, %v7967, %v7971
  %v7976 = vand.u32 2147483647, %v7902
  %vm7977 = vcmp.eq.f32.partialorder %v7976, 8.507059e+37
  %v7978 = vand.u32 %v7902, 2147483648
  %v7979 = vor.u32 1.1754944e-38, %v7978
  %v7980 = vsel %vm7977, %v7979, %v7975
  %v7981 = vmul.f32 1.0, %v7980
  %v7982 = vrcp.pop %v7903
  %v7983 = vmul.f32 %v7903, %v7982
  %v7984 = vsub.f32 1.0, %v7983
  %v7985 = vmul.f32 %v7982, %v7984
  %v7986 = vadd.f32 %v7982, %v7985
  %vm7987 = vweird.f32 %v7903
  %vm7988 = vweird.f32 %v7982
  %vm7989 = vmor %vm7987, %vm7988
  %v7990 = vsel %vm7989, %v7982, %v7986
  %v7991 = vand.u32 2147483647, %v7903
  %vm7992 = vcmp.eq.f32.partialorder %v7991, 8.507059e+37
  %v7993 = vand.u32 %v7903, 2147483648
  %v7994 = vor.u32 1.1754944e-38, %v7993
  %v7995 = vsel %vm7992, %v7994, %v7990
  %v7996 = vmul.f32 1.0, %v7995
  %v7997 = vrcp.pop %v7904
  %v7998 = vmul.f32 %v7904, %v7997
  %v7999 = vsub.f32 1.0, %v7998
  %v8000 = vmul.f32 %v7997, %v7999
  %v8001 = vadd.f32 %v7997, %v8000
  %vm8002 = vweird.f32 %v7904
  %vm8003 = vweird.f32 %v7997
  %vm8004 = vmor %vm8002, %vm8003
  %v8005 = vsel %vm8004, %v7997, %v8001
  %v8006 = vand.u32 2147483647, %v7904
  %vm8007 = vcmp.eq.f32.partialorder %v8006, 8.507059e+37
  %v8008 = vand.u32 %v7904, 2147483648
  %v8009 = vor.u32 1.1754944e-38, %v8008
  %v8010 = vsel %vm8007, %v8009, %v8005
  %v8011 = vmul.f32 1.0, %v8010
  %v8012 = vrcp.pop %v7905
  %v8013 = vmul.f32 %v7905, %v8012
  %v8014 = vsub.f32 1.0, %v8013
  %v8015 = vmul.f32 %v8012, %v8014
  %v8016 = vadd.f32 %v8012, %v8015
  %vm8017 = vweird.f32 %v7905
  %vm8018 = vweird.f32 %v8012
  %vm8019 = vmor %vm8017, %vm8018
  %v8020 = vsel %vm8019, %v8012, %v8016
  %v8021 = vand.u32 2147483647, %v7905
  %vm8022 = vcmp.eq.f32.partialorder %v8021, 8.507059e+37
  %v8023 = vand.u32 %v7905, 2147483648
  %v8024 = vor.u32 1.1754944e-38, %v8023
  %v8025 = vsel %vm8022, %v8024, %v8020
  %v8026 = vmul.f32 1.0, %v8025
  %v8027 = vrcp.pop %v7906
  %v8028 = vmul.f32 %v7906, %v8027
  %v8029 = vsub.f32 1.0, %v8028
  %v8030 = vmul.f32 %v8027, %v8029
  %v8031 = vadd.f32 %v8027, %v8030
  %vm8032 = vweird.f32 %v7906
  %vm8033 = vweird.f32 %v8027
  %vm8034 = vmor %vm8032, %vm8033
  %v8035 = vsel %vm8034, %v8027, %v8031
  %v8036 = vand.u32 2147483647, %v7906
  %vm8037 = vcmp.eq.f32.partialorder %v8036, 8.507059e+37
  %v8038 = vand.u32 %v7906, 2147483648
  %v8039 = vor.u32 1.1754944e-38, %v8038
  %v8040 = vsel %vm8037, %v8039, %v8035
  %v8041 = vmul.f32 1.0, %v8040
  %8043 = vset.pattern.permute.xlu0 0
  %8044 = vperm.xlu0 %8043, %v7921
  %v8045 = vpop.permute.xlu0 %8044
  %8048 = vset.pattern.permute.xlu0 0
  %8049 = vperm.xlu0 %8048, %v7936
  %v8050 = vpop.permute.xlu0 %8049
  %8053 = vset.pattern.permute.xlu0 0
  %8054 = vperm.xlu0 %8053, %v7951
  %v8055 = vpop.permute.xlu0 %8054
  %8058 = vset.pattern.permute.xlu0 0
  %8059 = vperm.xlu0 %8058, %v7966
  %v8060 = vpop.permute.xlu0 %8059
  %8063 = vset.pattern.permute.xlu0 0
  %8064 = vperm.xlu0 %8063, %v7981
  %v8065 = vpop.permute.xlu0 %8064
  %8068 = vset.pattern.permute.xlu0 0
  %8069 = vperm.xlu0 %8068, %v7996
  %v8070 = vpop.permute.xlu0 %8069
  %8073 = vset.pattern.permute.xlu0 0
  %8074 = vperm.xlu0 %8073, %v8011
  %v8075 = vpop.permute.xlu0 %8074
  %8078 = vset.pattern.permute.xlu0 0
  %8079 = vperm.xlu0 %8078, %v8026
  %v8080 = vpop.permute.xlu0 %8079
  %8083 = vset.pattern.permute.xlu0 0
  %8084 = vperm.xlu0 %8083, %v8041
  %v8085 = vpop.permute.xlu0 %8084
  %v8087 = vmul.f32 %v7249, %v8045
  %v8088 = vmul.f32 %v7250, %v8050
  %v8089 = vmul.f32 %v7251, %v8055
  %v8090 = vmul.f32 %v7252, %v8060
  %v8091 = vmul.f32 %v7253, %v8065
  %v8092 = vmul.f32 %v7254, %v8070
  %v8093 = vmul.f32 %v7255, %v8075
  %v8094 = vmul.f32 %v7256, %v8080
  %v8095 = vmul.f32 %v7257, %v8085
  %s8096 = scalar_lea.vmem %s15, 12
  %v8097 = vld [vmem:[%s8096] sm:$0xf]
  %v8098 = vld [vmem:[%s8096 + $0x4] sm:$0xf]
  %v8099 = vld [vmem:[%s8096 + $0x8] sm:$0xf]
  %v8100 = vpack.c.bf16 %v8088, %v8087
  %v8101 = vpack.c.bf16 %v8090, %v8089
  %v8102 = vpack.c.bf16 %v8092, %v8091
  %v8103 = vpack.c.bf16 %v8094, %v8093
  %v8104 = vpack.c.bf16 %v8095, %v8095
  %s8105 = scalar_lea.vmem %s16, 24
  %v8106 = vld [vmem:[%s8105] sm:$0xff]
  %v8107 = vld [vmem:[%s8105 + $0x8] sm:$0xff]
  %v8108 = vld [vmem:[%s8105 + $0x10] sm:$0xff]
  %8110 = vset.pattern.permute.xlu0 0
  %8111 = vperm.xlu0 %8110, %v8106
  %v8112 = vpop.permute.xlu0 %8111
  %8115 = vset.pattern.permute.xlu0 0
  %8116 = vperm.xlu0 %8115, %v8107
  %v8117 = vpop.permute.xlu0 %8116
  %8120 = vset.pattern.permute.xlu0 0
  %8121 = vperm.xlu0 %8120, %v8108
  %v8122 = vpop.permute.xlu0 %8121
  %v8127 = vunpack.c.l.b16 %v8097
  %v8128 = vunpack.c.l.b16 %v8098
  %v8129 = vunpack.c.l.b16 %v8099
  %v8130 = vpack.c.b16 %v8128, %v8127
  %v8131 = vpack.c.b16 %v8129, %v8129
  %v8133 = vsel %vm1125, %v8130, 0
  %v8136 = vsel %vm1125, %v8131, 0
  %v8139 = vsel %vm675, %v8104, 0
  %8141 = vmatpush.bf16.msra.mxu0 0
  %8142 = vmatpush.bf16.msra.mxu0 0
  %8143 = vmatpush.bf16.msra.mxu0 0
  %8144 = vmatpush.bf16.msra.mxu0 %v8139
  %8145 = vmatpush.bf16.msra.mxu0 %v8103
  %8146 = vmatpush.bf16.msra.mxu0 %v8102
  %8147 = vmatpush.bf16.msra.mxu0 %v8101
  %8148 = vmatpush.bf16.msra.mxu0 %v8100
  %8149 = vmatmul.bf16.gmra.mxu0 %v8133
  %v8150 = vpop.f32.mrf.mxu0
  %v8151 = vadd.f32 %v8112, %v8150
  %v8152 = vpop.f32.mrf.mxu0
  %v8153 = vadd.f32 %v8117, %v8152
  %8154 = vmatmul.bf16.gmra.mxu0 %v8136
  %v8155 = vpop.f32.mrf.mxu0
  %v8156 = vadd.f32 %v8122, %v8155
  %v8157 = vpop.f32.mrf.mxu0
  %8158 = vdwg.mxu0
  %s8159 = scalar_lea.vmem %s5, 72
  %v8160 = vld [vmem:[%s8159] sm:$0xf]
  %v8161 = vld [vmem:[%s8159 + $0x4] sm:$0xf]
  %v8162 = vld [vmem:[%s8159 + $0x8] sm:$0xf]
  %v8163 = vld [vmem:[%s8159 + $0xc] sm:$0xf]
  %v8164 = vld [vmem:[%s8159 + $0x10] sm:$0xf]
  %v8165 = vld [vmem:[%s8159 + $0x14] sm:$0xf]
  %s8166 = scalar_lea.vmem %s6, 144
  %v8167 = vld [vmem:[%s8166] sm:$0xff]
  %v8168 = vld [vmem:[%s8166 + $0x8] sm:$0xff]
  %v8169 = vld [vmem:[%s8166 + $0x10] sm:$0xff]
  %v8170 = vld [vmem:[%s8166 + $0x18] sm:$0xff]
  %v8171 = vld [vmem:[%s8166 + $0x20] sm:$0xff]
  %v8172 = vld [vmem:[%s8166 + $0x28] sm:$0xff]
  %v8173 = vpack.c.bf16 %v8153, %v8151
  %v8174 = vpack.c.bf16 %v8156, %v8156
  %v8181 = vunpack.c.l.b16 %v8160
  %v8182 = vunpack.c.l.b16 %v8161
  %v8183 = vunpack.c.l.b16 %v8162
  %v8184 = vunpack.c.l.b16 %v8163
  %v8185 = vunpack.c.l.b16 %v8164
  %v8186 = vunpack.c.l.b16 %v8165
  %v8187 = vpack.c.b16 %v8182, %v8181
  %v8188 = vpack.c.b16 %v8184, %v8183
  %v8189 = vpack.c.b16 %v8186, %v8185
  %v8191 = vsel %vm665, %v8187, 0
  %v8194 = vsel %vm665, %v8188, 0
  %v8197 = vsel %vm665, %v8189, 0
  %v8200 = vsel %vm675, %v8174, 0
  %8202 = vmatpush.bf16.msra.mxu0 0
  %8203 = vmatpush.bf16.msra.mxu0 0
  %8204 = vmatpush.bf16.msra.mxu0 0
  %8205 = vmatpush.bf16.msra.mxu0 0
  %8206 = vmatpush.bf16.msra.mxu0 0
  %8207 = vmatpush.bf16.msra.mxu0 0
  %8208 = vmatpush.bf16.msra.mxu0 %v8200
  %8209 = vmatpush.bf16.msra.mxu0 %v8173
  %8210 = vmatmul.bf16.gmra.mxu0 %v8191
  %v8211 = vpop.f32.mrf.mxu0
  %v8212 = vadd.f32 0.0, %v8211
  %v8213 = vpop.f32.mrf.mxu0
  %v8214 = vadd.f32 0.0, %v8213
  %8215 = vmatmul.bf16.gmra.mxu0 %v8194
  %v8216 = vpop.f32.mrf.mxu0
  %v8217 = vadd.f32 0.0, %v8216
  %v8218 = vpop.f32.mrf.mxu0
  %v8219 = vadd.f32 0.0, %v8218
  %8220 = vmatmul.bf16.gmra.mxu0 %v8197
  %v8221 = vpop.f32.mrf.mxu0
  %v8222 = vadd.f32 0.0, %v8221
  %v8223 = vpop.f32.mrf.mxu0
  %v8224 = vadd.f32 0.0, %v8223
  %8225 = vdwg.mxu0
  %v8226 = vmul.f32 %v8212, %v704
  %v8227 = vmul.f32 %v8214, %v704
  %v8228 = vmul.f32 %v8217, %v704
  %8229 = vadd.xlane.f32.xlu0 %v8226
  %v8230 = vpop.xlane.xlu0 %8229
  %8231 = vadd.xlane.f32.xlu0 %v8227
  %v8232 = vpop.xlane.xlu0 %8231
  %8233 = vadd.xlane.f32.xlu0 %v8228
  %v8234 = vpop.xlane.xlu0 %8233
  %v8235 = vmul.f32 %v8219, %v716
  %v8236 = vmul.f32 %v8222, %v716
  %v8237 = vmul.f32 %v8224, %v716
  %8238 = vadd.xlane.f32.xlu0 %v8235
  %v8239 = vpop.xlane.xlu0 %8238
  %8240 = vadd.xlane.f32.xlu0 %v8236
  %v8241 = vpop.xlane.xlu0 %8240
  %8242 = vadd.xlane.f32.xlu0 %v8237
  %v8243 = vpop.xlane.xlu0 %8242
  %v8244 = vadd.f32 %v8230, %v8167
  %v8245 = vadd.f32 %v8232, %v8168
  %v8246 = vadd.f32 %v8234, %v8169
  %v8247 = vxor.u32 %v8244, 2147483648
  %v8248 = vxor.u32 %v8245, 2147483648
  %v8249 = vxor.u32 %v8246, 2147483648
  %v8250 = vmul.f32 %v8247, 1.442695
  %v8251 = vpow.pop %v8250
  %v8252 = vmul.f32 %v8248, 1.442695
  %v8253 = vpow.pop %v8252
  %v8254 = vmul.f32 %v8249, 1.442695
  %v8255 = vpow.pop %v8254
  %v8256 = vadd.f32 %v8251, 1.0
  %v8257 = vadd.f32 %v8253, 1.0
  %v8258 = vadd.f32 %v8255, 1.0
  %v8259 = vrcp.pop %v8256
  %v8260 = vmul.f32 %v8256, %v8259
  %v8261 = vsub.f32 1.0, %v8260
  %v8262 = vmul.f32 %v8259, %v8261
  %v8263 = vadd.f32 %v8259, %v8262
  %vm8264 = vweird.f32 %v8256
  %vm8265 = vweird.f32 %v8259
  %vm8266 = vmor %vm8264, %vm8265
  %v8267 = vsel %vm8266, %v8259, %v8263
  %v8268 = vand.u32 2147483647, %v8256
  %vm8269 = vcmp.eq.f32.partialorder %v8268, 8.507059e+37
  %v8270 = vand.u32 %v8256, 2147483648
  %v8271 = vor.u32 1.1754944e-38, %v8270
  %v8272 = vsel %vm8269, %v8271, %v8267
  %v8273 = vmul.f32 1.0, %v8272
  %v8274 = vrcp.pop %v8257
  %v8275 = vmul.f32 %v8257, %v8274
  %v8276 = vsub.f32 1.0, %v8275
  %v8277 = vmul.f32 %v8274, %v8276
  %v8278 = vadd.f32 %v8274, %v8277
  %vm8279 = vweird.f32 %v8257
  %vm8280 = vweird.f32 %v8274
  %vm8281 = vmor %vm8279, %vm8280
  %v8282 = vsel %vm8281, %v8274, %v8278
  %v8283 = vand.u32 2147483647, %v8257
  %vm8284 = vcmp.eq.f32.partialorder %v8283, 8.507059e+37
  %v8285 = vand.u32 %v8257, 2147483648
  %v8286 = vor.u32 1.1754944e-38, %v8285
  %v8287 = vsel %vm8284, %v8286, %v8282
  %v8288 = vmul.f32 1.0, %v8287
  %v8289 = vrcp.pop %v8258
  %v8290 = vmul.f32 %v8258, %v8289
  %v8291 = vsub.f32 1.0, %v8290
  %v8292 = vmul.f32 %v8289, %v8291
  %v8293 = vadd.f32 %v8289, %v8292
  %vm8294 = vweird.f32 %v8258
  %vm8295 = vweird.f32 %v8289
  %vm8296 = vmor %vm8294, %vm8295
  %v8297 = vsel %vm8296, %v8289, %v8293
  %v8298 = vand.u32 2147483647, %v8258
  %vm8299 = vcmp.eq.f32.partialorder %v8298, 8.507059e+37
  %v8300 = vand.u32 %v8258, 2147483648
  %v8301 = vor.u32 1.1754944e-38, %v8300
  %v8302 = vsel %vm8299, %v8301, %v8297
  %v8303 = vmul.f32 1.0, %v8302
  %v8304 = vadd.f32 %v8239, %v8170
  %v8305 = vadd.f32 %v8241, %v8171
  %v8306 = vadd.f32 %v8243, %v8172
  %v8307 = vxor.u32 %v8304, 2147483648
  %v8308 = vxor.u32 %v8305, 2147483648
  %v8309 = vxor.u32 %v8306, 2147483648
  %v8310 = vmul.f32 %v8307, 1.442695
  %v8311 = vpow.pop %v8310
  %v8312 = vmul.f32 %v8308, 1.442695
  %v8313 = vpow.pop %v8312
  %v8314 = vmul.f32 %v8309, 1.442695
  %v8315 = vpow.pop %v8314
  %v8316 = vadd.f32 %v8311, 1.0
  %v8317 = vadd.f32 %v8313, 1.0
  %v8318 = vadd.f32 %v8315, 1.0
  %v8319 = vrcp.pop %v8316
  %v8320 = vmul.f32 %v8316, %v8319
  %v8321 = vsub.f32 1.0, %v8320
  %v8322 = vmul.f32 %v8319, %v8321
  %v8323 = vadd.f32 %v8319, %v8322
  %vm8324 = vweird.f32 %v8316
  %vm8325 = vweird.f32 %v8319
  %vm8326 = vmor %vm8324, %vm8325
  %v8327 = vsel %vm8326, %v8319, %v8323
  %v8328 = vand.u32 2147483647, %v8316
  %vm8329 = vcmp.eq.f32.partialorder %v8328, 8.507059e+37
  %v8330 = vand.u32 %v8316, 2147483648
  %v8331 = vor.u32 1.1754944e-38, %v8330
  %v8332 = vsel %vm8329, %v8331, %v8327
  %v8333 = vmul.f32 1.0, %v8332
  %v8334 = vrcp.pop %v8317
  %v8335 = vmul.f32 %v8317, %v8334
  %v8336 = vsub.f32 1.0, %v8335
  %v8337 = vmul.f32 %v8334, %v8336
  %v8338 = vadd.f32 %v8334, %v8337
  %vm8339 = vweird.f32 %v8317
  %vm8340 = vweird.f32 %v8334
  %vm8341 = vmor %vm8339, %vm8340
  %v8342 = vsel %vm8341, %v8334, %v8338
  %v8343 = vand.u32 2147483647, %v8317
  %vm8344 = vcmp.eq.f32.partialorder %v8343, 8.507059e+37
  %v8345 = vand.u32 %v8317, 2147483648
  %v8346 = vor.u32 1.1754944e-38, %v8345
  %v8347 = vsel %vm8344, %v8346, %v8342
  %v8348 = vmul.f32 1.0, %v8347
  %v8349 = vrcp.pop %v8318
  %v8350 = vmul.f32 %v8318, %v8349
  %v8351 = vsub.f32 1.0, %v8350
  %v8352 = vmul.f32 %v8349, %v8351
  %v8353 = vadd.f32 %v8349, %v8352
  %vm8354 = vweird.f32 %v8318
  %vm8355 = vweird.f32 %v8349
  %vm8356 = vmor %vm8354, %vm8355
  %v8357 = vsel %vm8356, %v8349, %v8353
  %v8358 = vand.u32 2147483647, %v8318
  %vm8359 = vcmp.eq.f32.partialorder %v8358, 8.507059e+37
  %v8360 = vand.u32 %v8318, 2147483648
  %v8361 = vor.u32 1.1754944e-38, %v8360
  %v8362 = vsel %vm8359, %v8361, %v8357
  %v8363 = vmul.f32 1.0, %v8362
  %v8364 = vmul.f32 %v8273, %v8333
  %v8365 = vmul.f32 %v8288, %v8348
  %v8366 = vmul.f32 %v8303, %v8363
  %v8367 = vsub.f32 %v8364, 0.2
  %v8368 = vsub.f32 %v8365, 0.2
  %v8369 = vsub.f32 %v8366, 0.2
  %v8370 = vmul.f32 %v8367, 2.0
  %v8371 = vmul.f32 %v8368, 2.0
  %v8372 = vmul.f32 %v8369, 2.0
  %v8373 = vxor.u32 %v8370, 2147483648
  %v8374 = vxor.u32 %v8371, 2147483648
  %v8375 = vxor.u32 %v8372, 2147483648
  %v8376 = vmul.f32 %v8373, 1.442695
  %v8377 = vpow.pop %v8376
  %v8378 = vmul.f32 %v8374, 1.442695
  %v8379 = vpow.pop %v8378
  %v8380 = vmul.f32 %v8375, 1.442695
  %v8381 = vpow.pop %v8380
  %v8382 = vadd.f32 %v8377, 1.0
  %v8383 = vadd.f32 %v8379, 1.0
  %v8384 = vadd.f32 %v8381, 1.0
  %v8385 = vrcp.pop %v8382
  %v8386 = vmul.f32 %v8382, %v8385
  %v8387 = vsub.f32 1.0, %v8386
  %v8388 = vmul.f32 %v8385, %v8387
  %v8389 = vadd.f32 %v8385, %v8388
  %vm8390 = vweird.f32 %v8382
  %vm8391 = vweird.f32 %v8385
  %vm8392 = vmor %vm8390, %vm8391
  %v8393 = vsel %vm8392, %v8385, %v8389
  %v8394 = vand.u32 2147483647, %v8382
  %vm8395 = vcmp.eq.f32.partialorder %v8394, 8.507059e+37
  %v8396 = vand.u32 %v8382, 2147483648
  %v8397 = vor.u32 1.1754944e-38, %v8396
  %v8398 = vsel %vm8395, %v8397, %v8393
  %v8399 = vmul.f32 1.0, %v8398
  %v8400 = vrcp.pop %v8383
  %v8401 = vmul.f32 %v8383, %v8400
  %v8402 = vsub.f32 1.0, %v8401
  %v8403 = vmul.f32 %v8400, %v8402
  %v8404 = vadd.f32 %v8400, %v8403
  %vm8405 = vweird.f32 %v8383
  %vm8406 = vweird.f32 %v8400
  %vm8407 = vmor %vm8405, %vm8406
  %v8408 = vsel %vm8407, %v8400, %v8404
  %v8409 = vand.u32 2147483647, %v8383
  %vm8410 = vcmp.eq.f32.partialorder %v8409, 8.507059e+37
  %v8411 = vand.u32 %v8383, 2147483648
  %v8412 = vor.u32 1.1754944e-38, %v8411
  %v8413 = vsel %vm8410, %v8412, %v8408
  %v8414 = vmul.f32 1.0, %v8413
  %v8415 = vrcp.pop %v8384
  %v8416 = vmul.f32 %v8384, %v8415
  %v8417 = vsub.f32 1.0, %v8416
  %v8418 = vmul.f32 %v8415, %v8417
  %v8419 = vadd.f32 %v8415, %v8418
  %vm8420 = vweird.f32 %v8384
  %vm8421 = vweird.f32 %v8415
  %vm8422 = vmor %vm8420, %vm8421
  %v8423 = vsel %vm8422, %v8415, %v8419
  %v8424 = vand.u32 2147483647, %v8384
  %vm8425 = vcmp.eq.f32.partialorder %v8424, 8.507059e+37
  %v8426 = vand.u32 %v8384, 2147483648
  %v8427 = vor.u32 1.1754944e-38, %v8426
  %v8428 = vsel %vm8425, %v8427, %v8423
  %v8429 = vmul.f32 1.0, %v8428
  %8431 = vset.pattern.permute.xlu0 0
  %8432 = vperm.xlu0 %8431, %v8399
  %v8433 = vpop.permute.xlu0 %8432
  %8436 = vset.pattern.permute.xlu0 0
  %8437 = vperm.xlu0 %8436, %v8414
  %v8438 = vpop.permute.xlu0 %8437
  %8441 = vset.pattern.permute.xlu0 0
  %8442 = vperm.xlu0 %8441, %v8429
  %v8443 = vpop.permute.xlu0 %8442
  %v8445 = vmul.f32 %v8151, %v8433
  %v8446 = vmul.f32 %v8153, %v8438
  %v8447 = vmul.f32 %v8156, %v8443
  %s8448 = scalar_lea.vmem %s17, 24
  %v8449 = vld [vmem:[%s8448] sm:$0xff]
  %v8450 = vld [vmem:[%s8448 + $0x8] sm:$0xff]
  %v8451 = vld [vmem:[%s8448 + $0x10] sm:$0xff]
  %8453 = vset.pattern.permute.xlu0 0
  %8454 = vperm.xlu0 %8453, %v8449
  %v8455 = vpop.permute.xlu0 %8454
  %8458 = vset.pattern.permute.xlu0 0
  %8459 = vperm.xlu0 %8458, %v8450
  %v8460 = vpop.permute.xlu0 %8459
  %8463 = vset.pattern.permute.xlu0 0
  %8464 = vperm.xlu0 %8463, %v8451
  %v8465 = vpop.permute.xlu0 %8464
  %v8467 = vmul.f32 %v8445, %v8455
  %v8468 = vmul.f32 %v8446, %v8460
  %v8469 = vmul.f32 %v8447, %v8465
  %8470 = vset.pattern.permute.xlu0 1
  %8471 = vperm.xlu0 %8470, %v8449
  %v8472 = vpop.permute.xlu0 %8471
  %8474 = vset.pattern.permute.xlu0 1
  %8475 = vperm.xlu0 %8474, %v8450
  %v8476 = vpop.permute.xlu0 %8475
  %8478 = vset.pattern.permute.xlu0 1
  %8479 = vperm.xlu0 %8478, %v8451
  %v8480 = vpop.permute.xlu0 %8479
  %v8482 = vadd.f32 %v8467, %v8472
  %v8483 = vadd.f32 %v8468, %v8476
  %v8484 = vadd.f32 %v8469, %v8480
  %v8485 = vadd.f32 %v8482, 3.0
  %v8486 = vadd.f32 %v8483, 3.0
  %v8487 = vadd.f32 %v8484, 3.0
  %v8488 = vmax.f32 %v8485, 0.0
  %v8489 = vmax.f32 %v8486, 0.0
  %v8490 = vmax.f32 %v8487, 0.0
  %v8491 = vmin.f32 %v8488, 6.0
  %v8492 = vmin.f32 %v8489, 6.0
  %v8493 = vmin.f32 %v8490, 6.0
  %v8494 = vmul.f32 %v8482, %v8491
  %v8495 = vmul.f32 %v8483, %v8492
  %v8496 = vmul.f32 %v8484, %v8493
  %v8497 = vmul.f32 %v8494, 0.16666667
  %v8498 = vmul.f32 %v8495, 0.16666667
  %v8499 = vmul.f32 %v8496, 0.16666667
  %v8500 = vadd.f32 %v8497, %v60
  %v8501 = vadd.f32 %v8498, %v61
  %v8502 = vadd.f32 %v8499, %v62
  %8503 = vst [vmem:[%s18] sm:$0xff] %v3815
  %8504 = vst [vmem:[%s18 + $0x8] sm:$0xff] %v3816
  %8505 = vst [vmem:[%s18 + $0x10] sm:$0xff] %v3817
  %8506 = vst [vmem:[%s18 + $0x18] sm:$0xff] %v8500
  %8507 = vst [vmem:[%s18 + $0x20] sm:$0xff] %v8501
  %8508 = vst [vmem:[%s18 + $0x28] sm:$0xff] %v8502
  // Predicated region
  $region74: #{lite_hcnet_forward.1} parent=0 // pred_check
    _
  $region75: #{lite_hcnet_forward.1} parent=0 // pred_check_branch
    %8510 = sbr.rel (0) target = $region77
  $region76: #{lite_hcnet_forward.1} parent=0 // pred_region
    _
  $region77: #{lite_hcnet_forward.1} parent=0 // pred_fallthru
    _
  // Predicated region
  $region78: #{lite_hcnet_forward.1} parent=0 // pred_check
    _
  $region79: #{lite_hcnet_forward.1} parent=0 // pred_check_branch
    %8512 = sbr.rel (0) target = $region81
  $region80: #{lite_hcnet_forward.1} parent=0 // pred_region
    _
  $region81: #{lite_hcnet_forward.1} parent=0 // pred_fallthru
    _

</llo_original>
